<compile_context>
chip_gen: v5e
topology: v5e:2x2
jax: 0.10.0
libtpu: 0.0.40
codegen_flags: <defaults>
</compile_context>

<pallas_src>
import functools
import math

import jax
import jax.numpy as jnp
from jax.experimental import pallas as pl
from jax.experimental.pallas import tpu as pltpu


_SUB = 16   # sublane granularity safe for both f32 (8) and bf16 (16) tiles


def _gelu_exact(x):
    # exact GELU (matches torch.nn.GELU() default, erf-based)
    return 0.5 * x * (1.0 + jax.lax.erf(x * (1.0 / math.sqrt(2.0))))


def _gelu_tanh(x):
    # tanh approximation: routes to the EUP instead of a VALU erf polynomial
    return jax.nn.gelu(x, approximate=True)


def _round_up(n, m):
    return ((n + m - 1) // m) * m


# ------------------------------- kernel --------------------------------------
# Operands:
#   cond_ref : (TB, 1)    f32   batch tile of timesteps
#   x_ref    : (TB, D)    f32   batch tile of inputs (D = in_dim)
#   b_ref    : (7+D, C)   f32   [coeff, phase, te_b1, in_b+te_b2, l1_b, l2_b,
#                                out_b_pad, then the D rows of in_w]
#   wte1_ref : (2C, C)    bf16  fused timestep_embed layer-1 weight
#   w_ref    : (4, C, C)  bf16  [te_w2, l1_w, l2_w, out_w_pad]
#   o_ref    : (TB, C)    bf16  lane-dense output slab (first out_dim cols valid)
def fourier_mlp_kernel(cond_ref, x_ref, b_ref, wte1_ref, w_ref, o_ref,
                       *, approx_gelu=False):
    gelu = _gelu_tanh if approx_gelu else _gelu_exact

    coeff = b_ref[0:1, :]
    phase = b_ref[1:2, :]
    te_b1 = b_ref[2:3, :]
    mid_b = b_ref[3:4, :]          # in_b + te_b2 folded on host
    l1_b = b_ref[4:5, :]
    l2_b = b_ref[5:6, :]
    out_b = b_ref[6:7, :]

    cond = cond_ref[...]                                     # (TB, 1) f32
    arg = cond * coeff + phase                               # (TB, C) f32 (VPU)
    sincos = jnp.concatenate([jnp.sin(arg), jnp.cos(arg)], axis=-1)  # (TB, 2C)

    # timestep_embed layer 1: single K=2C MXU contraction (fused sin/cos)
    h_t = jnp.dot(sincos.astype(jnp.bfloat16), wte1_ref[...],
                  preferred_element_type=jnp.float32) + te_b1
    h_t = gelu(h_t)
    # timestep_embed layer 2 (its bias te_b2 is folded into mid_b)
    h_t = jnp.dot(h_t.astype(jnp.bfloat16), w_ref[0],
                  preferred_element_type=jnp.float32)

    # input_embed: Linear(D -> C) with tiny K done as VPU broadcast-MACs,
    # reading the in_w rows stored at the tail of the bias stack.
    x = x_ref[...]                                           # (TB, D) f32
    in_dim = x_ref.shape[1]
    h_x = x[:, 0:1] * b_ref[7:8, :]
    for k in range(1, in_dim):                               # static, tiny loop
        h_x = h_x + x[:, k:k + 1] * b_ref[7 + k:8 + k, :]

    # layers: GELU, [Linear+GELU] x 2, Linear(C -> out_dim padded to C lanes)
    h = gelu(h_x + h_t + mid_b)
    h = gelu(jnp.dot(h.astype(jnp.bfloat16), w_ref[1],
                     preferred_element_type=jnp.float32) + l1_b)
    h = gelu(jnp.dot(h.astype(jnp.bfloat16), w_ref[2],
                     preferred_element_type=jnp.float32) + l2_b)
    o_ref[...] = (jnp.dot(h.astype(jnp.bfloat16), w_ref[3],
                          preferred_element_type=jnp.float32)
                  + out_b).astype(o_ref.dtype)


# ------------------------------ wrapper --------------------------------------
def pack_params(p):
    """Pack raw FourierMLP params into the kernel's 3 consolidated operands."""
    C = p['l1_w'].shape[0]
    out_dim = p['out_w'].shape[1]
    in_dim = p['in_w'].shape[0]
    assert out_dim <= C, "output head wider than channels not supported"

    out_w_pad = jnp.zeros((C, C), jnp.float32).at[:, :out_dim].set(p['out_w'])
    out_b_pad = jnp.zeros((1, C), jnp.float32).at[:, :out_dim].set(p['out_b'])

    w_te1 = p['te_w1'].astype(jnp.bfloat16)                  # (2C, C) fused
    w_stack = jnp.stack([p['te_w2'], p['l1_w'], p['l2_w'], out_w_pad]
                        ).astype(jnp.bfloat16)               # (4, C, C) bf16

    b_stack = jnp.concatenate([
        p['coeff'], p['phase'], p['te_b1'],
        p['in_b'] + p['te_b2'],      # folded mid-bias
        p['l1_b'], p['l2_b'], out_b_pad,
        p['in_w'].astype(jnp.float32),   # D trailing rows for the VPU MACs
    ], axis=0).astype(jnp.float32)                           # (7+D, C) f32

    return dict(w_te1=w_te1, w_stack=w_stack, b_stack=b_stack,
                in_dim=in_dim, out_dim=out_dim)


def fourier_mlp_forward(cond, inputs, packed, *, block_b=1024,
                        min_grid_steps=2, approx_gelu=False):
    """cond: (B,) or scalar; inputs: (B, in_dim). Returns (B, out_dim) f32."""
    B = inputs.shape[0]
    x = inputs.reshape(B, -1).astype(jnp.float32)
    in_dim = x.shape[1]
    assert in_dim == packed['in_dim']
    cond2d = jnp.broadcast_to(
        jnp.reshape(cond, (-1, 1)).astype(jnp.float32), (B, 1))

    C = packed['b_stack'].shape[1]
    out_dim = packed['out_dim']

    # Big tile to amortize per-step overhead, but keep >= min_grid_steps grid
    # steps so v7x can split the ("parallel",) batch axis across its 2 TCs.
    tb_cap = max(_SUB, _round_up(pl.cdiv(B, max(1, min_grid_steps)), _SUB))
    TB = min(block_b, _round_up(B, _SUB), tb_cap)
    Bp = _round_up(B, TB)
    if Bp != B:
        x = jnp.pad(x, ((0, Bp - B), (0, 0)))
        cond2d = jnp.pad(cond2d, ((0, Bp - B), (0, 0)))

    grid = (Bp // TB,)

    flops = 2 * Bp * C * (6 * C + in_dim)          # 5 matmuls + embed MACs
    transcendentals = 6 * Bp * C                    # sin, cos, 4x GELU
    bytes_accessed = (packed['w_te1'].size * 2 + packed['w_stack'].size * 2
                      + packed['b_stack'].size * 4
                      + Bp * (1 + in_dim) * 4       # cond + x in
                      + Bp * C * 2)                 # bf16 output slab

    kernel = functools.partial(fourier_mlp_kernel, approx_gelu=approx_gelu)

    out = pl.pallas_call(
        kernel,
        out_shape=jax.ShapeDtypeStruct((Bp, C), jnp.bfloat16),
        grid=grid,
        in_specs=[
            pl.BlockSpec((TB, 1), lambda i: (i, 0)),            # cond tile
            pl.BlockSpec((TB, in_dim), lambda i: (i, 0)),       # x tile
            pl.BlockSpec((7 + in_dim, C), lambda i: (0, 0)),    # bias/in_w stack
            pl.BlockSpec((2 * C, C), lambda i: (0, 0)),         # fused te_w1
            pl.BlockSpec((4, C, C), lambda i: (0, 0, 0)),       # weight stack
        ],
        out_specs=pl.BlockSpec((TB, C), lambda i: (i, 0)),      # bf16 lane-dense slab
        compiler_params=pltpu.CompilerParams(
            dimension_semantics=("parallel",)),
        cost_estimate=pl.CostEstimate(flops=flops,
                                      transcendentals=transcendentals,
                                      bytes_accessed=bytes_accessed),
    )(cond2d, x, packed['b_stack'], packed['w_te1'], packed['w_stack'])

    return out[:B, :out_dim].astype(jnp.float32)


# ------------------------- params / reference --------------------------------
def init_params(key, in_dim=2, out_dim=2, channels=128, zero_init=True):
    """Deterministic synthetic parameters (shapes match FourierMLP.__init__,
    num_layers=2). Linear weights are stored as (in, out) = W^T of PyTorch."""
    ks = jax.random.split(key, 8)

    def lin(k, fan_in, fan_out):
        kw, kb = jax.random.split(k)
        bound = 1.0 / math.sqrt(fan_in)
        w = jax.random.uniform(kw, (fan_in, fan_out), jnp.float32, -bound, bound)
        b = jax.random.uniform(kb, (1, fan_out), jnp.float32, -bound, bound)
        return w, b

    coeff = jnp.linspace(0.1, 100.0, channels, dtype=jnp.float32)[None]   # (1, C)
    phase = jax.random.normal(ks[0], (1, channels), jnp.float32)          # (1, C)
    in_w, in_b = lin(ks[1], in_dim, channels)
    te_w1, te_b1 = lin(ks[2], 2 * channels, channels)
    te_w2, te_b2 = lin(ks[3], channels, channels)
    l1_w, l1_b = lin(ks[4], channels, channels)
    l2_w, l2_b = lin(ks[5], channels, channels)
    if zero_init:
        out_w = jnp.zeros((channels, out_dim), jnp.float32)
        out_b = jnp.zeros((1, out_dim), jnp.float32)
    else:
        out_w, out_b = lin(ks[6], channels, out_dim)
    return dict(coeff=coeff, phase=phase,
                in_w=in_w, in_b=in_b,
                te_w1=te_w1, te_b1=te_b1, te_w2=te_w2, te_b2=te_b2,
                l1_w=l1_w, l1_b=l1_b, l2_w=l2_w, l2_b=l2_b,
                out_w=out_w, out_b=out_b)


def fourier_mlp_reference(cond, inputs, params):
    """Plain-JAX f32 reference of the PyTorch forward."""
    B = inputs.shape[0]
    cond = jnp.broadcast_to(jnp.reshape(cond, (-1, 1)).astype(jnp.float32), (B, 1))
    arg = params['coeff'] * cond + params['phase']
    sin_e, cos_e = jnp.sin(arg), jnp.cos(arg)
    emb = jnp.concatenate([sin_e, cos_e], axis=-1)           # b (d w), d=[sin,cos]
    h_t = _gelu_exact(emb @ params['te_w1'] + params['te_b1']) @ params['te_w2'] + params['te_b2']
    h_x = inputs.reshape(B, -1).astype(jnp.float32) @ params['in_w'] + params['in_b']
    h = _gelu_exact(h_x + h_t)
    h = _gelu_exact(h @ params['l1_w'] + params['l1_b'])
    h = _gelu_exact(h @ params['l2_w'] + params['l2_b'])
    return h @ params['out_w'] + params['out_b']


if __name__ == "__main__":
    key = jax.random.PRNGKey(0)
    k_cond, k_x, k_p = jax.random.split(key, 3)

    B, in_dim, out_dim, channels = 256, 2, 2, 128
    cond = jax.random.uniform(k_cond, (B,), jnp.float32)          # timesteps
    inputs = jax.random.normal(k_x, (B, in_dim), jnp.float32)

    # Default module config (zero_init=True): output head is zeroed -> exact 0.
    params_zero = init_params(k_p, in_dim, out_dim, channels, zero_init=True)
    out_zero = jax.block_until_ready(
        fourier_mlp_forward(cond, inputs, pack_params(params_zero)))
    assert out_zero.shape == (B, out_dim)
    assert jnp.allclose(out_zero, 0.0), "zero_init head must produce zeros"

    # zero_init=False to numerically exercise the full path vs. the reference.
    # Tolerance loosened vs. pure-f32: MXU operands are bf16 (f32 accumulation)
    # and the output slab is stored in bf16.
    params = init_params(k_p, in_dim, out_dim, channels, zero_init=False)
    packed = pack_params(params)
    ref = fourier_mlp_reference(cond, inputs, params)

    out = jax.block_until_ready(fourier_mlp_forward(cond, inputs, packed))
    assert out.shape == (B, out_dim)
    max_err = jnp.max(jnp.abs(out - ref))
    assert jnp.allclose(out, ref, rtol=5e-2, atol=5e-2), (
        f"mismatch (exact GELU): max abs err {max_err}")

    # Optional EUP-routed GELU variant (tanh approximation) — perf mode.
    out_a = jax.block_until_ready(
        fourier_mlp_forward(cond, inputs, packed, approx_gelu=True))
    max_err_a = jnp.max(jnp.abs(out_a - ref))
    assert jnp.allclose(out_a, ref, rtol=5e-2, atol=5e-2), (
        f"mismatch (approx GELU): max abs err {max_err_a}")

    print("KERNEL_OK")
</pallas_src>

<mosaic_0001>
module attributes {stable_mosaic.version = 11 : i64} {
  func.func @fourier_mlp_kernel(%arg0: i32, %arg1: memref<128x1xf32, #tpu.memory_space<vmem>>, %arg2: memref<128x2xf32, #tpu.memory_space<vmem>>, %arg3: memref<9x128xf32, #tpu.memory_space<vmem>>, %arg4: memref<256x128xbf16, #tpu.memory_space<vmem>>, %arg5: memref<4x128x128xbf16, #tpu.memory_space<vmem>>, %arg6: memref<128x128xbf16, #tpu.memory_space<vmem>>) attributes {dimension_semantics = [#tpu.dimension_semantics<parallel>], iteration_bounds = array<i64: 2>, scalar_prefetch = 0 : i64, scratch_operands = 0 : i64, tpu.core_type = #tpu.core_type<tc>, window_params = [{transform_indices = @transform_0, window_bounds = array<i64: 128, 1>}, {transform_indices = @transform_1, window_bounds = array<i64: 128, 2>}, {pipeline_mode = #tpu.pipeline_mode<synchronous>, transform_indices = @transform_2, window_bounds = array<i64: 9, 128>}, {pipeline_mode = #tpu.pipeline_mode<synchronous>, transform_indices = @transform_3, window_bounds = array<i64: 256, 128>}, {pipeline_mode = #tpu.pipeline_mode<synchronous>, transform_indices = @transform_4, window_bounds = array<i64: 4, 128, 128>}, {transform_indices = @transform_5, window_bounds = array<i64: 128, 128>}]} {
    %c0 = arith.constant 0 : index
    %c0_0 = arith.constant 0 : index
    %0 = vector.load %arg3[%c0, %c0_0] : memref<9x128xf32, #tpu.memory_space<vmem>>, vector<1x128xf32>
    %c1 = arith.constant 1 : index
    %c0_1 = arith.constant 0 : index
    %1 = vector.load %arg3[%c1, %c0_1] : memref<9x128xf32, #tpu.memory_space<vmem>>, vector<1x128xf32>
    %c2 = arith.constant 2 : index
    %c0_2 = arith.constant 0 : index
    %2 = vector.load %arg3[%c2, %c0_2] : memref<9x128xf32, #tpu.memory_space<vmem>>, vector<1x128xf32>
    %c3 = arith.constant 3 : index
    %c0_3 = arith.constant 0 : index
    %3 = vector.load %arg3[%c3, %c0_3] : memref<9x128xf32, #tpu.memory_space<vmem>>, vector<1x128xf32>
    %c4 = arith.constant 4 : index
    %c0_4 = arith.constant 0 : index
    %4 = vector.load %arg3[%c4, %c0_4] : memref<9x128xf32, #tpu.memory_space<vmem>>, vector<1x128xf32>
    %c5 = arith.constant 5 : index
    %c0_5 = arith.constant 0 : index
    %5 = vector.load %arg3[%c5, %c0_5] : memref<9x128xf32, #tpu.memory_space<vmem>>, vector<1x128xf32>
    %c6 = arith.constant 6 : index
    %c0_6 = arith.constant 0 : index
    %6 = vector.load %arg3[%c6, %c0_6] : memref<9x128xf32, #tpu.memory_space<vmem>>, vector<1x128xf32>
    %c0_7 = arith.constant 0 : index
    %c0_8 = arith.constant 0 : index
    %7 = vector.load %arg1[%c0_7, %c0_8] : memref<128x1xf32, #tpu.memory_space<vmem>>, vector<128x1xf32>
    %8 = vector.broadcast %7 : vector<128x1xf32> to vector<128x128xf32>
    %9 = vector.broadcast %0 : vector<1x128xf32> to vector<128x128xf32>
    %10 = arith.mulf %8, %9 : vector<128x128xf32>
    %11 = vector.broadcast %1 : vector<1x128xf32> to vector<128x128xf32>
    %12 = arith.addf %10, %11 : vector<128x128xf32>
    %13 = math.sin %12 : vector<128x128xf32>
    %14 = math.cos %12 : vector<128x128xf32>
    %15 = tpu.concatenate %13, %14 in 1 : vector<128x128xf32>, vector<128x128xf32> -> vector<128x256xf32>
    %16 = arith.truncf %15 : vector<128x256xf32> to vector<128x256xbf16>
    %c0_9 = arith.constant 0 : index
    %c0_10 = arith.constant 0 : index
    %17 = vector.load %arg4[%c0_9, %c0_10] : memref<256x128xbf16, #tpu.memory_space<vmem>>, vector<256x128xbf16>
    %cst = arith.constant dense<0.000000e+00> : vector<128x128xf32>
    %18 = tpu.matmul %16, %17, %cst {dimension_numbers = #tpu.dot_dimension_numbers<[1], [0], [0], [1], [0, 0, 1, 1], [], []>} : vector<128x256xbf16>, vector<256x128xbf16>, vector<128x128xf32> -> vector<128x128xf32>
    %19 = vector.broadcast %2 : vector<1x128xf32> to vector<128x128xf32>
    %20 = arith.addf %18, %19 : vector<128x128xf32>
    %cst_11 = arith.constant 5.000000e-01 : f32
    %21 = vector.broadcast %cst_11 : f32 to vector<128x128xf32>
    %22 = arith.mulf %21, %20 : vector<128x128xf32>
    %cst_12 = arith.constant 0.707106769 : f32
    %23 = vector.broadcast %cst_12 : f32 to vector<128x128xf32>
    %24 = arith.mulf %20, %23 : vector<128x128xf32>
    %25 = math.erf %24 : vector<128x128xf32>
    %cst_13 = arith.constant 1.000000e+00 : f32
    %26 = vector.broadcast %cst_13 : f32 to vector<128x128xf32>
    %27 = arith.addf %26, %25 : vector<128x128xf32>
    %28 = arith.mulf %22, %27 : vector<128x128xf32>
    %29 = arith.truncf %28 : vector<128x128xf32> to vector<128x128xbf16>
    %c0_14 = arith.constant 0 : index
    %c0_15 = arith.constant 0 : index
    %c0_16 = arith.constant 0 : index
    %30 = vector.load %arg5[%c0_14, %c0_15, %c0_16] : memref<4x128x128xbf16, #tpu.memory_space<vmem>>, vector<1x128x128xbf16>
    %31 = vector.shape_cast %30 : vector<1x128x128xbf16> to vector<128x128xbf16>
    %cst_17 = arith.constant dense<0.000000e+00> : vector<128x128xf32>
    %32 = tpu.matmul %29, %31, %cst_17 {dimension_numbers = #tpu.dot_dimension_numbers<[1], [0], [0], [1], [0, 0, 1, 1], [], []>} : vector<128x128xbf16>, vector<128x128xbf16>, vector<128x128xf32> -> vector<128x128xf32>
    %c0_18 = arith.constant 0 : index
    %c0_19 = arith.constant 0 : index
    %33 = vector.load %arg2[%c0_18, %c0_19] : memref<128x2xf32, #tpu.memory_space<vmem>>, vector<128x2xf32>
    %34 = vector.extract_strided_slice %33 {offsets = [0, 0], sizes = [128, 1], strides = [1, 1]} : vector<128x2xf32> to vector<128x1xf32>
    %c7 = arith.constant 7 : index
    %c0_20 = arith.constant 0 : index
    %35 = vector.load %arg3[%c7, %c0_20] : memref<9x128xf32, #tpu.memory_space<vmem>>, vector<1x128xf32>
    %36 = vector.broadcast %34 : vector<128x1xf32> to vector<128x128xf32>
    %37 = vector.broadcast %35 : vector<1x128xf32> to vector<128x128xf32>
    %38 = arith.mulf %36, %37 : vector<128x128xf32>
    %39 = vector.extract_strided_slice %33 {offsets = [0, 1], sizes = [128, 1], strides = [1, 1]} : vector<128x2xf32> to vector<128x1xf32>
    %c8 = arith.constant 8 : index
    %c0_21 = arith.constant 0 : index
    %40 = vector.load %arg3[%c8, %c0_21] : memref<9x128xf32, #tpu.memory_space<vmem>>, vector<1x128xf32>
    %41 = vector.broadcast %39 : vector<128x1xf32> to vector<128x128xf32>
    %42 = vector.broadcast %40 : vector<1x128xf32> to vector<128x128xf32>
    %43 = arith.mulf %41, %42 : vector<128x128xf32>
    %44 = arith.addf %38, %43 : vector<128x128xf32>
    %45 = arith.addf %44, %32 : vector<128x128xf32>
    %46 = vector.broadcast %3 : vector<1x128xf32> to vector<128x128xf32>
    %47 = arith.addf %45, %46 : vector<128x128xf32>
    %cst_22 = arith.constant 5.000000e-01 : f32
    %48 = vector.broadcast %cst_22 : f32 to vector<128x128xf32>
    %49 = arith.mulf %48, %47 : vector<128x128xf32>
    %cst_23 = arith.constant 0.707106769 : f32
    %50 = vector.broadcast %cst_23 : f32 to vector<128x128xf32>
    %51 = arith.mulf %47, %50 : vector<128x128xf32>
    %52 = math.erf %51 : vector<128x128xf32>
    %cst_24 = arith.constant 1.000000e+00 : f32
    %53 = vector.broadcast %cst_24 : f32 to vector<128x128xf32>
    %54 = arith.addf %53, %52 : vector<128x128xf32>
    %55 = arith.mulf %49, %54 : vector<128x128xf32>
    %56 = arith.truncf %55 : vector<128x128xf32> to vector<128x128xbf16>
    %c1_25 = arith.constant 1 : index
    %c0_26 = arith.constant 0 : index
    %c0_27 = arith.constant 0 : index
    %57 = vector.load %arg5[%c1_25, %c0_26, %c0_27] : memref<4x128x128xbf16, #tpu.memory_space<vmem>>, vector<1x128x128xbf16>
    %58 = vector.shape_cast %57 : vector<1x128x128xbf16> to vector<128x128xbf16>
    %cst_28 = arith.constant dense<0.000000e+00> : vector<128x128xf32>
    %59 = tpu.matmul %56, %58, %cst_28 {dimension_numbers = #tpu.dot_dimension_numbers<[1], [0], [0], [1], [0, 0, 1, 1], [], []>} : vector<128x128xbf16>, vector<128x128xbf16>, vector<128x128xf32> -> vector<128x128xf32>
    %60 = vector.broadcast %4 : vector<1x128xf32> to vector<128x128xf32>
    %61 = arith.addf %59, %60 : vector<128x128xf32>
    %cst_29 = arith.constant 5.000000e-01 : f32
    %62 = vector.broadcast %cst_29 : f32 to vector<128x128xf32>
    %63 = arith.mulf %62, %61 : vector<128x128xf32>
    %cst_30 = arith.constant 0.707106769 : f32
    %64 = vector.broadcast %cst_30 : f32 to vector<128x128xf32>
    %65 = arith.mulf %61, %64 : vector<128x128xf32>
    %66 = math.erf %65 : vector<128x128xf32>
    %cst_31 = arith.constant 1.000000e+00 : f32
    %67 = vector.broadcast %cst_31 : f32 to vector<128x128xf32>
    %68 = arith.addf %67, %66 : vector<128x128xf32>
    %69 = arith.mulf %63, %68 : vector<128x128xf32>
    %70 = arith.truncf %69 : vector<128x128xf32> to vector<128x128xbf16>
    %c2_32 = arith.constant 2 : index
    %c0_33 = arith.constant 0 : index
    %c0_34 = arith.constant 0 : index
    %71 = vector.load %arg5[%c2_32, %c0_33, %c0_34] : memref<4x128x128xbf16, #tpu.memory_space<vmem>>, vector<1x128x128xbf16>
    %72 = vector.shape_cast %71 : vector<1x128x128xbf16> to vector<128x128xbf16>
    %cst_35 = arith.constant dense<0.000000e+00> : vector<128x128xf32>
    %73 = tpu.matmul %70, %72, %cst_35 {dimension_numbers = #tpu.dot_dimension_numbers<[1], [0], [0], [1], [0, 0, 1, 1], [], []>} : vector<128x128xbf16>, vector<128x128xbf16>, vector<128x128xf32> -> vector<128x128xf32>
    %74 = vector.broadcast %5 : vector<1x128xf32> to vector<128x128xf32>
    %75 = arith.addf %73, %74 : vector<128x128xf32>
    %cst_36 = arith.constant 5.000000e-01 : f32
    %76 = vector.broadcast %cst_36 : f32 to vector<128x128xf32>
    %77 = arith.mulf %76, %75 : vector<128x128xf32>
    %cst_37 = arith.constant 0.707106769 : f32
    %78 = vector.broadcast %cst_37 : f32 to vector<128x128xf32>
    %79 = arith.mulf %75, %78 : vector<128x128xf32>
    %80 = math.erf %79 : vector<128x128xf32>
    %cst_38 = arith.constant 1.000000e+00 : f32
    %81 = vector.broadcast %cst_38 : f32 to vector<128x128xf32>
    %82 = arith.addf %81, %80 : vector<128x128xf32>
    %83 = arith.mulf %77, %82 : vector<128x128xf32>
    %84 = arith.truncf %83 : vector<128x128xf32> to vector<128x128xbf16>
    %c3_39 = arith.constant 3 : index
    %c0_40 = arith.constant 0 : index
    %c0_41 = arith.constant 0 : index
    %85 = vector.load %arg5[%c3_39, %c0_40, %c0_41] : memref<4x128x128xbf16, #tpu.memory_space<vmem>>, vector<1x128x128xbf16>
    %86 = vector.shape_cast %85 : vector<1x128x128xbf16> to vector<128x128xbf16>
    %cst_42 = arith.constant dense<0.000000e+00> : vector<128x128xf32>
    %87 = tpu.matmul %84, %86, %cst_42 {dimension_numbers = #tpu.dot_dimension_numbers<[1], [0], [0], [1], [0, 0, 1, 1], [], []>} : vector<128x128xbf16>, vector<128x128xbf16>, vector<128x128xf32> -> vector<128x128xf32>
    %88 = vector.broadcast %6 : vector<1x128xf32> to vector<128x128xf32>
    %89 = arith.addf %87, %88 : vector<128x128xf32>
    %90 = arith.truncf %89 : vector<128x128xf32> to vector<128x128xbf16>
    %c0_43 = arith.constant 0 : index
    %c0_44 = arith.constant 0 : index
    %91 = vector.load %arg6[%c0_43, %c0_44] : memref<128x128xbf16, #tpu.memory_space<vmem>>, vector<128x128xbf16>
    tpu.vector_store %arg6[%c0_43, %c0_44], %90 {strides = array<i32>} : memref<128x128xbf16, #tpu.memory_space<vmem>>, vector<128x128xbf16>,
    return
  }
  func.func @transform_0(%arg0: i32) -> (i32, i32) {
    %c0_i32 = arith.constant 0 : i32
    %c0_i32_0 = arith.constant 0 : i32
    return %arg0, %c0_i32 : i32, i32
  }
  func.func @transform_1(%arg0: i32) -> (i32, i32) {
    %c0_i32 = arith.constant 0 : i32
    %c0_i32_0 = arith.constant 0 : i32
    return %arg0, %c0_i32 : i32, i32
  }
  func.func @transform_2(%arg0: i32) -> (i32, i32) {
    %c0_i32 = arith.constant 0 : i32
    %c0_i32_0 = arith.constant 0 : i32
    %c0_i32_1 = arith.constant 0 : i32
    return %c0_i32, %c0_i32_0 : i32, i32
  }
  func.func @transform_3(%arg0: i32) -> (i32, i32) {
    %c0_i32 = arith.constant 0 : i32
    %c0_i32_0 = arith.constant 0 : i32
    %c0_i32_1 = arith.constant 0 : i32
    return %c0_i32, %c0_i32_0 : i32, i32
  }
  func.func @transform_4(%arg0: i32) -> (i32, i32, i32) {
    %c0_i32 = arith.constant 0 : i32
    %c0_i32_0 = arith.constant 0 : i32
    %c0_i32_1 = arith.constant 0 : i32
    %c0_i32_2 = arith.constant 0 : i32
    return %c0_i32, %c0_i32_0, %c0_i32_1 : i32, i32, i32
  }
  func.func @transform_5(%arg0: i32) -> (i32, i32) {
    %c0_i32 = arith.constant 0 : i32
    %c0_i32_0 = arith.constant 0 : i32
    return %arg0, %c0_i32 : i32, i32
  }
}

</mosaic_0001>

<llo_original>
// kernel: tpu_custom_call.1
$region0: #{tpu_custom_call.1}
  #allocation0 [shape = 'u32[]', space=smem, size = 0x4, offset = 0x4, fixed_abs, tag = 'smem constant byte address 0x4 - core index']
  #allocation1 [shape = 'u32[72,128]{1,0:T(1,128)}', space=vmem, size = 0x9000, scoped, tag = 'internal scratch']
  %s0 = inlined_call_operand.vmem [shape: f32[256,1], index: 0, kind: input, shape index: {}]
  %s1 = inlined_call_operand.vmem [shape: f32[256,2], index: 1, kind: input, shape index: {}]
  %s2 = inlined_call_operand.vmem [shape: f32[9,128], index: 2, kind: input, shape index: {}]
  %s3 = inlined_call_operand.vmem [shape: bf16[256,128], index: 3, kind: input, shape index: {}]
  %s4 = inlined_call_operand.vmem [shape: bf16[4,128,128], index: 4, kind: input, shape index: {}]
  %s5 = inlined_call_operand.hbm [shape: bf16[256,128], index: 5, kind: output, shape index: {}]
  %s6 = sld [smem:[#allocation0]]
  $region53: #{tpu_custom_call.1} parent=0
    _
  %s8 = ssub.s32 1, %s6
  %s9 = scalar_select 0, %s8, %s6
  $region1: #{tpu_custom_call.1} parent=0
    #allocation2 [shape = 'u8[65536]{0}', space=vmem, size = 0x10000, scoped, tag = 'output window, operand 0']
    #allocation3 [shape = 's32[2]{0}', space=sflag, size = 0x8, scoped, tag = 'scoped memory for tpu_custom_call.1']
    %10 = vsyncpa [#allocation3], 0
    %s11 = scalar_lea.sflag [#allocation3], 1
    %12 = vsyncpa %s11, 0
    loop: start=0, step=1, limit=4
    $region2: #{tpu_custom_call.1} parent=1 // loop_pre_header
      _
    $region3: #{tpu_custom_call.1} parent=1 // loop_header
      %s14 = sphi 0, %s18
      %p15 = scmp.ge.s32.totalorder %s14, 4
      %s24 = sphi 0, %s26
      %s27 = sphi 0, %s24
      %s28 = sphi 0, %s27
      %s44 = sphi 0, %s28
      %s50 = sphi 0, %s52
      %s53 = sphi 0, %s50
      %s54 = sphi 0, %s53
      %s70 = sphi 0, %s54
      %s74 = sphi 0, %s74
      %s76 = sphi 0, %s74
      %s77 = sphi 0, %s76
      %s91 = sphi 0, %s77
      %s95 = sphi 0, %s95
      %s97 = sphi 0, %s95
      %s98 = sphi 0, %s97
      %s112 = sphi 0, %s98
      %s116 = sphi 0, %s116
      %s118 = sphi 0, %s116
      %s119 = sphi 0, %s118
      %s133 = sphi 0, %s119
      %s139 = sphi 0, %s141
      %s142 = sphi 0, %s139
      %s143 = sphi 0, %s142
      %s159 = sphi 0, %s143
    $region4: #{tpu_custom_call.1} parent=1 // loop_header_branch
      %17 = sbr.rel (%p15) target = $region8
    $region5: #{tpu_custom_call.1} parent=1 // loop_body
      %s19 = ssub.s32 %s14, 1
      %s20 = ssub.s32 %s14, 2
      %s21 = sadd.s32 %s14, 1
      %s22 = ssub.s32 %s14, %s21
      %p23 = scmp.eq.s32.totalorder %s22, 0
      %s25 = sadd.s32 %s24, 1
      %s26 = scalar_select %p23, %s24, %s25
      %p29 = pneg %p23
      %p30 = scmp.eq.s32.totalorder %s14, 1
      %p31 = por %p29, %p30
      %p32 = scmp.ne.s32.totalorder %s24, %s27
      %p33 = scmp.eq.s32.totalorder %s14, 0
      %p34 = por %p32, %p33
      %p35 = scmp.ne.s32.totalorder %s24, %s27
      %p36 = scmp.eq.s32.totalorder %s19, 1
      %p37 = por %p35, %p36
      %p38 = scmp.ne.s32.totalorder %s27, %s28
      %p39 = scmp.eq.s32.totalorder %s19, 0
      %p40 = por %p38, %p39
      %p41 = scmp.ne.s32.totalorder %s27, %s28
      %p42 = scmp.eq.s32.totalorder %s20, 1
      %p43 = por %p41, %p42
      %p45 = scmp.ne.s32.totalorder %s28, %s44
      %p46 = scmp.eq.s32.totalorder %s20, 0
      %p47 = por %p45, %p46
      %s48 = ssub.s32 %s14, %s21
      %p49 = scmp.eq.s32.totalorder %s48, 0
      %s51 = sadd.s32 %s50, 1
      %s52 = scalar_select %p49, %s50, %s51
      %p55 = pneg %p49
      %p56 = scmp.eq.s32.totalorder %s14, 1
      %p57 = por %p55, %p56
      %p58 = scmp.ne.s32.totalorder %s50, %s53
      %p59 = scmp.eq.s32.totalorder %s14, 0
      %p60 = por %p58, %p59
      %p61 = scmp.ne.s32.totalorder %s50, %s53
      %p62 = scmp.eq.s32.totalorder %s19, 1
      %p63 = por %p61, %p62
      %p64 = scmp.ne.s32.totalorder %s53, %s54
      %p65 = scmp.eq.s32.totalorder %s19, 0
      %p66 = por %p64, %p65
      %p67 = scmp.ne.s32.totalorder %s53, %s54
      %p68 = scmp.eq.s32.totalorder %s20, 1
      %p69 = por %p67, %p68
      %p71 = scmp.ne.s32.totalorder %s54, %s70
      %p72 = scmp.eq.s32.totalorder %s20, 0
      %p73 = por %p71, %p72
      %s75 = sadd.s32 %s74, 1
      %p78 = scmp.eq.s32.totalorder %s14, 1
      %p79 = scmp.ne.s32.totalorder %s74, %s76
      %p80 = scmp.eq.s32.totalorder %s14, 0
      %p81 = por %p79, %p80
      %p82 = scmp.ne.s32.totalorder %s74, %s76
      %p83 = scmp.eq.s32.totalorder %s19, 1
      %p84 = por %p82, %p83
      %p85 = scmp.ne.s32.totalorder %s76, %s77
      %p86 = scmp.eq.s32.totalorder %s19, 0
      %p87 = por %p85, %p86
      %p88 = scmp.ne.s32.totalorder %s76, %s77
      %p89 = scmp.eq.s32.totalorder %s20, 1
      %p90 = por %p88, %p89
      %p92 = scmp.ne.s32.totalorder %s77, %s91
      %p93 = scmp.eq.s32.totalorder %s20, 0
      %p94 = por %p92, %p93
      %s96 = sadd.s32 %s95, 1
      %p99 = scmp.eq.s32.totalorder %s14, 1
      %p100 = scmp.ne.s32.totalorder %s95, %s97
      %p101 = scmp.eq.s32.totalorder %s14, 0
      %p102 = por %p100, %p101
      %p103 = scmp.ne.s32.totalorder %s95, %s97
      %p104 = scmp.eq.s32.totalorder %s19, 1
      %p105 = por %p103, %p104
      %p106 = scmp.ne.s32.totalorder %s97, %s98
      %p107 = scmp.eq.s32.totalorder %s19, 0
      %p108 = por %p106, %p107
      %p109 = scmp.ne.s32.totalorder %s97, %s98
      %p110 = scmp.eq.s32.totalorder %s20, 1
      %p111 = por %p109, %p110
      %p113 = scmp.ne.s32.totalorder %s98, %s112
      %p114 = scmp.eq.s32.totalorder %s20, 0
      %p115 = por %p113, %p114
      %s117 = sadd.s32 %s116, 1
      %p120 = scmp.eq.s32.totalorder %s14, 1
      %p121 = scmp.ne.s32.totalorder %s116, %s118
      %p122 = scmp.eq.s32.totalorder %s14, 0
      %p123 = por %p121, %p122
      %p124 = scmp.ne.s32.totalorder %s116, %s118
      %p125 = scmp.eq.s32.totalorder %s19, 1
      %p126 = por %p124, %p125
      %p127 = scmp.ne.s32.totalorder %s118, %s119
      %p128 = scmp.eq.s32.totalorder %s19, 0
      %p129 = por %p127, %p128
      %p130 = scmp.ne.s32.totalorder %s118, %s119
      %p131 = scmp.eq.s32.totalorder %s20, 1
      %p132 = por %p130, %p131
      %p134 = scmp.ne.s32.totalorder %s119, %s133
      %p135 = scmp.eq.s32.totalorder %s20, 0
      %p136 = por %p134, %p135
      %s137 = ssub.s32 %s14, %s21
      %p138 = scmp.eq.s32.totalorder %s137, 0
      %s140 = sadd.s32 %s139, 1
      %s141 = scalar_select %p138, %s139, %s140
      %p144 = pneg %p138
      %p145 = scmp.eq.s32.totalorder %s14, 1
      %p146 = por %p144, %p145
      %p147 = scmp.ne.s32.totalorder %s139, %s142
      %p148 = scmp.eq.s32.totalorder %s14, 0
      %p149 = por %p147, %p148
      %p150 = scmp.ne.s32.totalorder %s139, %s142
      %p151 = scmp.eq.s32.totalorder %s19, 1
      %p152 = por %p150, %p151
      %p153 = scmp.ne.s32.totalorder %s142, %s143
      %p154 = scmp.eq.s32.totalorder %s19, 0
      %p155 = por %p153, %p154
      %p156 = scmp.ne.s32.totalorder %s142, %s143
      %p157 = scmp.eq.s32.totalorder %s20, 1
      %p158 = por %p156, %p157
      %p160 = scmp.ne.s32.totalorder %s143, %s159
      %p161 = scmp.eq.s32.totalorder %s20, 0
      %p162 = por %p160, %p161
      %p163 = scmp.le.s32.totalorder 1, %s14
      %p164 = scmp.lt.s32.totalorder %s14, 3
      %p165 = pnand %p163, %p164
      %p166 = pneg %p165
      // Predicated region
      $region9: #{tpu_custom_call.1} parent=5 // pred_check
        _
      $region10: #{tpu_custom_call.1} parent=5 // pred_check_branch
        %168 = sbr.rel (%p165) target = $region12
      $region11: #{tpu_custom_call.1} parent=5 // pred_region
        %s169 = ssub.s32 %s14, 1
        // Predicated region
        $region13: #{tpu_custom_call.1} parent=11 // pred_check
          %p170 = pneg %p87
        $region14: #{tpu_custom_call.1} parent=11 // pred_check_branch
          %172 = sbr.rel (%p170) target = $region16
        $region15: #{tpu_custom_call.1} parent=11 // pred_region
          _
        $region16: #{tpu_custom_call.1} parent=11 // pred_fallthru
          _
        // Predicated region
        $region17: #{tpu_custom_call.1} parent=11 // pred_check
          %p173 = pneg %p108
        $region18: #{tpu_custom_call.1} parent=11 // pred_check_branch
          %175 = sbr.rel (%p173) target = $region20
        $region19: #{tpu_custom_call.1} parent=11 // pred_region
          _
        $region20: #{tpu_custom_call.1} parent=11 // pred_fallthru
          _
        // Predicated region
        $region21: #{tpu_custom_call.1} parent=11 // pred_check
          %p176 = pneg %p129
        $region22: #{tpu_custom_call.1} parent=11 // pred_check_branch
          %178 = sbr.rel (%p176) target = $region24
        $region23: #{tpu_custom_call.1} parent=11 // pred_region
          _
        $region24: #{tpu_custom_call.1} parent=11 // pred_fallthru
          _
      $region12: #{tpu_custom_call.1} parent=5 // pred_fallthru
        _
      %p179 = scmp.lt.s32.totalorder %s14, 2
      // Predicated region
      $region25: #{tpu_custom_call.1} parent=5 // pred_check
        %p180 = pneg %p179
      $region26: #{tpu_custom_call.1} parent=5 // pred_check_branch
        %182 = sbr.rel (%p180) target = $region28
      $region27: #{tpu_custom_call.1} parent=5 // pred_region
        // Predicated region
        $region29: #{tpu_custom_call.1} parent=27 // pred_check
          %p183 = pneg %p34
        $region30: #{tpu_custom_call.1} parent=27 // pred_check_branch
          %185 = sbr.rel (%p183) target = $region32
        $region31: #{tpu_custom_call.1} parent=27 // pred_region
          %s186 = smul.u32 16, %s14
          %p187 = scmp.lt.s32.totalorder %s186, 31
          %s188 = scalar_select %p187, %s186, 31
          %s189 = smul.addr %s188, 8
          %s190 = scalar_lea.vmem %s0, %s189
          %s191 = smul.u32 16, %s14
        $region32: #{tpu_custom_call.1} parent=27 // pred_fallthru
          _
        // Predicated region
        $region33: #{tpu_custom_call.1} parent=27 // pred_check
          %p192 = pneg %p60
        $region34: #{tpu_custom_call.1} parent=27 // pred_check_branch
          %194 = sbr.rel (%p192) target = $region36
        $region35: #{tpu_custom_call.1} parent=27 // pred_region
          %s195 = smul.u32 16, %s14
          %p196 = scmp.lt.s32.totalorder %s195, 31
          %s197 = scalar_select %p196, %s195, 31
          %s198 = smul.addr %s197, 8
          %s199 = scalar_lea.vmem %s1, %s198
          %s200 = smul.u32 16, %s14
        $region36: #{tpu_custom_call.1} parent=27 // pred_fallthru
          _
      $region28: #{tpu_custom_call.1} parent=5 // pred_fallthru
        _
      %p201 = scmp.le.s32.totalorder 1, %s14
      %p202 = scmp.lt.s32.totalorder %s14, 3
      %p203 = pnand %p201, %p202
      %p204 = pneg %p203
      // Predicated region
      $region37: #{tpu_custom_call.1} parent=5 // pred_check
        _
      $region38: #{tpu_custom_call.1} parent=5 // pred_check_branch
        %206 = sbr.rel (%p203) target = $region40
      $region39: #{tpu_custom_call.1} parent=5 // pred_region
        %s207 = ssub.s32 %s14, 1
        %s208 = smul.u32 16, %s19
        %p209 = scmp.lt.s32.totalorder %s208, 31
        %s210 = scalar_select %p209, %s208, 31
        %s211 = smul.addr %s210, 8
        %s212 = scalar_lea.vmem %s0, %s211
        %p213 = pneg %p40
        %p214 = pneg %p37
        %s215 = smul.u32 16, %s19
        %p216 = scmp.lt.s32.totalorder %s215, 31
        %s217 = scalar_select %p216, %s215, 31
        %s218 = smul.addr %s217, 8
        %s219 = scalar_lea.vmem %s1, %s218
        %p220 = pneg %p66
        %p221 = pneg %p63
        %p222 = pneg %p87
        %p223 = pneg %p84
        %p224 = pneg %p108
        %p225 = pneg %p105
        %p226 = pneg %p129
        %p227 = pneg %p126
        %p228 = pneg %p155
        %p229 = pneg %p152
        %s230 = sand.u32 %s142, 1
        %s231 = scalar_lea.sflag [#allocation3], %s230
        %s232 = sand.u32 %s142, 1
        %s233 = smul.addr %s232, 64
        %s234 = scalar_lea.vmem [#allocation2], %s233
        %s235 = smul.u32 16, %s19
        %p236 = scmp.lt.s32.totalorder %s235, 31
        %s237 = scalar_select %p236, %s235, 31
        %s238 = smul.addr %s237, 8
        %s239 = scalar_lea.vmem %s0, %s238
        %s240 = smul.u32 16, %s19
        %s241 = smul.u32 16, %s19
        %p242 = scmp.lt.s32.totalorder %s241, 31
        %s243 = scalar_select %p242, %s241, 31
        %s244 = smul.addr %s243, 8
        %s245 = scalar_lea.vmem %s1, %s244
        %s246 = smul.u32 16, %s19
        %s247 = smul.u32 16, %s19
        %v248 = vld [vmem:[%s2] sm:$0x1]
        %v249 = vld [vmem:[%s2 + $0x1] sm:$0x1]
        %v250 = vld [vmem:[%s2 + $0x2] sm:$0x1]
        %v251 = vld [vmem:[%s2 + $0x3] sm:$0x1]
        %v252 = vld [vmem:[%s2 + $0x4] sm:$0x1]
        %v253 = vld [vmem:[%s2 + $0x5] sm:$0x1]
        %v254 = vld [vmem:[%s2 + $0x6] sm:$0x1]
        %v255 = vld [vmem:[%s239] sm:$0xff]
        %v256 = vld [vmem:[%s239 + $0x8] sm:$0xff]
        %v257 = vld [vmem:[%s239 + $0x10] sm:$0xff]
        %v258 = vld [vmem:[%s239 + $0x18] sm:$0xff]
        %v259 = vld [vmem:[%s239 + $0x20] sm:$0xff]
        %v260 = vld [vmem:[%s239 + $0x28] sm:$0xff]
        %v261 = vld [vmem:[%s239 + $0x30] sm:$0xff]
        %v262 = vld [vmem:[%s239 + $0x38] sm:$0xff]
        %v263 = vld [vmem:[%s239 + $0x40] sm:$0xff]
        %v264 = vld [vmem:[%s239 + $0x48] sm:$0xff]
        %v265 = vld [vmem:[%s239 + $0x50] sm:$0xff]
        %v266 = vld [vmem:[%s239 + $0x58] sm:$0xff]
        %v267 = vld [vmem:[%s239 + $0x60] sm:$0xff]
        %v268 = vld [vmem:[%s239 + $0x68] sm:$0xff]
        %v269 = vld [vmem:[%s239 + $0x70] sm:$0xff]
        %v270 = vld [vmem:[%s239 + $0x78] sm:$0xff]
        %272 = vset.pattern.permute.xlu0 0
        %273 = vperm.xlu0 %272, %v255
        %v274 = vpop.permute.xlu0 %273
        %277 = vset.pattern.permute.xlu0 0
        %278 = vperm.xlu0 %277, %v256
        %v279 = vpop.permute.xlu0 %278
        %282 = vset.pattern.permute.xlu0 0
        %283 = vperm.xlu0 %282, %v257
        %v284 = vpop.permute.xlu0 %283
        %287 = vset.pattern.permute.xlu0 0
        %288 = vperm.xlu0 %287, %v258
        %v289 = vpop.permute.xlu0 %288
        %292 = vset.pattern.permute.xlu0 0
        %293 = vperm.xlu0 %292, %v259
        %v294 = vpop.permute.xlu0 %293
        %297 = vset.pattern.permute.xlu0 0
        %298 = vperm.xlu0 %297, %v260
        %v299 = vpop.permute.xlu0 %298
        %302 = vset.pattern.permute.xlu0 0
        %303 = vperm.xlu0 %302, %v261
        %v304 = vpop.permute.xlu0 %303
        %307 = vset.pattern.permute.xlu0 0
        %308 = vperm.xlu0 %307, %v262
        %v309 = vpop.permute.xlu0 %308
        %312 = vset.pattern.permute.xlu0 0
        %313 = vperm.xlu0 %312, %v263
        %v314 = vpop.permute.xlu0 %313
        %317 = vset.pattern.permute.xlu0 0
        %318 = vperm.xlu0 %317, %v264
        %v319 = vpop.permute.xlu0 %318
        %322 = vset.pattern.permute.xlu0 0
        %323 = vperm.xlu0 %322, %v265
        %v324 = vpop.permute.xlu0 %323
        %327 = vset.pattern.permute.xlu0 0
        %328 = vperm.xlu0 %327, %v266
        %v329 = vpop.permute.xlu0 %328
        %332 = vset.pattern.permute.xlu0 0
        %333 = vperm.xlu0 %332, %v267
        %v334 = vpop.permute.xlu0 %333
        %337 = vset.pattern.permute.xlu0 0
        %338 = vperm.xlu0 %337, %v268
        %v339 = vpop.permute.xlu0 %338
        %342 = vset.pattern.permute.xlu0 0
        %343 = vperm.xlu0 %342, %v269
        %v344 = vpop.permute.xlu0 %343
        %347 = vset.pattern.permute.xlu0 0
        %348 = vperm.xlu0 %347, %v270
        %v349 = vpop.permute.xlu0 %348
        %v351 = vperm.slane %v248, 0
        %v352 = vmul.f32 %v274, %v351
        %v353 = vmul.f32 %v279, %v351
        %v354 = vmul.f32 %v284, %v351
        %v355 = vmul.f32 %v289, %v351
        %v356 = vmul.f32 %v294, %v351
        %v357 = vmul.f32 %v299, %v351
        %v358 = vmul.f32 %v304, %v351
        %v359 = vmul.f32 %v309, %v351
        %v360 = vmul.f32 %v314, %v351
        %v361 = vmul.f32 %v319, %v351
        %v362 = vmul.f32 %v324, %v351
        %v363 = vmul.f32 %v329, %v351
        %v364 = vmul.f32 %v334, %v351
        %v365 = vmul.f32 %v339, %v351
        %v366 = vmul.f32 %v344, %v351
        %v367 = vmul.f32 %v349, %v351
        %v368 = vperm.slane %v249, 0
        %v369 = vadd.f32 %v352, %v368
        %v370 = vadd.f32 %v353, %v368
        %v371 = vadd.f32 %v354, %v368
        %v372 = vadd.f32 %v355, %v368
        %v373 = vadd.f32 %v356, %v368
        %v374 = vadd.f32 %v357, %v368
        %v375 = vadd.f32 %v358, %v368
        %v376 = vadd.f32 %v359, %v368
        %v377 = vadd.f32 %v360, %v368
        %v378 = vadd.f32 %v361, %v368
        %v379 = vadd.f32 %v362, %v368
        %v380 = vadd.f32 %v363, %v368
        %v381 = vadd.f32 %v364, %v368
        %v382 = vadd.f32 %v365, %v368
        %v383 = vadd.f32 %v366, %v368
        %v384 = vadd.f32 %v367, %v368
        %v385 = vand.u32 2147483647, %v369
        %vm386 = vcmp.le.f32.partialorder %v385, 0.7853982
        %vm387 = vcmp.lt.s32.totalorder %v369, 0
        %v388 = vand.u32 %v369, 2139095040
        %v389 = vshrl.u32 %v388, 23
        %v390 = vsub.s32 %v389, 127
        %v391 = vand.u32 2147483647, %v369
        %v392 = vand.u32 %v391, 8388607
        %v393 = vor.u32 %v392, 8388608
        %v394 = vsub.s32 0, %v393
        %v395 = vadd.s32 %v390, 1
        %vm396 = vcmp.gt.s32.totalorder %v395, 0
        %v397 = vsel %vm396, %v395, 0
        %v398 = vshrl.u32 %v397, 5
        %v399 = vand.u32 %v397, 31
        %v400 = vsub.s32 32, %v399
        %v401 = vshrl.u32 683565275, %v400
        %v402 = vshll.u32 683565275, %v399
        %v403 = vshrl.u32 2475754826, %v400
        %v404 = vor.u32 %v402, %v403
        %v405 = vshll.u32 2475754826, %v399
        %v406 = vshrl.u32 2131351028, %v400
        %v407 = vor.u32 %v405, %v406
        %v408 = vshll.u32 2131351028, %v399
        %v409 = vshrl.u32 2102212464, %v400
        %v410 = vor.u32 %v408, %v409
        %v411 = vshll.u32 2102212464, %v399
        %v412 = vshrl.u32 920167782, %v400
        %v413 = vor.u32 %v411, %v412
        %v414 = vshll.u32 920167782, %v399
        %v415 = vshrl.u32 1326507024, %v400
        %v416 = vor.u32 %v414, %v415
        %vm417 = vcmp.lt.s32.totalorder %v398, 1
        %vm418 = vcmp.lt.s32.totalorder %v398, 2
        %vm419 = vcmp.lt.s32.totalorder %v398, 3
        %vm420 = vcmp.lt.s32.totalorder %v398, 4
        %v421 = vsel %vm417, %v401, %v404
        %v422 = vsel %vm420, %v410, 2102212464
        %v423 = vsel %vm419, %v407, %v422
        %v424 = vsel %vm418, %v421, %v423
        %v425 = vsel %vm417, %v404, %v407
        %v426 = vsel %vm420, %v413, 920167782
        %v427 = vsel %vm419, %v410, %v426
        %v428 = vsel %vm418, %v425, %v427
        %v429 = vsel %vm417, %v407, %v410
        %v430 = vsel %vm420, %v416, 1326507024
        %v431 = vsel %vm419, %v413, %v430
        %v432 = vsel %vm418, %v429, %v431
        %v433 = vshll.u32 %v393, 8
        %v434 = vand.u32 %v433, 65535
        %v435 = vshrl.u32 %v433, 16
        %v436 = vand.u32 %v432, 65535
        %v437 = vshrl.u32 %v432, 16
        %v438 = vmul.u32 %v434, %v436
        %v439 = vmul.u32 %v434, %v437
        %v440 = vmul.u32 %v435, %v436
        %v441 = vmul.u32 %v435, %v437
        %v442 = vshll.u32 %v439, 16
        %v443 = vshrl.u32 %v439, 16
        %v444 = vshll.u32 %v440, 16
        %v445 = vshrl.u32 %v440, 16
        %vm446 = vc.u32 %v438, %v442
        %v447 = vsel %vm446, 1, 0
        %v448 = vadd.s32 %v438, %v442
        %v449 = vadd.s32 %v441, %v447
        %vm450 = vc.u32 %v448, %v444
        %v451 = vsel %vm450, 1, 0
        %v452 = vadd.s32 %v448, %v444
        %v453 = vadd.s32 %v449, %v451
        %v454 = vadd.s32 %v453, %v443
        %v455 = vadd.s32 %v454, %v445
        %v456 = vand.u32 %v433, 65535
        %v457 = vshrl.u32 %v433, 16
        %v458 = vand.u32 %v428, 65535
        %v459 = vshrl.u32 %v428, 16
        %v460 = vmul.u32 %v456, %v458
        %v461 = vmul.u32 %v456, %v459
        %v462 = vmul.u32 %v457, %v458
        %v463 = vmul.u32 %v457, %v459
        %v464 = vshll.u32 %v461, 16
        %v465 = vshrl.u32 %v461, 16
        %v466 = vshll.u32 %v462, 16
        %v467 = vshrl.u32 %v462, 16
        %vm468 = vc.u32 %v460, %v464
        %v469 = vsel %vm468, 1, 0
        %v470 = vadd.s32 %v460, %v464
        %v471 = vadd.s32 %v463, %v469
        %vm472 = vc.u32 %v470, %v466
        %v473 = vsel %vm472, 1, 0
        %v474 = vadd.s32 %v470, %v466
        %v475 = vadd.s32 %v471, %v473
        %v476 = vadd.s32 %v475, %v465
        %v477 = vadd.s32 %v476, %v467
        %v478 = vmul.u32 %v433, %v424
        %v479 = vadd.s32 %v455, %v474
        %vm480 = vc.u32 %v455, %v474
        %v481 = vadd.s32 %v477, 1
        %v482 = vsel %vm480, %v481, %v477
        %v483 = vadd.s32 %v478, %v482
        %v484 = vadd.s32 %v483, 536870912
        %v485 = vshrl.u32 %v484, 30
        %v486 = vshll.u32 %v485, 30
        %v487 = vsub.s32 %v483, %v486
        %vm488 = vcmp.lt.s32.totalorder %v487, 0
        %v489 = vsub.s32 0, %v487
        %v490 = vsel %vm488, %v489, %v487
        %v491 = vclz %v490
        %v492 = vsub.s32 %v491, 2
        %vm493 = vcmp.gt.s32.totalorder 0, %v492
        %v494 = vsel %vm493, 0, %v492
        %v495 = vsub.s32 32, %v494
        %v496 = vshll.u32 %v487, %v494
        %v497 = vshrl.u32 %v479, %v495
        %v498 = vor.u32 %v496, %v497
        %v499 = vsub.s32 4294967266, %v494
        %v500 = vadd.s32 %v499, 127
        %v501 = vshll.u32 %v500, 23
        %v502 = vor.u32 4788187, %v501
        %v503 = vand.u32 2147483647, %v502
        %v505 = vcvt.s32.f32 %v498
        %v506 = vmul.f32 %v505, %v503
        %v507 = vxor.u32 %v506, 2147483648
        %v508 = vsel %vm387, %v507, %v506
        %v509 = vsub.s32 4, %v485
        %v510 = vsel %vm387, %v509, %v485
        %v511 = vsel %vm386, %v369, %v508
        %v512 = vsel %vm386, 0, %v510
        %v513 = vmul.f32 %v511, %v511
        %v514 = vmul.f32 %v513, -0.001358992
        %v515 = vadd.f32 %v514, 0.041655596
        %v516 = vmul.f32 %v513, %v515
        %v517 = vadd.f32 %v516, -0.4999988
        %v518 = vmul.f32 %v513, %v517
        %v519 = vadd.f32 1.0, %v518
        %v520 = vmul.f32 %v511, %v511
        %v521 = vmul.f32 %v520, -0.00019511016
        %v522 = vadd.f32 %v521, 0.008332121
        %v523 = vmul.f32 %v520, %v522
        %v524 = vadd.f32 %v523, -0.16666654
        %v525 = vmul.f32 %v520, %v524
        %v526 = vadd.f32 %v525, 1.0
        %v527 = vmul.f32 %v526, %v511
        %vm528 = vweird.f32 %v369
        %v529 = vadd.s32 %v512, 3
        %v530 = vand.u32 %v529, 3
        %vm531 = vcmp.lt.s32.totalorder %v530, 2
        %vm532 = vcmp.eq.s32.totalorder %v530, 0
        %v533 = vxor.u32 %v527, 2147483648
        %v534 = vsel %vm532, %v519, %v533
        %vm535 = vcmp.eq.s32.totalorder %v530, 2
        %v536 = vxor.u32 %v519, 2147483648
        %v537 = vsel %vm535, %v536, %v527
        %v538 = vsel %vm531, %v534, %v537
        %v539 = vsel %vm528, nan, %v538
        %v540 = vand.u32 2147483647, %v370
        %vm541 = vcmp.le.f32.partialorder %v540, 0.7853982
        %vm542 = vcmp.lt.s32.totalorder %v370, 0
        %v543 = vand.u32 %v370, 2139095040
        %v544 = vshrl.u32 %v543, 23
        %v545 = vsub.s32 %v544, 127
        %v546 = vand.u32 2147483647, %v370
        %v547 = vand.u32 %v546, 8388607
        %v548 = vor.u32 %v547, 8388608
        %v549 = vsub.s32 0, %v548
        %v550 = vadd.s32 %v545, 1
        %vm551 = vcmp.gt.s32.totalorder %v550, 0
        %v552 = vsel %vm551, %v550, 0
        %v553 = vshrl.u32 %v552, 5
        %v554 = vand.u32 %v552, 31
        %v555 = vsub.s32 32, %v554
        %v556 = vshrl.u32 683565275, %v555
        %v557 = vshll.u32 683565275, %v554
        %v558 = vshrl.u32 2475754826, %v555
        %v559 = vor.u32 %v557, %v558
        %v560 = vshll.u32 2475754826, %v554
        %v561 = vshrl.u32 2131351028, %v555
        %v562 = vor.u32 %v560, %v561
        %v563 = vshll.u32 2131351028, %v554
        %v564 = vshrl.u32 2102212464, %v555
        %v565 = vor.u32 %v563, %v564
        %v566 = vshll.u32 2102212464, %v554
        %v567 = vshrl.u32 920167782, %v555
        %v568 = vor.u32 %v566, %v567
        %v569 = vshll.u32 920167782, %v554
        %v570 = vshrl.u32 1326507024, %v555
        %v571 = vor.u32 %v569, %v570
        %vm572 = vcmp.lt.s32.totalorder %v553, 1
        %vm573 = vcmp.lt.s32.totalorder %v553, 2
        %vm574 = vcmp.lt.s32.totalorder %v553, 3
        %vm575 = vcmp.lt.s32.totalorder %v553, 4
        %v576 = vsel %vm572, %v556, %v559
        %v577 = vsel %vm575, %v565, 2102212464
        %v578 = vsel %vm574, %v562, %v577
        %v579 = vsel %vm573, %v576, %v578
        %v580 = vsel %vm572, %v559, %v562
        %v581 = vsel %vm575, %v568, 920167782
        %v582 = vsel %vm574, %v565, %v581
        %v583 = vsel %vm573, %v580, %v582
        %v584 = vsel %vm572, %v562, %v565
        %v585 = vsel %vm575, %v571, 1326507024
        %v586 = vsel %vm574, %v568, %v585
        %v587 = vsel %vm573, %v584, %v586
        %v588 = vshll.u32 %v548, 8
        %v589 = vand.u32 %v588, 65535
        %v590 = vshrl.u32 %v588, 16
        %v591 = vand.u32 %v587, 65535
        %v592 = vshrl.u32 %v587, 16
        %v593 = vmul.u32 %v589, %v591
        %v594 = vmul.u32 %v589, %v592
        %v595 = vmul.u32 %v590, %v591
        %v596 = vmul.u32 %v590, %v592
        %v597 = vshll.u32 %v594, 16
        %v598 = vshrl.u32 %v594, 16
        %v599 = vshll.u32 %v595, 16
        %v600 = vshrl.u32 %v595, 16
        %vm601 = vc.u32 %v593, %v597
        %v602 = vsel %vm601, 1, 0
        %v603 = vadd.s32 %v593, %v597
        %v604 = vadd.s32 %v596, %v602
        %vm605 = vc.u32 %v603, %v599
        %v606 = vsel %vm605, 1, 0
        %v607 = vadd.s32 %v603, %v599
        %v608 = vadd.s32 %v604, %v606
        %v609 = vadd.s32 %v608, %v598
        %v610 = vadd.s32 %v609, %v600
        %v611 = vand.u32 %v588, 65535
        %v612 = vshrl.u32 %v588, 16
        %v613 = vand.u32 %v583, 65535
        %v614 = vshrl.u32 %v583, 16
        %v615 = vmul.u32 %v611, %v613
        %v616 = vmul.u32 %v611, %v614
        %v617 = vmul.u32 %v612, %v613
        %v618 = vmul.u32 %v612, %v614
        %v619 = vshll.u32 %v616, 16
        %v620 = vshrl.u32 %v616, 16
        %v621 = vshll.u32 %v617, 16
        %v622 = vshrl.u32 %v617, 16
        %vm623 = vc.u32 %v615, %v619
        %v624 = vsel %vm623, 1, 0
        %v625 = vadd.s32 %v615, %v619
        %v626 = vadd.s32 %v618, %v624
        %vm627 = vc.u32 %v625, %v621
        %v628 = vsel %vm627, 1, 0
        %v629 = vadd.s32 %v625, %v621
        %v630 = vadd.s32 %v626, %v628
        %v631 = vadd.s32 %v630, %v620
        %v632 = vadd.s32 %v631, %v622
        %v633 = vmul.u32 %v588, %v579
        %v634 = vadd.s32 %v610, %v629
        %vm635 = vc.u32 %v610, %v629
        %v636 = vadd.s32 %v632, 1
        %v637 = vsel %vm635, %v636, %v632
        %v638 = vadd.s32 %v633, %v637
        %v639 = vadd.s32 %v638, 536870912
        %v640 = vshrl.u32 %v639, 30
        %v641 = vshll.u32 %v640, 30
        %v642 = vsub.s32 %v638, %v641
        %vm643 = vcmp.lt.s32.totalorder %v642, 0
        %v644 = vsub.s32 0, %v642
        %v645 = vsel %vm643, %v644, %v642
        %v646 = vclz %v645
        %v647 = vsub.s32 %v646, 2
        %vm648 = vcmp.gt.s32.totalorder 0, %v647
        %v649 = vsel %vm648, 0, %v647
        %v650 = vsub.s32 32, %v649
        %v651 = vshll.u32 %v642, %v649
        %v652 = vshrl.u32 %v634, %v650
        %v653 = vor.u32 %v651, %v652
        %v654 = vsub.s32 4294967266, %v649
        %v655 = vadd.s32 %v654, 127
        %v656 = vshll.u32 %v655, 23
        %v657 = vor.u32 4788187, %v656
        %v658 = vand.u32 2147483647, %v657
        %v660 = vcvt.s32.f32 %v653
        %v661 = vmul.f32 %v660, %v658
        %v662 = vxor.u32 %v661, 2147483648
        %v663 = vsel %vm542, %v662, %v661
        %v664 = vsub.s32 4, %v640
        %v665 = vsel %vm542, %v664, %v640
        %v666 = vsel %vm541, %v370, %v663
        %v667 = vsel %vm541, 0, %v665
        %v668 = vmul.f32 %v666, %v666
        %v669 = vmul.f32 %v668, -0.001358992
        %v670 = vadd.f32 %v669, 0.041655596
        %v671 = vmul.f32 %v668, %v670
        %v672 = vadd.f32 %v671, -0.4999988
        %v673 = vmul.f32 %v668, %v672
        %v674 = vadd.f32 1.0, %v673
        %v675 = vmul.f32 %v666, %v666
        %v676 = vmul.f32 %v675, -0.00019511016
        %v677 = vadd.f32 %v676, 0.008332121
        %v678 = vmul.f32 %v675, %v677
        %v679 = vadd.f32 %v678, -0.16666654
        %v680 = vmul.f32 %v675, %v679
        %v681 = vadd.f32 %v680, 1.0
        %v682 = vmul.f32 %v681, %v666
        %vm683 = vweird.f32 %v370
        %v684 = vadd.s32 %v667, 3
        %v685 = vand.u32 %v684, 3
        %vm686 = vcmp.lt.s32.totalorder %v685, 2
        %vm687 = vcmp.eq.s32.totalorder %v685, 0
        %v688 = vxor.u32 %v682, 2147483648
        %v689 = vsel %vm687, %v674, %v688
        %vm690 = vcmp.eq.s32.totalorder %v685, 2
        %v691 = vxor.u32 %v674, 2147483648
        %v692 = vsel %vm690, %v691, %v682
        %v693 = vsel %vm686, %v689, %v692
        %v694 = vsel %vm683, nan, %v693
        %v695 = vand.u32 2147483647, %v371
        %vm696 = vcmp.le.f32.partialorder %v695, 0.7853982
        %vm697 = vcmp.lt.s32.totalorder %v371, 0
        %v698 = vand.u32 %v371, 2139095040
        %v699 = vshrl.u32 %v698, 23
        %v700 = vsub.s32 %v699, 127
        %v701 = vand.u32 2147483647, %v371
        %v702 = vand.u32 %v701, 8388607
        %v703 = vor.u32 %v702, 8388608
        %v704 = vsub.s32 0, %v703
        %v705 = vadd.s32 %v700, 1
        %vm706 = vcmp.gt.s32.totalorder %v705, 0
        %v707 = vsel %vm706, %v705, 0
        %v708 = vshrl.u32 %v707, 5
        %v709 = vand.u32 %v707, 31
        %v710 = vsub.s32 32, %v709
        %v711 = vshrl.u32 683565275, %v710
        %v712 = vshll.u32 683565275, %v709
        %v713 = vshrl.u32 2475754826, %v710
        %v714 = vor.u32 %v712, %v713
        %v715 = vshll.u32 2475754826, %v709
        %v716 = vshrl.u32 2131351028, %v710
        %v717 = vor.u32 %v715, %v716
        %v718 = vshll.u32 2131351028, %v709
        %v719 = vshrl.u32 2102212464, %v710
        %v720 = vor.u32 %v718, %v719
        %v721 = vshll.u32 2102212464, %v709
        %v722 = vshrl.u32 920167782, %v710
        %v723 = vor.u32 %v721, %v722
        %v724 = vshll.u32 920167782, %v709
        %v725 = vshrl.u32 1326507024, %v710
        %v726 = vor.u32 %v724, %v725
        %vm727 = vcmp.lt.s32.totalorder %v708, 1
        %vm728 = vcmp.lt.s32.totalorder %v708, 2
        %vm729 = vcmp.lt.s32.totalorder %v708, 3
        %vm730 = vcmp.lt.s32.totalorder %v708, 4
        %v731 = vsel %vm727, %v711, %v714
        %v732 = vsel %vm730, %v720, 2102212464
        %v733 = vsel %vm729, %v717, %v732
        %v734 = vsel %vm728, %v731, %v733
        %v735 = vsel %vm727, %v714, %v717
        %v736 = vsel %vm730, %v723, 920167782
        %v737 = vsel %vm729, %v720, %v736
        %v738 = vsel %vm728, %v735, %v737
        %v739 = vsel %vm727, %v717, %v720
        %v740 = vsel %vm730, %v726, 1326507024
        %v741 = vsel %vm729, %v723, %v740
        %v742 = vsel %vm728, %v739, %v741
        %v743 = vshll.u32 %v703, 8
        %v744 = vand.u32 %v743, 65535
        %v745 = vshrl.u32 %v743, 16
        %v746 = vand.u32 %v742, 65535
        %v747 = vshrl.u32 %v742, 16
        %v748 = vmul.u32 %v744, %v746
        %v749 = vmul.u32 %v744, %v747
        %v750 = vmul.u32 %v745, %v746
        %v751 = vmul.u32 %v745, %v747
        %v752 = vshll.u32 %v749, 16
        %v753 = vshrl.u32 %v749, 16
        %v754 = vshll.u32 %v750, 16
        %v755 = vshrl.u32 %v750, 16
        %vm756 = vc.u32 %v748, %v752
        %v757 = vsel %vm756, 1, 0
        %v758 = vadd.s32 %v748, %v752
        %v759 = vadd.s32 %v751, %v757
        %vm760 = vc.u32 %v758, %v754
        %v761 = vsel %vm760, 1, 0
        %v762 = vadd.s32 %v758, %v754
        %v763 = vadd.s32 %v759, %v761
        %v764 = vadd.s32 %v763, %v753
        %v765 = vadd.s32 %v764, %v755
        %v766 = vand.u32 %v743, 65535
        %v767 = vshrl.u32 %v743, 16
        %v768 = vand.u32 %v738, 65535
        %v769 = vshrl.u32 %v738, 16
        %v770 = vmul.u32 %v766, %v768
        %v771 = vmul.u32 %v766, %v769
        %v772 = vmul.u32 %v767, %v768
        %v773 = vmul.u32 %v767, %v769
        %v774 = vshll.u32 %v771, 16
        %v775 = vshrl.u32 %v771, 16
        %v776 = vshll.u32 %v772, 16
        %v777 = vshrl.u32 %v772, 16
        %vm778 = vc.u32 %v770, %v774
        %v779 = vsel %vm778, 1, 0
        %v780 = vadd.s32 %v770, %v774
        %v781 = vadd.s32 %v773, %v779
        %vm782 = vc.u32 %v780, %v776
        %v783 = vsel %vm782, 1, 0
        %v784 = vadd.s32 %v780, %v776
        %v785 = vadd.s32 %v781, %v783
        %v786 = vadd.s32 %v785, %v775
        %v787 = vadd.s32 %v786, %v777
        %v788 = vmul.u32 %v743, %v734
        %v789 = vadd.s32 %v765, %v784
        %vm790 = vc.u32 %v765, %v784
        %v791 = vadd.s32 %v787, 1
        %v792 = vsel %vm790, %v791, %v787
        %v793 = vadd.s32 %v788, %v792
        %v794 = vadd.s32 %v793, 536870912
        %v795 = vshrl.u32 %v794, 30
        %v796 = vshll.u32 %v795, 30
        %v797 = vsub.s32 %v793, %v796
        %vm798 = vcmp.lt.s32.totalorder %v797, 0
        %v799 = vsub.s32 0, %v797
        %v800 = vsel %vm798, %v799, %v797
        %v801 = vclz %v800
        %v802 = vsub.s32 %v801, 2
        %vm803 = vcmp.gt.s32.totalorder 0, %v802
        %v804 = vsel %vm803, 0, %v802
        %v805 = vsub.s32 32, %v804
        %v806 = vshll.u32 %v797, %v804
        %v807 = vshrl.u32 %v789, %v805
        %v808 = vor.u32 %v806, %v807
        %v809 = vsub.s32 4294967266, %v804
        %v810 = vadd.s32 %v809, 127
        %v811 = vshll.u32 %v810, 23
        %v812 = vor.u32 4788187, %v811
        %v813 = vand.u32 2147483647, %v812
        %v815 = vcvt.s32.f32 %v808
        %v816 = vmul.f32 %v815, %v813
        %v817 = vxor.u32 %v816, 2147483648
        %v818 = vsel %vm697, %v817, %v816
        %v819 = vsub.s32 4, %v795
        %v820 = vsel %vm697, %v819, %v795
        %v821 = vsel %vm696, %v371, %v818
        %v822 = vsel %vm696, 0, %v820
        %v823 = vmul.f32 %v821, %v821
        %v824 = vmul.f32 %v823, -0.001358992
        %v825 = vadd.f32 %v824, 0.041655596
        %v826 = vmul.f32 %v823, %v825
        %v827 = vadd.f32 %v826, -0.4999988
        %v828 = vmul.f32 %v823, %v827
        %v829 = vadd.f32 1.0, %v828
        %v830 = vmul.f32 %v821, %v821
        %v831 = vmul.f32 %v830, -0.00019511016
        %v832 = vadd.f32 %v831, 0.008332121
        %v833 = vmul.f32 %v830, %v832
        %v834 = vadd.f32 %v833, -0.16666654
        %v835 = vmul.f32 %v830, %v834
        %v836 = vadd.f32 %v835, 1.0
        %v837 = vmul.f32 %v836, %v821
        %vm838 = vweird.f32 %v371
        %v839 = vadd.s32 %v822, 3
        %v840 = vand.u32 %v839, 3
        %vm841 = vcmp.lt.s32.totalorder %v840, 2
        %vm842 = vcmp.eq.s32.totalorder %v840, 0
        %v843 = vxor.u32 %v837, 2147483648
        %v844 = vsel %vm842, %v829, %v843
        %vm845 = vcmp.eq.s32.totalorder %v840, 2
        %v846 = vxor.u32 %v829, 2147483648
        %v847 = vsel %vm845, %v846, %v837
        %v848 = vsel %vm841, %v844, %v847
        %v849 = vsel %vm838, nan, %v848
        %v850 = vand.u32 2147483647, %v372
        %vm851 = vcmp.le.f32.partialorder %v850, 0.7853982
        %vm852 = vcmp.lt.s32.totalorder %v372, 0
        %v853 = vand.u32 %v372, 2139095040
        %v854 = vshrl.u32 %v853, 23
        %v855 = vsub.s32 %v854, 127
        %v856 = vand.u32 2147483647, %v372
        %v857 = vand.u32 %v856, 8388607
        %v858 = vor.u32 %v857, 8388608
        %v859 = vsub.s32 0, %v858
        %v860 = vadd.s32 %v855, 1
        %vm861 = vcmp.gt.s32.totalorder %v860, 0
        %v862 = vsel %vm861, %v860, 0
        %v863 = vshrl.u32 %v862, 5
        %v864 = vand.u32 %v862, 31
        %v865 = vsub.s32 32, %v864
        %v866 = vshrl.u32 683565275, %v865
        %v867 = vshll.u32 683565275, %v864
        %v868 = vshrl.u32 2475754826, %v865
        %v869 = vor.u32 %v867, %v868
        %v870 = vshll.u32 2475754826, %v864
        %v871 = vshrl.u32 2131351028, %v865
        %v872 = vor.u32 %v870, %v871
        %v873 = vshll.u32 2131351028, %v864
        %v874 = vshrl.u32 2102212464, %v865
        %v875 = vor.u32 %v873, %v874
        %v876 = vshll.u32 2102212464, %v864
        %v877 = vshrl.u32 920167782, %v865
        %v878 = vor.u32 %v876, %v877
        %v879 = vshll.u32 920167782, %v864
        %v880 = vshrl.u32 1326507024, %v865
        %v881 = vor.u32 %v879, %v880
        %vm882 = vcmp.lt.s32.totalorder %v863, 1
        %vm883 = vcmp.lt.s32.totalorder %v863, 2
        %vm884 = vcmp.lt.s32.totalorder %v863, 3
        %vm885 = vcmp.lt.s32.totalorder %v863, 4
        %v886 = vsel %vm882, %v866, %v869
        %v887 = vsel %vm885, %v875, 2102212464
        %v888 = vsel %vm884, %v872, %v887
        %v889 = vsel %vm883, %v886, %v888
        %v890 = vsel %vm882, %v869, %v872
        %v891 = vsel %vm885, %v878, 920167782
        %v892 = vsel %vm884, %v875, %v891
        %v893 = vsel %vm883, %v890, %v892
        %v894 = vsel %vm882, %v872, %v875
        %v895 = vsel %vm885, %v881, 1326507024
        %v896 = vsel %vm884, %v878, %v895
        %v897 = vsel %vm883, %v894, %v896
        %v898 = vshll.u32 %v858, 8
        %v899 = vand.u32 %v898, 65535
        %v900 = vshrl.u32 %v898, 16
        %v901 = vand.u32 %v897, 65535
        %v902 = vshrl.u32 %v897, 16
        %v903 = vmul.u32 %v899, %v901
        %v904 = vmul.u32 %v899, %v902
        %v905 = vmul.u32 %v900, %v901
        %v906 = vmul.u32 %v900, %v902
        %v907 = vshll.u32 %v904, 16
        %v908 = vshrl.u32 %v904, 16
        %v909 = vshll.u32 %v905, 16
        %v910 = vshrl.u32 %v905, 16
        %vm911 = vc.u32 %v903, %v907
        %v912 = vsel %vm911, 1, 0
        %v913 = vadd.s32 %v903, %v907
        %v914 = vadd.s32 %v906, %v912
        %vm915 = vc.u32 %v913, %v909
        %v916 = vsel %vm915, 1, 0
        %v917 = vadd.s32 %v913, %v909
        %v918 = vadd.s32 %v914, %v916
        %v919 = vadd.s32 %v918, %v908
        %v920 = vadd.s32 %v919, %v910
        %v921 = vand.u32 %v898, 65535
        %v922 = vshrl.u32 %v898, 16
        %v923 = vand.u32 %v893, 65535
        %v924 = vshrl.u32 %v893, 16
        %v925 = vmul.u32 %v921, %v923
        %v926 = vmul.u32 %v921, %v924
        %v927 = vmul.u32 %v922, %v923
        %v928 = vmul.u32 %v922, %v924
        %v929 = vshll.u32 %v926, 16
        %v930 = vshrl.u32 %v926, 16
        %v931 = vshll.u32 %v927, 16
        %v932 = vshrl.u32 %v927, 16
        %vm933 = vc.u32 %v925, %v929
        %v934 = vsel %vm933, 1, 0
        %v935 = vadd.s32 %v925, %v929
        %v936 = vadd.s32 %v928, %v934
        %vm937 = vc.u32 %v935, %v931
        %v938 = vsel %vm937, 1, 0
        %v939 = vadd.s32 %v935, %v931
        %v940 = vadd.s32 %v936, %v938
        %v941 = vadd.s32 %v940, %v930
        %v942 = vadd.s32 %v941, %v932
        %v943 = vmul.u32 %v898, %v889
        %v944 = vadd.s32 %v920, %v939
        %vm945 = vc.u32 %v920, %v939
        %v946 = vadd.s32 %v942, 1
        %v947 = vsel %vm945, %v946, %v942
        %v948 = vadd.s32 %v943, %v947
        %v949 = vadd.s32 %v948, 536870912
        %v950 = vshrl.u32 %v949, 30
        %v951 = vshll.u32 %v950, 30
        %v952 = vsub.s32 %v948, %v951
        %vm953 = vcmp.lt.s32.totalorder %v952, 0
        %v954 = vsub.s32 0, %v952
        %v955 = vsel %vm953, %v954, %v952
        %v956 = vclz %v955
        %v957 = vsub.s32 %v956, 2
        %vm958 = vcmp.gt.s32.totalorder 0, %v957
        %v959 = vsel %vm958, 0, %v957
        %v960 = vsub.s32 32, %v959
        %v961 = vshll.u32 %v952, %v959
        %v962 = vshrl.u32 %v944, %v960
        %v963 = vor.u32 %v961, %v962
        %v964 = vsub.s32 4294967266, %v959
        %v965 = vadd.s32 %v964, 127
        %v966 = vshll.u32 %v965, 23
        %v967 = vor.u32 4788187, %v966
        %v968 = vand.u32 2147483647, %v967
        %v970 = vcvt.s32.f32 %v963
        %v971 = vmul.f32 %v970, %v968
        %v972 = vxor.u32 %v971, 2147483648
        %v973 = vsel %vm852, %v972, %v971
        %v974 = vsub.s32 4, %v950
        %v975 = vsel %vm852, %v974, %v950
        %v976 = vsel %vm851, %v372, %v973
        %v977 = vsel %vm851, 0, %v975
        %v978 = vmul.f32 %v976, %v976
        %v979 = vmul.f32 %v978, -0.001358992
        %v980 = vadd.f32 %v979, 0.041655596
        %v981 = vmul.f32 %v978, %v980
        %v982 = vadd.f32 %v981, -0.4999988
        %v983 = vmul.f32 %v978, %v982
        %v984 = vadd.f32 1.0, %v983
        %v985 = vmul.f32 %v976, %v976
        %v986 = vmul.f32 %v985, -0.00019511016
        %v987 = vadd.f32 %v986, 0.008332121
        %v988 = vmul.f32 %v985, %v987
        %v989 = vadd.f32 %v988, -0.16666654
        %v990 = vmul.f32 %v985, %v989
        %v991 = vadd.f32 %v990, 1.0
        %v992 = vmul.f32 %v991, %v976
        %vm993 = vweird.f32 %v372
        %v994 = vadd.s32 %v977, 3
        %v995 = vand.u32 %v994, 3
        %vm996 = vcmp.lt.s32.totalorder %v995, 2
        %vm997 = vcmp.eq.s32.totalorder %v995, 0
        %v998 = vxor.u32 %v992, 2147483648
        %v999 = vsel %vm997, %v984, %v998
        %vm1000 = vcmp.eq.s32.totalorder %v995, 2
        %v1001 = vxor.u32 %v984, 2147483648
        %v1002 = vsel %vm1000, %v1001, %v992
        %v1003 = vsel %vm996, %v999, %v1002
        %v1004 = vsel %vm993, nan, %v1003
        %v1005 = vand.u32 2147483647, %v373
        %vm1006 = vcmp.le.f32.partialorder %v1005, 0.7853982
        %vm1007 = vcmp.lt.s32.totalorder %v373, 0
        %v1008 = vand.u32 %v373, 2139095040
        %v1009 = vshrl.u32 %v1008, 23
        %v1010 = vsub.s32 %v1009, 127
        %v1011 = vand.u32 2147483647, %v373
        %v1012 = vand.u32 %v1011, 8388607
        %v1013 = vor.u32 %v1012, 8388608
        %v1014 = vsub.s32 0, %v1013
        %v1015 = vadd.s32 %v1010, 1
        %vm1016 = vcmp.gt.s32.totalorder %v1015, 0
        %v1017 = vsel %vm1016, %v1015, 0
        %v1018 = vshrl.u32 %v1017, 5
        %v1019 = vand.u32 %v1017, 31
        %v1020 = vsub.s32 32, %v1019
        %v1021 = vshrl.u32 683565275, %v1020
        %v1022 = vshll.u32 683565275, %v1019
        %v1023 = vshrl.u32 2475754826, %v1020
        %v1024 = vor.u32 %v1022, %v1023
        %v1025 = vshll.u32 2475754826, %v1019
        %v1026 = vshrl.u32 2131351028, %v1020
        %v1027 = vor.u32 %v1025, %v1026
        %v1028 = vshll.u32 2131351028, %v1019
        %v1029 = vshrl.u32 2102212464, %v1020
        %v1030 = vor.u32 %v1028, %v1029
        %v1031 = vshll.u32 2102212464, %v1019
        %v1032 = vshrl.u32 920167782, %v1020
        %v1033 = vor.u32 %v1031, %v1032
        %v1034 = vshll.u32 920167782, %v1019
        %v1035 = vshrl.u32 1326507024, %v1020
        %v1036 = vor.u32 %v1034, %v1035
        %vm1037 = vcmp.lt.s32.totalorder %v1018, 1
        %vm1038 = vcmp.lt.s32.totalorder %v1018, 2
        %vm1039 = vcmp.lt.s32.totalorder %v1018, 3
        %vm1040 = vcmp.lt.s32.totalorder %v1018, 4
        %v1041 = vsel %vm1037, %v1021, %v1024
        %v1042 = vsel %vm1040, %v1030, 2102212464
        %v1043 = vsel %vm1039, %v1027, %v1042
        %v1044 = vsel %vm1038, %v1041, %v1043
        %v1045 = vsel %vm1037, %v1024, %v1027
        %v1046 = vsel %vm1040, %v1033, 920167782
        %v1047 = vsel %vm1039, %v1030, %v1046
        %v1048 = vsel %vm1038, %v1045, %v1047
        %v1049 = vsel %vm1037, %v1027, %v1030
        %v1050 = vsel %vm1040, %v1036, 1326507024
        %v1051 = vsel %vm1039, %v1033, %v1050
        %v1052 = vsel %vm1038, %v1049, %v1051
        %v1053 = vshll.u32 %v1013, 8
        %v1054 = vand.u32 %v1053, 65535
        %v1055 = vshrl.u32 %v1053, 16
        %v1056 = vand.u32 %v1052, 65535
        %v1057 = vshrl.u32 %v1052, 16
        %v1058 = vmul.u32 %v1054, %v1056
        %v1059 = vmul.u32 %v1054, %v1057
        %v1060 = vmul.u32 %v1055, %v1056
        %v1061 = vmul.u32 %v1055, %v1057
        %v1062 = vshll.u32 %v1059, 16
        %v1063 = vshrl.u32 %v1059, 16
        %v1064 = vshll.u32 %v1060, 16
        %v1065 = vshrl.u32 %v1060, 16
        %vm1066 = vc.u32 %v1058, %v1062
        %v1067 = vsel %vm1066, 1, 0
        %v1068 = vadd.s32 %v1058, %v1062
        %v1069 = vadd.s32 %v1061, %v1067
        %vm1070 = vc.u32 %v1068, %v1064
        %v1071 = vsel %vm1070, 1, 0
        %v1072 = vadd.s32 %v1068, %v1064
        %v1073 = vadd.s32 %v1069, %v1071
        %v1074 = vadd.s32 %v1073, %v1063
        %v1075 = vadd.s32 %v1074, %v1065
        %v1076 = vand.u32 %v1053, 65535
        %v1077 = vshrl.u32 %v1053, 16
        %v1078 = vand.u32 %v1048, 65535
        %v1079 = vshrl.u32 %v1048, 16
        %v1080 = vmul.u32 %v1076, %v1078
        %v1081 = vmul.u32 %v1076, %v1079
        %v1082 = vmul.u32 %v1077, %v1078
        %v1083 = vmul.u32 %v1077, %v1079
        %v1084 = vshll.u32 %v1081, 16
        %v1085 = vshrl.u32 %v1081, 16
        %v1086 = vshll.u32 %v1082, 16
        %v1087 = vshrl.u32 %v1082, 16
        %vm1088 = vc.u32 %v1080, %v1084
        %v1089 = vsel %vm1088, 1, 0
        %v1090 = vadd.s32 %v1080, %v1084
        %v1091 = vadd.s32 %v1083, %v1089
        %vm1092 = vc.u32 %v1090, %v1086
        %v1093 = vsel %vm1092, 1, 0
        %v1094 = vadd.s32 %v1090, %v1086
        %v1095 = vadd.s32 %v1091, %v1093
        %v1096 = vadd.s32 %v1095, %v1085
        %v1097 = vadd.s32 %v1096, %v1087
        %v1098 = vmul.u32 %v1053, %v1044
        %v1099 = vadd.s32 %v1075, %v1094
        %vm1100 = vc.u32 %v1075, %v1094
        %v1101 = vadd.s32 %v1097, 1
        %v1102 = vsel %vm1100, %v1101, %v1097
        %v1103 = vadd.s32 %v1098, %v1102
        %v1104 = vadd.s32 %v1103, 536870912
        %v1105 = vshrl.u32 %v1104, 30
        %v1106 = vshll.u32 %v1105, 30
        %v1107 = vsub.s32 %v1103, %v1106
        %vm1108 = vcmp.lt.s32.totalorder %v1107, 0
        %v1109 = vsub.s32 0, %v1107
        %v1110 = vsel %vm1108, %v1109, %v1107
        %v1111 = vclz %v1110
        %v1112 = vsub.s32 %v1111, 2
        %vm1113 = vcmp.gt.s32.totalorder 0, %v1112
        %v1114 = vsel %vm1113, 0, %v1112
        %v1115 = vsub.s32 32, %v1114
        %v1116 = vshll.u32 %v1107, %v1114
        %v1117 = vshrl.u32 %v1099, %v1115
        %v1118 = vor.u32 %v1116, %v1117
        %v1119 = vsub.s32 4294967266, %v1114
        %v1120 = vadd.s32 %v1119, 127
        %v1121 = vshll.u32 %v1120, 23
        %v1122 = vor.u32 4788187, %v1121
        %v1123 = vand.u32 2147483647, %v1122
        %v1125 = vcvt.s32.f32 %v1118
        %v1126 = vmul.f32 %v1125, %v1123
        %v1127 = vxor.u32 %v1126, 2147483648
        %v1128 = vsel %vm1007, %v1127, %v1126
        %v1129 = vsub.s32 4, %v1105
        %v1130 = vsel %vm1007, %v1129, %v1105
        %v1131 = vsel %vm1006, %v373, %v1128
        %v1132 = vsel %vm1006, 0, %v1130
        %v1133 = vmul.f32 %v1131, %v1131
        %v1134 = vmul.f32 %v1133, -0.001358992
        %v1135 = vadd.f32 %v1134, 0.041655596
        %v1136 = vmul.f32 %v1133, %v1135
        %v1137 = vadd.f32 %v1136, -0.4999988
        %v1138 = vmul.f32 %v1133, %v1137
        %v1139 = vadd.f32 1.0, %v1138
        %v1140 = vmul.f32 %v1131, %v1131
        %v1141 = vmul.f32 %v1140, -0.00019511016
        %v1142 = vadd.f32 %v1141, 0.008332121
        %v1143 = vmul.f32 %v1140, %v1142
        %v1144 = vadd.f32 %v1143, -0.16666654
        %v1145 = vmul.f32 %v1140, %v1144
        %v1146 = vadd.f32 %v1145, 1.0
        %v1147 = vmul.f32 %v1146, %v1131
        %vm1148 = vweird.f32 %v373
        %v1149 = vadd.s32 %v1132, 3
        %v1150 = vand.u32 %v1149, 3
        %vm1151 = vcmp.lt.s32.totalorder %v1150, 2
        %vm1152 = vcmp.eq.s32.totalorder %v1150, 0
        %v1153 = vxor.u32 %v1147, 2147483648
        %v1154 = vsel %vm1152, %v1139, %v1153
        %vm1155 = vcmp.eq.s32.totalorder %v1150, 2
        %v1156 = vxor.u32 %v1139, 2147483648
        %v1157 = vsel %vm1155, %v1156, %v1147
        %v1158 = vsel %vm1151, %v1154, %v1157
        %v1159 = vsel %vm1148, nan, %v1158
        %v1160 = vand.u32 2147483647, %v374
        %vm1161 = vcmp.le.f32.partialorder %v1160, 0.7853982
        %vm1162 = vcmp.lt.s32.totalorder %v374, 0
        %v1163 = vand.u32 %v374, 2139095040
        %v1164 = vshrl.u32 %v1163, 23
        %v1165 = vsub.s32 %v1164, 127
        %v1166 = vand.u32 2147483647, %v374
        %v1167 = vand.u32 %v1166, 8388607
        %v1168 = vor.u32 %v1167, 8388608
        %v1169 = vsub.s32 0, %v1168
        %v1170 = vadd.s32 %v1165, 1
        %vm1171 = vcmp.gt.s32.totalorder %v1170, 0
        %v1172 = vsel %vm1171, %v1170, 0
        %v1173 = vshrl.u32 %v1172, 5
        %v1174 = vand.u32 %v1172, 31
        %v1175 = vsub.s32 32, %v1174
        %v1176 = vshrl.u32 683565275, %v1175
        %v1177 = vshll.u32 683565275, %v1174
        %v1178 = vshrl.u32 2475754826, %v1175
        %v1179 = vor.u32 %v1177, %v1178
        %v1180 = vshll.u32 2475754826, %v1174
        %v1181 = vshrl.u32 2131351028, %v1175
        %v1182 = vor.u32 %v1180, %v1181
        %v1183 = vshll.u32 2131351028, %v1174
        %v1184 = vshrl.u32 2102212464, %v1175
        %v1185 = vor.u32 %v1183, %v1184
        %v1186 = vshll.u32 2102212464, %v1174
        %v1187 = vshrl.u32 920167782, %v1175
        %v1188 = vor.u32 %v1186, %v1187
        %v1189 = vshll.u32 920167782, %v1174
        %v1190 = vshrl.u32 1326507024, %v1175
        %v1191 = vor.u32 %v1189, %v1190
        %vm1192 = vcmp.lt.s32.totalorder %v1173, 1
        %vm1193 = vcmp.lt.s32.totalorder %v1173, 2
        %vm1194 = vcmp.lt.s32.totalorder %v1173, 3
        %vm1195 = vcmp.lt.s32.totalorder %v1173, 4
        %v1196 = vsel %vm1192, %v1176, %v1179
        %v1197 = vsel %vm1195, %v1185, 2102212464
        %v1198 = vsel %vm1194, %v1182, %v1197
        %v1199 = vsel %vm1193, %v1196, %v1198
        %v1200 = vsel %vm1192, %v1179, %v1182
        %v1201 = vsel %vm1195, %v1188, 920167782
        %v1202 = vsel %vm1194, %v1185, %v1201
        %v1203 = vsel %vm1193, %v1200, %v1202
        %v1204 = vsel %vm1192, %v1182, %v1185
        %v1205 = vsel %vm1195, %v1191, 1326507024
        %v1206 = vsel %vm1194, %v1188, %v1205
        %v1207 = vsel %vm1193, %v1204, %v1206
        %v1208 = vshll.u32 %v1168, 8
        %v1209 = vand.u32 %v1208, 65535
        %v1210 = vshrl.u32 %v1208, 16
        %v1211 = vand.u32 %v1207, 65535
        %v1212 = vshrl.u32 %v1207, 16
        %v1213 = vmul.u32 %v1209, %v1211
        %v1214 = vmul.u32 %v1209, %v1212
        %v1215 = vmul.u32 %v1210, %v1211
        %v1216 = vmul.u32 %v1210, %v1212
        %v1217 = vshll.u32 %v1214, 16
        %v1218 = vshrl.u32 %v1214, 16
        %v1219 = vshll.u32 %v1215, 16
        %v1220 = vshrl.u32 %v1215, 16
        %vm1221 = vc.u32 %v1213, %v1217
        %v1222 = vsel %vm1221, 1, 0
        %v1223 = vadd.s32 %v1213, %v1217
        %v1224 = vadd.s32 %v1216, %v1222
        %vm1225 = vc.u32 %v1223, %v1219
        %v1226 = vsel %vm1225, 1, 0
        %v1227 = vadd.s32 %v1223, %v1219
        %v1228 = vadd.s32 %v1224, %v1226
        %v1229 = vadd.s32 %v1228, %v1218
        %v1230 = vadd.s32 %v1229, %v1220
        %v1231 = vand.u32 %v1208, 65535
        %v1232 = vshrl.u32 %v1208, 16
        %v1233 = vand.u32 %v1203, 65535
        %v1234 = vshrl.u32 %v1203, 16
        %v1235 = vmul.u32 %v1231, %v1233
        %v1236 = vmul.u32 %v1231, %v1234
        %v1237 = vmul.u32 %v1232, %v1233
        %v1238 = vmul.u32 %v1232, %v1234
        %v1239 = vshll.u32 %v1236, 16
        %v1240 = vshrl.u32 %v1236, 16
        %v1241 = vshll.u32 %v1237, 16
        %v1242 = vshrl.u32 %v1237, 16
        %vm1243 = vc.u32 %v1235, %v1239
        %v1244 = vsel %vm1243, 1, 0
        %v1245 = vadd.s32 %v1235, %v1239
        %v1246 = vadd.s32 %v1238, %v1244
        %vm1247 = vc.u32 %v1245, %v1241
        %v1248 = vsel %vm1247, 1, 0
        %v1249 = vadd.s32 %v1245, %v1241
        %v1250 = vadd.s32 %v1246, %v1248
        %v1251 = vadd.s32 %v1250, %v1240
        %v1252 = vadd.s32 %v1251, %v1242
        %v1253 = vmul.u32 %v1208, %v1199
        %v1254 = vadd.s32 %v1230, %v1249
        %vm1255 = vc.u32 %v1230, %v1249
        %v1256 = vadd.s32 %v1252, 1
        %v1257 = vsel %vm1255, %v1256, %v1252
        %v1258 = vadd.s32 %v1253, %v1257
        %v1259 = vadd.s32 %v1258, 536870912
        %v1260 = vshrl.u32 %v1259, 30
        %v1261 = vshll.u32 %v1260, 30
        %v1262 = vsub.s32 %v1258, %v1261
        %vm1263 = vcmp.lt.s32.totalorder %v1262, 0
        %v1264 = vsub.s32 0, %v1262
        %v1265 = vsel %vm1263, %v1264, %v1262
        %v1266 = vclz %v1265
        %v1267 = vsub.s32 %v1266, 2
        %vm1268 = vcmp.gt.s32.totalorder 0, %v1267
        %v1269 = vsel %vm1268, 0, %v1267
        %v1270 = vsub.s32 32, %v1269
        %v1271 = vshll.u32 %v1262, %v1269
        %v1272 = vshrl.u32 %v1254, %v1270
        %v1273 = vor.u32 %v1271, %v1272
        %v1274 = vsub.s32 4294967266, %v1269
        %v1275 = vadd.s32 %v1274, 127
        %v1276 = vshll.u32 %v1275, 23
        %v1277 = vor.u32 4788187, %v1276
        %v1278 = vand.u32 2147483647, %v1277
        %v1280 = vcvt.s32.f32 %v1273
        %v1281 = vmul.f32 %v1280, %v1278
        %v1282 = vxor.u32 %v1281, 2147483648
        %v1283 = vsel %vm1162, %v1282, %v1281
        %v1284 = vsub.s32 4, %v1260
        %v1285 = vsel %vm1162, %v1284, %v1260
        %v1286 = vsel %vm1161, %v374, %v1283
        %v1287 = vsel %vm1161, 0, %v1285
        %v1288 = vmul.f32 %v1286, %v1286
        %v1289 = vmul.f32 %v1288, -0.001358992
        %v1290 = vadd.f32 %v1289, 0.041655596
        %v1291 = vmul.f32 %v1288, %v1290
        %v1292 = vadd.f32 %v1291, -0.4999988
        %v1293 = vmul.f32 %v1288, %v1292
        %v1294 = vadd.f32 1.0, %v1293
        %v1295 = vmul.f32 %v1286, %v1286
        %v1296 = vmul.f32 %v1295, -0.00019511016
        %v1297 = vadd.f32 %v1296, 0.008332121
        %v1298 = vmul.f32 %v1295, %v1297
        %v1299 = vadd.f32 %v1298, -0.16666654
        %v1300 = vmul.f32 %v1295, %v1299
        %v1301 = vadd.f32 %v1300, 1.0
        %v1302 = vmul.f32 %v1301, %v1286
        %vm1303 = vweird.f32 %v374
        %v1304 = vadd.s32 %v1287, 3
        %v1305 = vand.u32 %v1304, 3
        %vm1306 = vcmp.lt.s32.totalorder %v1305, 2
        %vm1307 = vcmp.eq.s32.totalorder %v1305, 0
        %v1308 = vxor.u32 %v1302, 2147483648
        %v1309 = vsel %vm1307, %v1294, %v1308
        %vm1310 = vcmp.eq.s32.totalorder %v1305, 2
        %v1311 = vxor.u32 %v1294, 2147483648
        %v1312 = vsel %vm1310, %v1311, %v1302
        %v1313 = vsel %vm1306, %v1309, %v1312
        %v1314 = vsel %vm1303, nan, %v1313
        %v1315 = vand.u32 2147483647, %v375
        %vm1316 = vcmp.le.f32.partialorder %v1315, 0.7853982
        %vm1317 = vcmp.lt.s32.totalorder %v375, 0
        %v1318 = vand.u32 %v375, 2139095040
        %v1319 = vshrl.u32 %v1318, 23
        %v1320 = vsub.s32 %v1319, 127
        %v1321 = vand.u32 2147483647, %v375
        %v1322 = vand.u32 %v1321, 8388607
        %v1323 = vor.u32 %v1322, 8388608
        %v1324 = vsub.s32 0, %v1323
        %v1325 = vadd.s32 %v1320, 1
        %vm1326 = vcmp.gt.s32.totalorder %v1325, 0
        %v1327 = vsel %vm1326, %v1325, 0
        %v1328 = vshrl.u32 %v1327, 5
        %v1329 = vand.u32 %v1327, 31
        %v1330 = vsub.s32 32, %v1329
        %v1331 = vshrl.u32 683565275, %v1330
        %v1332 = vshll.u32 683565275, %v1329
        %v1333 = vshrl.u32 2475754826, %v1330
        %v1334 = vor.u32 %v1332, %v1333
        %v1335 = vshll.u32 2475754826, %v1329
        %v1336 = vshrl.u32 2131351028, %v1330
        %v1337 = vor.u32 %v1335, %v1336
        %v1338 = vshll.u32 2131351028, %v1329
        %v1339 = vshrl.u32 2102212464, %v1330
        %v1340 = vor.u32 %v1338, %v1339
        %v1341 = vshll.u32 2102212464, %v1329
        %v1342 = vshrl.u32 920167782, %v1330
        %v1343 = vor.u32 %v1341, %v1342
        %v1344 = vshll.u32 920167782, %v1329
        %v1345 = vshrl.u32 1326507024, %v1330
        %v1346 = vor.u32 %v1344, %v1345
        %vm1347 = vcmp.lt.s32.totalorder %v1328, 1
        %vm1348 = vcmp.lt.s32.totalorder %v1328, 2
        %vm1349 = vcmp.lt.s32.totalorder %v1328, 3
        %vm1350 = vcmp.lt.s32.totalorder %v1328, 4
        %v1351 = vsel %vm1347, %v1331, %v1334
        %v1352 = vsel %vm1350, %v1340, 2102212464
        %v1353 = vsel %vm1349, %v1337, %v1352
        %v1354 = vsel %vm1348, %v1351, %v1353
        %v1355 = vsel %vm1347, %v1334, %v1337
        %v1356 = vsel %vm1350, %v1343, 920167782
        %v1357 = vsel %vm1349, %v1340, %v1356
        %v1358 = vsel %vm1348, %v1355, %v1357
        %v1359 = vsel %vm1347, %v1337, %v1340
        %v1360 = vsel %vm1350, %v1346, 1326507024
        %v1361 = vsel %vm1349, %v1343, %v1360
        %v1362 = vsel %vm1348, %v1359, %v1361
        %v1363 = vshll.u32 %v1323, 8
        %v1364 = vand.u32 %v1363, 65535
        %v1365 = vshrl.u32 %v1363, 16
        %v1366 = vand.u32 %v1362, 65535
        %v1367 = vshrl.u32 %v1362, 16
        %v1368 = vmul.u32 %v1364, %v1366
        %v1369 = vmul.u32 %v1364, %v1367
        %v1370 = vmul.u32 %v1365, %v1366
        %v1371 = vmul.u32 %v1365, %v1367
        %v1372 = vshll.u32 %v1369, 16
        %v1373 = vshrl.u32 %v1369, 16
        %v1374 = vshll.u32 %v1370, 16
        %v1375 = vshrl.u32 %v1370, 16
        %vm1376 = vc.u32 %v1368, %v1372
        %v1377 = vsel %vm1376, 1, 0
        %v1378 = vadd.s32 %v1368, %v1372
        %v1379 = vadd.s32 %v1371, %v1377
        %vm1380 = vc.u32 %v1378, %v1374
        %v1381 = vsel %vm1380, 1, 0
        %v1382 = vadd.s32 %v1378, %v1374
        %v1383 = vadd.s32 %v1379, %v1381
        %v1384 = vadd.s32 %v1383, %v1373
        %v1385 = vadd.s32 %v1384, %v1375
        %v1386 = vand.u32 %v1363, 65535
        %v1387 = vshrl.u32 %v1363, 16
        %v1388 = vand.u32 %v1358, 65535
        %v1389 = vshrl.u32 %v1358, 16
        %v1390 = vmul.u32 %v1386, %v1388
        %v1391 = vmul.u32 %v1386, %v1389
        %v1392 = vmul.u32 %v1387, %v1388
        %v1393 = vmul.u32 %v1387, %v1389
        %v1394 = vshll.u32 %v1391, 16
        %v1395 = vshrl.u32 %v1391, 16
        %v1396 = vshll.u32 %v1392, 16
        %v1397 = vshrl.u32 %v1392, 16
        %vm1398 = vc.u32 %v1390, %v1394
        %v1399 = vsel %vm1398, 1, 0
        %v1400 = vadd.s32 %v1390, %v1394
        %v1401 = vadd.s32 %v1393, %v1399
        %vm1402 = vc.u32 %v1400, %v1396
        %v1403 = vsel %vm1402, 1, 0
        %v1404 = vadd.s32 %v1400, %v1396
        %v1405 = vadd.s32 %v1401, %v1403
        %v1406 = vadd.s32 %v1405, %v1395
        %v1407 = vadd.s32 %v1406, %v1397
        %v1408 = vmul.u32 %v1363, %v1354
        %v1409 = vadd.s32 %v1385, %v1404
        %vm1410 = vc.u32 %v1385, %v1404
        %v1411 = vadd.s32 %v1407, 1
        %v1412 = vsel %vm1410, %v1411, %v1407
        %v1413 = vadd.s32 %v1408, %v1412
        %v1414 = vadd.s32 %v1413, 536870912
        %v1415 = vshrl.u32 %v1414, 30
        %v1416 = vshll.u32 %v1415, 30
        %v1417 = vsub.s32 %v1413, %v1416
        %vm1418 = vcmp.lt.s32.totalorder %v1417, 0
        %v1419 = vsub.s32 0, %v1417
        %v1420 = vsel %vm1418, %v1419, %v1417
        %v1421 = vclz %v1420
        %v1422 = vsub.s32 %v1421, 2
        %vm1423 = vcmp.gt.s32.totalorder 0, %v1422
        %v1424 = vsel %vm1423, 0, %v1422
        %v1425 = vsub.s32 32, %v1424
        %v1426 = vshll.u32 %v1417, %v1424
        %v1427 = vshrl.u32 %v1409, %v1425
        %v1428 = vor.u32 %v1426, %v1427
        %v1429 = vsub.s32 4294967266, %v1424
        %v1430 = vadd.s32 %v1429, 127
        %v1431 = vshll.u32 %v1430, 23
        %v1432 = vor.u32 4788187, %v1431
        %v1433 = vand.u32 2147483647, %v1432
        %v1435 = vcvt.s32.f32 %v1428
        %v1436 = vmul.f32 %v1435, %v1433
        %v1437 = vxor.u32 %v1436, 2147483648
        %v1438 = vsel %vm1317, %v1437, %v1436
        %v1439 = vsub.s32 4, %v1415
        %v1440 = vsel %vm1317, %v1439, %v1415
        %v1441 = vsel %vm1316, %v375, %v1438
        %v1442 = vsel %vm1316, 0, %v1440
        %v1443 = vmul.f32 %v1441, %v1441
        %v1444 = vmul.f32 %v1443, -0.001358992
        %v1445 = vadd.f32 %v1444, 0.041655596
        %v1446 = vmul.f32 %v1443, %v1445
        %v1447 = vadd.f32 %v1446, -0.4999988
        %v1448 = vmul.f32 %v1443, %v1447
        %v1449 = vadd.f32 1.0, %v1448
        %v1450 = vmul.f32 %v1441, %v1441
        %v1451 = vmul.f32 %v1450, -0.00019511016
        %v1452 = vadd.f32 %v1451, 0.008332121
        %v1453 = vmul.f32 %v1450, %v1452
        %v1454 = vadd.f32 %v1453, -0.16666654
        %v1455 = vmul.f32 %v1450, %v1454
        %v1456 = vadd.f32 %v1455, 1.0
        %v1457 = vmul.f32 %v1456, %v1441
        %vm1458 = vweird.f32 %v375
        %v1459 = vadd.s32 %v1442, 3
        %v1460 = vand.u32 %v1459, 3
        %vm1461 = vcmp.lt.s32.totalorder %v1460, 2
        %vm1462 = vcmp.eq.s32.totalorder %v1460, 0
        %v1463 = vxor.u32 %v1457, 2147483648
        %v1464 = vsel %vm1462, %v1449, %v1463
        %vm1465 = vcmp.eq.s32.totalorder %v1460, 2
        %v1466 = vxor.u32 %v1449, 2147483648
        %v1467 = vsel %vm1465, %v1466, %v1457
        %v1468 = vsel %vm1461, %v1464, %v1467
        %v1469 = vsel %vm1458, nan, %v1468
        %v1470 = vand.u32 2147483647, %v376
        %vm1471 = vcmp.le.f32.partialorder %v1470, 0.7853982
        %vm1472 = vcmp.lt.s32.totalorder %v376, 0
        %v1473 = vand.u32 %v376, 2139095040
        %v1474 = vshrl.u32 %v1473, 23
        %v1475 = vsub.s32 %v1474, 127
        %v1476 = vand.u32 2147483647, %v376
        %v1477 = vand.u32 %v1476, 8388607
        %v1478 = vor.u32 %v1477, 8388608
        %v1479 = vsub.s32 0, %v1478
        %v1480 = vadd.s32 %v1475, 1
        %vm1481 = vcmp.gt.s32.totalorder %v1480, 0
        %v1482 = vsel %vm1481, %v1480, 0
        %v1483 = vshrl.u32 %v1482, 5
        %v1484 = vand.u32 %v1482, 31
        %v1485 = vsub.s32 32, %v1484
        %v1486 = vshrl.u32 683565275, %v1485
        %v1487 = vshll.u32 683565275, %v1484
        %v1488 = vshrl.u32 2475754826, %v1485
        %v1489 = vor.u32 %v1487, %v1488
        %v1490 = vshll.u32 2475754826, %v1484
        %v1491 = vshrl.u32 2131351028, %v1485
        %v1492 = vor.u32 %v1490, %v1491
        %v1493 = vshll.u32 2131351028, %v1484
        %v1494 = vshrl.u32 2102212464, %v1485
        %v1495 = vor.u32 %v1493, %v1494
        %v1496 = vshll.u32 2102212464, %v1484
        %v1497 = vshrl.u32 920167782, %v1485
        %v1498 = vor.u32 %v1496, %v1497
        %v1499 = vshll.u32 920167782, %v1484
        %v1500 = vshrl.u32 1326507024, %v1485
        %v1501 = vor.u32 %v1499, %v1500
        %vm1502 = vcmp.lt.s32.totalorder %v1483, 1
        %vm1503 = vcmp.lt.s32.totalorder %v1483, 2
        %vm1504 = vcmp.lt.s32.totalorder %v1483, 3
        %vm1505 = vcmp.lt.s32.totalorder %v1483, 4
        %v1506 = vsel %vm1502, %v1486, %v1489
        %v1507 = vsel %vm1505, %v1495, 2102212464
        %v1508 = vsel %vm1504, %v1492, %v1507
        %v1509 = vsel %vm1503, %v1506, %v1508
        %v1510 = vsel %vm1502, %v1489, %v1492
        %v1511 = vsel %vm1505, %v1498, 920167782
        %v1512 = vsel %vm1504, %v1495, %v1511
        %v1513 = vsel %vm1503, %v1510, %v1512
        %v1514 = vsel %vm1502, %v1492, %v1495
        %v1515 = vsel %vm1505, %v1501, 1326507024
        %v1516 = vsel %vm1504, %v1498, %v1515
        %v1517 = vsel %vm1503, %v1514, %v1516
        %v1518 = vshll.u32 %v1478, 8
        %v1519 = vand.u32 %v1518, 65535
        %v1520 = vshrl.u32 %v1518, 16
        %v1521 = vand.u32 %v1517, 65535
        %v1522 = vshrl.u32 %v1517, 16
        %v1523 = vmul.u32 %v1519, %v1521
        %v1524 = vmul.u32 %v1519, %v1522
        %v1525 = vmul.u32 %v1520, %v1521
        %v1526 = vmul.u32 %v1520, %v1522
        %v1527 = vshll.u32 %v1524, 16
        %v1528 = vshrl.u32 %v1524, 16
        %v1529 = vshll.u32 %v1525, 16
        %v1530 = vshrl.u32 %v1525, 16
        %vm1531 = vc.u32 %v1523, %v1527
        %v1532 = vsel %vm1531, 1, 0
        %v1533 = vadd.s32 %v1523, %v1527
        %v1534 = vadd.s32 %v1526, %v1532
        %vm1535 = vc.u32 %v1533, %v1529
        %v1536 = vsel %vm1535, 1, 0
        %v1537 = vadd.s32 %v1533, %v1529
        %v1538 = vadd.s32 %v1534, %v1536
        %v1539 = vadd.s32 %v1538, %v1528
        %v1540 = vadd.s32 %v1539, %v1530
        %v1541 = vand.u32 %v1518, 65535
        %v1542 = vshrl.u32 %v1518, 16
        %v1543 = vand.u32 %v1513, 65535
        %v1544 = vshrl.u32 %v1513, 16
        %v1545 = vmul.u32 %v1541, %v1543
        %v1546 = vmul.u32 %v1541, %v1544
        %v1547 = vmul.u32 %v1542, %v1543
        %v1548 = vmul.u32 %v1542, %v1544
        %v1549 = vshll.u32 %v1546, 16
        %v1550 = vshrl.u32 %v1546, 16
        %v1551 = vshll.u32 %v1547, 16
        %v1552 = vshrl.u32 %v1547, 16
        %vm1553 = vc.u32 %v1545, %v1549
        %v1554 = vsel %vm1553, 1, 0
        %v1555 = vadd.s32 %v1545, %v1549
        %v1556 = vadd.s32 %v1548, %v1554
        %vm1557 = vc.u32 %v1555, %v1551
        %v1558 = vsel %vm1557, 1, 0
        %v1559 = vadd.s32 %v1555, %v1551
        %v1560 = vadd.s32 %v1556, %v1558
        %v1561 = vadd.s32 %v1560, %v1550
        %v1562 = vadd.s32 %v1561, %v1552
        %v1563 = vmul.u32 %v1518, %v1509
        %v1564 = vadd.s32 %v1540, %v1559
        %vm1565 = vc.u32 %v1540, %v1559
        %v1566 = vadd.s32 %v1562, 1
        %v1567 = vsel %vm1565, %v1566, %v1562
        %v1568 = vadd.s32 %v1563, %v1567
        %v1569 = vadd.s32 %v1568, 536870912
        %v1570 = vshrl.u32 %v1569, 30
        %v1571 = vshll.u32 %v1570, 30
        %v1572 = vsub.s32 %v1568, %v1571
        %vm1573 = vcmp.lt.s32.totalorder %v1572, 0
        %v1574 = vsub.s32 0, %v1572
        %v1575 = vsel %vm1573, %v1574, %v1572
        %v1576 = vclz %v1575
        %v1577 = vsub.s32 %v1576, 2
        %vm1578 = vcmp.gt.s32.totalorder 0, %v1577
        %v1579 = vsel %vm1578, 0, %v1577
        %v1580 = vsub.s32 32, %v1579
        %v1581 = vshll.u32 %v1572, %v1579
        %v1582 = vshrl.u32 %v1564, %v1580
        %v1583 = vor.u32 %v1581, %v1582
        %v1584 = vsub.s32 4294967266, %v1579
        %v1585 = vadd.s32 %v1584, 127
        %v1586 = vshll.u32 %v1585, 23
        %v1587 = vor.u32 4788187, %v1586
        %v1588 = vand.u32 2147483647, %v1587
        %v1590 = vcvt.s32.f32 %v1583
        %v1591 = vmul.f32 %v1590, %v1588
        %v1592 = vxor.u32 %v1591, 2147483648
        %v1593 = vsel %vm1472, %v1592, %v1591
        %v1594 = vsub.s32 4, %v1570
        %v1595 = vsel %vm1472, %v1594, %v1570
        %v1596 = vsel %vm1471, %v376, %v1593
        %v1597 = vsel %vm1471, 0, %v1595
        %v1598 = vmul.f32 %v1596, %v1596
        %v1599 = vmul.f32 %v1598, -0.001358992
        %v1600 = vadd.f32 %v1599, 0.041655596
        %v1601 = vmul.f32 %v1598, %v1600
        %v1602 = vadd.f32 %v1601, -0.4999988
        %v1603 = vmul.f32 %v1598, %v1602
        %v1604 = vadd.f32 1.0, %v1603
        %v1605 = vmul.f32 %v1596, %v1596
        %v1606 = vmul.f32 %v1605, -0.00019511016
        %v1607 = vadd.f32 %v1606, 0.008332121
        %v1608 = vmul.f32 %v1605, %v1607
        %v1609 = vadd.f32 %v1608, -0.16666654
        %v1610 = vmul.f32 %v1605, %v1609
        %v1611 = vadd.f32 %v1610, 1.0
        %v1612 = vmul.f32 %v1611, %v1596
        %vm1613 = vweird.f32 %v376
        %v1614 = vadd.s32 %v1597, 3
        %v1615 = vand.u32 %v1614, 3
        %vm1616 = vcmp.lt.s32.totalorder %v1615, 2
        %vm1617 = vcmp.eq.s32.totalorder %v1615, 0
        %v1618 = vxor.u32 %v1612, 2147483648
        %v1619 = vsel %vm1617, %v1604, %v1618
        %vm1620 = vcmp.eq.s32.totalorder %v1615, 2
        %v1621 = vxor.u32 %v1604, 2147483648
        %v1622 = vsel %vm1620, %v1621, %v1612
        %v1623 = vsel %vm1616, %v1619, %v1622
        %v1624 = vsel %vm1613, nan, %v1623
        %v1625 = vand.u32 2147483647, %v377
        %vm1626 = vcmp.le.f32.partialorder %v1625, 0.7853982
        %vm1627 = vcmp.lt.s32.totalorder %v377, 0
        %v1628 = vand.u32 %v377, 2139095040
        %v1629 = vshrl.u32 %v1628, 23
        %v1630 = vsub.s32 %v1629, 127
        %v1631 = vand.u32 2147483647, %v377
        %v1632 = vand.u32 %v1631, 8388607
        %v1633 = vor.u32 %v1632, 8388608
        %v1634 = vsub.s32 0, %v1633
        %v1635 = vadd.s32 %v1630, 1
        %vm1636 = vcmp.gt.s32.totalorder %v1635, 0
        %v1637 = vsel %vm1636, %v1635, 0
        %v1638 = vshrl.u32 %v1637, 5
        %v1639 = vand.u32 %v1637, 31
        %v1640 = vsub.s32 32, %v1639
        %v1641 = vshrl.u32 683565275, %v1640
        %v1642 = vshll.u32 683565275, %v1639
        %v1643 = vshrl.u32 2475754826, %v1640
        %v1644 = vor.u32 %v1642, %v1643
        %v1645 = vshll.u32 2475754826, %v1639
        %v1646 = vshrl.u32 2131351028, %v1640
        %v1647 = vor.u32 %v1645, %v1646
        %v1648 = vshll.u32 2131351028, %v1639
        %v1649 = vshrl.u32 2102212464, %v1640
        %v1650 = vor.u32 %v1648, %v1649
        %v1651 = vshll.u32 2102212464, %v1639
        %v1652 = vshrl.u32 920167782, %v1640
        %v1653 = vor.u32 %v1651, %v1652
        %v1654 = vshll.u32 920167782, %v1639
        %v1655 = vshrl.u32 1326507024, %v1640
        %v1656 = vor.u32 %v1654, %v1655
        %vm1657 = vcmp.lt.s32.totalorder %v1638, 1
        %vm1658 = vcmp.lt.s32.totalorder %v1638, 2
        %vm1659 = vcmp.lt.s32.totalorder %v1638, 3
        %vm1660 = vcmp.lt.s32.totalorder %v1638, 4
        %v1661 = vsel %vm1657, %v1641, %v1644
        %v1662 = vsel %vm1660, %v1650, 2102212464
        %v1663 = vsel %vm1659, %v1647, %v1662
        %v1664 = vsel %vm1658, %v1661, %v1663
        %v1665 = vsel %vm1657, %v1644, %v1647
        %v1666 = vsel %vm1660, %v1653, 920167782
        %v1667 = vsel %vm1659, %v1650, %v1666
        %v1668 = vsel %vm1658, %v1665, %v1667
        %v1669 = vsel %vm1657, %v1647, %v1650
        %v1670 = vsel %vm1660, %v1656, 1326507024
        %v1671 = vsel %vm1659, %v1653, %v1670
        %v1672 = vsel %vm1658, %v1669, %v1671
        %v1673 = vshll.u32 %v1633, 8
        %v1674 = vand.u32 %v1673, 65535
        %v1675 = vshrl.u32 %v1673, 16
        %v1676 = vand.u32 %v1672, 65535
        %v1677 = vshrl.u32 %v1672, 16
        %v1678 = vmul.u32 %v1674, %v1676
        %v1679 = vmul.u32 %v1674, %v1677
        %v1680 = vmul.u32 %v1675, %v1676
        %v1681 = vmul.u32 %v1675, %v1677
        %v1682 = vshll.u32 %v1679, 16
        %v1683 = vshrl.u32 %v1679, 16
        %v1684 = vshll.u32 %v1680, 16
        %v1685 = vshrl.u32 %v1680, 16
        %vm1686 = vc.u32 %v1678, %v1682
        %v1687 = vsel %vm1686, 1, 0
        %v1688 = vadd.s32 %v1678, %v1682
        %v1689 = vadd.s32 %v1681, %v1687
        %vm1690 = vc.u32 %v1688, %v1684
        %v1691 = vsel %vm1690, 1, 0
        %v1692 = vadd.s32 %v1688, %v1684
        %v1693 = vadd.s32 %v1689, %v1691
        %v1694 = vadd.s32 %v1693, %v1683
        %v1695 = vadd.s32 %v1694, %v1685
        %v1696 = vand.u32 %v1673, 65535
        %v1697 = vshrl.u32 %v1673, 16
        %v1698 = vand.u32 %v1668, 65535
        %v1699 = vshrl.u32 %v1668, 16
        %v1700 = vmul.u32 %v1696, %v1698
        %v1701 = vmul.u32 %v1696, %v1699
        %v1702 = vmul.u32 %v1697, %v1698
        %v1703 = vmul.u32 %v1697, %v1699
        %v1704 = vshll.u32 %v1701, 16
        %v1705 = vshrl.u32 %v1701, 16
        %v1706 = vshll.u32 %v1702, 16
        %v1707 = vshrl.u32 %v1702, 16
        %vm1708 = vc.u32 %v1700, %v1704
        %v1709 = vsel %vm1708, 1, 0
        %v1710 = vadd.s32 %v1700, %v1704
        %v1711 = vadd.s32 %v1703, %v1709
        %vm1712 = vc.u32 %v1710, %v1706
        %v1713 = vsel %vm1712, 1, 0
        %v1714 = vadd.s32 %v1710, %v1706
        %v1715 = vadd.s32 %v1711, %v1713
        %v1716 = vadd.s32 %v1715, %v1705
        %v1717 = vadd.s32 %v1716, %v1707
        %v1718 = vmul.u32 %v1673, %v1664
        %v1719 = vadd.s32 %v1695, %v1714
        %vm1720 = vc.u32 %v1695, %v1714
        %v1721 = vadd.s32 %v1717, 1
        %v1722 = vsel %vm1720, %v1721, %v1717
        %v1723 = vadd.s32 %v1718, %v1722
        %v1724 = vadd.s32 %v1723, 536870912
        %v1725 = vshrl.u32 %v1724, 30
        %v1726 = vshll.u32 %v1725, 30
        %v1727 = vsub.s32 %v1723, %v1726
        %vm1728 = vcmp.lt.s32.totalorder %v1727, 0
        %v1729 = vsub.s32 0, %v1727
        %v1730 = vsel %vm1728, %v1729, %v1727
        %v1731 = vclz %v1730
        %v1732 = vsub.s32 %v1731, 2
        %vm1733 = vcmp.gt.s32.totalorder 0, %v1732
        %v1734 = vsel %vm1733, 0, %v1732
        %v1735 = vsub.s32 32, %v1734
        %v1736 = vshll.u32 %v1727, %v1734
        %v1737 = vshrl.u32 %v1719, %v1735
        %v1738 = vor.u32 %v1736, %v1737
        %v1739 = vsub.s32 4294967266, %v1734
        %v1740 = vadd.s32 %v1739, 127
        %v1741 = vshll.u32 %v1740, 23
        %v1742 = vor.u32 4788187, %v1741
        %v1743 = vand.u32 2147483647, %v1742
        %v1745 = vcvt.s32.f32 %v1738
        %v1746 = vmul.f32 %v1745, %v1743
        %v1747 = vxor.u32 %v1746, 2147483648
        %v1748 = vsel %vm1627, %v1747, %v1746
        %v1749 = vsub.s32 4, %v1725
        %v1750 = vsel %vm1627, %v1749, %v1725
        %v1751 = vsel %vm1626, %v377, %v1748
        %v1752 = vsel %vm1626, 0, %v1750
        %v1753 = vmul.f32 %v1751, %v1751
        %v1754 = vmul.f32 %v1753, -0.001358992
        %v1755 = vadd.f32 %v1754, 0.041655596
        %v1756 = vmul.f32 %v1753, %v1755
        %v1757 = vadd.f32 %v1756, -0.4999988
        %v1758 = vmul.f32 %v1753, %v1757
        %v1759 = vadd.f32 1.0, %v1758
        %v1760 = vmul.f32 %v1751, %v1751
        %v1761 = vmul.f32 %v1760, -0.00019511016
        %v1762 = vadd.f32 %v1761, 0.008332121
        %v1763 = vmul.f32 %v1760, %v1762
        %v1764 = vadd.f32 %v1763, -0.16666654
        %v1765 = vmul.f32 %v1760, %v1764
        %v1766 = vadd.f32 %v1765, 1.0
        %v1767 = vmul.f32 %v1766, %v1751
        %vm1768 = vweird.f32 %v377
        %v1769 = vadd.s32 %v1752, 3
        %v1770 = vand.u32 %v1769, 3
        %vm1771 = vcmp.lt.s32.totalorder %v1770, 2
        %vm1772 = vcmp.eq.s32.totalorder %v1770, 0
        %v1773 = vxor.u32 %v1767, 2147483648
        %v1774 = vsel %vm1772, %v1759, %v1773
        %vm1775 = vcmp.eq.s32.totalorder %v1770, 2
        %v1776 = vxor.u32 %v1759, 2147483648
        %v1777 = vsel %vm1775, %v1776, %v1767
        %v1778 = vsel %vm1771, %v1774, %v1777
        %v1779 = vsel %vm1768, nan, %v1778
        %v1780 = vand.u32 2147483647, %v378
        %vm1781 = vcmp.le.f32.partialorder %v1780, 0.7853982
        %vm1782 = vcmp.lt.s32.totalorder %v378, 0
        %v1783 = vand.u32 %v378, 2139095040
        %v1784 = vshrl.u32 %v1783, 23
        %v1785 = vsub.s32 %v1784, 127
        %v1786 = vand.u32 2147483647, %v378
        %v1787 = vand.u32 %v1786, 8388607
        %v1788 = vor.u32 %v1787, 8388608
        %v1789 = vsub.s32 0, %v1788
        %v1790 = vadd.s32 %v1785, 1
        %vm1791 = vcmp.gt.s32.totalorder %v1790, 0
        %v1792 = vsel %vm1791, %v1790, 0
        %v1793 = vshrl.u32 %v1792, 5
        %v1794 = vand.u32 %v1792, 31
        %v1795 = vsub.s32 32, %v1794
        %v1796 = vshrl.u32 683565275, %v1795
        %v1797 = vshll.u32 683565275, %v1794
        %v1798 = vshrl.u32 2475754826, %v1795
        %v1799 = vor.u32 %v1797, %v1798
        %v1800 = vshll.u32 2475754826, %v1794
        %v1801 = vshrl.u32 2131351028, %v1795
        %v1802 = vor.u32 %v1800, %v1801
        %v1803 = vshll.u32 2131351028, %v1794
        %v1804 = vshrl.u32 2102212464, %v1795
        %v1805 = vor.u32 %v1803, %v1804
        %v1806 = vshll.u32 2102212464, %v1794
        %v1807 = vshrl.u32 920167782, %v1795
        %v1808 = vor.u32 %v1806, %v1807
        %v1809 = vshll.u32 920167782, %v1794
        %v1810 = vshrl.u32 1326507024, %v1795
        %v1811 = vor.u32 %v1809, %v1810
        %vm1812 = vcmp.lt.s32.totalorder %v1793, 1
        %vm1813 = vcmp.lt.s32.totalorder %v1793, 2
        %vm1814 = vcmp.lt.s32.totalorder %v1793, 3
        %vm1815 = vcmp.lt.s32.totalorder %v1793, 4
        %v1816 = vsel %vm1812, %v1796, %v1799
        %v1817 = vsel %vm1815, %v1805, 2102212464
        %v1818 = vsel %vm1814, %v1802, %v1817
        %v1819 = vsel %vm1813, %v1816, %v1818
        %v1820 = vsel %vm1812, %v1799, %v1802
        %v1821 = vsel %vm1815, %v1808, 920167782
        %v1822 = vsel %vm1814, %v1805, %v1821
        %v1823 = vsel %vm1813, %v1820, %v1822
        %v1824 = vsel %vm1812, %v1802, %v1805
        %v1825 = vsel %vm1815, %v1811, 1326507024
        %v1826 = vsel %vm1814, %v1808, %v1825
        %v1827 = vsel %vm1813, %v1824, %v1826
        %v1828 = vshll.u32 %v1788, 8
        %v1829 = vand.u32 %v1828, 65535
        %v1830 = vshrl.u32 %v1828, 16
        %v1831 = vand.u32 %v1827, 65535
        %v1832 = vshrl.u32 %v1827, 16
        %v1833 = vmul.u32 %v1829, %v1831
        %v1834 = vmul.u32 %v1829, %v1832
        %v1835 = vmul.u32 %v1830, %v1831
        %v1836 = vmul.u32 %v1830, %v1832
        %v1837 = vshll.u32 %v1834, 16
        %v1838 = vshrl.u32 %v1834, 16
        %v1839 = vshll.u32 %v1835, 16
        %v1840 = vshrl.u32 %v1835, 16
        %vm1841 = vc.u32 %v1833, %v1837
        %v1842 = vsel %vm1841, 1, 0
        %v1843 = vadd.s32 %v1833, %v1837
        %v1844 = vadd.s32 %v1836, %v1842
        %vm1845 = vc.u32 %v1843, %v1839
        %v1846 = vsel %vm1845, 1, 0
        %v1847 = vadd.s32 %v1843, %v1839
        %v1848 = vadd.s32 %v1844, %v1846
        %v1849 = vadd.s32 %v1848, %v1838
        %v1850 = vadd.s32 %v1849, %v1840
        %v1851 = vand.u32 %v1828, 65535
        %v1852 = vshrl.u32 %v1828, 16
        %v1853 = vand.u32 %v1823, 65535
        %v1854 = vshrl.u32 %v1823, 16
        %v1855 = vmul.u32 %v1851, %v1853
        %v1856 = vmul.u32 %v1851, %v1854
        %v1857 = vmul.u32 %v1852, %v1853
        %v1858 = vmul.u32 %v1852, %v1854
        %v1859 = vshll.u32 %v1856, 16
        %v1860 = vshrl.u32 %v1856, 16
        %v1861 = vshll.u32 %v1857, 16
        %v1862 = vshrl.u32 %v1857, 16
        %vm1863 = vc.u32 %v1855, %v1859
        %v1864 = vsel %vm1863, 1, 0
        %v1865 = vadd.s32 %v1855, %v1859
        %v1866 = vadd.s32 %v1858, %v1864
        %vm1867 = vc.u32 %v1865, %v1861
        %v1868 = vsel %vm1867, 1, 0
        %v1869 = vadd.s32 %v1865, %v1861
        %v1870 = vadd.s32 %v1866, %v1868
        %v1871 = vadd.s32 %v1870, %v1860
        %v1872 = vadd.s32 %v1871, %v1862
        %v1873 = vmul.u32 %v1828, %v1819
        %v1874 = vadd.s32 %v1850, %v1869
        %vm1875 = vc.u32 %v1850, %v1869
        %v1876 = vadd.s32 %v1872, 1
        %v1877 = vsel %vm1875, %v1876, %v1872
        %v1878 = vadd.s32 %v1873, %v1877
        %v1879 = vadd.s32 %v1878, 536870912
        %v1880 = vshrl.u32 %v1879, 30
        %v1881 = vshll.u32 %v1880, 30
        %v1882 = vsub.s32 %v1878, %v1881
        %vm1883 = vcmp.lt.s32.totalorder %v1882, 0
        %v1884 = vsub.s32 0, %v1882
        %v1885 = vsel %vm1883, %v1884, %v1882
        %v1886 = vclz %v1885
        %v1887 = vsub.s32 %v1886, 2
        %vm1888 = vcmp.gt.s32.totalorder 0, %v1887
        %v1889 = vsel %vm1888, 0, %v1887
        %v1890 = vsub.s32 32, %v1889
        %v1891 = vshll.u32 %v1882, %v1889
        %v1892 = vshrl.u32 %v1874, %v1890
        %v1893 = vor.u32 %v1891, %v1892
        %v1894 = vsub.s32 4294967266, %v1889
        %v1895 = vadd.s32 %v1894, 127
        %v1896 = vshll.u32 %v1895, 23
        %v1897 = vor.u32 4788187, %v1896
        %v1898 = vand.u32 2147483647, %v1897
        %v1900 = vcvt.s32.f32 %v1893
        %v1901 = vmul.f32 %v1900, %v1898
        %v1902 = vxor.u32 %v1901, 2147483648
        %v1903 = vsel %vm1782, %v1902, %v1901
        %v1904 = vsub.s32 4, %v1880
        %v1905 = vsel %vm1782, %v1904, %v1880
        %v1906 = vsel %vm1781, %v378, %v1903
        %v1907 = vsel %vm1781, 0, %v1905
        %v1908 = vmul.f32 %v1906, %v1906
        %v1909 = vmul.f32 %v1908, -0.001358992
        %v1910 = vadd.f32 %v1909, 0.041655596
        %v1911 = vmul.f32 %v1908, %v1910
        %v1912 = vadd.f32 %v1911, -0.4999988
        %v1913 = vmul.f32 %v1908, %v1912
        %v1914 = vadd.f32 1.0, %v1913
        %v1915 = vmul.f32 %v1906, %v1906
        %v1916 = vmul.f32 %v1915, -0.00019511016
        %v1917 = vadd.f32 %v1916, 0.008332121
        %v1918 = vmul.f32 %v1915, %v1917
        %v1919 = vadd.f32 %v1918, -0.16666654
        %v1920 = vmul.f32 %v1915, %v1919
        %v1921 = vadd.f32 %v1920, 1.0
        %v1922 = vmul.f32 %v1921, %v1906
        %vm1923 = vweird.f32 %v378
        %v1924 = vadd.s32 %v1907, 3
        %v1925 = vand.u32 %v1924, 3
        %vm1926 = vcmp.lt.s32.totalorder %v1925, 2
        %vm1927 = vcmp.eq.s32.totalorder %v1925, 0
        %v1928 = vxor.u32 %v1922, 2147483648
        %v1929 = vsel %vm1927, %v1914, %v1928
        %vm1930 = vcmp.eq.s32.totalorder %v1925, 2
        %v1931 = vxor.u32 %v1914, 2147483648
        %v1932 = vsel %vm1930, %v1931, %v1922
        %v1933 = vsel %vm1926, %v1929, %v1932
        %v1934 = vsel %vm1923, nan, %v1933
        %v1935 = vand.u32 2147483647, %v379
        %vm1936 = vcmp.le.f32.partialorder %v1935, 0.7853982
        %vm1937 = vcmp.lt.s32.totalorder %v379, 0
        %v1938 = vand.u32 %v379, 2139095040
        %v1939 = vshrl.u32 %v1938, 23
        %v1940 = vsub.s32 %v1939, 127
        %v1941 = vand.u32 2147483647, %v379
        %v1942 = vand.u32 %v1941, 8388607
        %v1943 = vor.u32 %v1942, 8388608
        %v1944 = vsub.s32 0, %v1943
        %v1945 = vadd.s32 %v1940, 1
        %vm1946 = vcmp.gt.s32.totalorder %v1945, 0
        %v1947 = vsel %vm1946, %v1945, 0
        %v1948 = vshrl.u32 %v1947, 5
        %v1949 = vand.u32 %v1947, 31
        %v1950 = vsub.s32 32, %v1949
        %v1951 = vshrl.u32 683565275, %v1950
        %v1952 = vshll.u32 683565275, %v1949
        %v1953 = vshrl.u32 2475754826, %v1950
        %v1954 = vor.u32 %v1952, %v1953
        %v1955 = vshll.u32 2475754826, %v1949
        %v1956 = vshrl.u32 2131351028, %v1950
        %v1957 = vor.u32 %v1955, %v1956
        %v1958 = vshll.u32 2131351028, %v1949
        %v1959 = vshrl.u32 2102212464, %v1950
        %v1960 = vor.u32 %v1958, %v1959
        %v1961 = vshll.u32 2102212464, %v1949
        %v1962 = vshrl.u32 920167782, %v1950
        %v1963 = vor.u32 %v1961, %v1962
        %v1964 = vshll.u32 920167782, %v1949
        %v1965 = vshrl.u32 1326507024, %v1950
        %v1966 = vor.u32 %v1964, %v1965
        %vm1967 = vcmp.lt.s32.totalorder %v1948, 1
        %vm1968 = vcmp.lt.s32.totalorder %v1948, 2
        %vm1969 = vcmp.lt.s32.totalorder %v1948, 3
        %vm1970 = vcmp.lt.s32.totalorder %v1948, 4
        %v1971 = vsel %vm1967, %v1951, %v1954
        %v1972 = vsel %vm1970, %v1960, 2102212464
        %v1973 = vsel %vm1969, %v1957, %v1972
        %v1974 = vsel %vm1968, %v1971, %v1973
        %v1975 = vsel %vm1967, %v1954, %v1957
        %v1976 = vsel %vm1970, %v1963, 920167782
        %v1977 = vsel %vm1969, %v1960, %v1976
        %v1978 = vsel %vm1968, %v1975, %v1977
        %v1979 = vsel %vm1967, %v1957, %v1960
        %v1980 = vsel %vm1970, %v1966, 1326507024
        %v1981 = vsel %vm1969, %v1963, %v1980
        %v1982 = vsel %vm1968, %v1979, %v1981
        %v1983 = vshll.u32 %v1943, 8
        %v1984 = vand.u32 %v1983, 65535
        %v1985 = vshrl.u32 %v1983, 16
        %v1986 = vand.u32 %v1982, 65535
        %v1987 = vshrl.u32 %v1982, 16
        %v1988 = vmul.u32 %v1984, %v1986
        %v1989 = vmul.u32 %v1984, %v1987
        %v1990 = vmul.u32 %v1985, %v1986
        %v1991 = vmul.u32 %v1985, %v1987
        %v1992 = vshll.u32 %v1989, 16
        %v1993 = vshrl.u32 %v1989, 16
        %v1994 = vshll.u32 %v1990, 16
        %v1995 = vshrl.u32 %v1990, 16
        %vm1996 = vc.u32 %v1988, %v1992
        %v1997 = vsel %vm1996, 1, 0
        %v1998 = vadd.s32 %v1988, %v1992
        %v1999 = vadd.s32 %v1991, %v1997
        %vm2000 = vc.u32 %v1998, %v1994
        %v2001 = vsel %vm2000, 1, 0
        %v2002 = vadd.s32 %v1998, %v1994
        %v2003 = vadd.s32 %v1999, %v2001
        %v2004 = vadd.s32 %v2003, %v1993
        %v2005 = vadd.s32 %v2004, %v1995
        %v2006 = vand.u32 %v1983, 65535
        %v2007 = vshrl.u32 %v1983, 16
        %v2008 = vand.u32 %v1978, 65535
        %v2009 = vshrl.u32 %v1978, 16
        %v2010 = vmul.u32 %v2006, %v2008
        %v2011 = vmul.u32 %v2006, %v2009
        %v2012 = vmul.u32 %v2007, %v2008
        %v2013 = vmul.u32 %v2007, %v2009
        %v2014 = vshll.u32 %v2011, 16
        %v2015 = vshrl.u32 %v2011, 16
        %v2016 = vshll.u32 %v2012, 16
        %v2017 = vshrl.u32 %v2012, 16
        %vm2018 = vc.u32 %v2010, %v2014
        %v2019 = vsel %vm2018, 1, 0
        %v2020 = vadd.s32 %v2010, %v2014
        %v2021 = vadd.s32 %v2013, %v2019
        %vm2022 = vc.u32 %v2020, %v2016
        %v2023 = vsel %vm2022, 1, 0
        %v2024 = vadd.s32 %v2020, %v2016
        %v2025 = vadd.s32 %v2021, %v2023
        %v2026 = vadd.s32 %v2025, %v2015
        %v2027 = vadd.s32 %v2026, %v2017
        %v2028 = vmul.u32 %v1983, %v1974
        %v2029 = vadd.s32 %v2005, %v2024
        %vm2030 = vc.u32 %v2005, %v2024
        %v2031 = vadd.s32 %v2027, 1
        %v2032 = vsel %vm2030, %v2031, %v2027
        %v2033 = vadd.s32 %v2028, %v2032
        %v2034 = vadd.s32 %v2033, 536870912
        %v2035 = vshrl.u32 %v2034, 30
        %v2036 = vshll.u32 %v2035, 30
        %v2037 = vsub.s32 %v2033, %v2036
        %vm2038 = vcmp.lt.s32.totalorder %v2037, 0
        %v2039 = vsub.s32 0, %v2037
        %v2040 = vsel %vm2038, %v2039, %v2037
        %v2041 = vclz %v2040
        %v2042 = vsub.s32 %v2041, 2
        %vm2043 = vcmp.gt.s32.totalorder 0, %v2042
        %v2044 = vsel %vm2043, 0, %v2042
        %v2045 = vsub.s32 32, %v2044
        %v2046 = vshll.u32 %v2037, %v2044
        %v2047 = vshrl.u32 %v2029, %v2045
        %v2048 = vor.u32 %v2046, %v2047
        %v2049 = vsub.s32 4294967266, %v2044
        %v2050 = vadd.s32 %v2049, 127
        %v2051 = vshll.u32 %v2050, 23
        %v2052 = vor.u32 4788187, %v2051
        %v2053 = vand.u32 2147483647, %v2052
        %v2055 = vcvt.s32.f32 %v2048
        %v2056 = vmul.f32 %v2055, %v2053
        %v2057 = vxor.u32 %v2056, 2147483648
        %v2058 = vsel %vm1937, %v2057, %v2056
        %v2059 = vsub.s32 4, %v2035
        %v2060 = vsel %vm1937, %v2059, %v2035
        %v2061 = vsel %vm1936, %v379, %v2058
        %v2062 = vsel %vm1936, 0, %v2060
        %v2063 = vmul.f32 %v2061, %v2061
        %v2064 = vmul.f32 %v2063, -0.001358992
        %v2065 = vadd.f32 %v2064, 0.041655596
        %v2066 = vmul.f32 %v2063, %v2065
        %v2067 = vadd.f32 %v2066, -0.4999988
        %v2068 = vmul.f32 %v2063, %v2067
        %v2069 = vadd.f32 1.0, %v2068
        %v2070 = vmul.f32 %v2061, %v2061
        %v2071 = vmul.f32 %v2070, -0.00019511016
        %v2072 = vadd.f32 %v2071, 0.008332121
        %v2073 = vmul.f32 %v2070, %v2072
        %v2074 = vadd.f32 %v2073, -0.16666654
        %v2075 = vmul.f32 %v2070, %v2074
        %v2076 = vadd.f32 %v2075, 1.0
        %v2077 = vmul.f32 %v2076, %v2061
        %vm2078 = vweird.f32 %v379
        %v2079 = vadd.s32 %v2062, 3
        %v2080 = vand.u32 %v2079, 3
        %vm2081 = vcmp.lt.s32.totalorder %v2080, 2
        %vm2082 = vcmp.eq.s32.totalorder %v2080, 0
        %v2083 = vxor.u32 %v2077, 2147483648
        %v2084 = vsel %vm2082, %v2069, %v2083
        %vm2085 = vcmp.eq.s32.totalorder %v2080, 2
        %v2086 = vxor.u32 %v2069, 2147483648
        %v2087 = vsel %vm2085, %v2086, %v2077
        %v2088 = vsel %vm2081, %v2084, %v2087
        %v2089 = vsel %vm2078, nan, %v2088
        %v2090 = vand.u32 2147483647, %v380
        %vm2091 = vcmp.le.f32.partialorder %v2090, 0.7853982
        %vm2092 = vcmp.lt.s32.totalorder %v380, 0
        %v2093 = vand.u32 %v380, 2139095040
        %v2094 = vshrl.u32 %v2093, 23
        %v2095 = vsub.s32 %v2094, 127
        %v2096 = vand.u32 2147483647, %v380
        %v2097 = vand.u32 %v2096, 8388607
        %v2098 = vor.u32 %v2097, 8388608
        %v2099 = vsub.s32 0, %v2098
        %v2100 = vadd.s32 %v2095, 1
        %vm2101 = vcmp.gt.s32.totalorder %v2100, 0
        %v2102 = vsel %vm2101, %v2100, 0
        %v2103 = vshrl.u32 %v2102, 5
        %v2104 = vand.u32 %v2102, 31
        %v2105 = vsub.s32 32, %v2104
        %v2106 = vshrl.u32 683565275, %v2105
        %v2107 = vshll.u32 683565275, %v2104
        %v2108 = vshrl.u32 2475754826, %v2105
        %v2109 = vor.u32 %v2107, %v2108
        %v2110 = vshll.u32 2475754826, %v2104
        %v2111 = vshrl.u32 2131351028, %v2105
        %v2112 = vor.u32 %v2110, %v2111
        %v2113 = vshll.u32 2131351028, %v2104
        %v2114 = vshrl.u32 2102212464, %v2105
        %v2115 = vor.u32 %v2113, %v2114
        %v2116 = vshll.u32 2102212464, %v2104
        %v2117 = vshrl.u32 920167782, %v2105
        %v2118 = vor.u32 %v2116, %v2117
        %v2119 = vshll.u32 920167782, %v2104
        %v2120 = vshrl.u32 1326507024, %v2105
        %v2121 = vor.u32 %v2119, %v2120
        %vm2122 = vcmp.lt.s32.totalorder %v2103, 1
        %vm2123 = vcmp.lt.s32.totalorder %v2103, 2
        %vm2124 = vcmp.lt.s32.totalorder %v2103, 3
        %vm2125 = vcmp.lt.s32.totalorder %v2103, 4
        %v2126 = vsel %vm2122, %v2106, %v2109
        %v2127 = vsel %vm2125, %v2115, 2102212464
        %v2128 = vsel %vm2124, %v2112, %v2127
        %v2129 = vsel %vm2123, %v2126, %v2128
        %v2130 = vsel %vm2122, %v2109, %v2112
        %v2131 = vsel %vm2125, %v2118, 920167782
        %v2132 = vsel %vm2124, %v2115, %v2131
        %v2133 = vsel %vm2123, %v2130, %v2132
        %v2134 = vsel %vm2122, %v2112, %v2115
        %v2135 = vsel %vm2125, %v2121, 1326507024
        %v2136 = vsel %vm2124, %v2118, %v2135
        %v2137 = vsel %vm2123, %v2134, %v2136
        %v2138 = vshll.u32 %v2098, 8
        %v2139 = vand.u32 %v2138, 65535
        %v2140 = vshrl.u32 %v2138, 16
        %v2141 = vand.u32 %v2137, 65535
        %v2142 = vshrl.u32 %v2137, 16
        %v2143 = vmul.u32 %v2139, %v2141
        %v2144 = vmul.u32 %v2139, %v2142
        %v2145 = vmul.u32 %v2140, %v2141
        %v2146 = vmul.u32 %v2140, %v2142
        %v2147 = vshll.u32 %v2144, 16
        %v2148 = vshrl.u32 %v2144, 16
        %v2149 = vshll.u32 %v2145, 16
        %v2150 = vshrl.u32 %v2145, 16
        %vm2151 = vc.u32 %v2143, %v2147
        %v2152 = vsel %vm2151, 1, 0
        %v2153 = vadd.s32 %v2143, %v2147
        %v2154 = vadd.s32 %v2146, %v2152
        %vm2155 = vc.u32 %v2153, %v2149
        %v2156 = vsel %vm2155, 1, 0
        %v2157 = vadd.s32 %v2153, %v2149
        %v2158 = vadd.s32 %v2154, %v2156
        %v2159 = vadd.s32 %v2158, %v2148
        %v2160 = vadd.s32 %v2159, %v2150
        %v2161 = vand.u32 %v2138, 65535
        %v2162 = vshrl.u32 %v2138, 16
        %v2163 = vand.u32 %v2133, 65535
        %v2164 = vshrl.u32 %v2133, 16
        %v2165 = vmul.u32 %v2161, %v2163
        %v2166 = vmul.u32 %v2161, %v2164
        %v2167 = vmul.u32 %v2162, %v2163
        %v2168 = vmul.u32 %v2162, %v2164
        %v2169 = vshll.u32 %v2166, 16
        %v2170 = vshrl.u32 %v2166, 16
        %v2171 = vshll.u32 %v2167, 16
        %v2172 = vshrl.u32 %v2167, 16
        %vm2173 = vc.u32 %v2165, %v2169
        %v2174 = vsel %vm2173, 1, 0
        %v2175 = vadd.s32 %v2165, %v2169
        %v2176 = vadd.s32 %v2168, %v2174
        %vm2177 = vc.u32 %v2175, %v2171
        %v2178 = vsel %vm2177, 1, 0
        %v2179 = vadd.s32 %v2175, %v2171
        %v2180 = vadd.s32 %v2176, %v2178
        %v2181 = vadd.s32 %v2180, %v2170
        %v2182 = vadd.s32 %v2181, %v2172
        %v2183 = vmul.u32 %v2138, %v2129
        %v2184 = vadd.s32 %v2160, %v2179
        %vm2185 = vc.u32 %v2160, %v2179
        %v2186 = vadd.s32 %v2182, 1
        %v2187 = vsel %vm2185, %v2186, %v2182
        %v2188 = vadd.s32 %v2183, %v2187
        %v2189 = vadd.s32 %v2188, 536870912
        %v2190 = vshrl.u32 %v2189, 30
        %v2191 = vshll.u32 %v2190, 30
        %v2192 = vsub.s32 %v2188, %v2191
        %vm2193 = vcmp.lt.s32.totalorder %v2192, 0
        %v2194 = vsub.s32 0, %v2192
        %v2195 = vsel %vm2193, %v2194, %v2192
        %v2196 = vclz %v2195
        %v2197 = vsub.s32 %v2196, 2
        %vm2198 = vcmp.gt.s32.totalorder 0, %v2197
        %v2199 = vsel %vm2198, 0, %v2197
        %v2200 = vsub.s32 32, %v2199
        %v2201 = vshll.u32 %v2192, %v2199
        %v2202 = vshrl.u32 %v2184, %v2200
        %v2203 = vor.u32 %v2201, %v2202
        %v2204 = vsub.s32 4294967266, %v2199
        %v2205 = vadd.s32 %v2204, 127
        %v2206 = vshll.u32 %v2205, 23
        %v2207 = vor.u32 4788187, %v2206
        %v2208 = vand.u32 2147483647, %v2207
        %v2210 = vcvt.s32.f32 %v2203
        %v2211 = vmul.f32 %v2210, %v2208
        %v2212 = vxor.u32 %v2211, 2147483648
        %v2213 = vsel %vm2092, %v2212, %v2211
        %v2214 = vsub.s32 4, %v2190
        %v2215 = vsel %vm2092, %v2214, %v2190
        %v2216 = vsel %vm2091, %v380, %v2213
        %v2217 = vsel %vm2091, 0, %v2215
        %v2218 = vmul.f32 %v2216, %v2216
        %v2219 = vmul.f32 %v2218, -0.001358992
        %v2220 = vadd.f32 %v2219, 0.041655596
        %v2221 = vmul.f32 %v2218, %v2220
        %v2222 = vadd.f32 %v2221, -0.4999988
        %v2223 = vmul.f32 %v2218, %v2222
        %v2224 = vadd.f32 1.0, %v2223
        %v2225 = vmul.f32 %v2216, %v2216
        %v2226 = vmul.f32 %v2225, -0.00019511016
        %v2227 = vadd.f32 %v2226, 0.008332121
        %v2228 = vmul.f32 %v2225, %v2227
        %v2229 = vadd.f32 %v2228, -0.16666654
        %v2230 = vmul.f32 %v2225, %v2229
        %v2231 = vadd.f32 %v2230, 1.0
        %v2232 = vmul.f32 %v2231, %v2216
        %vm2233 = vweird.f32 %v380
        %v2234 = vadd.s32 %v2217, 3
        %v2235 = vand.u32 %v2234, 3
        %vm2236 = vcmp.lt.s32.totalorder %v2235, 2
        %vm2237 = vcmp.eq.s32.totalorder %v2235, 0
        %v2238 = vxor.u32 %v2232, 2147483648
        %v2239 = vsel %vm2237, %v2224, %v2238
        %vm2240 = vcmp.eq.s32.totalorder %v2235, 2
        %v2241 = vxor.u32 %v2224, 2147483648
        %v2242 = vsel %vm2240, %v2241, %v2232
        %v2243 = vsel %vm2236, %v2239, %v2242
        %v2244 = vsel %vm2233, nan, %v2243
        %v2245 = vand.u32 2147483647, %v381
        %vm2246 = vcmp.le.f32.partialorder %v2245, 0.7853982
        %vm2247 = vcmp.lt.s32.totalorder %v381, 0
        %v2248 = vand.u32 %v381, 2139095040
        %v2249 = vshrl.u32 %v2248, 23
        %v2250 = vsub.s32 %v2249, 127
        %v2251 = vand.u32 2147483647, %v381
        %v2252 = vand.u32 %v2251, 8388607
        %v2253 = vor.u32 %v2252, 8388608
        %v2254 = vsub.s32 0, %v2253
        %v2255 = vadd.s32 %v2250, 1
        %vm2256 = vcmp.gt.s32.totalorder %v2255, 0
        %v2257 = vsel %vm2256, %v2255, 0
        %v2258 = vshrl.u32 %v2257, 5
        %v2259 = vand.u32 %v2257, 31
        %v2260 = vsub.s32 32, %v2259
        %v2261 = vshrl.u32 683565275, %v2260
        %v2262 = vshll.u32 683565275, %v2259
        %v2263 = vshrl.u32 2475754826, %v2260
        %v2264 = vor.u32 %v2262, %v2263
        %v2265 = vshll.u32 2475754826, %v2259
        %v2266 = vshrl.u32 2131351028, %v2260
        %v2267 = vor.u32 %v2265, %v2266
        %v2268 = vshll.u32 2131351028, %v2259
        %v2269 = vshrl.u32 2102212464, %v2260
        %v2270 = vor.u32 %v2268, %v2269
        %v2271 = vshll.u32 2102212464, %v2259
        %v2272 = vshrl.u32 920167782, %v2260
        %v2273 = vor.u32 %v2271, %v2272
        %v2274 = vshll.u32 920167782, %v2259
        %v2275 = vshrl.u32 1326507024, %v2260
        %v2276 = vor.u32 %v2274, %v2275
        %vm2277 = vcmp.lt.s32.totalorder %v2258, 1
        %vm2278 = vcmp.lt.s32.totalorder %v2258, 2
        %vm2279 = vcmp.lt.s32.totalorder %v2258, 3
        %vm2280 = vcmp.lt.s32.totalorder %v2258, 4
        %v2281 = vsel %vm2277, %v2261, %v2264
        %v2282 = vsel %vm2280, %v2270, 2102212464
        %v2283 = vsel %vm2279, %v2267, %v2282
        %v2284 = vsel %vm2278, %v2281, %v2283
        %v2285 = vsel %vm2277, %v2264, %v2267
        %v2286 = vsel %vm2280, %v2273, 920167782
        %v2287 = vsel %vm2279, %v2270, %v2286
        %v2288 = vsel %vm2278, %v2285, %v2287
        %v2289 = vsel %vm2277, %v2267, %v2270
        %v2290 = vsel %vm2280, %v2276, 1326507024
        %v2291 = vsel %vm2279, %v2273, %v2290
        %v2292 = vsel %vm2278, %v2289, %v2291
        %v2293 = vshll.u32 %v2253, 8
        %v2294 = vand.u32 %v2293, 65535
        %v2295 = vshrl.u32 %v2293, 16
        %v2296 = vand.u32 %v2292, 65535
        %v2297 = vshrl.u32 %v2292, 16
        %v2298 = vmul.u32 %v2294, %v2296
        %v2299 = vmul.u32 %v2294, %v2297
        %v2300 = vmul.u32 %v2295, %v2296
        %v2301 = vmul.u32 %v2295, %v2297
        %v2302 = vshll.u32 %v2299, 16
        %v2303 = vshrl.u32 %v2299, 16
        %v2304 = vshll.u32 %v2300, 16
        %v2305 = vshrl.u32 %v2300, 16
        %vm2306 = vc.u32 %v2298, %v2302
        %v2307 = vsel %vm2306, 1, 0
        %v2308 = vadd.s32 %v2298, %v2302
        %v2309 = vadd.s32 %v2301, %v2307
        %vm2310 = vc.u32 %v2308, %v2304
        %v2311 = vsel %vm2310, 1, 0
        %v2312 = vadd.s32 %v2308, %v2304
        %v2313 = vadd.s32 %v2309, %v2311
        %v2314 = vadd.s32 %v2313, %v2303
        %v2315 = vadd.s32 %v2314, %v2305
        %v2316 = vand.u32 %v2293, 65535
        %v2317 = vshrl.u32 %v2293, 16
        %v2318 = vand.u32 %v2288, 65535
        %v2319 = vshrl.u32 %v2288, 16
        %v2320 = vmul.u32 %v2316, %v2318
        %v2321 = vmul.u32 %v2316, %v2319
        %v2322 = vmul.u32 %v2317, %v2318
        %v2323 = vmul.u32 %v2317, %v2319
        %v2324 = vshll.u32 %v2321, 16
        %v2325 = vshrl.u32 %v2321, 16
        %v2326 = vshll.u32 %v2322, 16
        %v2327 = vshrl.u32 %v2322, 16
        %vm2328 = vc.u32 %v2320, %v2324
        %v2329 = vsel %vm2328, 1, 0
        %v2330 = vadd.s32 %v2320, %v2324
        %v2331 = vadd.s32 %v2323, %v2329
        %vm2332 = vc.u32 %v2330, %v2326
        %v2333 = vsel %vm2332, 1, 0
        %v2334 = vadd.s32 %v2330, %v2326
        %v2335 = vadd.s32 %v2331, %v2333
        %v2336 = vadd.s32 %v2335, %v2325
        %v2337 = vadd.s32 %v2336, %v2327
        %v2338 = vmul.u32 %v2293, %v2284
        %v2339 = vadd.s32 %v2315, %v2334
        %vm2340 = vc.u32 %v2315, %v2334
        %v2341 = vadd.s32 %v2337, 1
        %v2342 = vsel %vm2340, %v2341, %v2337
        %v2343 = vadd.s32 %v2338, %v2342
        %v2344 = vadd.s32 %v2343, 536870912
        %v2345 = vshrl.u32 %v2344, 30
        %v2346 = vshll.u32 %v2345, 30
        %v2347 = vsub.s32 %v2343, %v2346
        %vm2348 = vcmp.lt.s32.totalorder %v2347, 0
        %v2349 = vsub.s32 0, %v2347
        %v2350 = vsel %vm2348, %v2349, %v2347
        %v2351 = vclz %v2350
        %v2352 = vsub.s32 %v2351, 2
        %vm2353 = vcmp.gt.s32.totalorder 0, %v2352
        %v2354 = vsel %vm2353, 0, %v2352
        %v2355 = vsub.s32 32, %v2354
        %v2356 = vshll.u32 %v2347, %v2354
        %v2357 = vshrl.u32 %v2339, %v2355
        %v2358 = vor.u32 %v2356, %v2357
        %v2359 = vsub.s32 4294967266, %v2354
        %v2360 = vadd.s32 %v2359, 127
        %v2361 = vshll.u32 %v2360, 23
        %v2362 = vor.u32 4788187, %v2361
        %v2363 = vand.u32 2147483647, %v2362
        %v2365 = vcvt.s32.f32 %v2358
        %v2366 = vmul.f32 %v2365, %v2363
        %v2367 = vxor.u32 %v2366, 2147483648
        %v2368 = vsel %vm2247, %v2367, %v2366
        %v2369 = vsub.s32 4, %v2345
        %v2370 = vsel %vm2247, %v2369, %v2345
        %v2371 = vsel %vm2246, %v381, %v2368
        %v2372 = vsel %vm2246, 0, %v2370
        %v2373 = vmul.f32 %v2371, %v2371
        %v2374 = vmul.f32 %v2373, -0.001358992
        %v2375 = vadd.f32 %v2374, 0.041655596
        %v2376 = vmul.f32 %v2373, %v2375
        %v2377 = vadd.f32 %v2376, -0.4999988
        %v2378 = vmul.f32 %v2373, %v2377
        %v2379 = vadd.f32 1.0, %v2378
        %v2380 = vmul.f32 %v2371, %v2371
        %v2381 = vmul.f32 %v2380, -0.00019511016
        %v2382 = vadd.f32 %v2381, 0.008332121
        %v2383 = vmul.f32 %v2380, %v2382
        %v2384 = vadd.f32 %v2383, -0.16666654
        %v2385 = vmul.f32 %v2380, %v2384
        %v2386 = vadd.f32 %v2385, 1.0
        %v2387 = vmul.f32 %v2386, %v2371
        %vm2388 = vweird.f32 %v381
        %v2389 = vadd.s32 %v2372, 3
        %v2390 = vand.u32 %v2389, 3
        %vm2391 = vcmp.lt.s32.totalorder %v2390, 2
        %vm2392 = vcmp.eq.s32.totalorder %v2390, 0
        %v2393 = vxor.u32 %v2387, 2147483648
        %v2394 = vsel %vm2392, %v2379, %v2393
        %vm2395 = vcmp.eq.s32.totalorder %v2390, 2
        %v2396 = vxor.u32 %v2379, 2147483648
        %v2397 = vsel %vm2395, %v2396, %v2387
        %v2398 = vsel %vm2391, %v2394, %v2397
        %v2399 = vsel %vm2388, nan, %v2398
        %v2400 = vand.u32 2147483647, %v382
        %vm2401 = vcmp.le.f32.partialorder %v2400, 0.7853982
        %vm2402 = vcmp.lt.s32.totalorder %v382, 0
        %v2403 = vand.u32 %v382, 2139095040
        %v2404 = vshrl.u32 %v2403, 23
        %v2405 = vsub.s32 %v2404, 127
        %v2406 = vand.u32 2147483647, %v382
        %v2407 = vand.u32 %v2406, 8388607
        %v2408 = vor.u32 %v2407, 8388608
        %v2409 = vsub.s32 0, %v2408
        %v2410 = vadd.s32 %v2405, 1
        %vm2411 = vcmp.gt.s32.totalorder %v2410, 0
        %v2412 = vsel %vm2411, %v2410, 0
        %v2413 = vshrl.u32 %v2412, 5
        %v2414 = vand.u32 %v2412, 31
        %v2415 = vsub.s32 32, %v2414
        %v2416 = vshrl.u32 683565275, %v2415
        %v2417 = vshll.u32 683565275, %v2414
        %v2418 = vshrl.u32 2475754826, %v2415
        %v2419 = vor.u32 %v2417, %v2418
        %v2420 = vshll.u32 2475754826, %v2414
        %v2421 = vshrl.u32 2131351028, %v2415
        %v2422 = vor.u32 %v2420, %v2421
        %v2423 = vshll.u32 2131351028, %v2414
        %v2424 = vshrl.u32 2102212464, %v2415
        %v2425 = vor.u32 %v2423, %v2424
        %v2426 = vshll.u32 2102212464, %v2414
        %v2427 = vshrl.u32 920167782, %v2415
        %v2428 = vor.u32 %v2426, %v2427
        %v2429 = vshll.u32 920167782, %v2414
        %v2430 = vshrl.u32 1326507024, %v2415
        %v2431 = vor.u32 %v2429, %v2430
        %vm2432 = vcmp.lt.s32.totalorder %v2413, 1
        %vm2433 = vcmp.lt.s32.totalorder %v2413, 2
        %vm2434 = vcmp.lt.s32.totalorder %v2413, 3
        %vm2435 = vcmp.lt.s32.totalorder %v2413, 4
        %v2436 = vsel %vm2432, %v2416, %v2419
        %v2437 = vsel %vm2435, %v2425, 2102212464
        %v2438 = vsel %vm2434, %v2422, %v2437
        %v2439 = vsel %vm2433, %v2436, %v2438
        %v2440 = vsel %vm2432, %v2419, %v2422
        %v2441 = vsel %vm2435, %v2428, 920167782
        %v2442 = vsel %vm2434, %v2425, %v2441
        %v2443 = vsel %vm2433, %v2440, %v2442
        %v2444 = vsel %vm2432, %v2422, %v2425
        %v2445 = vsel %vm2435, %v2431, 1326507024
        %v2446 = vsel %vm2434, %v2428, %v2445
        %v2447 = vsel %vm2433, %v2444, %v2446
        %v2448 = vshll.u32 %v2408, 8
        %v2449 = vand.u32 %v2448, 65535
        %v2450 = vshrl.u32 %v2448, 16
        %v2451 = vand.u32 %v2447, 65535
        %v2452 = vshrl.u32 %v2447, 16
        %v2453 = vmul.u32 %v2449, %v2451
        %v2454 = vmul.u32 %v2449, %v2452
        %v2455 = vmul.u32 %v2450, %v2451
        %v2456 = vmul.u32 %v2450, %v2452
        %v2457 = vshll.u32 %v2454, 16
        %v2458 = vshrl.u32 %v2454, 16
        %v2459 = vshll.u32 %v2455, 16
        %v2460 = vshrl.u32 %v2455, 16
        %vm2461 = vc.u32 %v2453, %v2457
        %v2462 = vsel %vm2461, 1, 0
        %v2463 = vadd.s32 %v2453, %v2457
        %v2464 = vadd.s32 %v2456, %v2462
        %vm2465 = vc.u32 %v2463, %v2459
        %v2466 = vsel %vm2465, 1, 0
        %v2467 = vadd.s32 %v2463, %v2459
        %v2468 = vadd.s32 %v2464, %v2466
        %v2469 = vadd.s32 %v2468, %v2458
        %v2470 = vadd.s32 %v2469, %v2460
        %v2471 = vand.u32 %v2448, 65535
        %v2472 = vshrl.u32 %v2448, 16
        %v2473 = vand.u32 %v2443, 65535
        %v2474 = vshrl.u32 %v2443, 16
        %v2475 = vmul.u32 %v2471, %v2473
        %v2476 = vmul.u32 %v2471, %v2474
        %v2477 = vmul.u32 %v2472, %v2473
        %v2478 = vmul.u32 %v2472, %v2474
        %v2479 = vshll.u32 %v2476, 16
        %v2480 = vshrl.u32 %v2476, 16
        %v2481 = vshll.u32 %v2477, 16
        %v2482 = vshrl.u32 %v2477, 16
        %vm2483 = vc.u32 %v2475, %v2479
        %v2484 = vsel %vm2483, 1, 0
        %v2485 = vadd.s32 %v2475, %v2479
        %v2486 = vadd.s32 %v2478, %v2484
        %vm2487 = vc.u32 %v2485, %v2481
        %v2488 = vsel %vm2487, 1, 0
        %v2489 = vadd.s32 %v2485, %v2481
        %v2490 = vadd.s32 %v2486, %v2488
        %v2491 = vadd.s32 %v2490, %v2480
        %v2492 = vadd.s32 %v2491, %v2482
        %v2493 = vmul.u32 %v2448, %v2439
        %v2494 = vadd.s32 %v2470, %v2489
        %vm2495 = vc.u32 %v2470, %v2489
        %v2496 = vadd.s32 %v2492, 1
        %v2497 = vsel %vm2495, %v2496, %v2492
        %v2498 = vadd.s32 %v2493, %v2497
        %v2499 = vadd.s32 %v2498, 536870912
        %v2500 = vshrl.u32 %v2499, 30
        %v2501 = vshll.u32 %v2500, 30
        %v2502 = vsub.s32 %v2498, %v2501
        %vm2503 = vcmp.lt.s32.totalorder %v2502, 0
        %v2504 = vsub.s32 0, %v2502
        %v2505 = vsel %vm2503, %v2504, %v2502
        %v2506 = vclz %v2505
        %v2507 = vsub.s32 %v2506, 2
        %vm2508 = vcmp.gt.s32.totalorder 0, %v2507
        %v2509 = vsel %vm2508, 0, %v2507
        %v2510 = vsub.s32 32, %v2509
        %v2511 = vshll.u32 %v2502, %v2509
        %v2512 = vshrl.u32 %v2494, %v2510
        %v2513 = vor.u32 %v2511, %v2512
        %v2514 = vsub.s32 4294967266, %v2509
        %v2515 = vadd.s32 %v2514, 127
        %v2516 = vshll.u32 %v2515, 23
        %v2517 = vor.u32 4788187, %v2516
        %v2518 = vand.u32 2147483647, %v2517
        %v2520 = vcvt.s32.f32 %v2513
        %v2521 = vmul.f32 %v2520, %v2518
        %v2522 = vxor.u32 %v2521, 2147483648
        %v2523 = vsel %vm2402, %v2522, %v2521
        %v2524 = vsub.s32 4, %v2500
        %v2525 = vsel %vm2402, %v2524, %v2500
        %v2526 = vsel %vm2401, %v382, %v2523
        %v2527 = vsel %vm2401, 0, %v2525
        %v2528 = vmul.f32 %v2526, %v2526
        %v2529 = vmul.f32 %v2528, -0.001358992
        %v2530 = vadd.f32 %v2529, 0.041655596
        %v2531 = vmul.f32 %v2528, %v2530
        %v2532 = vadd.f32 %v2531, -0.4999988
        %v2533 = vmul.f32 %v2528, %v2532
        %v2534 = vadd.f32 1.0, %v2533
        %v2535 = vmul.f32 %v2526, %v2526
        %v2536 = vmul.f32 %v2535, -0.00019511016
        %v2537 = vadd.f32 %v2536, 0.008332121
        %v2538 = vmul.f32 %v2535, %v2537
        %v2539 = vadd.f32 %v2538, -0.16666654
        %v2540 = vmul.f32 %v2535, %v2539
        %v2541 = vadd.f32 %v2540, 1.0
        %v2542 = vmul.f32 %v2541, %v2526
        %vm2543 = vweird.f32 %v382
        %v2544 = vadd.s32 %v2527, 3
        %v2545 = vand.u32 %v2544, 3
        %vm2546 = vcmp.lt.s32.totalorder %v2545, 2
        %vm2547 = vcmp.eq.s32.totalorder %v2545, 0
        %v2548 = vxor.u32 %v2542, 2147483648
        %v2549 = vsel %vm2547, %v2534, %v2548
        %vm2550 = vcmp.eq.s32.totalorder %v2545, 2
        %v2551 = vxor.u32 %v2534, 2147483648
        %v2552 = vsel %vm2550, %v2551, %v2542
        %v2553 = vsel %vm2546, %v2549, %v2552
        %v2554 = vsel %vm2543, nan, %v2553
        %v2555 = vand.u32 2147483647, %v383
        %vm2556 = vcmp.le.f32.partialorder %v2555, 0.7853982
        %vm2557 = vcmp.lt.s32.totalorder %v383, 0
        %v2558 = vand.u32 %v383, 2139095040
        %v2559 = vshrl.u32 %v2558, 23
        %v2560 = vsub.s32 %v2559, 127
        %v2561 = vand.u32 2147483647, %v383
        %v2562 = vand.u32 %v2561, 8388607
        %v2563 = vor.u32 %v2562, 8388608
        %v2564 = vsub.s32 0, %v2563
        %v2565 = vadd.s32 %v2560, 1
        %vm2566 = vcmp.gt.s32.totalorder %v2565, 0
        %v2567 = vsel %vm2566, %v2565, 0
        %v2568 = vshrl.u32 %v2567, 5
        %v2569 = vand.u32 %v2567, 31
        %v2570 = vsub.s32 32, %v2569
        %v2571 = vshrl.u32 683565275, %v2570
        %v2572 = vshll.u32 683565275, %v2569
        %v2573 = vshrl.u32 2475754826, %v2570
        %v2574 = vor.u32 %v2572, %v2573
        %v2575 = vshll.u32 2475754826, %v2569
        %v2576 = vshrl.u32 2131351028, %v2570
        %v2577 = vor.u32 %v2575, %v2576
        %v2578 = vshll.u32 2131351028, %v2569
        %v2579 = vshrl.u32 2102212464, %v2570
        %v2580 = vor.u32 %v2578, %v2579
        %v2581 = vshll.u32 2102212464, %v2569
        %v2582 = vshrl.u32 920167782, %v2570
        %v2583 = vor.u32 %v2581, %v2582
        %v2584 = vshll.u32 920167782, %v2569
        %v2585 = vshrl.u32 1326507024, %v2570
        %v2586 = vor.u32 %v2584, %v2585
        %vm2587 = vcmp.lt.s32.totalorder %v2568, 1
        %vm2588 = vcmp.lt.s32.totalorder %v2568, 2
        %vm2589 = vcmp.lt.s32.totalorder %v2568, 3
        %vm2590 = vcmp.lt.s32.totalorder %v2568, 4
        %v2591 = vsel %vm2587, %v2571, %v2574
        %v2592 = vsel %vm2590, %v2580, 2102212464
        %v2593 = vsel %vm2589, %v2577, %v2592
        %v2594 = vsel %vm2588, %v2591, %v2593
        %v2595 = vsel %vm2587, %v2574, %v2577
        %v2596 = vsel %vm2590, %v2583, 920167782
        %v2597 = vsel %vm2589, %v2580, %v2596
        %v2598 = vsel %vm2588, %v2595, %v2597
        %v2599 = vsel %vm2587, %v2577, %v2580
        %v2600 = vsel %vm2590, %v2586, 1326507024
        %v2601 = vsel %vm2589, %v2583, %v2600
        %v2602 = vsel %vm2588, %v2599, %v2601
        %v2603 = vshll.u32 %v2563, 8
        %v2604 = vand.u32 %v2603, 65535
        %v2605 = vshrl.u32 %v2603, 16
        %v2606 = vand.u32 %v2602, 65535
        %v2607 = vshrl.u32 %v2602, 16
        %v2608 = vmul.u32 %v2604, %v2606
        %v2609 = vmul.u32 %v2604, %v2607
        %v2610 = vmul.u32 %v2605, %v2606
        %v2611 = vmul.u32 %v2605, %v2607
        %v2612 = vshll.u32 %v2609, 16
        %v2613 = vshrl.u32 %v2609, 16
        %v2614 = vshll.u32 %v2610, 16
        %v2615 = vshrl.u32 %v2610, 16
        %vm2616 = vc.u32 %v2608, %v2612
        %v2617 = vsel %vm2616, 1, 0
        %v2618 = vadd.s32 %v2608, %v2612
        %v2619 = vadd.s32 %v2611, %v2617
        %vm2620 = vc.u32 %v2618, %v2614
        %v2621 = vsel %vm2620, 1, 0
        %v2622 = vadd.s32 %v2618, %v2614
        %v2623 = vadd.s32 %v2619, %v2621
        %v2624 = vadd.s32 %v2623, %v2613
        %v2625 = vadd.s32 %v2624, %v2615
        %v2626 = vand.u32 %v2603, 65535
        %v2627 = vshrl.u32 %v2603, 16
        %v2628 = vand.u32 %v2598, 65535
        %v2629 = vshrl.u32 %v2598, 16
        %v2630 = vmul.u32 %v2626, %v2628
        %v2631 = vmul.u32 %v2626, %v2629
        %v2632 = vmul.u32 %v2627, %v2628
        %v2633 = vmul.u32 %v2627, %v2629
        %v2634 = vshll.u32 %v2631, 16
        %v2635 = vshrl.u32 %v2631, 16
        %v2636 = vshll.u32 %v2632, 16
        %v2637 = vshrl.u32 %v2632, 16
        %vm2638 = vc.u32 %v2630, %v2634
        %v2639 = vsel %vm2638, 1, 0
        %v2640 = vadd.s32 %v2630, %v2634
        %v2641 = vadd.s32 %v2633, %v2639
        %vm2642 = vc.u32 %v2640, %v2636
        %v2643 = vsel %vm2642, 1, 0
        %v2644 = vadd.s32 %v2640, %v2636
        %v2645 = vadd.s32 %v2641, %v2643
        %v2646 = vadd.s32 %v2645, %v2635
        %v2647 = vadd.s32 %v2646, %v2637
        %v2648 = vmul.u32 %v2603, %v2594
        %v2649 = vadd.s32 %v2625, %v2644
        %vm2650 = vc.u32 %v2625, %v2644
        %v2651 = vadd.s32 %v2647, 1
        %v2652 = vsel %vm2650, %v2651, %v2647
        %v2653 = vadd.s32 %v2648, %v2652
        %v2654 = vadd.s32 %v2653, 536870912
        %v2655 = vshrl.u32 %v2654, 30
        %v2656 = vshll.u32 %v2655, 30
        %v2657 = vsub.s32 %v2653, %v2656
        %vm2658 = vcmp.lt.s32.totalorder %v2657, 0
        %v2659 = vsub.s32 0, %v2657
        %v2660 = vsel %vm2658, %v2659, %v2657
        %v2661 = vclz %v2660
        %v2662 = vsub.s32 %v2661, 2
        %vm2663 = vcmp.gt.s32.totalorder 0, %v2662
        %v2664 = vsel %vm2663, 0, %v2662
        %v2665 = vsub.s32 32, %v2664
        %v2666 = vshll.u32 %v2657, %v2664
        %v2667 = vshrl.u32 %v2649, %v2665
        %v2668 = vor.u32 %v2666, %v2667
        %v2669 = vsub.s32 4294967266, %v2664
        %v2670 = vadd.s32 %v2669, 127
        %v2671 = vshll.u32 %v2670, 23
        %v2672 = vor.u32 4788187, %v2671
        %v2673 = vand.u32 2147483647, %v2672
        %v2675 = vcvt.s32.f32 %v2668
        %v2676 = vmul.f32 %v2675, %v2673
        %v2677 = vxor.u32 %v2676, 2147483648
        %v2678 = vsel %vm2557, %v2677, %v2676
        %v2679 = vsub.s32 4, %v2655
        %v2680 = vsel %vm2557, %v2679, %v2655
        %v2681 = vsel %vm2556, %v383, %v2678
        %v2682 = vsel %vm2556, 0, %v2680
        %v2683 = vmul.f32 %v2681, %v2681
        %v2684 = vmul.f32 %v2683, -0.001358992
        %v2685 = vadd.f32 %v2684, 0.041655596
        %v2686 = vmul.f32 %v2683, %v2685
        %v2687 = vadd.f32 %v2686, -0.4999988
        %v2688 = vmul.f32 %v2683, %v2687
        %v2689 = vadd.f32 1.0, %v2688
        %v2690 = vmul.f32 %v2681, %v2681
        %v2691 = vmul.f32 %v2690, -0.00019511016
        %v2692 = vadd.f32 %v2691, 0.008332121
        %v2693 = vmul.f32 %v2690, %v2692
        %v2694 = vadd.f32 %v2693, -0.16666654
        %v2695 = vmul.f32 %v2690, %v2694
        %v2696 = vadd.f32 %v2695, 1.0
        %v2697 = vmul.f32 %v2696, %v2681
        %vm2698 = vweird.f32 %v383
        %v2699 = vadd.s32 %v2682, 3
        %v2700 = vand.u32 %v2699, 3
        %vm2701 = vcmp.lt.s32.totalorder %v2700, 2
        %vm2702 = vcmp.eq.s32.totalorder %v2700, 0
        %v2703 = vxor.u32 %v2697, 2147483648
        %v2704 = vsel %vm2702, %v2689, %v2703
        %vm2705 = vcmp.eq.s32.totalorder %v2700, 2
        %v2706 = vxor.u32 %v2689, 2147483648
        %v2707 = vsel %vm2705, %v2706, %v2697
        %v2708 = vsel %vm2701, %v2704, %v2707
        %v2709 = vsel %vm2698, nan, %v2708
        %v2710 = vand.u32 2147483647, %v384
        %vm2711 = vcmp.le.f32.partialorder %v2710, 0.7853982
        %vm2712 = vcmp.lt.s32.totalorder %v384, 0
        %v2713 = vand.u32 %v384, 2139095040
        %v2714 = vshrl.u32 %v2713, 23
        %v2715 = vsub.s32 %v2714, 127
        %v2716 = vand.u32 2147483647, %v384
        %v2717 = vand.u32 %v2716, 8388607
        %v2718 = vor.u32 %v2717, 8388608
        %v2719 = vsub.s32 0, %v2718
        %v2720 = vadd.s32 %v2715, 1
        %vm2721 = vcmp.gt.s32.totalorder %v2720, 0
        %v2722 = vsel %vm2721, %v2720, 0
        %v2723 = vshrl.u32 %v2722, 5
        %v2724 = vand.u32 %v2722, 31
        %v2725 = vsub.s32 32, %v2724
        %v2726 = vshrl.u32 683565275, %v2725
        %v2727 = vshll.u32 683565275, %v2724
        %v2728 = vshrl.u32 2475754826, %v2725
        %v2729 = vor.u32 %v2727, %v2728
        %v2730 = vshll.u32 2475754826, %v2724
        %v2731 = vshrl.u32 2131351028, %v2725
        %v2732 = vor.u32 %v2730, %v2731
        %v2733 = vshll.u32 2131351028, %v2724
        %v2734 = vshrl.u32 2102212464, %v2725
        %v2735 = vor.u32 %v2733, %v2734
        %v2736 = vshll.u32 2102212464, %v2724
        %v2737 = vshrl.u32 920167782, %v2725
        %v2738 = vor.u32 %v2736, %v2737
        %v2739 = vshll.u32 920167782, %v2724
        %v2740 = vshrl.u32 1326507024, %v2725
        %v2741 = vor.u32 %v2739, %v2740
        %vm2742 = vcmp.lt.s32.totalorder %v2723, 1
        %vm2743 = vcmp.lt.s32.totalorder %v2723, 2
        %vm2744 = vcmp.lt.s32.totalorder %v2723, 3
        %vm2745 = vcmp.lt.s32.totalorder %v2723, 4
        %v2746 = vsel %vm2742, %v2726, %v2729
        %v2747 = vsel %vm2745, %v2735, 2102212464
        %v2748 = vsel %vm2744, %v2732, %v2747
        %v2749 = vsel %vm2743, %v2746, %v2748
        %v2750 = vsel %vm2742, %v2729, %v2732
        %v2751 = vsel %vm2745, %v2738, 920167782
        %v2752 = vsel %vm2744, %v2735, %v2751
        %v2753 = vsel %vm2743, %v2750, %v2752
        %v2754 = vsel %vm2742, %v2732, %v2735
        %v2755 = vsel %vm2745, %v2741, 1326507024
        %v2756 = vsel %vm2744, %v2738, %v2755
        %v2757 = vsel %vm2743, %v2754, %v2756
        %v2758 = vshll.u32 %v2718, 8
        %v2759 = vand.u32 %v2758, 65535
        %v2760 = vshrl.u32 %v2758, 16
        %v2761 = vand.u32 %v2757, 65535
        %v2762 = vshrl.u32 %v2757, 16
        %v2763 = vmul.u32 %v2759, %v2761
        %v2764 = vmul.u32 %v2759, %v2762
        %v2765 = vmul.u32 %v2760, %v2761
        %v2766 = vmul.u32 %v2760, %v2762
        %v2767 = vshll.u32 %v2764, 16
        %v2768 = vshrl.u32 %v2764, 16
        %v2769 = vshll.u32 %v2765, 16
        %v2770 = vshrl.u32 %v2765, 16
        %vm2771 = vc.u32 %v2763, %v2767
        %v2772 = vsel %vm2771, 1, 0
        %v2773 = vadd.s32 %v2763, %v2767
        %v2774 = vadd.s32 %v2766, %v2772
        %vm2775 = vc.u32 %v2773, %v2769
        %v2776 = vsel %vm2775, 1, 0
        %v2777 = vadd.s32 %v2773, %v2769
        %v2778 = vadd.s32 %v2774, %v2776
        %v2779 = vadd.s32 %v2778, %v2768
        %v2780 = vadd.s32 %v2779, %v2770
        %v2781 = vand.u32 %v2758, 65535
        %v2782 = vshrl.u32 %v2758, 16
        %v2783 = vand.u32 %v2753, 65535
        %v2784 = vshrl.u32 %v2753, 16
        %v2785 = vmul.u32 %v2781, %v2783
        %v2786 = vmul.u32 %v2781, %v2784
        %v2787 = vmul.u32 %v2782, %v2783
        %v2788 = vmul.u32 %v2782, %v2784
        %v2789 = vshll.u32 %v2786, 16
        %v2790 = vshrl.u32 %v2786, 16
        %v2791 = vshll.u32 %v2787, 16
        %v2792 = vshrl.u32 %v2787, 16
        %vm2793 = vc.u32 %v2785, %v2789
        %v2794 = vsel %vm2793, 1, 0
        %v2795 = vadd.s32 %v2785, %v2789
        %v2796 = vadd.s32 %v2788, %v2794
        %vm2797 = vc.u32 %v2795, %v2791
        %v2798 = vsel %vm2797, 1, 0
        %v2799 = vadd.s32 %v2795, %v2791
        %v2800 = vadd.s32 %v2796, %v2798
        %v2801 = vadd.s32 %v2800, %v2790
        %v2802 = vadd.s32 %v2801, %v2792
        %v2803 = vmul.u32 %v2758, %v2749
        %v2804 = vadd.s32 %v2780, %v2799
        %vm2805 = vc.u32 %v2780, %v2799
        %v2806 = vadd.s32 %v2802, 1
        %v2807 = vsel %vm2805, %v2806, %v2802
        %v2808 = vadd.s32 %v2803, %v2807
        %v2809 = vadd.s32 %v2808, 536870912
        %v2810 = vshrl.u32 %v2809, 30
        %v2811 = vshll.u32 %v2810, 30
        %v2812 = vsub.s32 %v2808, %v2811
        %vm2813 = vcmp.lt.s32.totalorder %v2812, 0
        %v2814 = vsub.s32 0, %v2812
        %v2815 = vsel %vm2813, %v2814, %v2812
        %v2816 = vclz %v2815
        %v2817 = vsub.s32 %v2816, 2
        %vm2818 = vcmp.gt.s32.totalorder 0, %v2817
        %v2819 = vsel %vm2818, 0, %v2817
        %v2820 = vsub.s32 32, %v2819
        %v2821 = vshll.u32 %v2812, %v2819
        %v2822 = vshrl.u32 %v2804, %v2820
        %v2823 = vor.u32 %v2821, %v2822
        %v2824 = vsub.s32 4294967266, %v2819
        %v2825 = vadd.s32 %v2824, 127
        %v2826 = vshll.u32 %v2825, 23
        %v2827 = vor.u32 4788187, %v2826
        %v2828 = vand.u32 2147483647, %v2827
        %v2830 = vcvt.s32.f32 %v2823
        %v2831 = vmul.f32 %v2830, %v2828
        %v2832 = vxor.u32 %v2831, 2147483648
        %v2833 = vsel %vm2712, %v2832, %v2831
        %v2834 = vsub.s32 4, %v2810
        %v2835 = vsel %vm2712, %v2834, %v2810
        %v2836 = vsel %vm2711, %v384, %v2833
        %v2837 = vsel %vm2711, 0, %v2835
        %v2838 = vmul.f32 %v2836, %v2836
        %v2839 = vmul.f32 %v2838, -0.001358992
        %v2840 = vadd.f32 %v2839, 0.041655596
        %v2841 = vmul.f32 %v2838, %v2840
        %v2842 = vadd.f32 %v2841, -0.4999988
        %v2843 = vmul.f32 %v2838, %v2842
        %v2844 = vadd.f32 1.0, %v2843
        %v2845 = vmul.f32 %v2836, %v2836
        %v2846 = vmul.f32 %v2845, -0.00019511016
        %v2847 = vadd.f32 %v2846, 0.008332121
        %v2848 = vmul.f32 %v2845, %v2847
        %v2849 = vadd.f32 %v2848, -0.16666654
        %v2850 = vmul.f32 %v2845, %v2849
        %v2851 = vadd.f32 %v2850, 1.0
        %v2852 = vmul.f32 %v2851, %v2836
        %vm2853 = vweird.f32 %v384
        %v2854 = vadd.s32 %v2837, 3
        %v2855 = vand.u32 %v2854, 3
        %vm2856 = vcmp.lt.s32.totalorder %v2855, 2
        %vm2857 = vcmp.eq.s32.totalorder %v2855, 0
        %v2858 = vxor.u32 %v2852, 2147483648
        %v2859 = vsel %vm2857, %v2844, %v2858
        %vm2860 = vcmp.eq.s32.totalorder %v2855, 2
        %v2861 = vxor.u32 %v2844, 2147483648
        %v2862 = vsel %vm2860, %v2861, %v2852
        %v2863 = vsel %vm2856, %v2859, %v2862
        %v2864 = vsel %vm2853, nan, %v2863
        %v2865 = vand.u32 2147483647, %v369
        %vm2866 = vcmp.le.f32.partialorder %v2865, 0.7853982
        %vm2867 = vcmp.lt.s32.totalorder %v369, 0
        %v2868 = vand.u32 %v369, 2139095040
        %v2869 = vshrl.u32 %v2868, 23
        %v2870 = vsub.s32 %v2869, 127
        %v2871 = vand.u32 2147483647, %v369
        %v2872 = vand.u32 %v2871, 8388607
        %v2873 = vor.u32 %v2872, 8388608
        %v2874 = vsub.s32 0, %v2873
        %v2875 = vadd.s32 %v2870, 1
        %vm2876 = vcmp.gt.s32.totalorder %v2875, 0
        %v2877 = vsel %vm2876, %v2875, 0
        %v2878 = vshrl.u32 %v2877, 5
        %v2879 = vand.u32 %v2877, 31
        %v2880 = vsub.s32 32, %v2879
        %v2881 = vshrl.u32 683565275, %v2880
        %v2882 = vshll.u32 683565275, %v2879
        %v2883 = vshrl.u32 2475754826, %v2880
        %v2884 = vor.u32 %v2882, %v2883
        %v2885 = vshll.u32 2475754826, %v2879
        %v2886 = vshrl.u32 2131351028, %v2880
        %v2887 = vor.u32 %v2885, %v2886
        %v2888 = vshll.u32 2131351028, %v2879
        %v2889 = vshrl.u32 2102212464, %v2880
        %v2890 = vor.u32 %v2888, %v2889
        %v2891 = vshll.u32 2102212464, %v2879
        %v2892 = vshrl.u32 920167782, %v2880
        %v2893 = vor.u32 %v2891, %v2892
        %v2894 = vshll.u32 920167782, %v2879
        %v2895 = vshrl.u32 1326507024, %v2880
        %v2896 = vor.u32 %v2894, %v2895
        %vm2897 = vcmp.lt.s32.totalorder %v2878, 1
        %vm2898 = vcmp.lt.s32.totalorder %v2878, 2
        %vm2899 = vcmp.lt.s32.totalorder %v2878, 3
        %vm2900 = vcmp.lt.s32.totalorder %v2878, 4
        %v2901 = vsel %vm2897, %v2881, %v2884
        %v2902 = vsel %vm2900, %v2890, 2102212464
        %v2903 = vsel %vm2899, %v2887, %v2902
        %v2904 = vsel %vm2898, %v2901, %v2903
        %v2905 = vsel %vm2897, %v2884, %v2887
        %v2906 = vsel %vm2900, %v2893, 920167782
        %v2907 = vsel %vm2899, %v2890, %v2906
        %v2908 = vsel %vm2898, %v2905, %v2907
        %v2909 = vsel %vm2897, %v2887, %v2890
        %v2910 = vsel %vm2900, %v2896, 1326507024
        %v2911 = vsel %vm2899, %v2893, %v2910
        %v2912 = vsel %vm2898, %v2909, %v2911
        %v2913 = vshll.u32 %v2873, 8
        %v2914 = vand.u32 %v2913, 65535
        %v2915 = vshrl.u32 %v2913, 16
        %v2916 = vand.u32 %v2912, 65535
        %v2917 = vshrl.u32 %v2912, 16
        %v2918 = vmul.u32 %v2914, %v2916
        %v2919 = vmul.u32 %v2914, %v2917
        %v2920 = vmul.u32 %v2915, %v2916
        %v2921 = vmul.u32 %v2915, %v2917
        %v2922 = vshll.u32 %v2919, 16
        %v2923 = vshrl.u32 %v2919, 16
        %v2924 = vshll.u32 %v2920, 16
        %v2925 = vshrl.u32 %v2920, 16
        %vm2926 = vc.u32 %v2918, %v2922
        %v2927 = vsel %vm2926, 1, 0
        %v2928 = vadd.s32 %v2918, %v2922
        %v2929 = vadd.s32 %v2921, %v2927
        %vm2930 = vc.u32 %v2928, %v2924
        %v2931 = vsel %vm2930, 1, 0
        %v2932 = vadd.s32 %v2928, %v2924
        %v2933 = vadd.s32 %v2929, %v2931
        %v2934 = vadd.s32 %v2933, %v2923
        %v2935 = vadd.s32 %v2934, %v2925
        %v2936 = vand.u32 %v2913, 65535
        %v2937 = vshrl.u32 %v2913, 16
        %v2938 = vand.u32 %v2908, 65535
        %v2939 = vshrl.u32 %v2908, 16
        %v2940 = vmul.u32 %v2936, %v2938
        %v2941 = vmul.u32 %v2936, %v2939
        %v2942 = vmul.u32 %v2937, %v2938
        %v2943 = vmul.u32 %v2937, %v2939
        %v2944 = vshll.u32 %v2941, 16
        %v2945 = vshrl.u32 %v2941, 16
        %v2946 = vshll.u32 %v2942, 16
        %v2947 = vshrl.u32 %v2942, 16
        %vm2948 = vc.u32 %v2940, %v2944
        %v2949 = vsel %vm2948, 1, 0
        %v2950 = vadd.s32 %v2940, %v2944
        %v2951 = vadd.s32 %v2943, %v2949
        %vm2952 = vc.u32 %v2950, %v2946
        %v2953 = vsel %vm2952, 1, 0
        %v2954 = vadd.s32 %v2950, %v2946
        %v2955 = vadd.s32 %v2951, %v2953
        %v2956 = vadd.s32 %v2955, %v2945
        %v2957 = vadd.s32 %v2956, %v2947
        %v2958 = vmul.u32 %v2913, %v2904
        %v2959 = vadd.s32 %v2935, %v2954
        %vm2960 = vc.u32 %v2935, %v2954
        %v2961 = vadd.s32 %v2957, 1
        %v2962 = vsel %vm2960, %v2961, %v2957
        %v2963 = vadd.s32 %v2958, %v2962
        %v2964 = vadd.s32 %v2963, 536870912
        %v2965 = vshrl.u32 %v2964, 30
        %v2966 = vshll.u32 %v2965, 30
        %v2967 = vsub.s32 %v2963, %v2966
        %vm2968 = vcmp.lt.s32.totalorder %v2967, 0
        %v2969 = vsub.s32 0, %v2967
        %v2970 = vsel %vm2968, %v2969, %v2967
        %v2971 = vclz %v2970
        %v2972 = vsub.s32 %v2971, 2
        %vm2973 = vcmp.gt.s32.totalorder 0, %v2972
        %v2974 = vsel %vm2973, 0, %v2972
        %v2975 = vsub.s32 32, %v2974
        %v2976 = vshll.u32 %v2967, %v2974
        %v2977 = vshrl.u32 %v2959, %v2975
        %v2978 = vor.u32 %v2976, %v2977
        %v2979 = vsub.s32 4294967266, %v2974
        %v2980 = vadd.s32 %v2979, 127
        %v2981 = vshll.u32 %v2980, 23
        %v2982 = vor.u32 4788187, %v2981
        %v2983 = vand.u32 2147483647, %v2982
        %v2985 = vcvt.s32.f32 %v2978
        %v2986 = vmul.f32 %v2985, %v2983
        %v2987 = vxor.u32 %v2986, 2147483648
        %v2988 = vsel %vm2867, %v2987, %v2986
        %v2989 = vsub.s32 4, %v2965
        %v2990 = vsel %vm2867, %v2989, %v2965
        %v2991 = vsel %vm2866, %v369, %v2988
        %v2992 = vsel %vm2866, 0, %v2990
        %v2993 = vmul.f32 %v2991, %v2991
        %v2994 = vmul.f32 %v2993, -0.001358992
        %v2995 = vadd.f32 %v2994, 0.041655596
        %v2996 = vmul.f32 %v2993, %v2995
        %v2997 = vadd.f32 %v2996, -0.4999988
        %v2998 = vmul.f32 %v2993, %v2997
        %v2999 = vadd.f32 1.0, %v2998
        %v3000 = vmul.f32 %v2991, %v2991
        %v3001 = vmul.f32 %v3000, -0.00019511016
        %v3002 = vadd.f32 %v3001, 0.008332121
        %v3003 = vmul.f32 %v3000, %v3002
        %v3004 = vadd.f32 %v3003, -0.16666654
        %v3005 = vmul.f32 %v3000, %v3004
        %v3006 = vadd.f32 %v3005, 1.0
        %v3007 = vmul.f32 %v3006, %v2991
        %vm3008 = vweird.f32 %v369
        %v3009 = vand.u32 %v2992, 3
        %vm3010 = vcmp.lt.s32.totalorder %v3009, 2
        %vm3011 = vcmp.eq.s32.totalorder %v3009, 0
        %v3012 = vxor.u32 %v3007, 2147483648
        %v3013 = vsel %vm3011, %v2999, %v3012
        %vm3014 = vcmp.eq.s32.totalorder %v3009, 2
        %v3015 = vxor.u32 %v2999, 2147483648
        %v3016 = vsel %vm3014, %v3015, %v3007
        %v3017 = vsel %vm3010, %v3013, %v3016
        %v3018 = vsel %vm3008, nan, %v3017
        %v3019 = vand.u32 2147483647, %v370
        %vm3020 = vcmp.le.f32.partialorder %v3019, 0.7853982
        %vm3021 = vcmp.lt.s32.totalorder %v370, 0
        %v3022 = vand.u32 %v370, 2139095040
        %v3023 = vshrl.u32 %v3022, 23
        %v3024 = vsub.s32 %v3023, 127
        %v3025 = vand.u32 2147483647, %v370
        %v3026 = vand.u32 %v3025, 8388607
        %v3027 = vor.u32 %v3026, 8388608
        %v3028 = vsub.s32 0, %v3027
        %v3029 = vadd.s32 %v3024, 1
        %vm3030 = vcmp.gt.s32.totalorder %v3029, 0
        %v3031 = vsel %vm3030, %v3029, 0
        %v3032 = vshrl.u32 %v3031, 5
        %v3033 = vand.u32 %v3031, 31
        %v3034 = vsub.s32 32, %v3033
        %v3035 = vshrl.u32 683565275, %v3034
        %v3036 = vshll.u32 683565275, %v3033
        %v3037 = vshrl.u32 2475754826, %v3034
        %v3038 = vor.u32 %v3036, %v3037
        %v3039 = vshll.u32 2475754826, %v3033
        %v3040 = vshrl.u32 2131351028, %v3034
        %v3041 = vor.u32 %v3039, %v3040
        %v3042 = vshll.u32 2131351028, %v3033
        %v3043 = vshrl.u32 2102212464, %v3034
        %v3044 = vor.u32 %v3042, %v3043
        %v3045 = vshll.u32 2102212464, %v3033
        %v3046 = vshrl.u32 920167782, %v3034
        %v3047 = vor.u32 %v3045, %v3046
        %v3048 = vshll.u32 920167782, %v3033
        %v3049 = vshrl.u32 1326507024, %v3034
        %v3050 = vor.u32 %v3048, %v3049
        %vm3051 = vcmp.lt.s32.totalorder %v3032, 1
        %vm3052 = vcmp.lt.s32.totalorder %v3032, 2
        %vm3053 = vcmp.lt.s32.totalorder %v3032, 3
        %vm3054 = vcmp.lt.s32.totalorder %v3032, 4
        %v3055 = vsel %vm3051, %v3035, %v3038
        %v3056 = vsel %vm3054, %v3044, 2102212464
        %v3057 = vsel %vm3053, %v3041, %v3056
        %v3058 = vsel %vm3052, %v3055, %v3057
        %v3059 = vsel %vm3051, %v3038, %v3041
        %v3060 = vsel %vm3054, %v3047, 920167782
        %v3061 = vsel %vm3053, %v3044, %v3060
        %v3062 = vsel %vm3052, %v3059, %v3061
        %v3063 = vsel %vm3051, %v3041, %v3044
        %v3064 = vsel %vm3054, %v3050, 1326507024
        %v3065 = vsel %vm3053, %v3047, %v3064
        %v3066 = vsel %vm3052, %v3063, %v3065
        %v3067 = vshll.u32 %v3027, 8
        %v3068 = vand.u32 %v3067, 65535
        %v3069 = vshrl.u32 %v3067, 16
        %v3070 = vand.u32 %v3066, 65535
        %v3071 = vshrl.u32 %v3066, 16
        %v3072 = vmul.u32 %v3068, %v3070
        %v3073 = vmul.u32 %v3068, %v3071
        %v3074 = vmul.u32 %v3069, %v3070
        %v3075 = vmul.u32 %v3069, %v3071
        %v3076 = vshll.u32 %v3073, 16
        %v3077 = vshrl.u32 %v3073, 16
        %v3078 = vshll.u32 %v3074, 16
        %v3079 = vshrl.u32 %v3074, 16
        %vm3080 = vc.u32 %v3072, %v3076
        %v3081 = vsel %vm3080, 1, 0
        %v3082 = vadd.s32 %v3072, %v3076
        %v3083 = vadd.s32 %v3075, %v3081
        %vm3084 = vc.u32 %v3082, %v3078
        %v3085 = vsel %vm3084, 1, 0
        %v3086 = vadd.s32 %v3082, %v3078
        %v3087 = vadd.s32 %v3083, %v3085
        %v3088 = vadd.s32 %v3087, %v3077
        %v3089 = vadd.s32 %v3088, %v3079
        %v3090 = vand.u32 %v3067, 65535
        %v3091 = vshrl.u32 %v3067, 16
        %v3092 = vand.u32 %v3062, 65535
        %v3093 = vshrl.u32 %v3062, 16
        %v3094 = vmul.u32 %v3090, %v3092
        %v3095 = vmul.u32 %v3090, %v3093
        %v3096 = vmul.u32 %v3091, %v3092
        %v3097 = vmul.u32 %v3091, %v3093
        %v3098 = vshll.u32 %v3095, 16
        %v3099 = vshrl.u32 %v3095, 16
        %v3100 = vshll.u32 %v3096, 16
        %v3101 = vshrl.u32 %v3096, 16
        %vm3102 = vc.u32 %v3094, %v3098
        %v3103 = vsel %vm3102, 1, 0
        %v3104 = vadd.s32 %v3094, %v3098
        %v3105 = vadd.s32 %v3097, %v3103
        %vm3106 = vc.u32 %v3104, %v3100
        %v3107 = vsel %vm3106, 1, 0
        %v3108 = vadd.s32 %v3104, %v3100
        %v3109 = vadd.s32 %v3105, %v3107
        %v3110 = vadd.s32 %v3109, %v3099
        %v3111 = vadd.s32 %v3110, %v3101
        %v3112 = vmul.u32 %v3067, %v3058
        %v3113 = vadd.s32 %v3089, %v3108
        %vm3114 = vc.u32 %v3089, %v3108
        %v3115 = vadd.s32 %v3111, 1
        %v3116 = vsel %vm3114, %v3115, %v3111
        %v3117 = vadd.s32 %v3112, %v3116
        %v3118 = vadd.s32 %v3117, 536870912
        %v3119 = vshrl.u32 %v3118, 30
        %v3120 = vshll.u32 %v3119, 30
        %v3121 = vsub.s32 %v3117, %v3120
        %vm3122 = vcmp.lt.s32.totalorder %v3121, 0
        %v3123 = vsub.s32 0, %v3121
        %v3124 = vsel %vm3122, %v3123, %v3121
        %v3125 = vclz %v3124
        %v3126 = vsub.s32 %v3125, 2
        %vm3127 = vcmp.gt.s32.totalorder 0, %v3126
        %v3128 = vsel %vm3127, 0, %v3126
        %v3129 = vsub.s32 32, %v3128
        %v3130 = vshll.u32 %v3121, %v3128
        %v3131 = vshrl.u32 %v3113, %v3129
        %v3132 = vor.u32 %v3130, %v3131
        %v3133 = vsub.s32 4294967266, %v3128
        %v3134 = vadd.s32 %v3133, 127
        %v3135 = vshll.u32 %v3134, 23
        %v3136 = vor.u32 4788187, %v3135
        %v3137 = vand.u32 2147483647, %v3136
        %v3139 = vcvt.s32.f32 %v3132
        %v3140 = vmul.f32 %v3139, %v3137
        %v3141 = vxor.u32 %v3140, 2147483648
        %v3142 = vsel %vm3021, %v3141, %v3140
        %v3143 = vsub.s32 4, %v3119
        %v3144 = vsel %vm3021, %v3143, %v3119
        %v3145 = vsel %vm3020, %v370, %v3142
        %v3146 = vsel %vm3020, 0, %v3144
        %v3147 = vmul.f32 %v3145, %v3145
        %v3148 = vmul.f32 %v3147, -0.001358992
        %v3149 = vadd.f32 %v3148, 0.041655596
        %v3150 = vmul.f32 %v3147, %v3149
        %v3151 = vadd.f32 %v3150, -0.4999988
        %v3152 = vmul.f32 %v3147, %v3151
        %v3153 = vadd.f32 1.0, %v3152
        %v3154 = vmul.f32 %v3145, %v3145
        %v3155 = vmul.f32 %v3154, -0.00019511016
        %v3156 = vadd.f32 %v3155, 0.008332121
        %v3157 = vmul.f32 %v3154, %v3156
        %v3158 = vadd.f32 %v3157, -0.16666654
        %v3159 = vmul.f32 %v3154, %v3158
        %v3160 = vadd.f32 %v3159, 1.0
        %v3161 = vmul.f32 %v3160, %v3145
        %vm3162 = vweird.f32 %v370
        %v3163 = vand.u32 %v3146, 3
        %vm3164 = vcmp.lt.s32.totalorder %v3163, 2
        %vm3165 = vcmp.eq.s32.totalorder %v3163, 0
        %v3166 = vxor.u32 %v3161, 2147483648
        %v3167 = vsel %vm3165, %v3153, %v3166
        %vm3168 = vcmp.eq.s32.totalorder %v3163, 2
        %v3169 = vxor.u32 %v3153, 2147483648
        %v3170 = vsel %vm3168, %v3169, %v3161
        %v3171 = vsel %vm3164, %v3167, %v3170
        %v3172 = vsel %vm3162, nan, %v3171
        %v3173 = vand.u32 2147483647, %v371
        %vm3174 = vcmp.le.f32.partialorder %v3173, 0.7853982
        %vm3175 = vcmp.lt.s32.totalorder %v371, 0
        %v3176 = vand.u32 %v371, 2139095040
        %v3177 = vshrl.u32 %v3176, 23
        %v3178 = vsub.s32 %v3177, 127
        %v3179 = vand.u32 2147483647, %v371
        %v3180 = vand.u32 %v3179, 8388607
        %v3181 = vor.u32 %v3180, 8388608
        %v3182 = vsub.s32 0, %v3181
        %v3183 = vadd.s32 %v3178, 1
        %vm3184 = vcmp.gt.s32.totalorder %v3183, 0
        %v3185 = vsel %vm3184, %v3183, 0
        %v3186 = vshrl.u32 %v3185, 5
        %v3187 = vand.u32 %v3185, 31
        %v3188 = vsub.s32 32, %v3187
        %v3189 = vshrl.u32 683565275, %v3188
        %v3190 = vshll.u32 683565275, %v3187
        %v3191 = vshrl.u32 2475754826, %v3188
        %v3192 = vor.u32 %v3190, %v3191
        %v3193 = vshll.u32 2475754826, %v3187
        %v3194 = vshrl.u32 2131351028, %v3188
        %v3195 = vor.u32 %v3193, %v3194
        %v3196 = vshll.u32 2131351028, %v3187
        %v3197 = vshrl.u32 2102212464, %v3188
        %v3198 = vor.u32 %v3196, %v3197
        %v3199 = vshll.u32 2102212464, %v3187
        %v3200 = vshrl.u32 920167782, %v3188
        %v3201 = vor.u32 %v3199, %v3200
        %v3202 = vshll.u32 920167782, %v3187
        %v3203 = vshrl.u32 1326507024, %v3188
        %v3204 = vor.u32 %v3202, %v3203
        %vm3205 = vcmp.lt.s32.totalorder %v3186, 1
        %vm3206 = vcmp.lt.s32.totalorder %v3186, 2
        %vm3207 = vcmp.lt.s32.totalorder %v3186, 3
        %vm3208 = vcmp.lt.s32.totalorder %v3186, 4
        %v3209 = vsel %vm3205, %v3189, %v3192
        %v3210 = vsel %vm3208, %v3198, 2102212464
        %v3211 = vsel %vm3207, %v3195, %v3210
        %v3212 = vsel %vm3206, %v3209, %v3211
        %v3213 = vsel %vm3205, %v3192, %v3195
        %v3214 = vsel %vm3208, %v3201, 920167782
        %v3215 = vsel %vm3207, %v3198, %v3214
        %v3216 = vsel %vm3206, %v3213, %v3215
        %v3217 = vsel %vm3205, %v3195, %v3198
        %v3218 = vsel %vm3208, %v3204, 1326507024
        %v3219 = vsel %vm3207, %v3201, %v3218
        %v3220 = vsel %vm3206, %v3217, %v3219
        %v3221 = vshll.u32 %v3181, 8
        %v3222 = vand.u32 %v3221, 65535
        %v3223 = vshrl.u32 %v3221, 16
        %v3224 = vand.u32 %v3220, 65535
        %v3225 = vshrl.u32 %v3220, 16
        %v3226 = vmul.u32 %v3222, %v3224
        %v3227 = vmul.u32 %v3222, %v3225
        %v3228 = vmul.u32 %v3223, %v3224
        %v3229 = vmul.u32 %v3223, %v3225
        %v3230 = vshll.u32 %v3227, 16
        %v3231 = vshrl.u32 %v3227, 16
        %v3232 = vshll.u32 %v3228, 16
        %v3233 = vshrl.u32 %v3228, 16
        %vm3234 = vc.u32 %v3226, %v3230
        %v3235 = vsel %vm3234, 1, 0
        %v3236 = vadd.s32 %v3226, %v3230
        %v3237 = vadd.s32 %v3229, %v3235
        %vm3238 = vc.u32 %v3236, %v3232
        %v3239 = vsel %vm3238, 1, 0
        %v3240 = vadd.s32 %v3236, %v3232
        %v3241 = vadd.s32 %v3237, %v3239
        %v3242 = vadd.s32 %v3241, %v3231
        %v3243 = vadd.s32 %v3242, %v3233
        %v3244 = vand.u32 %v3221, 65535
        %v3245 = vshrl.u32 %v3221, 16
        %v3246 = vand.u32 %v3216, 65535
        %v3247 = vshrl.u32 %v3216, 16
        %v3248 = vmul.u32 %v3244, %v3246
        %v3249 = vmul.u32 %v3244, %v3247
        %v3250 = vmul.u32 %v3245, %v3246
        %v3251 = vmul.u32 %v3245, %v3247
        %v3252 = vshll.u32 %v3249, 16
        %v3253 = vshrl.u32 %v3249, 16
        %v3254 = vshll.u32 %v3250, 16
        %v3255 = vshrl.u32 %v3250, 16
        %vm3256 = vc.u32 %v3248, %v3252
        %v3257 = vsel %vm3256, 1, 0
        %v3258 = vadd.s32 %v3248, %v3252
        %v3259 = vadd.s32 %v3251, %v3257
        %vm3260 = vc.u32 %v3258, %v3254
        %v3261 = vsel %vm3260, 1, 0
        %v3262 = vadd.s32 %v3258, %v3254
        %v3263 = vadd.s32 %v3259, %v3261
        %v3264 = vadd.s32 %v3263, %v3253
        %v3265 = vadd.s32 %v3264, %v3255
        %v3266 = vmul.u32 %v3221, %v3212
        %v3267 = vadd.s32 %v3243, %v3262
        %vm3268 = vc.u32 %v3243, %v3262
        %v3269 = vadd.s32 %v3265, 1
        %v3270 = vsel %vm3268, %v3269, %v3265
        %v3271 = vadd.s32 %v3266, %v3270
        %v3272 = vadd.s32 %v3271, 536870912
        %v3273 = vshrl.u32 %v3272, 30
        %v3274 = vshll.u32 %v3273, 30
        %v3275 = vsub.s32 %v3271, %v3274
        %vm3276 = vcmp.lt.s32.totalorder %v3275, 0
        %v3277 = vsub.s32 0, %v3275
        %v3278 = vsel %vm3276, %v3277, %v3275
        %v3279 = vclz %v3278
        %v3280 = vsub.s32 %v3279, 2
        %vm3281 = vcmp.gt.s32.totalorder 0, %v3280
        %v3282 = vsel %vm3281, 0, %v3280
        %v3283 = vsub.s32 32, %v3282
        %v3284 = vshll.u32 %v3275, %v3282
        %v3285 = vshrl.u32 %v3267, %v3283
        %v3286 = vor.u32 %v3284, %v3285
        %v3287 = vsub.s32 4294967266, %v3282
        %v3288 = vadd.s32 %v3287, 127
        %v3289 = vshll.u32 %v3288, 23
        %v3290 = vor.u32 4788187, %v3289
        %v3291 = vand.u32 2147483647, %v3290
        %v3293 = vcvt.s32.f32 %v3286
        %v3294 = vmul.f32 %v3293, %v3291
        %v3295 = vxor.u32 %v3294, 2147483648
        %v3296 = vsel %vm3175, %v3295, %v3294
        %v3297 = vsub.s32 4, %v3273
        %v3298 = vsel %vm3175, %v3297, %v3273
        %v3299 = vsel %vm3174, %v371, %v3296
        %v3300 = vsel %vm3174, 0, %v3298
        %v3301 = vmul.f32 %v3299, %v3299
        %v3302 = vmul.f32 %v3301, -0.001358992
        %v3303 = vadd.f32 %v3302, 0.041655596
        %v3304 = vmul.f32 %v3301, %v3303
        %v3305 = vadd.f32 %v3304, -0.4999988
        %v3306 = vmul.f32 %v3301, %v3305
        %v3307 = vadd.f32 1.0, %v3306
        %v3308 = vmul.f32 %v3299, %v3299
        %v3309 = vmul.f32 %v3308, -0.00019511016
        %v3310 = vadd.f32 %v3309, 0.008332121
        %v3311 = vmul.f32 %v3308, %v3310
        %v3312 = vadd.f32 %v3311, -0.16666654
        %v3313 = vmul.f32 %v3308, %v3312
        %v3314 = vadd.f32 %v3313, 1.0
        %v3315 = vmul.f32 %v3314, %v3299
        %vm3316 = vweird.f32 %v371
        %v3317 = vand.u32 %v3300, 3
        %vm3318 = vcmp.lt.s32.totalorder %v3317, 2
        %vm3319 = vcmp.eq.s32.totalorder %v3317, 0
        %v3320 = vxor.u32 %v3315, 2147483648
        %v3321 = vsel %vm3319, %v3307, %v3320
        %vm3322 = vcmp.eq.s32.totalorder %v3317, 2
        %v3323 = vxor.u32 %v3307, 2147483648
        %v3324 = vsel %vm3322, %v3323, %v3315
        %v3325 = vsel %vm3318, %v3321, %v3324
        %v3326 = vsel %vm3316, nan, %v3325
        %v3327 = vand.u32 2147483647, %v372
        %vm3328 = vcmp.le.f32.partialorder %v3327, 0.7853982
        %vm3329 = vcmp.lt.s32.totalorder %v372, 0
        %v3330 = vand.u32 %v372, 2139095040
        %v3331 = vshrl.u32 %v3330, 23
        %v3332 = vsub.s32 %v3331, 127
        %v3333 = vand.u32 2147483647, %v372
        %v3334 = vand.u32 %v3333, 8388607
        %v3335 = vor.u32 %v3334, 8388608
        %v3336 = vsub.s32 0, %v3335
        %v3337 = vadd.s32 %v3332, 1
        %vm3338 = vcmp.gt.s32.totalorder %v3337, 0
        %v3339 = vsel %vm3338, %v3337, 0
        %v3340 = vshrl.u32 %v3339, 5
        %v3341 = vand.u32 %v3339, 31
        %v3342 = vsub.s32 32, %v3341
        %v3343 = vshrl.u32 683565275, %v3342
        %v3344 = vshll.u32 683565275, %v3341
        %v3345 = vshrl.u32 2475754826, %v3342
        %v3346 = vor.u32 %v3344, %v3345
        %v3347 = vshll.u32 2475754826, %v3341
        %v3348 = vshrl.u32 2131351028, %v3342
        %v3349 = vor.u32 %v3347, %v3348
        %v3350 = vshll.u32 2131351028, %v3341
        %v3351 = vshrl.u32 2102212464, %v3342
        %v3352 = vor.u32 %v3350, %v3351
        %v3353 = vshll.u32 2102212464, %v3341
        %v3354 = vshrl.u32 920167782, %v3342
        %v3355 = vor.u32 %v3353, %v3354
        %v3356 = vshll.u32 920167782, %v3341
        %v3357 = vshrl.u32 1326507024, %v3342
        %v3358 = vor.u32 %v3356, %v3357
        %vm3359 = vcmp.lt.s32.totalorder %v3340, 1
        %vm3360 = vcmp.lt.s32.totalorder %v3340, 2
        %vm3361 = vcmp.lt.s32.totalorder %v3340, 3
        %vm3362 = vcmp.lt.s32.totalorder %v3340, 4
        %v3363 = vsel %vm3359, %v3343, %v3346
        %v3364 = vsel %vm3362, %v3352, 2102212464
        %v3365 = vsel %vm3361, %v3349, %v3364
        %v3366 = vsel %vm3360, %v3363, %v3365
        %v3367 = vsel %vm3359, %v3346, %v3349
        %v3368 = vsel %vm3362, %v3355, 920167782
        %v3369 = vsel %vm3361, %v3352, %v3368
        %v3370 = vsel %vm3360, %v3367, %v3369
        %v3371 = vsel %vm3359, %v3349, %v3352
        %v3372 = vsel %vm3362, %v3358, 1326507024
        %v3373 = vsel %vm3361, %v3355, %v3372
        %v3374 = vsel %vm3360, %v3371, %v3373
        %v3375 = vshll.u32 %v3335, 8
        %v3376 = vand.u32 %v3375, 65535
        %v3377 = vshrl.u32 %v3375, 16
        %v3378 = vand.u32 %v3374, 65535
        %v3379 = vshrl.u32 %v3374, 16
        %v3380 = vmul.u32 %v3376, %v3378
        %v3381 = vmul.u32 %v3376, %v3379
        %v3382 = vmul.u32 %v3377, %v3378
        %v3383 = vmul.u32 %v3377, %v3379
        %v3384 = vshll.u32 %v3381, 16
        %v3385 = vshrl.u32 %v3381, 16
        %v3386 = vshll.u32 %v3382, 16
        %v3387 = vshrl.u32 %v3382, 16
        %vm3388 = vc.u32 %v3380, %v3384
        %v3389 = vsel %vm3388, 1, 0
        %v3390 = vadd.s32 %v3380, %v3384
        %v3391 = vadd.s32 %v3383, %v3389
        %vm3392 = vc.u32 %v3390, %v3386
        %v3393 = vsel %vm3392, 1, 0
        %v3394 = vadd.s32 %v3390, %v3386
        %v3395 = vadd.s32 %v3391, %v3393
        %v3396 = vadd.s32 %v3395, %v3385
        %v3397 = vadd.s32 %v3396, %v3387
        %v3398 = vand.u32 %v3375, 65535
        %v3399 = vshrl.u32 %v3375, 16
        %v3400 = vand.u32 %v3370, 65535
        %v3401 = vshrl.u32 %v3370, 16
        %v3402 = vmul.u32 %v3398, %v3400
        %v3403 = vmul.u32 %v3398, %v3401
        %v3404 = vmul.u32 %v3399, %v3400
        %v3405 = vmul.u32 %v3399, %v3401
        %v3406 = vshll.u32 %v3403, 16
        %v3407 = vshrl.u32 %v3403, 16
        %v3408 = vshll.u32 %v3404, 16
        %v3409 = vshrl.u32 %v3404, 16
        %vm3410 = vc.u32 %v3402, %v3406
        %v3411 = vsel %vm3410, 1, 0
        %v3412 = vadd.s32 %v3402, %v3406
        %v3413 = vadd.s32 %v3405, %v3411
        %vm3414 = vc.u32 %v3412, %v3408
        %v3415 = vsel %vm3414, 1, 0
        %v3416 = vadd.s32 %v3412, %v3408
        %v3417 = vadd.s32 %v3413, %v3415
        %v3418 = vadd.s32 %v3417, %v3407
        %v3419 = vadd.s32 %v3418, %v3409
        %v3420 = vmul.u32 %v3375, %v3366
        %v3421 = vadd.s32 %v3397, %v3416
        %vm3422 = vc.u32 %v3397, %v3416
        %v3423 = vadd.s32 %v3419, 1
        %v3424 = vsel %vm3422, %v3423, %v3419
        %v3425 = vadd.s32 %v3420, %v3424
        %v3426 = vadd.s32 %v3425, 536870912
        %v3427 = vshrl.u32 %v3426, 30
        %v3428 = vshll.u32 %v3427, 30
        %v3429 = vsub.s32 %v3425, %v3428
        %vm3430 = vcmp.lt.s32.totalorder %v3429, 0
        %v3431 = vsub.s32 0, %v3429
        %v3432 = vsel %vm3430, %v3431, %v3429
        %v3433 = vclz %v3432
        %v3434 = vsub.s32 %v3433, 2
        %vm3435 = vcmp.gt.s32.totalorder 0, %v3434
        %v3436 = vsel %vm3435, 0, %v3434
        %v3437 = vsub.s32 32, %v3436
        %v3438 = vshll.u32 %v3429, %v3436
        %v3439 = vshrl.u32 %v3421, %v3437
        %v3440 = vor.u32 %v3438, %v3439
        %v3441 = vsub.s32 4294967266, %v3436
        %v3442 = vadd.s32 %v3441, 127
        %v3443 = vshll.u32 %v3442, 23
        %v3444 = vor.u32 4788187, %v3443
        %v3445 = vand.u32 2147483647, %v3444
        %v3447 = vcvt.s32.f32 %v3440
        %v3448 = vmul.f32 %v3447, %v3445
        %v3449 = vxor.u32 %v3448, 2147483648
        %v3450 = vsel %vm3329, %v3449, %v3448
        %v3451 = vsub.s32 4, %v3427
        %v3452 = vsel %vm3329, %v3451, %v3427
        %v3453 = vsel %vm3328, %v372, %v3450
        %v3454 = vsel %vm3328, 0, %v3452
        %v3455 = vmul.f32 %v3453, %v3453
        %v3456 = vmul.f32 %v3455, -0.001358992
        %v3457 = vadd.f32 %v3456, 0.041655596
        %v3458 = vmul.f32 %v3455, %v3457
        %v3459 = vadd.f32 %v3458, -0.4999988
        %v3460 = vmul.f32 %v3455, %v3459
        %v3461 = vadd.f32 1.0, %v3460
        %v3462 = vmul.f32 %v3453, %v3453
        %v3463 = vmul.f32 %v3462, -0.00019511016
        %v3464 = vadd.f32 %v3463, 0.008332121
        %v3465 = vmul.f32 %v3462, %v3464
        %v3466 = vadd.f32 %v3465, -0.16666654
        %v3467 = vmul.f32 %v3462, %v3466
        %v3468 = vadd.f32 %v3467, 1.0
        %v3469 = vmul.f32 %v3468, %v3453
        %vm3470 = vweird.f32 %v372
        %v3471 = vand.u32 %v3454, 3
        %vm3472 = vcmp.lt.s32.totalorder %v3471, 2
        %vm3473 = vcmp.eq.s32.totalorder %v3471, 0
        %v3474 = vxor.u32 %v3469, 2147483648
        %v3475 = vsel %vm3473, %v3461, %v3474
        %vm3476 = vcmp.eq.s32.totalorder %v3471, 2
        %v3477 = vxor.u32 %v3461, 2147483648
        %v3478 = vsel %vm3476, %v3477, %v3469
        %v3479 = vsel %vm3472, %v3475, %v3478
        %v3480 = vsel %vm3470, nan, %v3479
        %v3481 = vand.u32 2147483647, %v373
        %vm3482 = vcmp.le.f32.partialorder %v3481, 0.7853982
        %vm3483 = vcmp.lt.s32.totalorder %v373, 0
        %v3484 = vand.u32 %v373, 2139095040
        %v3485 = vshrl.u32 %v3484, 23
        %v3486 = vsub.s32 %v3485, 127
        %v3487 = vand.u32 2147483647, %v373
        %v3488 = vand.u32 %v3487, 8388607
        %v3489 = vor.u32 %v3488, 8388608
        %v3490 = vsub.s32 0, %v3489
        %v3491 = vadd.s32 %v3486, 1
        %vm3492 = vcmp.gt.s32.totalorder %v3491, 0
        %v3493 = vsel %vm3492, %v3491, 0
        %v3494 = vshrl.u32 %v3493, 5
        %v3495 = vand.u32 %v3493, 31
        %v3496 = vsub.s32 32, %v3495
        %v3497 = vshrl.u32 683565275, %v3496
        %v3498 = vshll.u32 683565275, %v3495
        %v3499 = vshrl.u32 2475754826, %v3496
        %v3500 = vor.u32 %v3498, %v3499
        %v3501 = vshll.u32 2475754826, %v3495
        %v3502 = vshrl.u32 2131351028, %v3496
        %v3503 = vor.u32 %v3501, %v3502
        %v3504 = vshll.u32 2131351028, %v3495
        %v3505 = vshrl.u32 2102212464, %v3496
        %v3506 = vor.u32 %v3504, %v3505
        %v3507 = vshll.u32 2102212464, %v3495
        %v3508 = vshrl.u32 920167782, %v3496
        %v3509 = vor.u32 %v3507, %v3508
        %v3510 = vshll.u32 920167782, %v3495
        %v3511 = vshrl.u32 1326507024, %v3496
        %v3512 = vor.u32 %v3510, %v3511
        %vm3513 = vcmp.lt.s32.totalorder %v3494, 1
        %vm3514 = vcmp.lt.s32.totalorder %v3494, 2
        %vm3515 = vcmp.lt.s32.totalorder %v3494, 3
        %vm3516 = vcmp.lt.s32.totalorder %v3494, 4
        %v3517 = vsel %vm3513, %v3497, %v3500
        %v3518 = vsel %vm3516, %v3506, 2102212464
        %v3519 = vsel %vm3515, %v3503, %v3518
        %v3520 = vsel %vm3514, %v3517, %v3519
        %v3521 = vsel %vm3513, %v3500, %v3503
        %v3522 = vsel %vm3516, %v3509, 920167782
        %v3523 = vsel %vm3515, %v3506, %v3522
        %v3524 = vsel %vm3514, %v3521, %v3523
        %v3525 = vsel %vm3513, %v3503, %v3506
        %v3526 = vsel %vm3516, %v3512, 1326507024
        %v3527 = vsel %vm3515, %v3509, %v3526
        %v3528 = vsel %vm3514, %v3525, %v3527
        %v3529 = vshll.u32 %v3489, 8
        %v3530 = vand.u32 %v3529, 65535
        %v3531 = vshrl.u32 %v3529, 16
        %v3532 = vand.u32 %v3528, 65535
        %v3533 = vshrl.u32 %v3528, 16
        %v3534 = vmul.u32 %v3530, %v3532
        %v3535 = vmul.u32 %v3530, %v3533
        %v3536 = vmul.u32 %v3531, %v3532
        %v3537 = vmul.u32 %v3531, %v3533
        %v3538 = vshll.u32 %v3535, 16
        %v3539 = vshrl.u32 %v3535, 16
        %v3540 = vshll.u32 %v3536, 16
        %v3541 = vshrl.u32 %v3536, 16
        %vm3542 = vc.u32 %v3534, %v3538
        %v3543 = vsel %vm3542, 1, 0
        %v3544 = vadd.s32 %v3534, %v3538
        %v3545 = vadd.s32 %v3537, %v3543
        %vm3546 = vc.u32 %v3544, %v3540
        %v3547 = vsel %vm3546, 1, 0
        %v3548 = vadd.s32 %v3544, %v3540
        %v3549 = vadd.s32 %v3545, %v3547
        %v3550 = vadd.s32 %v3549, %v3539
        %v3551 = vadd.s32 %v3550, %v3541
        %v3552 = vand.u32 %v3529, 65535
        %v3553 = vshrl.u32 %v3529, 16
        %v3554 = vand.u32 %v3524, 65535
        %v3555 = vshrl.u32 %v3524, 16
        %v3556 = vmul.u32 %v3552, %v3554
        %v3557 = vmul.u32 %v3552, %v3555
        %v3558 = vmul.u32 %v3553, %v3554
        %v3559 = vmul.u32 %v3553, %v3555
        %v3560 = vshll.u32 %v3557, 16
        %v3561 = vshrl.u32 %v3557, 16
        %v3562 = vshll.u32 %v3558, 16
        %v3563 = vshrl.u32 %v3558, 16
        %vm3564 = vc.u32 %v3556, %v3560
        %v3565 = vsel %vm3564, 1, 0
        %v3566 = vadd.s32 %v3556, %v3560
        %v3567 = vadd.s32 %v3559, %v3565
        %vm3568 = vc.u32 %v3566, %v3562
        %v3569 = vsel %vm3568, 1, 0
        %v3570 = vadd.s32 %v3566, %v3562
        %v3571 = vadd.s32 %v3567, %v3569
        %v3572 = vadd.s32 %v3571, %v3561
        %v3573 = vadd.s32 %v3572, %v3563
        %v3574 = vmul.u32 %v3529, %v3520
        %v3575 = vadd.s32 %v3551, %v3570
        %vm3576 = vc.u32 %v3551, %v3570
        %v3577 = vadd.s32 %v3573, 1
        %v3578 = vsel %vm3576, %v3577, %v3573
        %v3579 = vadd.s32 %v3574, %v3578
        %v3580 = vadd.s32 %v3579, 536870912
        %v3581 = vshrl.u32 %v3580, 30
        %v3582 = vshll.u32 %v3581, 30
        %v3583 = vsub.s32 %v3579, %v3582
        %vm3584 = vcmp.lt.s32.totalorder %v3583, 0
        %v3585 = vsub.s32 0, %v3583
        %v3586 = vsel %vm3584, %v3585, %v3583
        %v3587 = vclz %v3586
        %v3588 = vsub.s32 %v3587, 2
        %vm3589 = vcmp.gt.s32.totalorder 0, %v3588
        %v3590 = vsel %vm3589, 0, %v3588
        %v3591 = vsub.s32 32, %v3590
        %v3592 = vshll.u32 %v3583, %v3590
        %v3593 = vshrl.u32 %v3575, %v3591
        %v3594 = vor.u32 %v3592, %v3593
        %v3595 = vsub.s32 4294967266, %v3590
        %v3596 = vadd.s32 %v3595, 127
        %v3597 = vshll.u32 %v3596, 23
        %v3598 = vor.u32 4788187, %v3597
        %v3599 = vand.u32 2147483647, %v3598
        %v3601 = vcvt.s32.f32 %v3594
        %v3602 = vmul.f32 %v3601, %v3599
        %v3603 = vxor.u32 %v3602, 2147483648
        %v3604 = vsel %vm3483, %v3603, %v3602
        %v3605 = vsub.s32 4, %v3581
        %v3606 = vsel %vm3483, %v3605, %v3581
        %v3607 = vsel %vm3482, %v373, %v3604
        %v3608 = vsel %vm3482, 0, %v3606
        %v3609 = vmul.f32 %v3607, %v3607
        %v3610 = vmul.f32 %v3609, -0.001358992
        %v3611 = vadd.f32 %v3610, 0.041655596
        %v3612 = vmul.f32 %v3609, %v3611
        %v3613 = vadd.f32 %v3612, -0.4999988
        %v3614 = vmul.f32 %v3609, %v3613
        %v3615 = vadd.f32 1.0, %v3614
        %v3616 = vmul.f32 %v3607, %v3607
        %v3617 = vmul.f32 %v3616, -0.00019511016
        %v3618 = vadd.f32 %v3617, 0.008332121
        %v3619 = vmul.f32 %v3616, %v3618
        %v3620 = vadd.f32 %v3619, -0.16666654
        %v3621 = vmul.f32 %v3616, %v3620
        %v3622 = vadd.f32 %v3621, 1.0
        %v3623 = vmul.f32 %v3622, %v3607
        %vm3624 = vweird.f32 %v373
        %v3625 = vand.u32 %v3608, 3
        %vm3626 = vcmp.lt.s32.totalorder %v3625, 2
        %vm3627 = vcmp.eq.s32.totalorder %v3625, 0
        %v3628 = vxor.u32 %v3623, 2147483648
        %v3629 = vsel %vm3627, %v3615, %v3628
        %vm3630 = vcmp.eq.s32.totalorder %v3625, 2
        %v3631 = vxor.u32 %v3615, 2147483648
        %v3632 = vsel %vm3630, %v3631, %v3623
        %v3633 = vsel %vm3626, %v3629, %v3632
        %v3634 = vsel %vm3624, nan, %v3633
        %v3635 = vand.u32 2147483647, %v374
        %vm3636 = vcmp.le.f32.partialorder %v3635, 0.7853982
        %vm3637 = vcmp.lt.s32.totalorder %v374, 0
        %v3638 = vand.u32 %v374, 2139095040
        %v3639 = vshrl.u32 %v3638, 23
        %v3640 = vsub.s32 %v3639, 127
        %v3641 = vand.u32 2147483647, %v374
        %v3642 = vand.u32 %v3641, 8388607
        %v3643 = vor.u32 %v3642, 8388608
        %v3644 = vsub.s32 0, %v3643
        %v3645 = vadd.s32 %v3640, 1
        %vm3646 = vcmp.gt.s32.totalorder %v3645, 0
        %v3647 = vsel %vm3646, %v3645, 0
        %v3648 = vshrl.u32 %v3647, 5
        %v3649 = vand.u32 %v3647, 31
        %v3650 = vsub.s32 32, %v3649
        %v3651 = vshrl.u32 683565275, %v3650
        %v3652 = vshll.u32 683565275, %v3649
        %v3653 = vshrl.u32 2475754826, %v3650
        %v3654 = vor.u32 %v3652, %v3653
        %v3655 = vshll.u32 2475754826, %v3649
        %v3656 = vshrl.u32 2131351028, %v3650
        %v3657 = vor.u32 %v3655, %v3656
        %v3658 = vshll.u32 2131351028, %v3649
        %v3659 = vshrl.u32 2102212464, %v3650
        %v3660 = vor.u32 %v3658, %v3659
        %v3661 = vshll.u32 2102212464, %v3649
        %v3662 = vshrl.u32 920167782, %v3650
        %v3663 = vor.u32 %v3661, %v3662
        %v3664 = vshll.u32 920167782, %v3649
        %v3665 = vshrl.u32 1326507024, %v3650
        %v3666 = vor.u32 %v3664, %v3665
        %vm3667 = vcmp.lt.s32.totalorder %v3648, 1
        %vm3668 = vcmp.lt.s32.totalorder %v3648, 2
        %vm3669 = vcmp.lt.s32.totalorder %v3648, 3
        %vm3670 = vcmp.lt.s32.totalorder %v3648, 4
        %v3671 = vsel %vm3667, %v3651, %v3654
        %v3672 = vsel %vm3670, %v3660, 2102212464
        %v3673 = vsel %vm3669, %v3657, %v3672
        %v3674 = vsel %vm3668, %v3671, %v3673
        %v3675 = vsel %vm3667, %v3654, %v3657
        %v3676 = vsel %vm3670, %v3663, 920167782
        %v3677 = vsel %vm3669, %v3660, %v3676
        %v3678 = vsel %vm3668, %v3675, %v3677
        %v3679 = vsel %vm3667, %v3657, %v3660
        %v3680 = vsel %vm3670, %v3666, 1326507024
        %v3681 = vsel %vm3669, %v3663, %v3680
        %v3682 = vsel %vm3668, %v3679, %v3681
        %v3683 = vshll.u32 %v3643, 8
        %v3684 = vand.u32 %v3683, 65535
        %v3685 = vshrl.u32 %v3683, 16
        %v3686 = vand.u32 %v3682, 65535
        %v3687 = vshrl.u32 %v3682, 16
        %v3688 = vmul.u32 %v3684, %v3686
        %v3689 = vmul.u32 %v3684, %v3687
        %v3690 = vmul.u32 %v3685, %v3686
        %v3691 = vmul.u32 %v3685, %v3687
        %v3692 = vshll.u32 %v3689, 16
        %v3693 = vshrl.u32 %v3689, 16
        %v3694 = vshll.u32 %v3690, 16
        %v3695 = vshrl.u32 %v3690, 16
        %vm3696 = vc.u32 %v3688, %v3692
        %v3697 = vsel %vm3696, 1, 0
        %v3698 = vadd.s32 %v3688, %v3692
        %v3699 = vadd.s32 %v3691, %v3697
        %vm3700 = vc.u32 %v3698, %v3694
        %v3701 = vsel %vm3700, 1, 0
        %v3702 = vadd.s32 %v3698, %v3694
        %v3703 = vadd.s32 %v3699, %v3701
        %v3704 = vadd.s32 %v3703, %v3693
        %v3705 = vadd.s32 %v3704, %v3695
        %v3706 = vand.u32 %v3683, 65535
        %v3707 = vshrl.u32 %v3683, 16
        %v3708 = vand.u32 %v3678, 65535
        %v3709 = vshrl.u32 %v3678, 16
        %v3710 = vmul.u32 %v3706, %v3708
        %v3711 = vmul.u32 %v3706, %v3709
        %v3712 = vmul.u32 %v3707, %v3708
        %v3713 = vmul.u32 %v3707, %v3709
        %v3714 = vshll.u32 %v3711, 16
        %v3715 = vshrl.u32 %v3711, 16
        %v3716 = vshll.u32 %v3712, 16
        %v3717 = vshrl.u32 %v3712, 16
        %vm3718 = vc.u32 %v3710, %v3714
        %v3719 = vsel %vm3718, 1, 0
        %v3720 = vadd.s32 %v3710, %v3714
        %v3721 = vadd.s32 %v3713, %v3719
        %vm3722 = vc.u32 %v3720, %v3716
        %v3723 = vsel %vm3722, 1, 0
        %v3724 = vadd.s32 %v3720, %v3716
        %v3725 = vadd.s32 %v3721, %v3723
        %v3726 = vadd.s32 %v3725, %v3715
        %v3727 = vadd.s32 %v3726, %v3717
        %v3728 = vmul.u32 %v3683, %v3674
        %v3729 = vadd.s32 %v3705, %v3724
        %vm3730 = vc.u32 %v3705, %v3724
        %v3731 = vadd.s32 %v3727, 1
        %v3732 = vsel %vm3730, %v3731, %v3727
        %v3733 = vadd.s32 %v3728, %v3732
        %v3734 = vadd.s32 %v3733, 536870912
        %v3735 = vshrl.u32 %v3734, 30
        %v3736 = vshll.u32 %v3735, 30
        %v3737 = vsub.s32 %v3733, %v3736
        %vm3738 = vcmp.lt.s32.totalorder %v3737, 0
        %v3739 = vsub.s32 0, %v3737
        %v3740 = vsel %vm3738, %v3739, %v3737
        %v3741 = vclz %v3740
        %v3742 = vsub.s32 %v3741, 2
        %vm3743 = vcmp.gt.s32.totalorder 0, %v3742
        %v3744 = vsel %vm3743, 0, %v3742
        %v3745 = vsub.s32 32, %v3744
        %v3746 = vshll.u32 %v3737, %v3744
        %v3747 = vshrl.u32 %v3729, %v3745
        %v3748 = vor.u32 %v3746, %v3747
        %v3749 = vsub.s32 4294967266, %v3744
        %v3750 = vadd.s32 %v3749, 127
        %v3751 = vshll.u32 %v3750, 23
        %v3752 = vor.u32 4788187, %v3751
        %v3753 = vand.u32 2147483647, %v3752
        %v3755 = vcvt.s32.f32 %v3748
        %v3756 = vmul.f32 %v3755, %v3753
        %v3757 = vxor.u32 %v3756, 2147483648
        %v3758 = vsel %vm3637, %v3757, %v3756
        %v3759 = vsub.s32 4, %v3735
        %v3760 = vsel %vm3637, %v3759, %v3735
        %v3761 = vsel %vm3636, %v374, %v3758
        %v3762 = vsel %vm3636, 0, %v3760
        %v3763 = vmul.f32 %v3761, %v3761
        %v3764 = vmul.f32 %v3763, -0.001358992
        %v3765 = vadd.f32 %v3764, 0.041655596
        %v3766 = vmul.f32 %v3763, %v3765
        %v3767 = vadd.f32 %v3766, -0.4999988
        %v3768 = vmul.f32 %v3763, %v3767
        %v3769 = vadd.f32 1.0, %v3768
        %v3770 = vmul.f32 %v3761, %v3761
        %v3771 = vmul.f32 %v3770, -0.00019511016
        %v3772 = vadd.f32 %v3771, 0.008332121
        %v3773 = vmul.f32 %v3770, %v3772
        %v3774 = vadd.f32 %v3773, -0.16666654
        %v3775 = vmul.f32 %v3770, %v3774
        %v3776 = vadd.f32 %v3775, 1.0
        %v3777 = vmul.f32 %v3776, %v3761
        %vm3778 = vweird.f32 %v374
        %v3779 = vand.u32 %v3762, 3
        %vm3780 = vcmp.lt.s32.totalorder %v3779, 2
        %vm3781 = vcmp.eq.s32.totalorder %v3779, 0
        %v3782 = vxor.u32 %v3777, 2147483648
        %v3783 = vsel %vm3781, %v3769, %v3782
        %vm3784 = vcmp.eq.s32.totalorder %v3779, 2
        %v3785 = vxor.u32 %v3769, 2147483648
        %v3786 = vsel %vm3784, %v3785, %v3777
        %v3787 = vsel %vm3780, %v3783, %v3786
        %v3788 = vsel %vm3778, nan, %v3787
        %v3789 = vand.u32 2147483647, %v375
        %vm3790 = vcmp.le.f32.partialorder %v3789, 0.7853982
        %vm3791 = vcmp.lt.s32.totalorder %v375, 0
        %v3792 = vand.u32 %v375, 2139095040
        %v3793 = vshrl.u32 %v3792, 23
        %v3794 = vsub.s32 %v3793, 127
        %v3795 = vand.u32 2147483647, %v375
        %v3796 = vand.u32 %v3795, 8388607
        %v3797 = vor.u32 %v3796, 8388608
        %v3798 = vsub.s32 0, %v3797
        %v3799 = vadd.s32 %v3794, 1
        %vm3800 = vcmp.gt.s32.totalorder %v3799, 0
        %v3801 = vsel %vm3800, %v3799, 0
        %v3802 = vshrl.u32 %v3801, 5
        %v3803 = vand.u32 %v3801, 31
        %v3804 = vsub.s32 32, %v3803
        %v3805 = vshrl.u32 683565275, %v3804
        %v3806 = vshll.u32 683565275, %v3803
        %v3807 = vshrl.u32 2475754826, %v3804
        %v3808 = vor.u32 %v3806, %v3807
        %v3809 = vshll.u32 2475754826, %v3803
        %v3810 = vshrl.u32 2131351028, %v3804
        %v3811 = vor.u32 %v3809, %v3810
        %v3812 = vshll.u32 2131351028, %v3803
        %v3813 = vshrl.u32 2102212464, %v3804
        %v3814 = vor.u32 %v3812, %v3813
        %v3815 = vshll.u32 2102212464, %v3803
        %v3816 = vshrl.u32 920167782, %v3804
        %v3817 = vor.u32 %v3815, %v3816
        %v3818 = vshll.u32 920167782, %v3803
        %v3819 = vshrl.u32 1326507024, %v3804
        %v3820 = vor.u32 %v3818, %v3819
        %vm3821 = vcmp.lt.s32.totalorder %v3802, 1
        %vm3822 = vcmp.lt.s32.totalorder %v3802, 2
        %vm3823 = vcmp.lt.s32.totalorder %v3802, 3
        %vm3824 = vcmp.lt.s32.totalorder %v3802, 4
        %v3825 = vsel %vm3821, %v3805, %v3808
        %v3826 = vsel %vm3824, %v3814, 2102212464
        %v3827 = vsel %vm3823, %v3811, %v3826
        %v3828 = vsel %vm3822, %v3825, %v3827
        %v3829 = vsel %vm3821, %v3808, %v3811
        %v3830 = vsel %vm3824, %v3817, 920167782
        %v3831 = vsel %vm3823, %v3814, %v3830
        %v3832 = vsel %vm3822, %v3829, %v3831
        %v3833 = vsel %vm3821, %v3811, %v3814
        %v3834 = vsel %vm3824, %v3820, 1326507024
        %v3835 = vsel %vm3823, %v3817, %v3834
        %v3836 = vsel %vm3822, %v3833, %v3835
        %v3837 = vshll.u32 %v3797, 8
        %v3838 = vand.u32 %v3837, 65535
        %v3839 = vshrl.u32 %v3837, 16
        %v3840 = vand.u32 %v3836, 65535
        %v3841 = vshrl.u32 %v3836, 16
        %v3842 = vmul.u32 %v3838, %v3840
        %v3843 = vmul.u32 %v3838, %v3841
        %v3844 = vmul.u32 %v3839, %v3840
        %v3845 = vmul.u32 %v3839, %v3841
        %v3846 = vshll.u32 %v3843, 16
        %v3847 = vshrl.u32 %v3843, 16
        %v3848 = vshll.u32 %v3844, 16
        %v3849 = vshrl.u32 %v3844, 16
        %vm3850 = vc.u32 %v3842, %v3846
        %v3851 = vsel %vm3850, 1, 0
        %v3852 = vadd.s32 %v3842, %v3846
        %v3853 = vadd.s32 %v3845, %v3851
        %vm3854 = vc.u32 %v3852, %v3848
        %v3855 = vsel %vm3854, 1, 0
        %v3856 = vadd.s32 %v3852, %v3848
        %v3857 = vadd.s32 %v3853, %v3855
        %v3858 = vadd.s32 %v3857, %v3847
        %v3859 = vadd.s32 %v3858, %v3849
        %v3860 = vand.u32 %v3837, 65535
        %v3861 = vshrl.u32 %v3837, 16
        %v3862 = vand.u32 %v3832, 65535
        %v3863 = vshrl.u32 %v3832, 16
        %v3864 = vmul.u32 %v3860, %v3862
        %v3865 = vmul.u32 %v3860, %v3863
        %v3866 = vmul.u32 %v3861, %v3862
        %v3867 = vmul.u32 %v3861, %v3863
        %v3868 = vshll.u32 %v3865, 16
        %v3869 = vshrl.u32 %v3865, 16
        %v3870 = vshll.u32 %v3866, 16
        %v3871 = vshrl.u32 %v3866, 16
        %vm3872 = vc.u32 %v3864, %v3868
        %v3873 = vsel %vm3872, 1, 0
        %v3874 = vadd.s32 %v3864, %v3868
        %v3875 = vadd.s32 %v3867, %v3873
        %vm3876 = vc.u32 %v3874, %v3870
        %v3877 = vsel %vm3876, 1, 0
        %v3878 = vadd.s32 %v3874, %v3870
        %v3879 = vadd.s32 %v3875, %v3877
        %v3880 = vadd.s32 %v3879, %v3869
        %v3881 = vadd.s32 %v3880, %v3871
        %v3882 = vmul.u32 %v3837, %v3828
        %v3883 = vadd.s32 %v3859, %v3878
        %vm3884 = vc.u32 %v3859, %v3878
        %v3885 = vadd.s32 %v3881, 1
        %v3886 = vsel %vm3884, %v3885, %v3881
        %v3887 = vadd.s32 %v3882, %v3886
        %v3888 = vadd.s32 %v3887, 536870912
        %v3889 = vshrl.u32 %v3888, 30
        %v3890 = vshll.u32 %v3889, 30
        %v3891 = vsub.s32 %v3887, %v3890
        %vm3892 = vcmp.lt.s32.totalorder %v3891, 0
        %v3893 = vsub.s32 0, %v3891
        %v3894 = vsel %vm3892, %v3893, %v3891
        %v3895 = vclz %v3894
        %v3896 = vsub.s32 %v3895, 2
        %vm3897 = vcmp.gt.s32.totalorder 0, %v3896
        %v3898 = vsel %vm3897, 0, %v3896
        %v3899 = vsub.s32 32, %v3898
        %v3900 = vshll.u32 %v3891, %v3898
        %v3901 = vshrl.u32 %v3883, %v3899
        %v3902 = vor.u32 %v3900, %v3901
        %v3903 = vsub.s32 4294967266, %v3898
        %v3904 = vadd.s32 %v3903, 127
        %v3905 = vshll.u32 %v3904, 23
        %v3906 = vor.u32 4788187, %v3905
        %v3907 = vand.u32 2147483647, %v3906
        %v3909 = vcvt.s32.f32 %v3902
        %v3910 = vmul.f32 %v3909, %v3907
        %v3911 = vxor.u32 %v3910, 2147483648
        %v3912 = vsel %vm3791, %v3911, %v3910
        %v3913 = vsub.s32 4, %v3889
        %v3914 = vsel %vm3791, %v3913, %v3889
        %v3915 = vsel %vm3790, %v375, %v3912
        %v3916 = vsel %vm3790, 0, %v3914
        %v3917 = vmul.f32 %v3915, %v3915
        %v3918 = vmul.f32 %v3917, -0.001358992
        %v3919 = vadd.f32 %v3918, 0.041655596
        %v3920 = vmul.f32 %v3917, %v3919
        %v3921 = vadd.f32 %v3920, -0.4999988
        %v3922 = vmul.f32 %v3917, %v3921
        %v3923 = vadd.f32 1.0, %v3922
        %v3924 = vmul.f32 %v3915, %v3915
        %v3925 = vmul.f32 %v3924, -0.00019511016
        %v3926 = vadd.f32 %v3925, 0.008332121
        %v3927 = vmul.f32 %v3924, %v3926
        %v3928 = vadd.f32 %v3927, -0.16666654
        %v3929 = vmul.f32 %v3924, %v3928
        %v3930 = vadd.f32 %v3929, 1.0
        %v3931 = vmul.f32 %v3930, %v3915
        %vm3932 = vweird.f32 %v375
        %v3933 = vand.u32 %v3916, 3
        %vm3934 = vcmp.lt.s32.totalorder %v3933, 2
        %vm3935 = vcmp.eq.s32.totalorder %v3933, 0
        %v3936 = vxor.u32 %v3931, 2147483648
        %v3937 = vsel %vm3935, %v3923, %v3936
        %vm3938 = vcmp.eq.s32.totalorder %v3933, 2
        %v3939 = vxor.u32 %v3923, 2147483648
        %v3940 = vsel %vm3938, %v3939, %v3931
        %v3941 = vsel %vm3934, %v3937, %v3940
        %v3942 = vsel %vm3932, nan, %v3941
        %v3943 = vand.u32 2147483647, %v376
        %vm3944 = vcmp.le.f32.partialorder %v3943, 0.7853982
        %vm3945 = vcmp.lt.s32.totalorder %v376, 0
        %v3946 = vand.u32 %v376, 2139095040
        %v3947 = vshrl.u32 %v3946, 23
        %v3948 = vsub.s32 %v3947, 127
        %v3949 = vand.u32 2147483647, %v376
        %v3950 = vand.u32 %v3949, 8388607
        %v3951 = vor.u32 %v3950, 8388608
        %v3952 = vsub.s32 0, %v3951
        %v3953 = vadd.s32 %v3948, 1
        %vm3954 = vcmp.gt.s32.totalorder %v3953, 0
        %v3955 = vsel %vm3954, %v3953, 0
        %v3956 = vshrl.u32 %v3955, 5
        %v3957 = vand.u32 %v3955, 31
        %v3958 = vsub.s32 32, %v3957
        %v3959 = vshrl.u32 683565275, %v3958
        %v3960 = vshll.u32 683565275, %v3957
        %v3961 = vshrl.u32 2475754826, %v3958
        %v3962 = vor.u32 %v3960, %v3961
        %v3963 = vshll.u32 2475754826, %v3957
        %v3964 = vshrl.u32 2131351028, %v3958
        %v3965 = vor.u32 %v3963, %v3964
        %v3966 = vshll.u32 2131351028, %v3957
        %v3967 = vshrl.u32 2102212464, %v3958
        %v3968 = vor.u32 %v3966, %v3967
        %v3969 = vshll.u32 2102212464, %v3957
        %v3970 = vshrl.u32 920167782, %v3958
        %v3971 = vor.u32 %v3969, %v3970
        %v3972 = vshll.u32 920167782, %v3957
        %v3973 = vshrl.u32 1326507024, %v3958
        %v3974 = vor.u32 %v3972, %v3973
        %vm3975 = vcmp.lt.s32.totalorder %v3956, 1
        %vm3976 = vcmp.lt.s32.totalorder %v3956, 2
        %vm3977 = vcmp.lt.s32.totalorder %v3956, 3
        %vm3978 = vcmp.lt.s32.totalorder %v3956, 4
        %v3979 = vsel %vm3975, %v3959, %v3962
        %v3980 = vsel %vm3978, %v3968, 2102212464
        %v3981 = vsel %vm3977, %v3965, %v3980
        %v3982 = vsel %vm3976, %v3979, %v3981
        %v3983 = vsel %vm3975, %v3962, %v3965
        %v3984 = vsel %vm3978, %v3971, 920167782
        %v3985 = vsel %vm3977, %v3968, %v3984
        %v3986 = vsel %vm3976, %v3983, %v3985
        %v3987 = vsel %vm3975, %v3965, %v3968
        %v3988 = vsel %vm3978, %v3974, 1326507024
        %v3989 = vsel %vm3977, %v3971, %v3988
        %v3990 = vsel %vm3976, %v3987, %v3989
        %v3991 = vshll.u32 %v3951, 8
        %v3992 = vand.u32 %v3991, 65535
        %v3993 = vshrl.u32 %v3991, 16
        %v3994 = vand.u32 %v3990, 65535
        %v3995 = vshrl.u32 %v3990, 16
        %v3996 = vmul.u32 %v3992, %v3994
        %v3997 = vmul.u32 %v3992, %v3995
        %v3998 = vmul.u32 %v3993, %v3994
        %v3999 = vmul.u32 %v3993, %v3995
        %v4000 = vshll.u32 %v3997, 16
        %v4001 = vshrl.u32 %v3997, 16
        %v4002 = vshll.u32 %v3998, 16
        %v4003 = vshrl.u32 %v3998, 16
        %vm4004 = vc.u32 %v3996, %v4000
        %v4005 = vsel %vm4004, 1, 0
        %v4006 = vadd.s32 %v3996, %v4000
        %v4007 = vadd.s32 %v3999, %v4005
        %vm4008 = vc.u32 %v4006, %v4002
        %v4009 = vsel %vm4008, 1, 0
        %v4010 = vadd.s32 %v4006, %v4002
        %v4011 = vadd.s32 %v4007, %v4009
        %v4012 = vadd.s32 %v4011, %v4001
        %v4013 = vadd.s32 %v4012, %v4003
        %v4014 = vand.u32 %v3991, 65535
        %v4015 = vshrl.u32 %v3991, 16
        %v4016 = vand.u32 %v3986, 65535
        %v4017 = vshrl.u32 %v3986, 16
        %v4018 = vmul.u32 %v4014, %v4016
        %v4019 = vmul.u32 %v4014, %v4017
        %v4020 = vmul.u32 %v4015, %v4016
        %v4021 = vmul.u32 %v4015, %v4017
        %v4022 = vshll.u32 %v4019, 16
        %v4023 = vshrl.u32 %v4019, 16
        %v4024 = vshll.u32 %v4020, 16
        %v4025 = vshrl.u32 %v4020, 16
        %vm4026 = vc.u32 %v4018, %v4022
        %v4027 = vsel %vm4026, 1, 0
        %v4028 = vadd.s32 %v4018, %v4022
        %v4029 = vadd.s32 %v4021, %v4027
        %vm4030 = vc.u32 %v4028, %v4024
        %v4031 = vsel %vm4030, 1, 0
        %v4032 = vadd.s32 %v4028, %v4024
        %v4033 = vadd.s32 %v4029, %v4031
        %v4034 = vadd.s32 %v4033, %v4023
        %v4035 = vadd.s32 %v4034, %v4025
        %v4036 = vmul.u32 %v3991, %v3982
        %v4037 = vadd.s32 %v4013, %v4032
        %vm4038 = vc.u32 %v4013, %v4032
        %v4039 = vadd.s32 %v4035, 1
        %v4040 = vsel %vm4038, %v4039, %v4035
        %v4041 = vadd.s32 %v4036, %v4040
        %v4042 = vadd.s32 %v4041, 536870912
        %v4043 = vshrl.u32 %v4042, 30
        %v4044 = vshll.u32 %v4043, 30
        %v4045 = vsub.s32 %v4041, %v4044
        %vm4046 = vcmp.lt.s32.totalorder %v4045, 0
        %v4047 = vsub.s32 0, %v4045
        %v4048 = vsel %vm4046, %v4047, %v4045
        %v4049 = vclz %v4048
        %v4050 = vsub.s32 %v4049, 2
        %vm4051 = vcmp.gt.s32.totalorder 0, %v4050
        %v4052 = vsel %vm4051, 0, %v4050
        %v4053 = vsub.s32 32, %v4052
        %v4054 = vshll.u32 %v4045, %v4052
        %v4055 = vshrl.u32 %v4037, %v4053
        %v4056 = vor.u32 %v4054, %v4055
        %v4057 = vsub.s32 4294967266, %v4052
        %v4058 = vadd.s32 %v4057, 127
        %v4059 = vshll.u32 %v4058, 23
        %v4060 = vor.u32 4788187, %v4059
        %v4061 = vand.u32 2147483647, %v4060
        %v4063 = vcvt.s32.f32 %v4056
        %v4064 = vmul.f32 %v4063, %v4061
        %v4065 = vxor.u32 %v4064, 2147483648
        %v4066 = vsel %vm3945, %v4065, %v4064
        %v4067 = vsub.s32 4, %v4043
        %v4068 = vsel %vm3945, %v4067, %v4043
        %v4069 = vsel %vm3944, %v376, %v4066
        %v4070 = vsel %vm3944, 0, %v4068
        %v4071 = vmul.f32 %v4069, %v4069
        %v4072 = vmul.f32 %v4071, -0.001358992
        %v4073 = vadd.f32 %v4072, 0.041655596
        %v4074 = vmul.f32 %v4071, %v4073
        %v4075 = vadd.f32 %v4074, -0.4999988
        %v4076 = vmul.f32 %v4071, %v4075
        %v4077 = vadd.f32 1.0, %v4076
        %v4078 = vmul.f32 %v4069, %v4069
        %v4079 = vmul.f32 %v4078, -0.00019511016
        %v4080 = vadd.f32 %v4079, 0.008332121
        %v4081 = vmul.f32 %v4078, %v4080
        %v4082 = vadd.f32 %v4081, -0.16666654
        %v4083 = vmul.f32 %v4078, %v4082
        %v4084 = vadd.f32 %v4083, 1.0
        %v4085 = vmul.f32 %v4084, %v4069
        %vm4086 = vweird.f32 %v376
        %v4087 = vand.u32 %v4070, 3
        %vm4088 = vcmp.lt.s32.totalorder %v4087, 2
        %vm4089 = vcmp.eq.s32.totalorder %v4087, 0
        %v4090 = vxor.u32 %v4085, 2147483648
        %v4091 = vsel %vm4089, %v4077, %v4090
        %vm4092 = vcmp.eq.s32.totalorder %v4087, 2
        %v4093 = vxor.u32 %v4077, 2147483648
        %v4094 = vsel %vm4092, %v4093, %v4085
        %v4095 = vsel %vm4088, %v4091, %v4094
        %v4096 = vsel %vm4086, nan, %v4095
        %v4097 = vand.u32 2147483647, %v377
        %vm4098 = vcmp.le.f32.partialorder %v4097, 0.7853982
        %vm4099 = vcmp.lt.s32.totalorder %v377, 0
        %v4100 = vand.u32 %v377, 2139095040
        %v4101 = vshrl.u32 %v4100, 23
        %v4102 = vsub.s32 %v4101, 127
        %v4103 = vand.u32 2147483647, %v377
        %v4104 = vand.u32 %v4103, 8388607
        %v4105 = vor.u32 %v4104, 8388608
        %v4106 = vsub.s32 0, %v4105
        %v4107 = vadd.s32 %v4102, 1
        %vm4108 = vcmp.gt.s32.totalorder %v4107, 0
        %v4109 = vsel %vm4108, %v4107, 0
        %v4110 = vshrl.u32 %v4109, 5
        %v4111 = vand.u32 %v4109, 31
        %v4112 = vsub.s32 32, %v4111
        %v4113 = vshrl.u32 683565275, %v4112
        %v4114 = vshll.u32 683565275, %v4111
        %v4115 = vshrl.u32 2475754826, %v4112
        %v4116 = vor.u32 %v4114, %v4115
        %v4117 = vshll.u32 2475754826, %v4111
        %v4118 = vshrl.u32 2131351028, %v4112
        %v4119 = vor.u32 %v4117, %v4118
        %v4120 = vshll.u32 2131351028, %v4111
        %v4121 = vshrl.u32 2102212464, %v4112
        %v4122 = vor.u32 %v4120, %v4121
        %v4123 = vshll.u32 2102212464, %v4111
        %v4124 = vshrl.u32 920167782, %v4112
        %v4125 = vor.u32 %v4123, %v4124
        %v4126 = vshll.u32 920167782, %v4111
        %v4127 = vshrl.u32 1326507024, %v4112
        %v4128 = vor.u32 %v4126, %v4127
        %vm4129 = vcmp.lt.s32.totalorder %v4110, 1
        %vm4130 = vcmp.lt.s32.totalorder %v4110, 2
        %vm4131 = vcmp.lt.s32.totalorder %v4110, 3
        %vm4132 = vcmp.lt.s32.totalorder %v4110, 4
        %v4133 = vsel %vm4129, %v4113, %v4116
        %v4134 = vsel %vm4132, %v4122, 2102212464
        %v4135 = vsel %vm4131, %v4119, %v4134
        %v4136 = vsel %vm4130, %v4133, %v4135
        %v4137 = vsel %vm4129, %v4116, %v4119
        %v4138 = vsel %vm4132, %v4125, 920167782
        %v4139 = vsel %vm4131, %v4122, %v4138
        %v4140 = vsel %vm4130, %v4137, %v4139
        %v4141 = vsel %vm4129, %v4119, %v4122
        %v4142 = vsel %vm4132, %v4128, 1326507024
        %v4143 = vsel %vm4131, %v4125, %v4142
        %v4144 = vsel %vm4130, %v4141, %v4143
        %v4145 = vshll.u32 %v4105, 8
        %v4146 = vand.u32 %v4145, 65535
        %v4147 = vshrl.u32 %v4145, 16
        %v4148 = vand.u32 %v4144, 65535
        %v4149 = vshrl.u32 %v4144, 16
        %v4150 = vmul.u32 %v4146, %v4148
        %v4151 = vmul.u32 %v4146, %v4149
        %v4152 = vmul.u32 %v4147, %v4148
        %v4153 = vmul.u32 %v4147, %v4149
        %v4154 = vshll.u32 %v4151, 16
        %v4155 = vshrl.u32 %v4151, 16
        %v4156 = vshll.u32 %v4152, 16
        %v4157 = vshrl.u32 %v4152, 16
        %vm4158 = vc.u32 %v4150, %v4154
        %v4159 = vsel %vm4158, 1, 0
        %v4160 = vadd.s32 %v4150, %v4154
        %v4161 = vadd.s32 %v4153, %v4159
        %vm4162 = vc.u32 %v4160, %v4156
        %v4163 = vsel %vm4162, 1, 0
        %v4164 = vadd.s32 %v4160, %v4156
        %v4165 = vadd.s32 %v4161, %v4163
        %v4166 = vadd.s32 %v4165, %v4155
        %v4167 = vadd.s32 %v4166, %v4157
        %v4168 = vand.u32 %v4145, 65535
        %v4169 = vshrl.u32 %v4145, 16
        %v4170 = vand.u32 %v4140, 65535
        %v4171 = vshrl.u32 %v4140, 16
        %v4172 = vmul.u32 %v4168, %v4170
        %v4173 = vmul.u32 %v4168, %v4171
        %v4174 = vmul.u32 %v4169, %v4170
        %v4175 = vmul.u32 %v4169, %v4171
        %v4176 = vshll.u32 %v4173, 16
        %v4177 = vshrl.u32 %v4173, 16
        %v4178 = vshll.u32 %v4174, 16
        %v4179 = vshrl.u32 %v4174, 16
        %vm4180 = vc.u32 %v4172, %v4176
        %v4181 = vsel %vm4180, 1, 0
        %v4182 = vadd.s32 %v4172, %v4176
        %v4183 = vadd.s32 %v4175, %v4181
        %vm4184 = vc.u32 %v4182, %v4178
        %v4185 = vsel %vm4184, 1, 0
        %v4186 = vadd.s32 %v4182, %v4178
        %v4187 = vadd.s32 %v4183, %v4185
        %v4188 = vadd.s32 %v4187, %v4177
        %v4189 = vadd.s32 %v4188, %v4179
        %v4190 = vmul.u32 %v4145, %v4136
        %v4191 = vadd.s32 %v4167, %v4186
        %vm4192 = vc.u32 %v4167, %v4186
        %v4193 = vadd.s32 %v4189, 1
        %v4194 = vsel %vm4192, %v4193, %v4189
        %v4195 = vadd.s32 %v4190, %v4194
        %v4196 = vadd.s32 %v4195, 536870912
        %v4197 = vshrl.u32 %v4196, 30
        %v4198 = vshll.u32 %v4197, 30
        %v4199 = vsub.s32 %v4195, %v4198
        %vm4200 = vcmp.lt.s32.totalorder %v4199, 0
        %v4201 = vsub.s32 0, %v4199
        %v4202 = vsel %vm4200, %v4201, %v4199
        %v4203 = vclz %v4202
        %v4204 = vsub.s32 %v4203, 2
        %vm4205 = vcmp.gt.s32.totalorder 0, %v4204
        %v4206 = vsel %vm4205, 0, %v4204
        %v4207 = vsub.s32 32, %v4206
        %v4208 = vshll.u32 %v4199, %v4206
        %v4209 = vshrl.u32 %v4191, %v4207
        %v4210 = vor.u32 %v4208, %v4209
        %v4211 = vsub.s32 4294967266, %v4206
        %v4212 = vadd.s32 %v4211, 127
        %v4213 = vshll.u32 %v4212, 23
        %v4214 = vor.u32 4788187, %v4213
        %v4215 = vand.u32 2147483647, %v4214
        %v4217 = vcvt.s32.f32 %v4210
        %v4218 = vmul.f32 %v4217, %v4215
        %v4219 = vxor.u32 %v4218, 2147483648
        %v4220 = vsel %vm4099, %v4219, %v4218
        %v4221 = vsub.s32 4, %v4197
        %v4222 = vsel %vm4099, %v4221, %v4197
        %v4223 = vsel %vm4098, %v377, %v4220
        %v4224 = vsel %vm4098, 0, %v4222
        %v4225 = vmul.f32 %v4223, %v4223
        %v4226 = vmul.f32 %v4225, -0.001358992
        %v4227 = vadd.f32 %v4226, 0.041655596
        %v4228 = vmul.f32 %v4225, %v4227
        %v4229 = vadd.f32 %v4228, -0.4999988
        %v4230 = vmul.f32 %v4225, %v4229
        %v4231 = vadd.f32 1.0, %v4230
        %v4232 = vmul.f32 %v4223, %v4223
        %v4233 = vmul.f32 %v4232, -0.00019511016
        %v4234 = vadd.f32 %v4233, 0.008332121
        %v4235 = vmul.f32 %v4232, %v4234
        %v4236 = vadd.f32 %v4235, -0.16666654
        %v4237 = vmul.f32 %v4232, %v4236
        %v4238 = vadd.f32 %v4237, 1.0
        %v4239 = vmul.f32 %v4238, %v4223
        %vm4240 = vweird.f32 %v377
        %v4241 = vand.u32 %v4224, 3
        %vm4242 = vcmp.lt.s32.totalorder %v4241, 2
        %vm4243 = vcmp.eq.s32.totalorder %v4241, 0
        %v4244 = vxor.u32 %v4239, 2147483648
        %v4245 = vsel %vm4243, %v4231, %v4244
        %vm4246 = vcmp.eq.s32.totalorder %v4241, 2
        %v4247 = vxor.u32 %v4231, 2147483648
        %v4248 = vsel %vm4246, %v4247, %v4239
        %v4249 = vsel %vm4242, %v4245, %v4248
        %v4250 = vsel %vm4240, nan, %v4249
        %v4251 = vand.u32 2147483647, %v378
        %vm4252 = vcmp.le.f32.partialorder %v4251, 0.7853982
        %vm4253 = vcmp.lt.s32.totalorder %v378, 0
        %v4254 = vand.u32 %v378, 2139095040
        %v4255 = vshrl.u32 %v4254, 23
        %v4256 = vsub.s32 %v4255, 127
        %v4257 = vand.u32 2147483647, %v378
        %v4258 = vand.u32 %v4257, 8388607
        %v4259 = vor.u32 %v4258, 8388608
        %v4260 = vsub.s32 0, %v4259
        %v4261 = vadd.s32 %v4256, 1
        %vm4262 = vcmp.gt.s32.totalorder %v4261, 0
        %v4263 = vsel %vm4262, %v4261, 0
        %v4264 = vshrl.u32 %v4263, 5
        %v4265 = vand.u32 %v4263, 31
        %v4266 = vsub.s32 32, %v4265
        %v4267 = vshrl.u32 683565275, %v4266
        %v4268 = vshll.u32 683565275, %v4265
        %v4269 = vshrl.u32 2475754826, %v4266
        %v4270 = vor.u32 %v4268, %v4269
        %v4271 = vshll.u32 2475754826, %v4265
        %v4272 = vshrl.u32 2131351028, %v4266
        %v4273 = vor.u32 %v4271, %v4272
        %v4274 = vshll.u32 2131351028, %v4265
        %v4275 = vshrl.u32 2102212464, %v4266
        %v4276 = vor.u32 %v4274, %v4275
        %v4277 = vshll.u32 2102212464, %v4265
        %v4278 = vshrl.u32 920167782, %v4266
        %v4279 = vor.u32 %v4277, %v4278
        %v4280 = vshll.u32 920167782, %v4265
        %v4281 = vshrl.u32 1326507024, %v4266
        %v4282 = vor.u32 %v4280, %v4281
        %vm4283 = vcmp.lt.s32.totalorder %v4264, 1
        %vm4284 = vcmp.lt.s32.totalorder %v4264, 2
        %vm4285 = vcmp.lt.s32.totalorder %v4264, 3
        %vm4286 = vcmp.lt.s32.totalorder %v4264, 4
        %v4287 = vsel %vm4283, %v4267, %v4270
        %v4288 = vsel %vm4286, %v4276, 2102212464
        %v4289 = vsel %vm4285, %v4273, %v4288
        %v4290 = vsel %vm4284, %v4287, %v4289
        %v4291 = vsel %vm4283, %v4270, %v4273
        %v4292 = vsel %vm4286, %v4279, 920167782
        %v4293 = vsel %vm4285, %v4276, %v4292
        %v4294 = vsel %vm4284, %v4291, %v4293
        %v4295 = vsel %vm4283, %v4273, %v4276
        %v4296 = vsel %vm4286, %v4282, 1326507024
        %v4297 = vsel %vm4285, %v4279, %v4296
        %v4298 = vsel %vm4284, %v4295, %v4297
        %v4299 = vshll.u32 %v4259, 8
        %v4300 = vand.u32 %v4299, 65535
        %v4301 = vshrl.u32 %v4299, 16
        %v4302 = vand.u32 %v4298, 65535
        %v4303 = vshrl.u32 %v4298, 16
        %v4304 = vmul.u32 %v4300, %v4302
        %v4305 = vmul.u32 %v4300, %v4303
        %v4306 = vmul.u32 %v4301, %v4302
        %v4307 = vmul.u32 %v4301, %v4303
        %v4308 = vshll.u32 %v4305, 16
        %v4309 = vshrl.u32 %v4305, 16
        %v4310 = vshll.u32 %v4306, 16
        %v4311 = vshrl.u32 %v4306, 16
        %vm4312 = vc.u32 %v4304, %v4308
        %v4313 = vsel %vm4312, 1, 0
        %v4314 = vadd.s32 %v4304, %v4308
        %v4315 = vadd.s32 %v4307, %v4313
        %vm4316 = vc.u32 %v4314, %v4310
        %v4317 = vsel %vm4316, 1, 0
        %v4318 = vadd.s32 %v4314, %v4310
        %v4319 = vadd.s32 %v4315, %v4317
        %v4320 = vadd.s32 %v4319, %v4309
        %v4321 = vadd.s32 %v4320, %v4311
        %v4322 = vand.u32 %v4299, 65535
        %v4323 = vshrl.u32 %v4299, 16
        %v4324 = vand.u32 %v4294, 65535
        %v4325 = vshrl.u32 %v4294, 16
        %v4326 = vmul.u32 %v4322, %v4324
        %v4327 = vmul.u32 %v4322, %v4325
        %v4328 = vmul.u32 %v4323, %v4324
        %v4329 = vmul.u32 %v4323, %v4325
        %v4330 = vshll.u32 %v4327, 16
        %v4331 = vshrl.u32 %v4327, 16
        %v4332 = vshll.u32 %v4328, 16
        %v4333 = vshrl.u32 %v4328, 16
        %vm4334 = vc.u32 %v4326, %v4330
        %v4335 = vsel %vm4334, 1, 0
        %v4336 = vadd.s32 %v4326, %v4330
        %v4337 = vadd.s32 %v4329, %v4335
        %vm4338 = vc.u32 %v4336, %v4332
        %v4339 = vsel %vm4338, 1, 0
        %v4340 = vadd.s32 %v4336, %v4332
        %v4341 = vadd.s32 %v4337, %v4339
        %v4342 = vadd.s32 %v4341, %v4331
        %v4343 = vadd.s32 %v4342, %v4333
        %v4344 = vmul.u32 %v4299, %v4290
        %v4345 = vadd.s32 %v4321, %v4340
        %vm4346 = vc.u32 %v4321, %v4340
        %v4347 = vadd.s32 %v4343, 1
        %v4348 = vsel %vm4346, %v4347, %v4343
        %v4349 = vadd.s32 %v4344, %v4348
        %v4350 = vadd.s32 %v4349, 536870912
        %v4351 = vshrl.u32 %v4350, 30
        %v4352 = vshll.u32 %v4351, 30
        %v4353 = vsub.s32 %v4349, %v4352
        %vm4354 = vcmp.lt.s32.totalorder %v4353, 0
        %v4355 = vsub.s32 0, %v4353
        %v4356 = vsel %vm4354, %v4355, %v4353
        %v4357 = vclz %v4356
        %v4358 = vsub.s32 %v4357, 2
        %vm4359 = vcmp.gt.s32.totalorder 0, %v4358
        %v4360 = vsel %vm4359, 0, %v4358
        %v4361 = vsub.s32 32, %v4360
        %v4362 = vshll.u32 %v4353, %v4360
        %v4363 = vshrl.u32 %v4345, %v4361
        %v4364 = vor.u32 %v4362, %v4363
        %v4365 = vsub.s32 4294967266, %v4360
        %v4366 = vadd.s32 %v4365, 127
        %v4367 = vshll.u32 %v4366, 23
        %v4368 = vor.u32 4788187, %v4367
        %v4369 = vand.u32 2147483647, %v4368
        %v4371 = vcvt.s32.f32 %v4364
        %v4372 = vmul.f32 %v4371, %v4369
        %v4373 = vxor.u32 %v4372, 2147483648
        %v4374 = vsel %vm4253, %v4373, %v4372
        %v4375 = vsub.s32 4, %v4351
        %v4376 = vsel %vm4253, %v4375, %v4351
        %v4377 = vsel %vm4252, %v378, %v4374
        %v4378 = vsel %vm4252, 0, %v4376
        %v4379 = vmul.f32 %v4377, %v4377
        %v4380 = vmul.f32 %v4379, -0.001358992
        %v4381 = vadd.f32 %v4380, 0.041655596
        %v4382 = vmul.f32 %v4379, %v4381
        %v4383 = vadd.f32 %v4382, -0.4999988
        %v4384 = vmul.f32 %v4379, %v4383
        %v4385 = vadd.f32 1.0, %v4384
        %v4386 = vmul.f32 %v4377, %v4377
        %v4387 = vmul.f32 %v4386, -0.00019511016
        %v4388 = vadd.f32 %v4387, 0.008332121
        %v4389 = vmul.f32 %v4386, %v4388
        %v4390 = vadd.f32 %v4389, -0.16666654
        %v4391 = vmul.f32 %v4386, %v4390
        %v4392 = vadd.f32 %v4391, 1.0
        %v4393 = vmul.f32 %v4392, %v4377
        %vm4394 = vweird.f32 %v378
        %v4395 = vand.u32 %v4378, 3
        %vm4396 = vcmp.lt.s32.totalorder %v4395, 2
        %vm4397 = vcmp.eq.s32.totalorder %v4395, 0
        %v4398 = vxor.u32 %v4393, 2147483648
        %v4399 = vsel %vm4397, %v4385, %v4398
        %vm4400 = vcmp.eq.s32.totalorder %v4395, 2
        %v4401 = vxor.u32 %v4385, 2147483648
        %v4402 = vsel %vm4400, %v4401, %v4393
        %v4403 = vsel %vm4396, %v4399, %v4402
        %v4404 = vsel %vm4394, nan, %v4403
        %v4405 = vand.u32 2147483647, %v379
        %vm4406 = vcmp.le.f32.partialorder %v4405, 0.7853982
        %vm4407 = vcmp.lt.s32.totalorder %v379, 0
        %v4408 = vand.u32 %v379, 2139095040
        %v4409 = vshrl.u32 %v4408, 23
        %v4410 = vsub.s32 %v4409, 127
        %v4411 = vand.u32 2147483647, %v379
        %v4412 = vand.u32 %v4411, 8388607
        %v4413 = vor.u32 %v4412, 8388608
        %v4414 = vsub.s32 0, %v4413
        %v4415 = vadd.s32 %v4410, 1
        %vm4416 = vcmp.gt.s32.totalorder %v4415, 0
        %v4417 = vsel %vm4416, %v4415, 0
        %v4418 = vshrl.u32 %v4417, 5
        %v4419 = vand.u32 %v4417, 31
        %v4420 = vsub.s32 32, %v4419
        %v4421 = vshrl.u32 683565275, %v4420
        %v4422 = vshll.u32 683565275, %v4419
        %v4423 = vshrl.u32 2475754826, %v4420
        %v4424 = vor.u32 %v4422, %v4423
        %v4425 = vshll.u32 2475754826, %v4419
        %v4426 = vshrl.u32 2131351028, %v4420
        %v4427 = vor.u32 %v4425, %v4426
        %v4428 = vshll.u32 2131351028, %v4419
        %v4429 = vshrl.u32 2102212464, %v4420
        %v4430 = vor.u32 %v4428, %v4429
        %v4431 = vshll.u32 2102212464, %v4419
        %v4432 = vshrl.u32 920167782, %v4420
        %v4433 = vor.u32 %v4431, %v4432
        %v4434 = vshll.u32 920167782, %v4419
        %v4435 = vshrl.u32 1326507024, %v4420
        %v4436 = vor.u32 %v4434, %v4435
        %vm4437 = vcmp.lt.s32.totalorder %v4418, 1
        %vm4438 = vcmp.lt.s32.totalorder %v4418, 2
        %vm4439 = vcmp.lt.s32.totalorder %v4418, 3
        %vm4440 = vcmp.lt.s32.totalorder %v4418, 4
        %v4441 = vsel %vm4437, %v4421, %v4424
        %v4442 = vsel %vm4440, %v4430, 2102212464
        %v4443 = vsel %vm4439, %v4427, %v4442
        %v4444 = vsel %vm4438, %v4441, %v4443
        %v4445 = vsel %vm4437, %v4424, %v4427
        %v4446 = vsel %vm4440, %v4433, 920167782
        %v4447 = vsel %vm4439, %v4430, %v4446
        %v4448 = vsel %vm4438, %v4445, %v4447
        %v4449 = vsel %vm4437, %v4427, %v4430
        %v4450 = vsel %vm4440, %v4436, 1326507024
        %v4451 = vsel %vm4439, %v4433, %v4450
        %v4452 = vsel %vm4438, %v4449, %v4451
        %v4453 = vshll.u32 %v4413, 8
        %v4454 = vand.u32 %v4453, 65535
        %v4455 = vshrl.u32 %v4453, 16
        %v4456 = vand.u32 %v4452, 65535
        %v4457 = vshrl.u32 %v4452, 16
        %v4458 = vmul.u32 %v4454, %v4456
        %v4459 = vmul.u32 %v4454, %v4457
        %v4460 = vmul.u32 %v4455, %v4456
        %v4461 = vmul.u32 %v4455, %v4457
        %v4462 = vshll.u32 %v4459, 16
        %v4463 = vshrl.u32 %v4459, 16
        %v4464 = vshll.u32 %v4460, 16
        %v4465 = vshrl.u32 %v4460, 16
        %vm4466 = vc.u32 %v4458, %v4462
        %v4467 = vsel %vm4466, 1, 0
        %v4468 = vadd.s32 %v4458, %v4462
        %v4469 = vadd.s32 %v4461, %v4467
        %vm4470 = vc.u32 %v4468, %v4464
        %v4471 = vsel %vm4470, 1, 0
        %v4472 = vadd.s32 %v4468, %v4464
        %v4473 = vadd.s32 %v4469, %v4471
        %v4474 = vadd.s32 %v4473, %v4463
        %v4475 = vadd.s32 %v4474, %v4465
        %v4476 = vand.u32 %v4453, 65535
        %v4477 = vshrl.u32 %v4453, 16
        %v4478 = vand.u32 %v4448, 65535
        %v4479 = vshrl.u32 %v4448, 16
        %v4480 = vmul.u32 %v4476, %v4478
        %v4481 = vmul.u32 %v4476, %v4479
        %v4482 = vmul.u32 %v4477, %v4478
        %v4483 = vmul.u32 %v4477, %v4479
        %v4484 = vshll.u32 %v4481, 16
        %v4485 = vshrl.u32 %v4481, 16
        %v4486 = vshll.u32 %v4482, 16
        %v4487 = vshrl.u32 %v4482, 16
        %vm4488 = vc.u32 %v4480, %v4484
        %v4489 = vsel %vm4488, 1, 0
        %v4490 = vadd.s32 %v4480, %v4484
        %v4491 = vadd.s32 %v4483, %v4489
        %vm4492 = vc.u32 %v4490, %v4486
        %v4493 = vsel %vm4492, 1, 0
        %v4494 = vadd.s32 %v4490, %v4486
        %v4495 = vadd.s32 %v4491, %v4493
        %v4496 = vadd.s32 %v4495, %v4485
        %v4497 = vadd.s32 %v4496, %v4487
        %v4498 = vmul.u32 %v4453, %v4444
        %v4499 = vadd.s32 %v4475, %v4494
        %vm4500 = vc.u32 %v4475, %v4494
        %v4501 = vadd.s32 %v4497, 1
        %v4502 = vsel %vm4500, %v4501, %v4497
        %v4503 = vadd.s32 %v4498, %v4502
        %v4504 = vadd.s32 %v4503, 536870912
        %v4505 = vshrl.u32 %v4504, 30
        %v4506 = vshll.u32 %v4505, 30
        %v4507 = vsub.s32 %v4503, %v4506
        %vm4508 = vcmp.lt.s32.totalorder %v4507, 0
        %v4509 = vsub.s32 0, %v4507
        %v4510 = vsel %vm4508, %v4509, %v4507
        %v4511 = vclz %v4510
        %v4512 = vsub.s32 %v4511, 2
        %vm4513 = vcmp.gt.s32.totalorder 0, %v4512
        %v4514 = vsel %vm4513, 0, %v4512
        %v4515 = vsub.s32 32, %v4514
        %v4516 = vshll.u32 %v4507, %v4514
        %v4517 = vshrl.u32 %v4499, %v4515
        %v4518 = vor.u32 %v4516, %v4517
        %v4519 = vsub.s32 4294967266, %v4514
        %v4520 = vadd.s32 %v4519, 127
        %v4521 = vshll.u32 %v4520, 23
        %v4522 = vor.u32 4788187, %v4521
        %v4523 = vand.u32 2147483647, %v4522
        %v4525 = vcvt.s32.f32 %v4518
        %v4526 = vmul.f32 %v4525, %v4523
        %v4527 = vxor.u32 %v4526, 2147483648
        %v4528 = vsel %vm4407, %v4527, %v4526
        %v4529 = vsub.s32 4, %v4505
        %v4530 = vsel %vm4407, %v4529, %v4505
        %v4531 = vsel %vm4406, %v379, %v4528
        %v4532 = vsel %vm4406, 0, %v4530
        %v4533 = vmul.f32 %v4531, %v4531
        %v4534 = vmul.f32 %v4533, -0.001358992
        %v4535 = vadd.f32 %v4534, 0.041655596
        %v4536 = vmul.f32 %v4533, %v4535
        %v4537 = vadd.f32 %v4536, -0.4999988
        %v4538 = vmul.f32 %v4533, %v4537
        %v4539 = vadd.f32 1.0, %v4538
        %v4540 = vmul.f32 %v4531, %v4531
        %v4541 = vmul.f32 %v4540, -0.00019511016
        %v4542 = vadd.f32 %v4541, 0.008332121
        %v4543 = vmul.f32 %v4540, %v4542
        %v4544 = vadd.f32 %v4543, -0.16666654
        %v4545 = vmul.f32 %v4540, %v4544
        %v4546 = vadd.f32 %v4545, 1.0
        %v4547 = vmul.f32 %v4546, %v4531
        %vm4548 = vweird.f32 %v379
        %v4549 = vand.u32 %v4532, 3
        %vm4550 = vcmp.lt.s32.totalorder %v4549, 2
        %vm4551 = vcmp.eq.s32.totalorder %v4549, 0
        %v4552 = vxor.u32 %v4547, 2147483648
        %v4553 = vsel %vm4551, %v4539, %v4552
        %vm4554 = vcmp.eq.s32.totalorder %v4549, 2
        %v4555 = vxor.u32 %v4539, 2147483648
        %v4556 = vsel %vm4554, %v4555, %v4547
        %v4557 = vsel %vm4550, %v4553, %v4556
        %v4558 = vsel %vm4548, nan, %v4557
        %v4559 = vand.u32 2147483647, %v380
        %vm4560 = vcmp.le.f32.partialorder %v4559, 0.7853982
        %vm4561 = vcmp.lt.s32.totalorder %v380, 0
        %v4562 = vand.u32 %v380, 2139095040
        %v4563 = vshrl.u32 %v4562, 23
        %v4564 = vsub.s32 %v4563, 127
        %v4565 = vand.u32 2147483647, %v380
        %v4566 = vand.u32 %v4565, 8388607
        %v4567 = vor.u32 %v4566, 8388608
        %v4568 = vsub.s32 0, %v4567
        %v4569 = vadd.s32 %v4564, 1
        %vm4570 = vcmp.gt.s32.totalorder %v4569, 0
        %v4571 = vsel %vm4570, %v4569, 0
        %v4572 = vshrl.u32 %v4571, 5
        %v4573 = vand.u32 %v4571, 31
        %v4574 = vsub.s32 32, %v4573
        %v4575 = vshrl.u32 683565275, %v4574
        %v4576 = vshll.u32 683565275, %v4573
        %v4577 = vshrl.u32 2475754826, %v4574
        %v4578 = vor.u32 %v4576, %v4577
        %v4579 = vshll.u32 2475754826, %v4573
        %v4580 = vshrl.u32 2131351028, %v4574
        %v4581 = vor.u32 %v4579, %v4580
        %v4582 = vshll.u32 2131351028, %v4573
        %v4583 = vshrl.u32 2102212464, %v4574
        %v4584 = vor.u32 %v4582, %v4583
        %v4585 = vshll.u32 2102212464, %v4573
        %v4586 = vshrl.u32 920167782, %v4574
        %v4587 = vor.u32 %v4585, %v4586
        %v4588 = vshll.u32 920167782, %v4573
        %v4589 = vshrl.u32 1326507024, %v4574
        %v4590 = vor.u32 %v4588, %v4589
        %vm4591 = vcmp.lt.s32.totalorder %v4572, 1
        %vm4592 = vcmp.lt.s32.totalorder %v4572, 2
        %vm4593 = vcmp.lt.s32.totalorder %v4572, 3
        %vm4594 = vcmp.lt.s32.totalorder %v4572, 4
        %v4595 = vsel %vm4591, %v4575, %v4578
        %v4596 = vsel %vm4594, %v4584, 2102212464
        %v4597 = vsel %vm4593, %v4581, %v4596
        %v4598 = vsel %vm4592, %v4595, %v4597
        %v4599 = vsel %vm4591, %v4578, %v4581
        %v4600 = vsel %vm4594, %v4587, 920167782
        %v4601 = vsel %vm4593, %v4584, %v4600
        %v4602 = vsel %vm4592, %v4599, %v4601
        %v4603 = vsel %vm4591, %v4581, %v4584
        %v4604 = vsel %vm4594, %v4590, 1326507024
        %v4605 = vsel %vm4593, %v4587, %v4604
        %v4606 = vsel %vm4592, %v4603, %v4605
        %v4607 = vshll.u32 %v4567, 8
        %v4608 = vand.u32 %v4607, 65535
        %v4609 = vshrl.u32 %v4607, 16
        %v4610 = vand.u32 %v4606, 65535
        %v4611 = vshrl.u32 %v4606, 16
        %v4612 = vmul.u32 %v4608, %v4610
        %v4613 = vmul.u32 %v4608, %v4611
        %v4614 = vmul.u32 %v4609, %v4610
        %v4615 = vmul.u32 %v4609, %v4611
        %v4616 = vshll.u32 %v4613, 16
        %v4617 = vshrl.u32 %v4613, 16
        %v4618 = vshll.u32 %v4614, 16
        %v4619 = vshrl.u32 %v4614, 16
        %vm4620 = vc.u32 %v4612, %v4616
        %v4621 = vsel %vm4620, 1, 0
        %v4622 = vadd.s32 %v4612, %v4616
        %v4623 = vadd.s32 %v4615, %v4621
        %vm4624 = vc.u32 %v4622, %v4618
        %v4625 = vsel %vm4624, 1, 0
        %v4626 = vadd.s32 %v4622, %v4618
        %v4627 = vadd.s32 %v4623, %v4625
        %v4628 = vadd.s32 %v4627, %v4617
        %v4629 = vadd.s32 %v4628, %v4619
        %v4630 = vand.u32 %v4607, 65535
        %v4631 = vshrl.u32 %v4607, 16
        %v4632 = vand.u32 %v4602, 65535
        %v4633 = vshrl.u32 %v4602, 16
        %v4634 = vmul.u32 %v4630, %v4632
        %v4635 = vmul.u32 %v4630, %v4633
        %v4636 = vmul.u32 %v4631, %v4632
        %v4637 = vmul.u32 %v4631, %v4633
        %v4638 = vshll.u32 %v4635, 16
        %v4639 = vshrl.u32 %v4635, 16
        %v4640 = vshll.u32 %v4636, 16
        %v4641 = vshrl.u32 %v4636, 16
        %vm4642 = vc.u32 %v4634, %v4638
        %v4643 = vsel %vm4642, 1, 0
        %v4644 = vadd.s32 %v4634, %v4638
        %v4645 = vadd.s32 %v4637, %v4643
        %vm4646 = vc.u32 %v4644, %v4640
        %v4647 = vsel %vm4646, 1, 0
        %v4648 = vadd.s32 %v4644, %v4640
        %v4649 = vadd.s32 %v4645, %v4647
        %v4650 = vadd.s32 %v4649, %v4639
        %v4651 = vadd.s32 %v4650, %v4641
        %v4652 = vmul.u32 %v4607, %v4598
        %v4653 = vadd.s32 %v4629, %v4648
        %vm4654 = vc.u32 %v4629, %v4648
        %v4655 = vadd.s32 %v4651, 1
        %v4656 = vsel %vm4654, %v4655, %v4651
        %v4657 = vadd.s32 %v4652, %v4656
        %v4658 = vadd.s32 %v4657, 536870912
        %v4659 = vshrl.u32 %v4658, 30
        %v4660 = vshll.u32 %v4659, 30
        %v4661 = vsub.s32 %v4657, %v4660
        %vm4662 = vcmp.lt.s32.totalorder %v4661, 0
        %v4663 = vsub.s32 0, %v4661
        %v4664 = vsel %vm4662, %v4663, %v4661
        %v4665 = vclz %v4664
        %v4666 = vsub.s32 %v4665, 2
        %vm4667 = vcmp.gt.s32.totalorder 0, %v4666
        %v4668 = vsel %vm4667, 0, %v4666
        %v4669 = vsub.s32 32, %v4668
        %v4670 = vshll.u32 %v4661, %v4668
        %v4671 = vshrl.u32 %v4653, %v4669
        %v4672 = vor.u32 %v4670, %v4671
        %v4673 = vsub.s32 4294967266, %v4668
        %v4674 = vadd.s32 %v4673, 127
        %v4675 = vshll.u32 %v4674, 23
        %v4676 = vor.u32 4788187, %v4675
        %v4677 = vand.u32 2147483647, %v4676
        %v4679 = vcvt.s32.f32 %v4672
        %v4680 = vmul.f32 %v4679, %v4677
        %v4681 = vxor.u32 %v4680, 2147483648
        %v4682 = vsel %vm4561, %v4681, %v4680
        %v4683 = vsub.s32 4, %v4659
        %v4684 = vsel %vm4561, %v4683, %v4659
        %v4685 = vsel %vm4560, %v380, %v4682
        %v4686 = vsel %vm4560, 0, %v4684
        %v4687 = vmul.f32 %v4685, %v4685
        %v4688 = vmul.f32 %v4687, -0.001358992
        %v4689 = vadd.f32 %v4688, 0.041655596
        %v4690 = vmul.f32 %v4687, %v4689
        %v4691 = vadd.f32 %v4690, -0.4999988
        %v4692 = vmul.f32 %v4687, %v4691
        %v4693 = vadd.f32 1.0, %v4692
        %v4694 = vmul.f32 %v4685, %v4685
        %v4695 = vmul.f32 %v4694, -0.00019511016
        %v4696 = vadd.f32 %v4695, 0.008332121
        %v4697 = vmul.f32 %v4694, %v4696
        %v4698 = vadd.f32 %v4697, -0.16666654
        %v4699 = vmul.f32 %v4694, %v4698
        %v4700 = vadd.f32 %v4699, 1.0
        %v4701 = vmul.f32 %v4700, %v4685
        %vm4702 = vweird.f32 %v380
        %v4703 = vand.u32 %v4686, 3
        %vm4704 = vcmp.lt.s32.totalorder %v4703, 2
        %vm4705 = vcmp.eq.s32.totalorder %v4703, 0
        %v4706 = vxor.u32 %v4701, 2147483648
        %v4707 = vsel %vm4705, %v4693, %v4706
        %vm4708 = vcmp.eq.s32.totalorder %v4703, 2
        %v4709 = vxor.u32 %v4693, 2147483648
        %v4710 = vsel %vm4708, %v4709, %v4701
        %v4711 = vsel %vm4704, %v4707, %v4710
        %v4712 = vsel %vm4702, nan, %v4711
        %v4713 = vand.u32 2147483647, %v381
        %vm4714 = vcmp.le.f32.partialorder %v4713, 0.7853982
        %vm4715 = vcmp.lt.s32.totalorder %v381, 0
        %v4716 = vand.u32 %v381, 2139095040
        %v4717 = vshrl.u32 %v4716, 23
        %v4718 = vsub.s32 %v4717, 127
        %v4719 = vand.u32 2147483647, %v381
        %v4720 = vand.u32 %v4719, 8388607
        %v4721 = vor.u32 %v4720, 8388608
        %v4722 = vsub.s32 0, %v4721
        %v4723 = vadd.s32 %v4718, 1
        %vm4724 = vcmp.gt.s32.totalorder %v4723, 0
        %v4725 = vsel %vm4724, %v4723, 0
        %v4726 = vshrl.u32 %v4725, 5
        %v4727 = vand.u32 %v4725, 31
        %v4728 = vsub.s32 32, %v4727
        %v4729 = vshrl.u32 683565275, %v4728
        %v4730 = vshll.u32 683565275, %v4727
        %v4731 = vshrl.u32 2475754826, %v4728
        %v4732 = vor.u32 %v4730, %v4731
        %v4733 = vshll.u32 2475754826, %v4727
        %v4734 = vshrl.u32 2131351028, %v4728
        %v4735 = vor.u32 %v4733, %v4734
        %v4736 = vshll.u32 2131351028, %v4727
        %v4737 = vshrl.u32 2102212464, %v4728
        %v4738 = vor.u32 %v4736, %v4737
        %v4739 = vshll.u32 2102212464, %v4727
        %v4740 = vshrl.u32 920167782, %v4728
        %v4741 = vor.u32 %v4739, %v4740
        %v4742 = vshll.u32 920167782, %v4727
        %v4743 = vshrl.u32 1326507024, %v4728
        %v4744 = vor.u32 %v4742, %v4743
        %vm4745 = vcmp.lt.s32.totalorder %v4726, 1
        %vm4746 = vcmp.lt.s32.totalorder %v4726, 2
        %vm4747 = vcmp.lt.s32.totalorder %v4726, 3
        %vm4748 = vcmp.lt.s32.totalorder %v4726, 4
        %v4749 = vsel %vm4745, %v4729, %v4732
        %v4750 = vsel %vm4748, %v4738, 2102212464
        %v4751 = vsel %vm4747, %v4735, %v4750
        %v4752 = vsel %vm4746, %v4749, %v4751
        %v4753 = vsel %vm4745, %v4732, %v4735
        %v4754 = vsel %vm4748, %v4741, 920167782
        %v4755 = vsel %vm4747, %v4738, %v4754
        %v4756 = vsel %vm4746, %v4753, %v4755
        %v4757 = vsel %vm4745, %v4735, %v4738
        %v4758 = vsel %vm4748, %v4744, 1326507024
        %v4759 = vsel %vm4747, %v4741, %v4758
        %v4760 = vsel %vm4746, %v4757, %v4759
        %v4761 = vshll.u32 %v4721, 8
        %v4762 = vand.u32 %v4761, 65535
        %v4763 = vshrl.u32 %v4761, 16
        %v4764 = vand.u32 %v4760, 65535
        %v4765 = vshrl.u32 %v4760, 16
        %v4766 = vmul.u32 %v4762, %v4764
        %v4767 = vmul.u32 %v4762, %v4765
        %v4768 = vmul.u32 %v4763, %v4764
        %v4769 = vmul.u32 %v4763, %v4765
        %v4770 = vshll.u32 %v4767, 16
        %v4771 = vshrl.u32 %v4767, 16
        %v4772 = vshll.u32 %v4768, 16
        %v4773 = vshrl.u32 %v4768, 16
        %vm4774 = vc.u32 %v4766, %v4770
        %v4775 = vsel %vm4774, 1, 0
        %v4776 = vadd.s32 %v4766, %v4770
        %v4777 = vadd.s32 %v4769, %v4775
        %vm4778 = vc.u32 %v4776, %v4772
        %v4779 = vsel %vm4778, 1, 0
        %v4780 = vadd.s32 %v4776, %v4772
        %v4781 = vadd.s32 %v4777, %v4779
        %v4782 = vadd.s32 %v4781, %v4771
        %v4783 = vadd.s32 %v4782, %v4773
        %v4784 = vand.u32 %v4761, 65535
        %v4785 = vshrl.u32 %v4761, 16
        %v4786 = vand.u32 %v4756, 65535
        %v4787 = vshrl.u32 %v4756, 16
        %v4788 = vmul.u32 %v4784, %v4786
        %v4789 = vmul.u32 %v4784, %v4787
        %v4790 = vmul.u32 %v4785, %v4786
        %v4791 = vmul.u32 %v4785, %v4787
        %v4792 = vshll.u32 %v4789, 16
        %v4793 = vshrl.u32 %v4789, 16
        %v4794 = vshll.u32 %v4790, 16
        %v4795 = vshrl.u32 %v4790, 16
        %vm4796 = vc.u32 %v4788, %v4792
        %v4797 = vsel %vm4796, 1, 0
        %v4798 = vadd.s32 %v4788, %v4792
        %v4799 = vadd.s32 %v4791, %v4797
        %vm4800 = vc.u32 %v4798, %v4794
        %v4801 = vsel %vm4800, 1, 0
        %v4802 = vadd.s32 %v4798, %v4794
        %v4803 = vadd.s32 %v4799, %v4801
        %v4804 = vadd.s32 %v4803, %v4793
        %v4805 = vadd.s32 %v4804, %v4795
        %v4806 = vmul.u32 %v4761, %v4752
        %v4807 = vadd.s32 %v4783, %v4802
        %vm4808 = vc.u32 %v4783, %v4802
        %v4809 = vadd.s32 %v4805, 1
        %v4810 = vsel %vm4808, %v4809, %v4805
        %v4811 = vadd.s32 %v4806, %v4810
        %v4812 = vadd.s32 %v4811, 536870912
        %v4813 = vshrl.u32 %v4812, 30
        %v4814 = vshll.u32 %v4813, 30
        %v4815 = vsub.s32 %v4811, %v4814
        %vm4816 = vcmp.lt.s32.totalorder %v4815, 0
        %v4817 = vsub.s32 0, %v4815
        %v4818 = vsel %vm4816, %v4817, %v4815
        %v4819 = vclz %v4818
        %v4820 = vsub.s32 %v4819, 2
        %vm4821 = vcmp.gt.s32.totalorder 0, %v4820
        %v4822 = vsel %vm4821, 0, %v4820
        %v4823 = vsub.s32 32, %v4822
        %v4824 = vshll.u32 %v4815, %v4822
        %v4825 = vshrl.u32 %v4807, %v4823
        %v4826 = vor.u32 %v4824, %v4825
        %v4827 = vsub.s32 4294967266, %v4822
        %v4828 = vadd.s32 %v4827, 127
        %v4829 = vshll.u32 %v4828, 23
        %v4830 = vor.u32 4788187, %v4829
        %v4831 = vand.u32 2147483647, %v4830
        %v4833 = vcvt.s32.f32 %v4826
        %v4834 = vmul.f32 %v4833, %v4831
        %v4835 = vxor.u32 %v4834, 2147483648
        %v4836 = vsel %vm4715, %v4835, %v4834
        %v4837 = vsub.s32 4, %v4813
        %v4838 = vsel %vm4715, %v4837, %v4813
        %v4839 = vsel %vm4714, %v381, %v4836
        %v4840 = vsel %vm4714, 0, %v4838
        %v4841 = vmul.f32 %v4839, %v4839
        %v4842 = vmul.f32 %v4841, -0.001358992
        %v4843 = vadd.f32 %v4842, 0.041655596
        %v4844 = vmul.f32 %v4841, %v4843
        %v4845 = vadd.f32 %v4844, -0.4999988
        %v4846 = vmul.f32 %v4841, %v4845
        %v4847 = vadd.f32 1.0, %v4846
        %v4848 = vmul.f32 %v4839, %v4839
        %v4849 = vmul.f32 %v4848, -0.00019511016
        %v4850 = vadd.f32 %v4849, 0.008332121
        %v4851 = vmul.f32 %v4848, %v4850
        %v4852 = vadd.f32 %v4851, -0.16666654
        %v4853 = vmul.f32 %v4848, %v4852
        %v4854 = vadd.f32 %v4853, 1.0
        %v4855 = vmul.f32 %v4854, %v4839
        %vm4856 = vweird.f32 %v381
        %v4857 = vand.u32 %v4840, 3
        %vm4858 = vcmp.lt.s32.totalorder %v4857, 2
        %vm4859 = vcmp.eq.s32.totalorder %v4857, 0
        %v4860 = vxor.u32 %v4855, 2147483648
        %v4861 = vsel %vm4859, %v4847, %v4860
        %vm4862 = vcmp.eq.s32.totalorder %v4857, 2
        %v4863 = vxor.u32 %v4847, 2147483648
        %v4864 = vsel %vm4862, %v4863, %v4855
        %v4865 = vsel %vm4858, %v4861, %v4864
        %v4866 = vsel %vm4856, nan, %v4865
        %v4867 = vand.u32 2147483647, %v382
        %vm4868 = vcmp.le.f32.partialorder %v4867, 0.7853982
        %vm4869 = vcmp.lt.s32.totalorder %v382, 0
        %v4870 = vand.u32 %v382, 2139095040
        %v4871 = vshrl.u32 %v4870, 23
        %v4872 = vsub.s32 %v4871, 127
        %v4873 = vand.u32 2147483647, %v382
        %v4874 = vand.u32 %v4873, 8388607
        %v4875 = vor.u32 %v4874, 8388608
        %v4876 = vsub.s32 0, %v4875
        %v4877 = vadd.s32 %v4872, 1
        %vm4878 = vcmp.gt.s32.totalorder %v4877, 0
        %v4879 = vsel %vm4878, %v4877, 0
        %v4880 = vshrl.u32 %v4879, 5
        %v4881 = vand.u32 %v4879, 31
        %v4882 = vsub.s32 32, %v4881
        %v4883 = vshrl.u32 683565275, %v4882
        %v4884 = vshll.u32 683565275, %v4881
        %v4885 = vshrl.u32 2475754826, %v4882
        %v4886 = vor.u32 %v4884, %v4885
        %v4887 = vshll.u32 2475754826, %v4881
        %v4888 = vshrl.u32 2131351028, %v4882
        %v4889 = vor.u32 %v4887, %v4888
        %v4890 = vshll.u32 2131351028, %v4881
        %v4891 = vshrl.u32 2102212464, %v4882
        %v4892 = vor.u32 %v4890, %v4891
        %v4893 = vshll.u32 2102212464, %v4881
        %v4894 = vshrl.u32 920167782, %v4882
        %v4895 = vor.u32 %v4893, %v4894
        %v4896 = vshll.u32 920167782, %v4881
        %v4897 = vshrl.u32 1326507024, %v4882
        %v4898 = vor.u32 %v4896, %v4897
        %vm4899 = vcmp.lt.s32.totalorder %v4880, 1
        %vm4900 = vcmp.lt.s32.totalorder %v4880, 2
        %vm4901 = vcmp.lt.s32.totalorder %v4880, 3
        %vm4902 = vcmp.lt.s32.totalorder %v4880, 4
        %v4903 = vsel %vm4899, %v4883, %v4886
        %v4904 = vsel %vm4902, %v4892, 2102212464
        %v4905 = vsel %vm4901, %v4889, %v4904
        %v4906 = vsel %vm4900, %v4903, %v4905
        %v4907 = vsel %vm4899, %v4886, %v4889
        %v4908 = vsel %vm4902, %v4895, 920167782
        %v4909 = vsel %vm4901, %v4892, %v4908
        %v4910 = vsel %vm4900, %v4907, %v4909
        %v4911 = vsel %vm4899, %v4889, %v4892
        %v4912 = vsel %vm4902, %v4898, 1326507024
        %v4913 = vsel %vm4901, %v4895, %v4912
        %v4914 = vsel %vm4900, %v4911, %v4913
        %v4915 = vshll.u32 %v4875, 8
        %v4916 = vand.u32 %v4915, 65535
        %v4917 = vshrl.u32 %v4915, 16
        %v4918 = vand.u32 %v4914, 65535
        %v4919 = vshrl.u32 %v4914, 16
        %v4920 = vmul.u32 %v4916, %v4918
        %v4921 = vmul.u32 %v4916, %v4919
        %v4922 = vmul.u32 %v4917, %v4918
        %v4923 = vmul.u32 %v4917, %v4919
        %v4924 = vshll.u32 %v4921, 16
        %v4925 = vshrl.u32 %v4921, 16
        %v4926 = vshll.u32 %v4922, 16
        %v4927 = vshrl.u32 %v4922, 16
        %vm4928 = vc.u32 %v4920, %v4924
        %v4929 = vsel %vm4928, 1, 0
        %v4930 = vadd.s32 %v4920, %v4924
        %v4931 = vadd.s32 %v4923, %v4929
        %vm4932 = vc.u32 %v4930, %v4926
        %v4933 = vsel %vm4932, 1, 0
        %v4934 = vadd.s32 %v4930, %v4926
        %v4935 = vadd.s32 %v4931, %v4933
        %v4936 = vadd.s32 %v4935, %v4925
        %v4937 = vadd.s32 %v4936, %v4927
        %v4938 = vand.u32 %v4915, 65535
        %v4939 = vshrl.u32 %v4915, 16
        %v4940 = vand.u32 %v4910, 65535
        %v4941 = vshrl.u32 %v4910, 16
        %v4942 = vmul.u32 %v4938, %v4940
        %v4943 = vmul.u32 %v4938, %v4941
        %v4944 = vmul.u32 %v4939, %v4940
        %v4945 = vmul.u32 %v4939, %v4941
        %v4946 = vshll.u32 %v4943, 16
        %v4947 = vshrl.u32 %v4943, 16
        %v4948 = vshll.u32 %v4944, 16
        %v4949 = vshrl.u32 %v4944, 16
        %vm4950 = vc.u32 %v4942, %v4946
        %v4951 = vsel %vm4950, 1, 0
        %v4952 = vadd.s32 %v4942, %v4946
        %v4953 = vadd.s32 %v4945, %v4951
        %vm4954 = vc.u32 %v4952, %v4948
        %v4955 = vsel %vm4954, 1, 0
        %v4956 = vadd.s32 %v4952, %v4948
        %v4957 = vadd.s32 %v4953, %v4955
        %v4958 = vadd.s32 %v4957, %v4947
        %v4959 = vadd.s32 %v4958, %v4949
        %v4960 = vmul.u32 %v4915, %v4906
        %v4961 = vadd.s32 %v4937, %v4956
        %vm4962 = vc.u32 %v4937, %v4956
        %v4963 = vadd.s32 %v4959, 1
        %v4964 = vsel %vm4962, %v4963, %v4959
        %v4965 = vadd.s32 %v4960, %v4964
        %v4966 = vadd.s32 %v4965, 536870912
        %v4967 = vshrl.u32 %v4966, 30
        %v4968 = vshll.u32 %v4967, 30
        %v4969 = vsub.s32 %v4965, %v4968
        %vm4970 = vcmp.lt.s32.totalorder %v4969, 0
        %v4971 = vsub.s32 0, %v4969
        %v4972 = vsel %vm4970, %v4971, %v4969
        %v4973 = vclz %v4972
        %v4974 = vsub.s32 %v4973, 2
        %vm4975 = vcmp.gt.s32.totalorder 0, %v4974
        %v4976 = vsel %vm4975, 0, %v4974
        %v4977 = vsub.s32 32, %v4976
        %v4978 = vshll.u32 %v4969, %v4976
        %v4979 = vshrl.u32 %v4961, %v4977
        %v4980 = vor.u32 %v4978, %v4979
        %v4981 = vsub.s32 4294967266, %v4976
        %v4982 = vadd.s32 %v4981, 127
        %v4983 = vshll.u32 %v4982, 23
        %v4984 = vor.u32 4788187, %v4983
        %v4985 = vand.u32 2147483647, %v4984
        %v4987 = vcvt.s32.f32 %v4980
        %v4988 = vmul.f32 %v4987, %v4985
        %v4989 = vxor.u32 %v4988, 2147483648
        %v4990 = vsel %vm4869, %v4989, %v4988
        %v4991 = vsub.s32 4, %v4967
        %v4992 = vsel %vm4869, %v4991, %v4967
        %v4993 = vsel %vm4868, %v382, %v4990
        %v4994 = vsel %vm4868, 0, %v4992
        %v4995 = vmul.f32 %v4993, %v4993
        %v4996 = vmul.f32 %v4995, -0.001358992
        %v4997 = vadd.f32 %v4996, 0.041655596
        %v4998 = vmul.f32 %v4995, %v4997
        %v4999 = vadd.f32 %v4998, -0.4999988
        %v5000 = vmul.f32 %v4995, %v4999
        %v5001 = vadd.f32 1.0, %v5000
        %v5002 = vmul.f32 %v4993, %v4993
        %v5003 = vmul.f32 %v5002, -0.00019511016
        %v5004 = vadd.f32 %v5003, 0.008332121
        %v5005 = vmul.f32 %v5002, %v5004
        %v5006 = vadd.f32 %v5005, -0.16666654
        %v5007 = vmul.f32 %v5002, %v5006
        %v5008 = vadd.f32 %v5007, 1.0
        %v5009 = vmul.f32 %v5008, %v4993
        %vm5010 = vweird.f32 %v382
        %v5011 = vand.u32 %v4994, 3
        %vm5012 = vcmp.lt.s32.totalorder %v5011, 2
        %vm5013 = vcmp.eq.s32.totalorder %v5011, 0
        %v5014 = vxor.u32 %v5009, 2147483648
        %v5015 = vsel %vm5013, %v5001, %v5014
        %vm5016 = vcmp.eq.s32.totalorder %v5011, 2
        %v5017 = vxor.u32 %v5001, 2147483648
        %v5018 = vsel %vm5016, %v5017, %v5009
        %v5019 = vsel %vm5012, %v5015, %v5018
        %v5020 = vsel %vm5010, nan, %v5019
        %v5021 = vand.u32 2147483647, %v383
        %vm5022 = vcmp.le.f32.partialorder %v5021, 0.7853982
        %vm5023 = vcmp.lt.s32.totalorder %v383, 0
        %v5024 = vand.u32 %v383, 2139095040
        %v5025 = vshrl.u32 %v5024, 23
        %v5026 = vsub.s32 %v5025, 127
        %v5027 = vand.u32 2147483647, %v383
        %v5028 = vand.u32 %v5027, 8388607
        %v5029 = vor.u32 %v5028, 8388608
        %v5030 = vsub.s32 0, %v5029
        %v5031 = vadd.s32 %v5026, 1
        %vm5032 = vcmp.gt.s32.totalorder %v5031, 0
        %v5033 = vsel %vm5032, %v5031, 0
        %v5034 = vshrl.u32 %v5033, 5
        %v5035 = vand.u32 %v5033, 31
        %v5036 = vsub.s32 32, %v5035
        %v5037 = vshrl.u32 683565275, %v5036
        %v5038 = vshll.u32 683565275, %v5035
        %v5039 = vshrl.u32 2475754826, %v5036
        %v5040 = vor.u32 %v5038, %v5039
        %v5041 = vshll.u32 2475754826, %v5035
        %v5042 = vshrl.u32 2131351028, %v5036
        %v5043 = vor.u32 %v5041, %v5042
        %v5044 = vshll.u32 2131351028, %v5035
        %v5045 = vshrl.u32 2102212464, %v5036
        %v5046 = vor.u32 %v5044, %v5045
        %v5047 = vshll.u32 2102212464, %v5035
        %v5048 = vshrl.u32 920167782, %v5036
        %v5049 = vor.u32 %v5047, %v5048
        %v5050 = vshll.u32 920167782, %v5035
        %v5051 = vshrl.u32 1326507024, %v5036
        %v5052 = vor.u32 %v5050, %v5051
        %vm5053 = vcmp.lt.s32.totalorder %v5034, 1
        %vm5054 = vcmp.lt.s32.totalorder %v5034, 2
        %vm5055 = vcmp.lt.s32.totalorder %v5034, 3
        %vm5056 = vcmp.lt.s32.totalorder %v5034, 4
        %v5057 = vsel %vm5053, %v5037, %v5040
        %v5058 = vsel %vm5056, %v5046, 2102212464
        %v5059 = vsel %vm5055, %v5043, %v5058
        %v5060 = vsel %vm5054, %v5057, %v5059
        %v5061 = vsel %vm5053, %v5040, %v5043
        %v5062 = vsel %vm5056, %v5049, 920167782
        %v5063 = vsel %vm5055, %v5046, %v5062
        %v5064 = vsel %vm5054, %v5061, %v5063
        %v5065 = vsel %vm5053, %v5043, %v5046
        %v5066 = vsel %vm5056, %v5052, 1326507024
        %v5067 = vsel %vm5055, %v5049, %v5066
        %v5068 = vsel %vm5054, %v5065, %v5067
        %v5069 = vshll.u32 %v5029, 8
        %v5070 = vand.u32 %v5069, 65535
        %v5071 = vshrl.u32 %v5069, 16
        %v5072 = vand.u32 %v5068, 65535
        %v5073 = vshrl.u32 %v5068, 16
        %v5074 = vmul.u32 %v5070, %v5072
        %v5075 = vmul.u32 %v5070, %v5073
        %v5076 = vmul.u32 %v5071, %v5072
        %v5077 = vmul.u32 %v5071, %v5073
        %v5078 = vshll.u32 %v5075, 16
        %v5079 = vshrl.u32 %v5075, 16
        %v5080 = vshll.u32 %v5076, 16
        %v5081 = vshrl.u32 %v5076, 16
        %vm5082 = vc.u32 %v5074, %v5078
        %v5083 = vsel %vm5082, 1, 0
        %v5084 = vadd.s32 %v5074, %v5078
        %v5085 = vadd.s32 %v5077, %v5083
        %vm5086 = vc.u32 %v5084, %v5080
        %v5087 = vsel %vm5086, 1, 0
        %v5088 = vadd.s32 %v5084, %v5080
        %v5089 = vadd.s32 %v5085, %v5087
        %v5090 = vadd.s32 %v5089, %v5079
        %v5091 = vadd.s32 %v5090, %v5081
        %v5092 = vand.u32 %v5069, 65535
        %v5093 = vshrl.u32 %v5069, 16
        %v5094 = vand.u32 %v5064, 65535
        %v5095 = vshrl.u32 %v5064, 16
        %v5096 = vmul.u32 %v5092, %v5094
        %v5097 = vmul.u32 %v5092, %v5095
        %v5098 = vmul.u32 %v5093, %v5094
        %v5099 = vmul.u32 %v5093, %v5095
        %v5100 = vshll.u32 %v5097, 16
        %v5101 = vshrl.u32 %v5097, 16
        %v5102 = vshll.u32 %v5098, 16
        %v5103 = vshrl.u32 %v5098, 16
        %vm5104 = vc.u32 %v5096, %v5100
        %v5105 = vsel %vm5104, 1, 0
        %v5106 = vadd.s32 %v5096, %v5100
        %v5107 = vadd.s32 %v5099, %v5105
        %vm5108 = vc.u32 %v5106, %v5102
        %v5109 = vsel %vm5108, 1, 0
        %v5110 = vadd.s32 %v5106, %v5102
        %v5111 = vadd.s32 %v5107, %v5109
        %v5112 = vadd.s32 %v5111, %v5101
        %v5113 = vadd.s32 %v5112, %v5103
        %v5114 = vmul.u32 %v5069, %v5060
        %v5115 = vadd.s32 %v5091, %v5110
        %vm5116 = vc.u32 %v5091, %v5110
        %v5117 = vadd.s32 %v5113, 1
        %v5118 = vsel %vm5116, %v5117, %v5113
        %v5119 = vadd.s32 %v5114, %v5118
        %v5120 = vadd.s32 %v5119, 536870912
        %v5121 = vshrl.u32 %v5120, 30
        %v5122 = vshll.u32 %v5121, 30
        %v5123 = vsub.s32 %v5119, %v5122
        %vm5124 = vcmp.lt.s32.totalorder %v5123, 0
        %v5125 = vsub.s32 0, %v5123
        %v5126 = vsel %vm5124, %v5125, %v5123
        %v5127 = vclz %v5126
        %v5128 = vsub.s32 %v5127, 2
        %vm5129 = vcmp.gt.s32.totalorder 0, %v5128
        %v5130 = vsel %vm5129, 0, %v5128
        %v5131 = vsub.s32 32, %v5130
        %v5132 = vshll.u32 %v5123, %v5130
        %v5133 = vshrl.u32 %v5115, %v5131
        %v5134 = vor.u32 %v5132, %v5133
        %v5135 = vsub.s32 4294967266, %v5130
        %v5136 = vadd.s32 %v5135, 127
        %v5137 = vshll.u32 %v5136, 23
        %v5138 = vor.u32 4788187, %v5137
        %v5139 = vand.u32 2147483647, %v5138
        %v5141 = vcvt.s32.f32 %v5134
        %v5142 = vmul.f32 %v5141, %v5139
        %v5143 = vxor.u32 %v5142, 2147483648
        %v5144 = vsel %vm5023, %v5143, %v5142
        %v5145 = vsub.s32 4, %v5121
        %v5146 = vsel %vm5023, %v5145, %v5121
        %v5147 = vsel %vm5022, %v383, %v5144
        %v5148 = vsel %vm5022, 0, %v5146
        %v5149 = vmul.f32 %v5147, %v5147
        %v5150 = vmul.f32 %v5149, -0.001358992
        %v5151 = vadd.f32 %v5150, 0.041655596
        %v5152 = vmul.f32 %v5149, %v5151
        %v5153 = vadd.f32 %v5152, -0.4999988
        %v5154 = vmul.f32 %v5149, %v5153
        %v5155 = vadd.f32 1.0, %v5154
        %v5156 = vmul.f32 %v5147, %v5147
        %v5157 = vmul.f32 %v5156, -0.00019511016
        %v5158 = vadd.f32 %v5157, 0.008332121
        %v5159 = vmul.f32 %v5156, %v5158
        %v5160 = vadd.f32 %v5159, -0.16666654
        %v5161 = vmul.f32 %v5156, %v5160
        %v5162 = vadd.f32 %v5161, 1.0
        %v5163 = vmul.f32 %v5162, %v5147
        %vm5164 = vweird.f32 %v383
        %v5165 = vand.u32 %v5148, 3
        %vm5166 = vcmp.lt.s32.totalorder %v5165, 2
        %vm5167 = vcmp.eq.s32.totalorder %v5165, 0
        %v5168 = vxor.u32 %v5163, 2147483648
        %v5169 = vsel %vm5167, %v5155, %v5168
        %vm5170 = vcmp.eq.s32.totalorder %v5165, 2
        %v5171 = vxor.u32 %v5155, 2147483648
        %v5172 = vsel %vm5170, %v5171, %v5163
        %v5173 = vsel %vm5166, %v5169, %v5172
        %v5174 = vsel %vm5164, nan, %v5173
        %v5175 = vand.u32 2147483647, %v384
        %vm5176 = vcmp.le.f32.partialorder %v5175, 0.7853982
        %vm5177 = vcmp.lt.s32.totalorder %v384, 0
        %v5178 = vand.u32 %v384, 2139095040
        %v5179 = vshrl.u32 %v5178, 23
        %v5180 = vsub.s32 %v5179, 127
        %v5181 = vand.u32 2147483647, %v384
        %v5182 = vand.u32 %v5181, 8388607
        %v5183 = vor.u32 %v5182, 8388608
        %v5184 = vsub.s32 0, %v5183
        %v5185 = vadd.s32 %v5180, 1
        %vm5186 = vcmp.gt.s32.totalorder %v5185, 0
        %v5187 = vsel %vm5186, %v5185, 0
        %v5188 = vshrl.u32 %v5187, 5
        %v5189 = vand.u32 %v5187, 31
        %v5190 = vsub.s32 32, %v5189
        %v5191 = vshrl.u32 683565275, %v5190
        %v5192 = vshll.u32 683565275, %v5189
        %v5193 = vshrl.u32 2475754826, %v5190
        %v5194 = vor.u32 %v5192, %v5193
        %v5195 = vshll.u32 2475754826, %v5189
        %v5196 = vshrl.u32 2131351028, %v5190
        %v5197 = vor.u32 %v5195, %v5196
        %v5198 = vshll.u32 2131351028, %v5189
        %v5199 = vshrl.u32 2102212464, %v5190
        %v5200 = vor.u32 %v5198, %v5199
        %v5201 = vshll.u32 2102212464, %v5189
        %v5202 = vshrl.u32 920167782, %v5190
        %v5203 = vor.u32 %v5201, %v5202
        %v5204 = vshll.u32 920167782, %v5189
        %v5205 = vshrl.u32 1326507024, %v5190
        %v5206 = vor.u32 %v5204, %v5205
        %vm5207 = vcmp.lt.s32.totalorder %v5188, 1
        %vm5208 = vcmp.lt.s32.totalorder %v5188, 2
        %vm5209 = vcmp.lt.s32.totalorder %v5188, 3
        %vm5210 = vcmp.lt.s32.totalorder %v5188, 4
        %v5211 = vsel %vm5207, %v5191, %v5194
        %v5212 = vsel %vm5210, %v5200, 2102212464
        %v5213 = vsel %vm5209, %v5197, %v5212
        %v5214 = vsel %vm5208, %v5211, %v5213
        %v5215 = vsel %vm5207, %v5194, %v5197
        %v5216 = vsel %vm5210, %v5203, 920167782
        %v5217 = vsel %vm5209, %v5200, %v5216
        %v5218 = vsel %vm5208, %v5215, %v5217
        %v5219 = vsel %vm5207, %v5197, %v5200
        %v5220 = vsel %vm5210, %v5206, 1326507024
        %v5221 = vsel %vm5209, %v5203, %v5220
        %v5222 = vsel %vm5208, %v5219, %v5221
        %v5223 = vshll.u32 %v5183, 8
        %v5224 = vand.u32 %v5223, 65535
        %v5225 = vshrl.u32 %v5223, 16
        %v5226 = vand.u32 %v5222, 65535
        %v5227 = vshrl.u32 %v5222, 16
        %v5228 = vmul.u32 %v5224, %v5226
        %v5229 = vmul.u32 %v5224, %v5227
        %v5230 = vmul.u32 %v5225, %v5226
        %v5231 = vmul.u32 %v5225, %v5227
        %v5232 = vshll.u32 %v5229, 16
        %v5233 = vshrl.u32 %v5229, 16
        %v5234 = vshll.u32 %v5230, 16
        %v5235 = vshrl.u32 %v5230, 16
        %vm5236 = vc.u32 %v5228, %v5232
        %v5237 = vsel %vm5236, 1, 0
        %v5238 = vadd.s32 %v5228, %v5232
        %v5239 = vadd.s32 %v5231, %v5237
        %vm5240 = vc.u32 %v5238, %v5234
        %v5241 = vsel %vm5240, 1, 0
        %v5242 = vadd.s32 %v5238, %v5234
        %v5243 = vadd.s32 %v5239, %v5241
        %v5244 = vadd.s32 %v5243, %v5233
        %v5245 = vadd.s32 %v5244, %v5235
        %v5246 = vand.u32 %v5223, 65535
        %v5247 = vshrl.u32 %v5223, 16
        %v5248 = vand.u32 %v5218, 65535
        %v5249 = vshrl.u32 %v5218, 16
        %v5250 = vmul.u32 %v5246, %v5248
        %v5251 = vmul.u32 %v5246, %v5249
        %v5252 = vmul.u32 %v5247, %v5248
        %v5253 = vmul.u32 %v5247, %v5249
        %v5254 = vshll.u32 %v5251, 16
        %v5255 = vshrl.u32 %v5251, 16
        %v5256 = vshll.u32 %v5252, 16
        %v5257 = vshrl.u32 %v5252, 16
        %vm5258 = vc.u32 %v5250, %v5254
        %v5259 = vsel %vm5258, 1, 0
        %v5260 = vadd.s32 %v5250, %v5254
        %v5261 = vadd.s32 %v5253, %v5259
        %vm5262 = vc.u32 %v5260, %v5256
        %v5263 = vsel %vm5262, 1, 0
        %v5264 = vadd.s32 %v5260, %v5256
        %v5265 = vadd.s32 %v5261, %v5263
        %v5266 = vadd.s32 %v5265, %v5255
        %v5267 = vadd.s32 %v5266, %v5257
        %v5268 = vmul.u32 %v5223, %v5214
        %v5269 = vadd.s32 %v5245, %v5264
        %vm5270 = vc.u32 %v5245, %v5264
        %v5271 = vadd.s32 %v5267, 1
        %v5272 = vsel %vm5270, %v5271, %v5267
        %v5273 = vadd.s32 %v5268, %v5272
        %v5274 = vadd.s32 %v5273, 536870912
        %v5275 = vshrl.u32 %v5274, 30
        %v5276 = vshll.u32 %v5275, 30
        %v5277 = vsub.s32 %v5273, %v5276
        %vm5278 = vcmp.lt.s32.totalorder %v5277, 0
        %v5279 = vsub.s32 0, %v5277
        %v5280 = vsel %vm5278, %v5279, %v5277
        %v5281 = vclz %v5280
        %v5282 = vsub.s32 %v5281, 2
        %vm5283 = vcmp.gt.s32.totalorder 0, %v5282
        %v5284 = vsel %vm5283, 0, %v5282
        %v5285 = vsub.s32 32, %v5284
        %v5286 = vshll.u32 %v5277, %v5284
        %v5287 = vshrl.u32 %v5269, %v5285
        %v5288 = vor.u32 %v5286, %v5287
        %v5289 = vsub.s32 4294967266, %v5284
        %v5290 = vadd.s32 %v5289, 127
        %v5291 = vshll.u32 %v5290, 23
        %v5292 = vor.u32 4788187, %v5291
        %v5293 = vand.u32 2147483647, %v5292
        %v5295 = vcvt.s32.f32 %v5288
        %v5296 = vmul.f32 %v5295, %v5293
        %v5297 = vxor.u32 %v5296, 2147483648
        %v5298 = vsel %vm5177, %v5297, %v5296
        %v5299 = vsub.s32 4, %v5275
        %v5300 = vsel %vm5177, %v5299, %v5275
        %v5301 = vsel %vm5176, %v384, %v5298
        %v5302 = vsel %vm5176, 0, %v5300
        %v5303 = vmul.f32 %v5301, %v5301
        %v5304 = vmul.f32 %v5303, -0.001358992
        %v5305 = vadd.f32 %v5304, 0.041655596
        %v5306 = vmul.f32 %v5303, %v5305
        %v5307 = vadd.f32 %v5306, -0.4999988
        %v5308 = vmul.f32 %v5303, %v5307
        %v5309 = vadd.f32 1.0, %v5308
        %v5310 = vmul.f32 %v5301, %v5301
        %v5311 = vmul.f32 %v5310, -0.00019511016
        %v5312 = vadd.f32 %v5311, 0.008332121
        %v5313 = vmul.f32 %v5310, %v5312
        %v5314 = vadd.f32 %v5313, -0.16666654
        %v5315 = vmul.f32 %v5310, %v5314
        %v5316 = vadd.f32 %v5315, 1.0
        %v5317 = vmul.f32 %v5316, %v5301
        %vm5318 = vweird.f32 %v384
        %v5319 = vand.u32 %v5302, 3
        %vm5320 = vcmp.lt.s32.totalorder %v5319, 2
        %vm5321 = vcmp.eq.s32.totalorder %v5319, 0
        %v5322 = vxor.u32 %v5317, 2147483648
        %v5323 = vsel %vm5321, %v5309, %v5322
        %vm5324 = vcmp.eq.s32.totalorder %v5319, 2
        %v5325 = vxor.u32 %v5309, 2147483648
        %v5326 = vsel %vm5324, %v5325, %v5317
        %v5327 = vsel %vm5320, %v5323, %v5326
        %v5328 = vsel %vm5318, nan, %v5327
        %v5329 = vpack.c.bf16 %v694, %v539
        %v5330 = vpack.c.bf16 %v3172, %v3018
        %v5331 = vpack.c.bf16 %v1004, %v849
        %v5332 = vpack.c.bf16 %v3480, %v3326
        %v5333 = vpack.c.bf16 %v1314, %v1159
        %v5334 = vpack.c.bf16 %v3788, %v3634
        %v5335 = vpack.c.bf16 %v1624, %v1469
        %v5336 = vpack.c.bf16 %v4096, %v3942
        %v5337 = vpack.c.bf16 %v1934, %v1779
        %v5338 = vpack.c.bf16 %v4404, %v4250
        %v5339 = vpack.c.bf16 %v2244, %v2089
        %v5340 = vpack.c.bf16 %v4712, %v4558
        %v5341 = vpack.c.bf16 %v2554, %v2399
        %v5342 = vpack.c.bf16 %v5020, %v4866
        %v5343 = vpack.c.bf16 %v2864, %v2709
        %v5344 = vpack.c.bf16 %v5328, %v5174
        %v5345 = vld [vmem:[%s3] sm:$0xf]
        %v5346 = vld [vmem:[%s3 + $0x4] sm:$0xf]
        %v5347 = vld [vmem:[%s3 + $0x8] sm:$0xf]
        %v5348 = vld [vmem:[%s3 + $0xc] sm:$0xf]
        %v5349 = vld [vmem:[%s3 + $0x10] sm:$0xf]
        %v5350 = vld [vmem:[%s3 + $0x14] sm:$0xf]
        %v5351 = vld [vmem:[%s3 + $0x18] sm:$0xf]
        %v5352 = vld [vmem:[%s3 + $0x1c] sm:$0xf]
        %v5353 = vld [vmem:[%s3 + $0x20] sm:$0xf]
        %v5354 = vld [vmem:[%s3 + $0x24] sm:$0xf]
        %v5355 = vld [vmem:[%s3 + $0x28] sm:$0xf]
        %v5356 = vld [vmem:[%s3 + $0x2c] sm:$0xf]
        %v5357 = vld [vmem:[%s3 + $0x30] sm:$0xf]
        %v5358 = vld [vmem:[%s3 + $0x34] sm:$0xf]
        %v5359 = vld [vmem:[%s3 + $0x38] sm:$0xf]
        %v5360 = vld [vmem:[%s3 + $0x3c] sm:$0xf]
        %v5361 = vld [vmem:[%s3 + $0x40] sm:$0xf]
        %v5362 = vld [vmem:[%s3 + $0x44] sm:$0xf]
        %v5363 = vld [vmem:[%s3 + $0x48] sm:$0xf]
        %v5364 = vld [vmem:[%s3 + $0x4c] sm:$0xf]
        %v5365 = vld [vmem:[%s3 + $0x50] sm:$0xf]
        %v5366 = vld [vmem:[%s3 + $0x54] sm:$0xf]
        %v5367 = vld [vmem:[%s3 + $0x58] sm:$0xf]
        %v5368 = vld [vmem:[%s3 + $0x5c] sm:$0xf]
        %v5369 = vld [vmem:[%s3 + $0x60] sm:$0xf]
        %v5370 = vld [vmem:[%s3 + $0x64] sm:$0xf]
        %v5371 = vld [vmem:[%s3 + $0x68] sm:$0xf]
        %v5372 = vld [vmem:[%s3 + $0x6c] sm:$0xf]
        %v5373 = vld [vmem:[%s3 + $0x70] sm:$0xf]
        %v5374 = vld [vmem:[%s3 + $0x74] sm:$0xf]
        %v5375 = vld [vmem:[%s3 + $0x78] sm:$0xf]
        %v5376 = vld [vmem:[%s3 + $0x7c] sm:$0xf]
        %v5377 = vperm.slane %v250, 0
        %v5410 = vunpack.c.l.b16 %v5345
        %v5411 = vunpack.c.l.b16 %v5346
        %v5412 = vunpack.c.l.b16 %v5347
        %v5413 = vunpack.c.l.b16 %v5348
        %v5414 = vunpack.c.l.b16 %v5349
        %v5415 = vunpack.c.l.b16 %v5350
        %v5416 = vunpack.c.l.b16 %v5351
        %v5417 = vunpack.c.l.b16 %v5352
        %v5418 = vunpack.c.l.b16 %v5353
        %v5419 = vunpack.c.l.b16 %v5354
        %v5420 = vunpack.c.l.b16 %v5355
        %v5421 = vunpack.c.l.b16 %v5356
        %v5422 = vunpack.c.l.b16 %v5357
        %v5423 = vunpack.c.l.b16 %v5358
        %v5424 = vunpack.c.l.b16 %v5359
        %v5425 = vunpack.c.l.b16 %v5360
        %v5426 = vunpack.c.l.b16 %v5361
        %v5427 = vunpack.c.l.b16 %v5362
        %v5428 = vunpack.c.l.b16 %v5363
        %v5429 = vunpack.c.l.b16 %v5364
        %v5430 = vunpack.c.l.b16 %v5365
        %v5431 = vunpack.c.l.b16 %v5366
        %v5432 = vunpack.c.l.b16 %v5367
        %v5433 = vunpack.c.l.b16 %v5368
        %v5434 = vunpack.c.l.b16 %v5369
        %v5435 = vunpack.c.l.b16 %v5370
        %v5436 = vunpack.c.l.b16 %v5371
        %v5437 = vunpack.c.l.b16 %v5372
        %v5438 = vunpack.c.l.b16 %v5373
        %v5439 = vunpack.c.l.b16 %v5374
        %v5440 = vunpack.c.l.b16 %v5375
        %v5441 = vunpack.c.l.b16 %v5376
        %v5442 = vpack.c.b16 %v5411, %v5410
        %v5443 = vpack.c.b16 %v5413, %v5412
        %v5444 = vpack.c.b16 %v5415, %v5414
        %v5445 = vpack.c.b16 %v5417, %v5416
        %v5446 = vpack.c.b16 %v5419, %v5418
        %v5447 = vpack.c.b16 %v5421, %v5420
        %v5448 = vpack.c.b16 %v5423, %v5422
        %v5449 = vpack.c.b16 %v5425, %v5424
        %v5450 = vpack.c.b16 %v5427, %v5426
        %v5451 = vpack.c.b16 %v5429, %v5428
        %v5452 = vpack.c.b16 %v5431, %v5430
        %v5453 = vpack.c.b16 %v5433, %v5432
        %v5454 = vpack.c.b16 %v5435, %v5434
        %v5455 = vpack.c.b16 %v5437, %v5436
        %v5456 = vpack.c.b16 %v5439, %v5438
        %v5457 = vpack.c.b16 %v5441, %v5440
        %5474 = vmatpush.bf16.msra.mxu0 %v5449
        %5475 = vmatpush.bf16.msra.mxu0 %v5448
        %5476 = vmatpush.bf16.msra.mxu0 %v5447
        %5477 = vmatpush.bf16.msra.mxu0 %v5446
        %5478 = vmatpush.bf16.msra.mxu0 %v5445
        %5479 = vmatpush.bf16.msra.mxu0 %v5444
        %5480 = vmatpush.bf16.msra.mxu0 %v5443
        %5481 = vmatpush.bf16.msra.mxu0 %v5442
        %5482 = vmatmul.bf16.gmra.mxu0 %v5329
        %v5483 = vpop.f32.mrf.mxu0
        %v5484 = vadd.f32 %v5377, %v5483
        %v5485 = vpop.f32.mrf.mxu0
        %v5486 = vadd.f32 %v5377, %v5485
        %5487 = vmatmul.bf16.gmra.mxu0 %v5331
        %v5488 = vpop.f32.mrf.mxu0
        %v5489 = vadd.f32 %v5377, %v5488
        %v5490 = vpop.f32.mrf.mxu0
        %v5491 = vadd.f32 %v5377, %v5490
        %5492 = vmatmul.bf16.gmra.mxu0 %v5333
        %v5493 = vpop.f32.mrf.mxu0
        %v5494 = vadd.f32 %v5377, %v5493
        %v5495 = vpop.f32.mrf.mxu0
        %v5496 = vadd.f32 %v5377, %v5495
        %5497 = vmatmul.bf16.gmra.mxu0 %v5335
        %v5498 = vpop.f32.mrf.mxu0
        %v5499 = vadd.f32 %v5377, %v5498
        %v5500 = vpop.f32.mrf.mxu0
        %v5501 = vadd.f32 %v5377, %v5500
        %5502 = vmatmul.bf16.gmra.mxu0 %v5337
        %v5503 = vpop.f32.mrf.mxu0
        %v5504 = vadd.f32 %v5377, %v5503
        %v5505 = vpop.f32.mrf.mxu0
        %v5506 = vadd.f32 %v5377, %v5505
        %5507 = vmatmul.bf16.gmra.mxu0 %v5339
        %v5508 = vpop.f32.mrf.mxu0
        %v5509 = vadd.f32 %v5377, %v5508
        %v5510 = vpop.f32.mrf.mxu0
        %v5511 = vadd.f32 %v5377, %v5510
        %5512 = vmatmul.bf16.gmra.mxu0 %v5341
        %v5513 = vpop.f32.mrf.mxu0
        %v5514 = vadd.f32 %v5377, %v5513
        %v5515 = vpop.f32.mrf.mxu0
        %v5516 = vadd.f32 %v5377, %v5515
        %5517 = vmatmul.bf16.gmra.mxu0 %v5343
        %v5518 = vpop.f32.mrf.mxu0
        %v5519 = vadd.f32 %v5377, %v5518
        %v5520 = vpop.f32.mrf.mxu0
        %v5521 = vadd.f32 %v5377, %v5520
        %5522 = vdwg.mxu0
        %5523 = vmatpush.bf16.msra.mxu0 %v5457
        %5524 = vmatpush.bf16.msra.mxu0 %v5456
        %5525 = vmatpush.bf16.msra.mxu0 %v5455
        %5526 = vmatpush.bf16.msra.mxu0 %v5454
        %5527 = vmatpush.bf16.msra.mxu0 %v5453
        %5528 = vmatpush.bf16.msra.mxu0 %v5452
        %5529 = vmatpush.bf16.msra.mxu0 %v5451
        %5530 = vmatpush.bf16.msra.mxu0 %v5450
        %5531 = vmatmul.bf16.gmra.mxu0 %v5330
        %v5532 = vpop.f32.mrf.mxu0
        %v5533 = vadd.f32 %v5484, %v5532
        %v5534 = vpop.f32.mrf.mxu0
        %v5535 = vadd.f32 %v5486, %v5534
        %5536 = vmatmul.bf16.gmra.mxu0 %v5332
        %v5537 = vpop.f32.mrf.mxu0
        %v5538 = vadd.f32 %v5489, %v5537
        %v5539 = vpop.f32.mrf.mxu0
        %v5540 = vadd.f32 %v5491, %v5539
        %5541 = vmatmul.bf16.gmra.mxu0 %v5334
        %v5542 = vpop.f32.mrf.mxu0
        %v5543 = vadd.f32 %v5494, %v5542
        %v5544 = vpop.f32.mrf.mxu0
        %v5545 = vadd.f32 %v5496, %v5544
        %5546 = vmatmul.bf16.gmra.mxu0 %v5336
        %v5547 = vpop.f32.mrf.mxu0
        %v5548 = vadd.f32 %v5499, %v5547
        %v5549 = vpop.f32.mrf.mxu0
        %v5550 = vadd.f32 %v5501, %v5549
        %5551 = vmatmul.bf16.gmra.mxu0 %v5338
        %v5552 = vpop.f32.mrf.mxu0
        %v5553 = vadd.f32 %v5504, %v5552
        %v5554 = vpop.f32.mrf.mxu0
        %v5555 = vadd.f32 %v5506, %v5554
        %5556 = vmatmul.bf16.gmra.mxu0 %v5340
        %v5557 = vpop.f32.mrf.mxu0
        %v5558 = vadd.f32 %v5509, %v5557
        %v5559 = vpop.f32.mrf.mxu0
        %v5560 = vadd.f32 %v5511, %v5559
        %5561 = vmatmul.bf16.gmra.mxu0 %v5342
        %v5562 = vpop.f32.mrf.mxu0
        %v5563 = vadd.f32 %v5514, %v5562
        %v5564 = vpop.f32.mrf.mxu0
        %v5565 = vadd.f32 %v5516, %v5564
        %5566 = vmatmul.bf16.gmra.mxu0 %v5344
        %v5567 = vpop.f32.mrf.mxu0
        %v5568 = vadd.f32 %v5519, %v5567
        %v5569 = vpop.f32.mrf.mxu0
        %v5570 = vadd.f32 %v5521, %v5569
        %5571 = vdwg.mxu0
        %v5572 = vmul.f32 %v5533, 0.5
        %v5573 = vmul.f32 %v5535, 0.5
        %v5574 = vmul.f32 %v5538, 0.5
        %v5575 = vmul.f32 %v5540, 0.5
        %v5576 = vmul.f32 %v5543, 0.5
        %v5577 = vmul.f32 %v5545, 0.5
        %v5578 = vmul.f32 %v5548, 0.5
        %v5579 = vmul.f32 %v5550, 0.5
        %v5580 = vmul.f32 %v5553, 0.5
        %v5581 = vmul.f32 %v5555, 0.5
        %v5582 = vmul.f32 %v5558, 0.5
        %v5583 = vmul.f32 %v5560, 0.5
        %v5584 = vmul.f32 %v5563, 0.5
        %v5585 = vmul.f32 %v5565, 0.5
        %v5586 = vmul.f32 %v5568, 0.5
        %v5587 = vmul.f32 %v5570, 0.5
        %v5588 = vmul.f32 %v5533, 0.70710677
        %v5589 = vmul.f32 %v5535, 0.70710677
        %v5590 = vmul.f32 %v5538, 0.70710677
        %v5591 = vmul.f32 %v5540, 0.70710677
        %v5592 = vmul.f32 %v5543, 0.70710677
        %v5593 = vmul.f32 %v5545, 0.70710677
        %v5594 = vmul.f32 %v5548, 0.70710677
        %v5595 = vmul.f32 %v5550, 0.70710677
        %v5596 = vmul.f32 %v5553, 0.70710677
        %v5597 = vmul.f32 %v5555, 0.70710677
        %v5598 = vmul.f32 %v5558, 0.70710677
        %v5599 = vmul.f32 %v5560, 0.70710677
        %v5600 = vmul.f32 %v5563, 0.70710677
        %v5601 = vmul.f32 %v5565, 0.70710677
        %v5602 = vmul.f32 %v5568, 0.70710677
        %v5603 = vmul.f32 %v5570, 0.70710677
        %v5604 = vmul.f32 %v5588, %v5588
        %v5605 = vmin.f32 16.0, %v5604
        %v5606 = vmul.f32 %v5605, 2.1237322e-06
        %v5607 = vadd.f32 %v5606, 0.00028619796
        %v5608 = vmul.f32 %v5605, %v5607
        %v5609 = vadd.f32 %v5608, 0.0036580483
        %v5610 = vmul.f32 %v5605, %v5609
        %v5611 = vadd.f32 %v5610, 0.05243302
        %v5612 = vmul.f32 %v5605, %v5611
        %v5613 = vadd.f32 %v5612, 0.18741608
        %v5614 = vmul.f32 %v5605, %v5613
        %v5615 = vadd.f32 %v5614, 1.1283791
        %v5616 = vmul.f32 %v5588, %v5615
        %v5617 = vmul.f32 %v5605, 3.8918573e-05
        %v5618 = vadd.f32 %v5617, 0.001143296
        %v5619 = vmul.f32 %v5605, %v5618
        %v5620 = vadd.f32 %v5619, 0.014752088
        %v5621 = vmul.f32 %v5605, %v5620
        %v5622 = vadd.f32 %v5621, 0.112945676
        %v5623 = vmul.f32 %v5605, %v5622
        %v5624 = vadd.f32 %v5623, 0.4994258
        %v5625 = vmul.f32 %v5605, %v5624
        %v5626 = vadd.f32 %v5625, 1.0
        %v5627 = vrcp.pop %v5626
        %v5628 = vmul.f32 %v5626, %v5627
        %v5629 = vsub.f32 1.0, %v5628
        %v5630 = vmul.f32 %v5627, %v5629
        %v5631 = vadd.f32 %v5627, %v5630
        %vm5632 = vweird.f32 %v5626
        %vm5633 = vweird.f32 %v5627
        %vm5634 = vmor %vm5632, %vm5633
        %v5635 = vsel %vm5634, %v5627, %v5631
        %v5636 = vand.u32 2147483647, %v5626
        %vm5637 = vcmp.eq.f32.partialorder %v5636, 8.507059e+37
        %v5638 = vand.u32 %v5626, 2147483648
        %v5639 = vor.u32 1.1754944e-38, %v5638
        %v5640 = vsel %vm5637, %v5639, %v5635
        %v5641 = vmul.f32 %v5616, %v5640
        %v5642 = vmin.f32 %v5641, 1.0
        %v5643 = vmax.f32 %v5642, -1.0
        %v5644 = vmul.f32 %v5589, %v5589
        %v5645 = vmin.f32 16.0, %v5644
        %v5646 = vmul.f32 %v5645, 2.1237322e-06
        %v5647 = vadd.f32 %v5646, 0.00028619796
        %v5648 = vmul.f32 %v5645, %v5647
        %v5649 = vadd.f32 %v5648, 0.0036580483
        %v5650 = vmul.f32 %v5645, %v5649
        %v5651 = vadd.f32 %v5650, 0.05243302
        %v5652 = vmul.f32 %v5645, %v5651
        %v5653 = vadd.f32 %v5652, 0.18741608
        %v5654 = vmul.f32 %v5645, %v5653
        %v5655 = vadd.f32 %v5654, 1.1283791
        %v5656 = vmul.f32 %v5589, %v5655
        %v5657 = vmul.f32 %v5645, 3.8918573e-05
        %v5658 = vadd.f32 %v5657, 0.001143296
        %v5659 = vmul.f32 %v5645, %v5658
        %v5660 = vadd.f32 %v5659, 0.014752088
        %v5661 = vmul.f32 %v5645, %v5660
        %v5662 = vadd.f32 %v5661, 0.112945676
        %v5663 = vmul.f32 %v5645, %v5662
        %v5664 = vadd.f32 %v5663, 0.4994258
        %v5665 = vmul.f32 %v5645, %v5664
        %v5666 = vadd.f32 %v5665, 1.0
        %v5667 = vrcp.pop %v5666
        %v5668 = vmul.f32 %v5666, %v5667
        %v5669 = vsub.f32 1.0, %v5668
        %v5670 = vmul.f32 %v5667, %v5669
        %v5671 = vadd.f32 %v5667, %v5670
        %vm5672 = vweird.f32 %v5666
        %vm5673 = vweird.f32 %v5667
        %vm5674 = vmor %vm5672, %vm5673
        %v5675 = vsel %vm5674, %v5667, %v5671
        %v5676 = vand.u32 2147483647, %v5666
        %vm5677 = vcmp.eq.f32.partialorder %v5676, 8.507059e+37
        %v5678 = vand.u32 %v5666, 2147483648
        %v5679 = vor.u32 1.1754944e-38, %v5678
        %v5680 = vsel %vm5677, %v5679, %v5675
        %v5681 = vmul.f32 %v5656, %v5680
        %v5682 = vmin.f32 %v5681, 1.0
        %v5683 = vmax.f32 %v5682, -1.0
        %v5684 = vmul.f32 %v5590, %v5590
        %v5685 = vmin.f32 16.0, %v5684
        %v5686 = vmul.f32 %v5685, 2.1237322e-06
        %v5687 = vadd.f32 %v5686, 0.00028619796
        %v5688 = vmul.f32 %v5685, %v5687
        %v5689 = vadd.f32 %v5688, 0.0036580483
        %v5690 = vmul.f32 %v5685, %v5689
        %v5691 = vadd.f32 %v5690, 0.05243302
        %v5692 = vmul.f32 %v5685, %v5691
        %v5693 = vadd.f32 %v5692, 0.18741608
        %v5694 = vmul.f32 %v5685, %v5693
        %v5695 = vadd.f32 %v5694, 1.1283791
        %v5696 = vmul.f32 %v5590, %v5695
        %v5697 = vmul.f32 %v5685, 3.8918573e-05
        %v5698 = vadd.f32 %v5697, 0.001143296
        %v5699 = vmul.f32 %v5685, %v5698
        %v5700 = vadd.f32 %v5699, 0.014752088
        %v5701 = vmul.f32 %v5685, %v5700
        %v5702 = vadd.f32 %v5701, 0.112945676
        %v5703 = vmul.f32 %v5685, %v5702
        %v5704 = vadd.f32 %v5703, 0.4994258
        %v5705 = vmul.f32 %v5685, %v5704
        %v5706 = vadd.f32 %v5705, 1.0
        %v5707 = vrcp.pop %v5706
        %v5708 = vmul.f32 %v5706, %v5707
        %v5709 = vsub.f32 1.0, %v5708
        %v5710 = vmul.f32 %v5707, %v5709
        %v5711 = vadd.f32 %v5707, %v5710
        %vm5712 = vweird.f32 %v5706
        %vm5713 = vweird.f32 %v5707
        %vm5714 = vmor %vm5712, %vm5713
        %v5715 = vsel %vm5714, %v5707, %v5711
        %v5716 = vand.u32 2147483647, %v5706
        %vm5717 = vcmp.eq.f32.partialorder %v5716, 8.507059e+37
        %v5718 = vand.u32 %v5706, 2147483648
        %v5719 = vor.u32 1.1754944e-38, %v5718
        %v5720 = vsel %vm5717, %v5719, %v5715
        %v5721 = vmul.f32 %v5696, %v5720
        %v5722 = vmin.f32 %v5721, 1.0
        %v5723 = vmax.f32 %v5722, -1.0
        %v5724 = vmul.f32 %v5591, %v5591
        %v5725 = vmin.f32 16.0, %v5724
        %v5726 = vmul.f32 %v5725, 2.1237322e-06
        %v5727 = vadd.f32 %v5726, 0.00028619796
        %v5728 = vmul.f32 %v5725, %v5727
        %v5729 = vadd.f32 %v5728, 0.0036580483
        %v5730 = vmul.f32 %v5725, %v5729
        %v5731 = vadd.f32 %v5730, 0.05243302
        %v5732 = vmul.f32 %v5725, %v5731
        %v5733 = vadd.f32 %v5732, 0.18741608
        %v5734 = vmul.f32 %v5725, %v5733
        %v5735 = vadd.f32 %v5734, 1.1283791
        %v5736 = vmul.f32 %v5591, %v5735
        %v5737 = vmul.f32 %v5725, 3.8918573e-05
        %v5738 = vadd.f32 %v5737, 0.001143296
        %v5739 = vmul.f32 %v5725, %v5738
        %v5740 = vadd.f32 %v5739, 0.014752088
        %v5741 = vmul.f32 %v5725, %v5740
        %v5742 = vadd.f32 %v5741, 0.112945676
        %v5743 = vmul.f32 %v5725, %v5742
        %v5744 = vadd.f32 %v5743, 0.4994258
        %v5745 = vmul.f32 %v5725, %v5744
        %v5746 = vadd.f32 %v5745, 1.0
        %v5747 = vrcp.pop %v5746
        %v5748 = vmul.f32 %v5746, %v5747
        %v5749 = vsub.f32 1.0, %v5748
        %v5750 = vmul.f32 %v5747, %v5749
        %v5751 = vadd.f32 %v5747, %v5750
        %vm5752 = vweird.f32 %v5746
        %vm5753 = vweird.f32 %v5747
        %vm5754 = vmor %vm5752, %vm5753
        %v5755 = vsel %vm5754, %v5747, %v5751
        %v5756 = vand.u32 2147483647, %v5746
        %vm5757 = vcmp.eq.f32.partialorder %v5756, 8.507059e+37
        %v5758 = vand.u32 %v5746, 2147483648
        %v5759 = vor.u32 1.1754944e-38, %v5758
        %v5760 = vsel %vm5757, %v5759, %v5755
        %v5761 = vmul.f32 %v5736, %v5760
        %v5762 = vmin.f32 %v5761, 1.0
        %v5763 = vmax.f32 %v5762, -1.0
        %v5764 = vmul.f32 %v5592, %v5592
        %v5765 = vmin.f32 16.0, %v5764
        %v5766 = vmul.f32 %v5765, 2.1237322e-06
        %v5767 = vadd.f32 %v5766, 0.00028619796
        %v5768 = vmul.f32 %v5765, %v5767
        %v5769 = vadd.f32 %v5768, 0.0036580483
        %v5770 = vmul.f32 %v5765, %v5769
        %v5771 = vadd.f32 %v5770, 0.05243302
        %v5772 = vmul.f32 %v5765, %v5771
        %v5773 = vadd.f32 %v5772, 0.18741608
        %v5774 = vmul.f32 %v5765, %v5773
        %v5775 = vadd.f32 %v5774, 1.1283791
        %v5776 = vmul.f32 %v5592, %v5775
        %v5777 = vmul.f32 %v5765, 3.8918573e-05
        %v5778 = vadd.f32 %v5777, 0.001143296
        %v5779 = vmul.f32 %v5765, %v5778
        %v5780 = vadd.f32 %v5779, 0.014752088
        %v5781 = vmul.f32 %v5765, %v5780
        %v5782 = vadd.f32 %v5781, 0.112945676
        %v5783 = vmul.f32 %v5765, %v5782
        %v5784 = vadd.f32 %v5783, 0.4994258
        %v5785 = vmul.f32 %v5765, %v5784
        %v5786 = vadd.f32 %v5785, 1.0
        %v5787 = vrcp.pop %v5786
        %v5788 = vmul.f32 %v5786, %v5787
        %v5789 = vsub.f32 1.0, %v5788
        %v5790 = vmul.f32 %v5787, %v5789
        %v5791 = vadd.f32 %v5787, %v5790
        %vm5792 = vweird.f32 %v5786
        %vm5793 = vweird.f32 %v5787
        %vm5794 = vmor %vm5792, %vm5793
        %v5795 = vsel %vm5794, %v5787, %v5791
        %v5796 = vand.u32 2147483647, %v5786
        %vm5797 = vcmp.eq.f32.partialorder %v5796, 8.507059e+37
        %v5798 = vand.u32 %v5786, 2147483648
        %v5799 = vor.u32 1.1754944e-38, %v5798
        %v5800 = vsel %vm5797, %v5799, %v5795
        %v5801 = vmul.f32 %v5776, %v5800
        %v5802 = vmin.f32 %v5801, 1.0
        %v5803 = vmax.f32 %v5802, -1.0
        %v5804 = vmul.f32 %v5593, %v5593
        %v5805 = vmin.f32 16.0, %v5804
        %v5806 = vmul.f32 %v5805, 2.1237322e-06
        %v5807 = vadd.f32 %v5806, 0.00028619796
        %v5808 = vmul.f32 %v5805, %v5807
        %v5809 = vadd.f32 %v5808, 0.0036580483
        %v5810 = vmul.f32 %v5805, %v5809
        %v5811 = vadd.f32 %v5810, 0.05243302
        %v5812 = vmul.f32 %v5805, %v5811
        %v5813 = vadd.f32 %v5812, 0.18741608
        %v5814 = vmul.f32 %v5805, %v5813
        %v5815 = vadd.f32 %v5814, 1.1283791
        %v5816 = vmul.f32 %v5593, %v5815
        %v5817 = vmul.f32 %v5805, 3.8918573e-05
        %v5818 = vadd.f32 %v5817, 0.001143296
        %v5819 = vmul.f32 %v5805, %v5818
        %v5820 = vadd.f32 %v5819, 0.014752088
        %v5821 = vmul.f32 %v5805, %v5820
        %v5822 = vadd.f32 %v5821, 0.112945676
        %v5823 = vmul.f32 %v5805, %v5822
        %v5824 = vadd.f32 %v5823, 0.4994258
        %v5825 = vmul.f32 %v5805, %v5824
        %v5826 = vadd.f32 %v5825, 1.0
        %v5827 = vrcp.pop %v5826
        %v5828 = vmul.f32 %v5826, %v5827
        %v5829 = vsub.f32 1.0, %v5828
        %v5830 = vmul.f32 %v5827, %v5829
        %v5831 = vadd.f32 %v5827, %v5830
        %vm5832 = vweird.f32 %v5826
        %vm5833 = vweird.f32 %v5827
        %vm5834 = vmor %vm5832, %vm5833
        %v5835 = vsel %vm5834, %v5827, %v5831
        %v5836 = vand.u32 2147483647, %v5826
        %vm5837 = vcmp.eq.f32.partialorder %v5836, 8.507059e+37
        %v5838 = vand.u32 %v5826, 2147483648
        %v5839 = vor.u32 1.1754944e-38, %v5838
        %v5840 = vsel %vm5837, %v5839, %v5835
        %v5841 = vmul.f32 %v5816, %v5840
        %v5842 = vmin.f32 %v5841, 1.0
        %v5843 = vmax.f32 %v5842, -1.0
        %v5844 = vmul.f32 %v5594, %v5594
        %v5845 = vmin.f32 16.0, %v5844
        %v5846 = vmul.f32 %v5845, 2.1237322e-06
        %v5847 = vadd.f32 %v5846, 0.00028619796
        %v5848 = vmul.f32 %v5845, %v5847
        %v5849 = vadd.f32 %v5848, 0.0036580483
        %v5850 = vmul.f32 %v5845, %v5849
        %v5851 = vadd.f32 %v5850, 0.05243302
        %v5852 = vmul.f32 %v5845, %v5851
        %v5853 = vadd.f32 %v5852, 0.18741608
        %v5854 = vmul.f32 %v5845, %v5853
        %v5855 = vadd.f32 %v5854, 1.1283791
        %v5856 = vmul.f32 %v5594, %v5855
        %v5857 = vmul.f32 %v5845, 3.8918573e-05
        %v5858 = vadd.f32 %v5857, 0.001143296
        %v5859 = vmul.f32 %v5845, %v5858
        %v5860 = vadd.f32 %v5859, 0.014752088
        %v5861 = vmul.f32 %v5845, %v5860
        %v5862 = vadd.f32 %v5861, 0.112945676
        %v5863 = vmul.f32 %v5845, %v5862
        %v5864 = vadd.f32 %v5863, 0.4994258
        %v5865 = vmul.f32 %v5845, %v5864
        %v5866 = vadd.f32 %v5865, 1.0
        %v5867 = vrcp.pop %v5866
        %v5868 = vmul.f32 %v5866, %v5867
        %v5869 = vsub.f32 1.0, %v5868
        %v5870 = vmul.f32 %v5867, %v5869
        %v5871 = vadd.f32 %v5867, %v5870
        %vm5872 = vweird.f32 %v5866
        %vm5873 = vweird.f32 %v5867
        %vm5874 = vmor %vm5872, %vm5873
        %v5875 = vsel %vm5874, %v5867, %v5871
        %v5876 = vand.u32 2147483647, %v5866
        %vm5877 = vcmp.eq.f32.partialorder %v5876, 8.507059e+37
        %v5878 = vand.u32 %v5866, 2147483648
        %v5879 = vor.u32 1.1754944e-38, %v5878
        %v5880 = vsel %vm5877, %v5879, %v5875
        %v5881 = vmul.f32 %v5856, %v5880
        %v5882 = vmin.f32 %v5881, 1.0
        %v5883 = vmax.f32 %v5882, -1.0
        %v5884 = vmul.f32 %v5595, %v5595
        %v5885 = vmin.f32 16.0, %v5884
        %v5886 = vmul.f32 %v5885, 2.1237322e-06
        %v5887 = vadd.f32 %v5886, 0.00028619796
        %v5888 = vmul.f32 %v5885, %v5887
        %v5889 = vadd.f32 %v5888, 0.0036580483
        %v5890 = vmul.f32 %v5885, %v5889
        %v5891 = vadd.f32 %v5890, 0.05243302
        %v5892 = vmul.f32 %v5885, %v5891
        %v5893 = vadd.f32 %v5892, 0.18741608
        %v5894 = vmul.f32 %v5885, %v5893
        %v5895 = vadd.f32 %v5894, 1.1283791
        %v5896 = vmul.f32 %v5595, %v5895
        %v5897 = vmul.f32 %v5885, 3.8918573e-05
        %v5898 = vadd.f32 %v5897, 0.001143296
        %v5899 = vmul.f32 %v5885, %v5898
        %v5900 = vadd.f32 %v5899, 0.014752088
        %v5901 = vmul.f32 %v5885, %v5900
        %v5902 = vadd.f32 %v5901, 0.112945676
        %v5903 = vmul.f32 %v5885, %v5902
        %v5904 = vadd.f32 %v5903, 0.4994258
        %v5905 = vmul.f32 %v5885, %v5904
        %v5906 = vadd.f32 %v5905, 1.0
        %v5907 = vrcp.pop %v5906
        %v5908 = vmul.f32 %v5906, %v5907
        %v5909 = vsub.f32 1.0, %v5908
        %v5910 = vmul.f32 %v5907, %v5909
        %v5911 = vadd.f32 %v5907, %v5910
        %vm5912 = vweird.f32 %v5906
        %vm5913 = vweird.f32 %v5907
        %vm5914 = vmor %vm5912, %vm5913
        %v5915 = vsel %vm5914, %v5907, %v5911
        %v5916 = vand.u32 2147483647, %v5906
        %vm5917 = vcmp.eq.f32.partialorder %v5916, 8.507059e+37
        %v5918 = vand.u32 %v5906, 2147483648
        %v5919 = vor.u32 1.1754944e-38, %v5918
        %v5920 = vsel %vm5917, %v5919, %v5915
        %v5921 = vmul.f32 %v5896, %v5920
        %v5922 = vmin.f32 %v5921, 1.0
        %v5923 = vmax.f32 %v5922, -1.0
        %v5924 = vmul.f32 %v5596, %v5596
        %v5925 = vmin.f32 16.0, %v5924
        %v5926 = vmul.f32 %v5925, 2.1237322e-06
        %v5927 = vadd.f32 %v5926, 0.00028619796
        %v5928 = vmul.f32 %v5925, %v5927
        %v5929 = vadd.f32 %v5928, 0.0036580483
        %v5930 = vmul.f32 %v5925, %v5929
        %v5931 = vadd.f32 %v5930, 0.05243302
        %v5932 = vmul.f32 %v5925, %v5931
        %v5933 = vadd.f32 %v5932, 0.18741608
        %v5934 = vmul.f32 %v5925, %v5933
        %v5935 = vadd.f32 %v5934, 1.1283791
        %v5936 = vmul.f32 %v5596, %v5935
        %v5937 = vmul.f32 %v5925, 3.8918573e-05
        %v5938 = vadd.f32 %v5937, 0.001143296
        %v5939 = vmul.f32 %v5925, %v5938
        %v5940 = vadd.f32 %v5939, 0.014752088
        %v5941 = vmul.f32 %v5925, %v5940
        %v5942 = vadd.f32 %v5941, 0.112945676
        %v5943 = vmul.f32 %v5925, %v5942
        %v5944 = vadd.f32 %v5943, 0.4994258
        %v5945 = vmul.f32 %v5925, %v5944
        %v5946 = vadd.f32 %v5945, 1.0
        %v5947 = vrcp.pop %v5946
        %v5948 = vmul.f32 %v5946, %v5947
        %v5949 = vsub.f32 1.0, %v5948
        %v5950 = vmul.f32 %v5947, %v5949
        %v5951 = vadd.f32 %v5947, %v5950
        %vm5952 = vweird.f32 %v5946
        %vm5953 = vweird.f32 %v5947
        %vm5954 = vmor %vm5952, %vm5953
        %v5955 = vsel %vm5954, %v5947, %v5951
        %v5956 = vand.u32 2147483647, %v5946
        %vm5957 = vcmp.eq.f32.partialorder %v5956, 8.507059e+37
        %v5958 = vand.u32 %v5946, 2147483648
        %v5959 = vor.u32 1.1754944e-38, %v5958
        %v5960 = vsel %vm5957, %v5959, %v5955
        %v5961 = vmul.f32 %v5936, %v5960
        %v5962 = vmin.f32 %v5961, 1.0
        %v5963 = vmax.f32 %v5962, -1.0
        %v5964 = vmul.f32 %v5597, %v5597
        %v5965 = vmin.f32 16.0, %v5964
        %v5966 = vmul.f32 %v5965, 2.1237322e-06
        %v5967 = vadd.f32 %v5966, 0.00028619796
        %v5968 = vmul.f32 %v5965, %v5967
        %v5969 = vadd.f32 %v5968, 0.0036580483
        %v5970 = vmul.f32 %v5965, %v5969
        %v5971 = vadd.f32 %v5970, 0.05243302
        %v5972 = vmul.f32 %v5965, %v5971
        %v5973 = vadd.f32 %v5972, 0.18741608
        %v5974 = vmul.f32 %v5965, %v5973
        %v5975 = vadd.f32 %v5974, 1.1283791
        %v5976 = vmul.f32 %v5597, %v5975
        %v5977 = vmul.f32 %v5965, 3.8918573e-05
        %v5978 = vadd.f32 %v5977, 0.001143296
        %v5979 = vmul.f32 %v5965, %v5978
        %v5980 = vadd.f32 %v5979, 0.014752088
        %v5981 = vmul.f32 %v5965, %v5980
        %v5982 = vadd.f32 %v5981, 0.112945676
        %v5983 = vmul.f32 %v5965, %v5982
        %v5984 = vadd.f32 %v5983, 0.4994258
        %v5985 = vmul.f32 %v5965, %v5984
        %v5986 = vadd.f32 %v5985, 1.0
        %v5987 = vrcp.pop %v5986
        %v5988 = vmul.f32 %v5986, %v5987
        %v5989 = vsub.f32 1.0, %v5988
        %v5990 = vmul.f32 %v5987, %v5989
        %v5991 = vadd.f32 %v5987, %v5990
        %vm5992 = vweird.f32 %v5986
        %vm5993 = vweird.f32 %v5987
        %vm5994 = vmor %vm5992, %vm5993
        %v5995 = vsel %vm5994, %v5987, %v5991
        %v5996 = vand.u32 2147483647, %v5986
        %vm5997 = vcmp.eq.f32.partialorder %v5996, 8.507059e+37
        %v5998 = vand.u32 %v5986, 2147483648
        %v5999 = vor.u32 1.1754944e-38, %v5998
        %v6000 = vsel %vm5997, %v5999, %v5995
        %v6001 = vmul.f32 %v5976, %v6000
        %v6002 = vmin.f32 %v6001, 1.0
        %v6003 = vmax.f32 %v6002, -1.0
        %v6004 = vmul.f32 %v5598, %v5598
        %v6005 = vmin.f32 16.0, %v6004
        %v6006 = vmul.f32 %v6005, 2.1237322e-06
        %v6007 = vadd.f32 %v6006, 0.00028619796
        %v6008 = vmul.f32 %v6005, %v6007
        %v6009 = vadd.f32 %v6008, 0.0036580483
        %v6010 = vmul.f32 %v6005, %v6009
        %v6011 = vadd.f32 %v6010, 0.05243302
        %v6012 = vmul.f32 %v6005, %v6011
        %v6013 = vadd.f32 %v6012, 0.18741608
        %v6014 = vmul.f32 %v6005, %v6013
        %v6015 = vadd.f32 %v6014, 1.1283791
        %v6016 = vmul.f32 %v5598, %v6015
        %v6017 = vmul.f32 %v6005, 3.8918573e-05
        %v6018 = vadd.f32 %v6017, 0.001143296
        %v6019 = vmul.f32 %v6005, %v6018
        %v6020 = vadd.f32 %v6019, 0.014752088
        %v6021 = vmul.f32 %v6005, %v6020
        %v6022 = vadd.f32 %v6021, 0.112945676
        %v6023 = vmul.f32 %v6005, %v6022
        %v6024 = vadd.f32 %v6023, 0.4994258
        %v6025 = vmul.f32 %v6005, %v6024
        %v6026 = vadd.f32 %v6025, 1.0
        %v6027 = vrcp.pop %v6026
        %v6028 = vmul.f32 %v6026, %v6027
        %v6029 = vsub.f32 1.0, %v6028
        %v6030 = vmul.f32 %v6027, %v6029
        %v6031 = vadd.f32 %v6027, %v6030
        %vm6032 = vweird.f32 %v6026
        %vm6033 = vweird.f32 %v6027
        %vm6034 = vmor %vm6032, %vm6033
        %v6035 = vsel %vm6034, %v6027, %v6031
        %v6036 = vand.u32 2147483647, %v6026
        %vm6037 = vcmp.eq.f32.partialorder %v6036, 8.507059e+37
        %v6038 = vand.u32 %v6026, 2147483648
        %v6039 = vor.u32 1.1754944e-38, %v6038
        %v6040 = vsel %vm6037, %v6039, %v6035
        %v6041 = vmul.f32 %v6016, %v6040
        %v6042 = vmin.f32 %v6041, 1.0
        %v6043 = vmax.f32 %v6042, -1.0
        %v6044 = vmul.f32 %v5599, %v5599
        %v6045 = vmin.f32 16.0, %v6044
        %v6046 = vmul.f32 %v6045, 2.1237322e-06
        %v6047 = vadd.f32 %v6046, 0.00028619796
        %v6048 = vmul.f32 %v6045, %v6047
        %v6049 = vadd.f32 %v6048, 0.0036580483
        %v6050 = vmul.f32 %v6045, %v6049
        %v6051 = vadd.f32 %v6050, 0.05243302
        %v6052 = vmul.f32 %v6045, %v6051
        %v6053 = vadd.f32 %v6052, 0.18741608
        %v6054 = vmul.f32 %v6045, %v6053
        %v6055 = vadd.f32 %v6054, 1.1283791
        %v6056 = vmul.f32 %v5599, %v6055
        %v6057 = vmul.f32 %v6045, 3.8918573e-05
        %v6058 = vadd.f32 %v6057, 0.001143296
        %v6059 = vmul.f32 %v6045, %v6058
        %v6060 = vadd.f32 %v6059, 0.014752088
        %v6061 = vmul.f32 %v6045, %v6060
        %v6062 = vadd.f32 %v6061, 0.112945676
        %v6063 = vmul.f32 %v6045, %v6062
        %v6064 = vadd.f32 %v6063, 0.4994258
        %v6065 = vmul.f32 %v6045, %v6064
        %v6066 = vadd.f32 %v6065, 1.0
        %v6067 = vrcp.pop %v6066
        %v6068 = vmul.f32 %v6066, %v6067
        %v6069 = vsub.f32 1.0, %v6068
        %v6070 = vmul.f32 %v6067, %v6069
        %v6071 = vadd.f32 %v6067, %v6070
        %vm6072 = vweird.f32 %v6066
        %vm6073 = vweird.f32 %v6067
        %vm6074 = vmor %vm6072, %vm6073
        %v6075 = vsel %vm6074, %v6067, %v6071
        %v6076 = vand.u32 2147483647, %v6066
        %vm6077 = vcmp.eq.f32.partialorder %v6076, 8.507059e+37
        %v6078 = vand.u32 %v6066, 2147483648
        %v6079 = vor.u32 1.1754944e-38, %v6078
        %v6080 = vsel %vm6077, %v6079, %v6075
        %v6081 = vmul.f32 %v6056, %v6080
        %v6082 = vmin.f32 %v6081, 1.0
        %v6083 = vmax.f32 %v6082, -1.0
        %v6084 = vmul.f32 %v5600, %v5600
        %v6085 = vmin.f32 16.0, %v6084
        %v6086 = vmul.f32 %v6085, 2.1237322e-06
        %v6087 = vadd.f32 %v6086, 0.00028619796
        %v6088 = vmul.f32 %v6085, %v6087
        %v6089 = vadd.f32 %v6088, 0.0036580483
        %v6090 = vmul.f32 %v6085, %v6089
        %v6091 = vadd.f32 %v6090, 0.05243302
        %v6092 = vmul.f32 %v6085, %v6091
        %v6093 = vadd.f32 %v6092, 0.18741608
        %v6094 = vmul.f32 %v6085, %v6093
        %v6095 = vadd.f32 %v6094, 1.1283791
        %v6096 = vmul.f32 %v5600, %v6095
        %v6097 = vmul.f32 %v6085, 3.8918573e-05
        %v6098 = vadd.f32 %v6097, 0.001143296
        %v6099 = vmul.f32 %v6085, %v6098
        %v6100 = vadd.f32 %v6099, 0.014752088
        %v6101 = vmul.f32 %v6085, %v6100
        %v6102 = vadd.f32 %v6101, 0.112945676
        %v6103 = vmul.f32 %v6085, %v6102
        %v6104 = vadd.f32 %v6103, 0.4994258
        %v6105 = vmul.f32 %v6085, %v6104
        %v6106 = vadd.f32 %v6105, 1.0
        %v6107 = vrcp.pop %v6106
        %v6108 = vmul.f32 %v6106, %v6107
        %v6109 = vsub.f32 1.0, %v6108
        %v6110 = vmul.f32 %v6107, %v6109
        %v6111 = vadd.f32 %v6107, %v6110
        %vm6112 = vweird.f32 %v6106
        %vm6113 = vweird.f32 %v6107
        %vm6114 = vmor %vm6112, %vm6113
        %v6115 = vsel %vm6114, %v6107, %v6111
        %v6116 = vand.u32 2147483647, %v6106
        %vm6117 = vcmp.eq.f32.partialorder %v6116, 8.507059e+37
        %v6118 = vand.u32 %v6106, 2147483648
        %v6119 = vor.u32 1.1754944e-38, %v6118
        %v6120 = vsel %vm6117, %v6119, %v6115
        %v6121 = vmul.f32 %v6096, %v6120
        %v6122 = vmin.f32 %v6121, 1.0
        %v6123 = vmax.f32 %v6122, -1.0
        %v6124 = vmul.f32 %v5601, %v5601
        %v6125 = vmin.f32 16.0, %v6124
        %v6126 = vmul.f32 %v6125, 2.1237322e-06
        %v6127 = vadd.f32 %v6126, 0.00028619796
        %v6128 = vmul.f32 %v6125, %v6127
        %v6129 = vadd.f32 %v6128, 0.0036580483
        %v6130 = vmul.f32 %v6125, %v6129
        %v6131 = vadd.f32 %v6130, 0.05243302
        %v6132 = vmul.f32 %v6125, %v6131
        %v6133 = vadd.f32 %v6132, 0.18741608
        %v6134 = vmul.f32 %v6125, %v6133
        %v6135 = vadd.f32 %v6134, 1.1283791
        %v6136 = vmul.f32 %v5601, %v6135
        %v6137 = vmul.f32 %v6125, 3.8918573e-05
        %v6138 = vadd.f32 %v6137, 0.001143296
        %v6139 = vmul.f32 %v6125, %v6138
        %v6140 = vadd.f32 %v6139, 0.014752088
        %v6141 = vmul.f32 %v6125, %v6140
        %v6142 = vadd.f32 %v6141, 0.112945676
        %v6143 = vmul.f32 %v6125, %v6142
        %v6144 = vadd.f32 %v6143, 0.4994258
        %v6145 = vmul.f32 %v6125, %v6144
        %v6146 = vadd.f32 %v6145, 1.0
        %v6147 = vrcp.pop %v6146
        %v6148 = vmul.f32 %v6146, %v6147
        %v6149 = vsub.f32 1.0, %v6148
        %v6150 = vmul.f32 %v6147, %v6149
        %v6151 = vadd.f32 %v6147, %v6150
        %vm6152 = vweird.f32 %v6146
        %vm6153 = vweird.f32 %v6147
        %vm6154 = vmor %vm6152, %vm6153
        %v6155 = vsel %vm6154, %v6147, %v6151
        %v6156 = vand.u32 2147483647, %v6146
        %vm6157 = vcmp.eq.f32.partialorder %v6156, 8.507059e+37
        %v6158 = vand.u32 %v6146, 2147483648
        %v6159 = vor.u32 1.1754944e-38, %v6158
        %v6160 = vsel %vm6157, %v6159, %v6155
        %v6161 = vmul.f32 %v6136, %v6160
        %v6162 = vmin.f32 %v6161, 1.0
        %v6163 = vmax.f32 %v6162, -1.0
        %v6164 = vmul.f32 %v5602, %v5602
        %v6165 = vmin.f32 16.0, %v6164
        %v6166 = vmul.f32 %v6165, 2.1237322e-06
        %v6167 = vadd.f32 %v6166, 0.00028619796
        %v6168 = vmul.f32 %v6165, %v6167
        %v6169 = vadd.f32 %v6168, 0.0036580483
        %v6170 = vmul.f32 %v6165, %v6169
        %v6171 = vadd.f32 %v6170, 0.05243302
        %v6172 = vmul.f32 %v6165, %v6171
        %v6173 = vadd.f32 %v6172, 0.18741608
        %v6174 = vmul.f32 %v6165, %v6173
        %v6175 = vadd.f32 %v6174, 1.1283791
        %v6176 = vmul.f32 %v5602, %v6175
        %v6177 = vmul.f32 %v6165, 3.8918573e-05
        %v6178 = vadd.f32 %v6177, 0.001143296
        %v6179 = vmul.f32 %v6165, %v6178
        %v6180 = vadd.f32 %v6179, 0.014752088
        %v6181 = vmul.f32 %v6165, %v6180
        %v6182 = vadd.f32 %v6181, 0.112945676
        %v6183 = vmul.f32 %v6165, %v6182
        %v6184 = vadd.f32 %v6183, 0.4994258
        %v6185 = vmul.f32 %v6165, %v6184
        %v6186 = vadd.f32 %v6185, 1.0
        %v6187 = vrcp.pop %v6186
        %v6188 = vmul.f32 %v6186, %v6187
        %v6189 = vsub.f32 1.0, %v6188
        %v6190 = vmul.f32 %v6187, %v6189
        %v6191 = vadd.f32 %v6187, %v6190
        %vm6192 = vweird.f32 %v6186
        %vm6193 = vweird.f32 %v6187
        %vm6194 = vmor %vm6192, %vm6193
        %v6195 = vsel %vm6194, %v6187, %v6191
        %v6196 = vand.u32 2147483647, %v6186
        %vm6197 = vcmp.eq.f32.partialorder %v6196, 8.507059e+37
        %v6198 = vand.u32 %v6186, 2147483648
        %v6199 = vor.u32 1.1754944e-38, %v6198
        %v6200 = vsel %vm6197, %v6199, %v6195
        %v6201 = vmul.f32 %v6176, %v6200
        %v6202 = vmin.f32 %v6201, 1.0
        %v6203 = vmax.f32 %v6202, -1.0
        %v6204 = vmul.f32 %v5603, %v5603
        %v6205 = vmin.f32 16.0, %v6204
        %v6206 = vmul.f32 %v6205, 2.1237322e-06
        %v6207 = vadd.f32 %v6206, 0.00028619796
        %v6208 = vmul.f32 %v6205, %v6207
        %v6209 = vadd.f32 %v6208, 0.0036580483
        %v6210 = vmul.f32 %v6205, %v6209
        %v6211 = vadd.f32 %v6210, 0.05243302
        %v6212 = vmul.f32 %v6205, %v6211
        %v6213 = vadd.f32 %v6212, 0.18741608
        %v6214 = vmul.f32 %v6205, %v6213
        %v6215 = vadd.f32 %v6214, 1.1283791
        %v6216 = vmul.f32 %v5603, %v6215
        %v6217 = vmul.f32 %v6205, 3.8918573e-05
        %v6218 = vadd.f32 %v6217, 0.001143296
        %v6219 = vmul.f32 %v6205, %v6218
        %v6220 = vadd.f32 %v6219, 0.014752088
        %v6221 = vmul.f32 %v6205, %v6220
        %v6222 = vadd.f32 %v6221, 0.112945676
        %v6223 = vmul.f32 %v6205, %v6222
        %v6224 = vadd.f32 %v6223, 0.4994258
        %v6225 = vmul.f32 %v6205, %v6224
        %v6226 = vadd.f32 %v6225, 1.0
        %v6227 = vrcp.pop %v6226
        %v6228 = vmul.f32 %v6226, %v6227
        %v6229 = vsub.f32 1.0, %v6228
        %v6230 = vmul.f32 %v6227, %v6229
        %v6231 = vadd.f32 %v6227, %v6230
        %vm6232 = vweird.f32 %v6226
        %vm6233 = vweird.f32 %v6227
        %vm6234 = vmor %vm6232, %vm6233
        %v6235 = vsel %vm6234, %v6227, %v6231
        %v6236 = vand.u32 2147483647, %v6226
        %vm6237 = vcmp.eq.f32.partialorder %v6236, 8.507059e+37
        %v6238 = vand.u32 %v6226, 2147483648
        %v6239 = vor.u32 1.1754944e-38, %v6238
        %v6240 = vsel %vm6237, %v6239, %v6235
        %v6241 = vmul.f32 %v6216, %v6240
        %v6242 = vmin.f32 %v6241, 1.0
        %v6243 = vmax.f32 %v6242, -1.0
        %v6244 = vadd.f32 %v5643, 1.0
        %v6245 = vadd.f32 %v5683, 1.0
        %v6246 = vadd.f32 %v5723, 1.0
        %v6247 = vadd.f32 %v5763, 1.0
        %v6248 = vadd.f32 %v5803, 1.0
        %v6249 = vadd.f32 %v5843, 1.0
        %v6250 = vadd.f32 %v5883, 1.0
        %v6251 = vadd.f32 %v5923, 1.0
        %v6252 = vadd.f32 %v5963, 1.0
        %v6253 = vadd.f32 %v6003, 1.0
        %v6254 = vadd.f32 %v6043, 1.0
        %v6255 = vadd.f32 %v6083, 1.0
        %v6256 = vadd.f32 %v6123, 1.0
        %v6257 = vadd.f32 %v6163, 1.0
        %v6258 = vadd.f32 %v6203, 1.0
        %v6259 = vadd.f32 %v6243, 1.0
        %v6260 = vmul.f32 %v5572, %v6244
        %v6261 = vmul.f32 %v5573, %v6245
        %v6262 = vmul.f32 %v5574, %v6246
        %v6263 = vmul.f32 %v5575, %v6247
        %v6264 = vmul.f32 %v5576, %v6248
        %v6265 = vmul.f32 %v5577, %v6249
        %v6266 = vmul.f32 %v5578, %v6250
        %v6267 = vmul.f32 %v5579, %v6251
        %v6268 = vmul.f32 %v5580, %v6252
        %v6269 = vmul.f32 %v5581, %v6253
        %v6270 = vmul.f32 %v5582, %v6254
        %v6271 = vmul.f32 %v5583, %v6255
        %v6272 = vmul.f32 %v5584, %v6256
        %v6273 = vmul.f32 %v5585, %v6257
        %v6274 = vmul.f32 %v5586, %v6258
        %v6275 = vmul.f32 %v5587, %v6259
        %v6276 = vpack.c.bf16 %v6261, %v6260
        %v6277 = vpack.c.bf16 %v6263, %v6262
        %v6278 = vpack.c.bf16 %v6265, %v6264
        %v6279 = vpack.c.bf16 %v6267, %v6266
        %v6280 = vpack.c.bf16 %v6269, %v6268
        %v6281 = vpack.c.bf16 %v6271, %v6270
        %v6282 = vpack.c.bf16 %v6273, %v6272
        %v6283 = vpack.c.bf16 %v6275, %v6274
        %v6284 = vld [vmem:[%s4] sm:$0xf]
        %v6285 = vld [vmem:[%s4 + $0x4] sm:$0xf]
        %v6286 = vld [vmem:[%s4 + $0x8] sm:$0xf]
        %v6287 = vld [vmem:[%s4 + $0xc] sm:$0xf]
        %v6288 = vld [vmem:[%s4 + $0x10] sm:$0xf]
        %v6289 = vld [vmem:[%s4 + $0x14] sm:$0xf]
        %v6290 = vld [vmem:[%s4 + $0x18] sm:$0xf]
        %v6291 = vld [vmem:[%s4 + $0x1c] sm:$0xf]
        %v6292 = vld [vmem:[%s4 + $0x20] sm:$0xf]
        %v6293 = vld [vmem:[%s4 + $0x24] sm:$0xf]
        %v6294 = vld [vmem:[%s4 + $0x28] sm:$0xf]
        %v6295 = vld [vmem:[%s4 + $0x2c] sm:$0xf]
        %v6296 = vld [vmem:[%s4 + $0x30] sm:$0xf]
        %v6297 = vld [vmem:[%s4 + $0x34] sm:$0xf]
        %v6298 = vld [vmem:[%s4 + $0x38] sm:$0xf]
        %v6299 = vld [vmem:[%s4 + $0x3c] sm:$0xf]
        %v6316 = vunpack.c.l.b16 %v6284
        %v6317 = vunpack.c.l.b16 %v6285
        %v6318 = vunpack.c.l.b16 %v6286
        %v6319 = vunpack.c.l.b16 %v6287
        %v6320 = vunpack.c.l.b16 %v6288
        %v6321 = vunpack.c.l.b16 %v6289
        %v6322 = vunpack.c.l.b16 %v6290
        %v6323 = vunpack.c.l.b16 %v6291
        %v6324 = vunpack.c.l.b16 %v6292
        %v6325 = vunpack.c.l.b16 %v6293
        %v6326 = vunpack.c.l.b16 %v6294
        %v6327 = vunpack.c.l.b16 %v6295
        %v6328 = vunpack.c.l.b16 %v6296
        %v6329 = vunpack.c.l.b16 %v6297
        %v6330 = vunpack.c.l.b16 %v6298
        %v6331 = vunpack.c.l.b16 %v6299
        %v6332 = vpack.c.b16 %v6317, %v6316
        %v6333 = vpack.c.b16 %v6319, %v6318
        %v6334 = vpack.c.b16 %v6321, %v6320
        %v6335 = vpack.c.b16 %v6323, %v6322
        %v6336 = vpack.c.b16 %v6325, %v6324
        %v6337 = vpack.c.b16 %v6327, %v6326
        %v6338 = vpack.c.b16 %v6329, %v6328
        %v6339 = vpack.c.b16 %v6331, %v6330
        %6348 = vmatpush.bf16.msra.mxu0 %v6339
        %6349 = vmatpush.bf16.msra.mxu0 %v6338
        %6350 = vmatpush.bf16.msra.mxu0 %v6337
        %6351 = vmatpush.bf16.msra.mxu0 %v6336
        %6352 = vmatpush.bf16.msra.mxu0 %v6335
        %6353 = vmatpush.bf16.msra.mxu0 %v6334
        %6354 = vmatpush.bf16.msra.mxu0 %v6333
        %6355 = vmatpush.bf16.msra.mxu0 %v6332
        %6356 = vmatmul.bf16.gmra.mxu0 %v6276
        %v6357 = vpop.f32.mrf.mxu0
        %v6358 = vadd.f32 0.0, %v6357
        %v6359 = vpop.f32.mrf.mxu0
        %v6360 = vadd.f32 0.0, %v6359
        %6361 = vmatmul.bf16.gmra.mxu0 %v6277
        %v6362 = vpop.f32.mrf.mxu0
        %v6363 = vadd.f32 0.0, %v6362
        %v6364 = vpop.f32.mrf.mxu0
        %v6365 = vadd.f32 0.0, %v6364
        %6366 = vmatmul.bf16.gmra.mxu0 %v6278
        %v6367 = vpop.f32.mrf.mxu0
        %v6368 = vadd.f32 0.0, %v6367
        %v6369 = vpop.f32.mrf.mxu0
        %v6370 = vadd.f32 0.0, %v6369
        %6371 = vmatmul.bf16.gmra.mxu0 %v6279
        %v6372 = vpop.f32.mrf.mxu0
        %v6373 = vadd.f32 0.0, %v6372
        %v6374 = vpop.f32.mrf.mxu0
        %v6375 = vadd.f32 0.0, %v6374
        %6376 = vmatmul.bf16.gmra.mxu0 %v6280
        %v6377 = vpop.f32.mrf.mxu0
        %v6378 = vadd.f32 0.0, %v6377
        %v6379 = vpop.f32.mrf.mxu0
        %v6380 = vadd.f32 0.0, %v6379
        %6381 = vmatmul.bf16.gmra.mxu0 %v6281
        %v6382 = vpop.f32.mrf.mxu0
        %v6383 = vadd.f32 0.0, %v6382
        %v6384 = vpop.f32.mrf.mxu0
        %v6385 = vadd.f32 0.0, %v6384
        %6386 = vmatmul.bf16.gmra.mxu0 %v6282
        %v6387 = vpop.f32.mrf.mxu0
        %v6388 = vadd.f32 0.0, %v6387
        %v6389 = vpop.f32.mrf.mxu0
        %v6390 = vadd.f32 0.0, %v6389
        %6391 = vmatmul.bf16.gmra.mxu0 %v6283
        %v6392 = vpop.f32.mrf.mxu0
        %v6393 = vadd.f32 0.0, %v6392
        %v6394 = vpop.f32.mrf.mxu0
        %v6395 = vadd.f32 0.0, %v6394
        %6396 = vdwg.mxu0
        %v6397 = vld [vmem:[%s245] sm:$0xff]
        %v6398 = vld [vmem:[%s245 + $0x8] sm:$0xff]
        %v6399 = vld [vmem:[%s245 + $0x10] sm:$0xff]
        %v6400 = vld [vmem:[%s245 + $0x18] sm:$0xff]
        %v6401 = vld [vmem:[%s245 + $0x20] sm:$0xff]
        %v6402 = vld [vmem:[%s245 + $0x28] sm:$0xff]
        %v6403 = vld [vmem:[%s245 + $0x30] sm:$0xff]
        %v6404 = vld [vmem:[%s245 + $0x38] sm:$0xff]
        %v6405 = vld [vmem:[%s245 + $0x40] sm:$0xff]
        %v6406 = vld [vmem:[%s245 + $0x48] sm:$0xff]
        %v6407 = vld [vmem:[%s245 + $0x50] sm:$0xff]
        %v6408 = vld [vmem:[%s245 + $0x58] sm:$0xff]
        %v6409 = vld [vmem:[%s245 + $0x60] sm:$0xff]
        %v6410 = vld [vmem:[%s245 + $0x68] sm:$0xff]
        %v6411 = vld [vmem:[%s245 + $0x70] sm:$0xff]
        %v6412 = vld [vmem:[%s245 + $0x78] sm:$0xff]
        %v6413 = vld [vmem:[%s2 + $0x7] sm:$0x1]
        %6415 = vset.pattern.permute.xlu0 0
        %6416 = vperm.xlu0 %6415, %v6397
        %v6417 = vpop.permute.xlu0 %6416
        %6420 = vset.pattern.permute.xlu0 0
        %6421 = vperm.xlu0 %6420, %v6398
        %v6422 = vpop.permute.xlu0 %6421
        %6425 = vset.pattern.permute.xlu0 0
        %6426 = vperm.xlu0 %6425, %v6399
        %v6427 = vpop.permute.xlu0 %6426
        %6430 = vset.pattern.permute.xlu0 0
        %6431 = vperm.xlu0 %6430, %v6400
        %v6432 = vpop.permute.xlu0 %6431
        %6435 = vset.pattern.permute.xlu0 0
        %6436 = vperm.xlu0 %6435, %v6401
        %v6437 = vpop.permute.xlu0 %6436
        %6440 = vset.pattern.permute.xlu0 0
        %6441 = vperm.xlu0 %6440, %v6402
        %v6442 = vpop.permute.xlu0 %6441
        %6445 = vset.pattern.permute.xlu0 0
        %6446 = vperm.xlu0 %6445, %v6403
        %v6447 = vpop.permute.xlu0 %6446
        %6450 = vset.pattern.permute.xlu0 0
        %6451 = vperm.xlu0 %6450, %v6404
        %v6452 = vpop.permute.xlu0 %6451
        %6455 = vset.pattern.permute.xlu0 0
        %6456 = vperm.xlu0 %6455, %v6405
        %v6457 = vpop.permute.xlu0 %6456
        %6460 = vset.pattern.permute.xlu0 0
        %6461 = vperm.xlu0 %6460, %v6406
        %v6462 = vpop.permute.xlu0 %6461
        %6465 = vset.pattern.permute.xlu0 0
        %6466 = vperm.xlu0 %6465, %v6407
        %v6467 = vpop.permute.xlu0 %6466
        %6470 = vset.pattern.permute.xlu0 0
        %6471 = vperm.xlu0 %6470, %v6408
        %v6472 = vpop.permute.xlu0 %6471
        %6475 = vset.pattern.permute.xlu0 0
        %6476 = vperm.xlu0 %6475, %v6409
        %v6477 = vpop.permute.xlu0 %6476
        %6480 = vset.pattern.permute.xlu0 0
        %6481 = vperm.xlu0 %6480, %v6410
        %v6482 = vpop.permute.xlu0 %6481
        %6485 = vset.pattern.permute.xlu0 0
        %6486 = vperm.xlu0 %6485, %v6411
        %v6487 = vpop.permute.xlu0 %6486
        %6490 = vset.pattern.permute.xlu0 0
        %6491 = vperm.xlu0 %6490, %v6412
        %v6492 = vpop.permute.xlu0 %6491
        %v6494 = vperm.slane %v6413, 0
        %v6495 = vmul.f32 %v6417, %v6494
        %v6496 = vmul.f32 %v6422, %v6494
        %v6497 = vmul.f32 %v6427, %v6494
        %v6498 = vmul.f32 %v6432, %v6494
        %v6499 = vmul.f32 %v6437, %v6494
        %v6500 = vmul.f32 %v6442, %v6494
        %v6501 = vmul.f32 %v6447, %v6494
        %v6502 = vmul.f32 %v6452, %v6494
        %v6503 = vmul.f32 %v6457, %v6494
        %v6504 = vmul.f32 %v6462, %v6494
        %v6505 = vmul.f32 %v6467, %v6494
        %v6506 = vmul.f32 %v6472, %v6494
        %v6507 = vmul.f32 %v6477, %v6494
        %v6508 = vmul.f32 %v6482, %v6494
        %v6509 = vmul.f32 %v6487, %v6494
        %v6510 = vmul.f32 %v6492, %v6494
        %v6511 = vld [vmem:[%s2 + $0x8] sm:$0x1]
        %6512 = vset.pattern.permute.xlu0 1
        %6513 = vperm.xlu0 %6512, %v6397
        %v6514 = vpop.permute.xlu0 %6513
        %6516 = vset.pattern.permute.xlu0 1
        %6517 = vperm.xlu0 %6516, %v6398
        %v6518 = vpop.permute.xlu0 %6517
        %6520 = vset.pattern.permute.xlu0 1
        %6521 = vperm.xlu0 %6520, %v6399
        %v6522 = vpop.permute.xlu0 %6521
        %6524 = vset.pattern.permute.xlu0 1
        %6525 = vperm.xlu0 %6524, %v6400
        %v6526 = vpop.permute.xlu0 %6525
        %6528 = vset.pattern.permute.xlu0 1
        %6529 = vperm.xlu0 %6528, %v6401
        %v6530 = vpop.permute.xlu0 %6529
        %6532 = vset.pattern.permute.xlu0 1
        %6533 = vperm.xlu0 %6532, %v6402
        %v6534 = vpop.permute.xlu0 %6533
        %6536 = vset.pattern.permute.xlu0 1
        %6537 = vperm.xlu0 %6536, %v6403
        %v6538 = vpop.permute.xlu0 %6537
        %6540 = vset.pattern.permute.xlu0 1
        %6541 = vperm.xlu0 %6540, %v6404
        %v6542 = vpop.permute.xlu0 %6541
        %6544 = vset.pattern.permute.xlu0 1
        %6545 = vperm.xlu0 %6544, %v6405
        %v6546 = vpop.permute.xlu0 %6545
        %6548 = vset.pattern.permute.xlu0 1
        %6549 = vperm.xlu0 %6548, %v6406
        %v6550 = vpop.permute.xlu0 %6549
        %6552 = vset.pattern.permute.xlu0 1
        %6553 = vperm.xlu0 %6552, %v6407
        %v6554 = vpop.permute.xlu0 %6553
        %6556 = vset.pattern.permute.xlu0 1
        %6557 = vperm.xlu0 %6556, %v6408
        %v6558 = vpop.permute.xlu0 %6557
        %6560 = vset.pattern.permute.xlu0 1
        %6561 = vperm.xlu0 %6560, %v6409
        %v6562 = vpop.permute.xlu0 %6561
        %6564 = vset.pattern.permute.xlu0 1
        %6565 = vperm.xlu0 %6564, %v6410
        %v6566 = vpop.permute.xlu0 %6565
        %6568 = vset.pattern.permute.xlu0 1
        %6569 = vperm.xlu0 %6568, %v6411
        %v6570 = vpop.permute.xlu0 %6569
        %6572 = vset.pattern.permute.xlu0 1
        %6573 = vperm.xlu0 %6572, %v6412
        %v6574 = vpop.permute.xlu0 %6573
        %v6576 = vperm.slane %v6511, 0
        %v6577 = vmul.f32 %v6514, %v6576
        %v6578 = vmul.f32 %v6518, %v6576
        %v6579 = vmul.f32 %v6522, %v6576
        %v6580 = vmul.f32 %v6526, %v6576
        %v6581 = vmul.f32 %v6530, %v6576
        %v6582 = vmul.f32 %v6534, %v6576
        %v6583 = vmul.f32 %v6538, %v6576
        %v6584 = vmul.f32 %v6542, %v6576
        %v6585 = vmul.f32 %v6546, %v6576
        %v6586 = vmul.f32 %v6550, %v6576
        %v6587 = vmul.f32 %v6554, %v6576
        %v6588 = vmul.f32 %v6558, %v6576
        %v6589 = vmul.f32 %v6562, %v6576
        %v6590 = vmul.f32 %v6566, %v6576
        %v6591 = vmul.f32 %v6570, %v6576
        %v6592 = vmul.f32 %v6574, %v6576
        %v6593 = vadd.f32 %v6495, %v6577
        %v6594 = vadd.f32 %v6496, %v6578
        %v6595 = vadd.f32 %v6497, %v6579
        %v6596 = vadd.f32 %v6498, %v6580
        %v6597 = vadd.f32 %v6499, %v6581
        %v6598 = vadd.f32 %v6500, %v6582
        %v6599 = vadd.f32 %v6501, %v6583
        %v6600 = vadd.f32 %v6502, %v6584
        %v6601 = vadd.f32 %v6503, %v6585
        %v6602 = vadd.f32 %v6504, %v6586
        %v6603 = vadd.f32 %v6505, %v6587
        %v6604 = vadd.f32 %v6506, %v6588
        %v6605 = vadd.f32 %v6507, %v6589
        %v6606 = vadd.f32 %v6508, %v6590
        %v6607 = vadd.f32 %v6509, %v6591
        %v6608 = vadd.f32 %v6510, %v6592
        %v6609 = vadd.f32 %v6593, %v6358
        %v6610 = vadd.f32 %v6594, %v6360
        %v6611 = vadd.f32 %v6595, %v6363
        %v6612 = vadd.f32 %v6596, %v6365
        %v6613 = vadd.f32 %v6597, %v6368
        %v6614 = vadd.f32 %v6598, %v6370
        %v6615 = vadd.f32 %v6599, %v6373
        %v6616 = vadd.f32 %v6600, %v6375
        %v6617 = vadd.f32 %v6601, %v6378
        %v6618 = vadd.f32 %v6602, %v6380
        %v6619 = vadd.f32 %v6603, %v6383
        %v6620 = vadd.f32 %v6604, %v6385
        %v6621 = vadd.f32 %v6605, %v6388
        %v6622 = vadd.f32 %v6606, %v6390
        %v6623 = vadd.f32 %v6607, %v6393
        %v6624 = vadd.f32 %v6608, %v6395
        %v6625 = vperm.slane %v251, 0
        %v6626 = vadd.f32 %v6609, %v6625
        %v6627 = vadd.f32 %v6610, %v6625
        %v6628 = vadd.f32 %v6611, %v6625
        %v6629 = vadd.f32 %v6612, %v6625
        %v6630 = vadd.f32 %v6613, %v6625
        %v6631 = vadd.f32 %v6614, %v6625
        %v6632 = vadd.f32 %v6615, %v6625
        %v6633 = vadd.f32 %v6616, %v6625
        %v6634 = vadd.f32 %v6617, %v6625
        %v6635 = vadd.f32 %v6618, %v6625
        %v6636 = vadd.f32 %v6619, %v6625
        %v6637 = vadd.f32 %v6620, %v6625
        %v6638 = vadd.f32 %v6621, %v6625
        %v6639 = vadd.f32 %v6622, %v6625
        %v6640 = vadd.f32 %v6623, %v6625
        %v6641 = vadd.f32 %v6624, %v6625
        %v6642 = vmul.f32 %v6626, 0.5
        %v6643 = vmul.f32 %v6627, 0.5
        %v6644 = vmul.f32 %v6628, 0.5
        %v6645 = vmul.f32 %v6629, 0.5
        %v6646 = vmul.f32 %v6630, 0.5
        %v6647 = vmul.f32 %v6631, 0.5
        %v6648 = vmul.f32 %v6632, 0.5
        %v6649 = vmul.f32 %v6633, 0.5
        %v6650 = vmul.f32 %v6634, 0.5
        %v6651 = vmul.f32 %v6635, 0.5
        %v6652 = vmul.f32 %v6636, 0.5
        %v6653 = vmul.f32 %v6637, 0.5
        %v6654 = vmul.f32 %v6638, 0.5
        %v6655 = vmul.f32 %v6639, 0.5
        %v6656 = vmul.f32 %v6640, 0.5
        %v6657 = vmul.f32 %v6641, 0.5
        %v6658 = vmul.f32 %v6626, 0.70710677
        %v6659 = vmul.f32 %v6627, 0.70710677
        %v6660 = vmul.f32 %v6628, 0.70710677
        %v6661 = vmul.f32 %v6629, 0.70710677
        %v6662 = vmul.f32 %v6630, 0.70710677
        %v6663 = vmul.f32 %v6631, 0.70710677
        %v6664 = vmul.f32 %v6632, 0.70710677
        %v6665 = vmul.f32 %v6633, 0.70710677
        %v6666 = vmul.f32 %v6634, 0.70710677
        %v6667 = vmul.f32 %v6635, 0.70710677
        %v6668 = vmul.f32 %v6636, 0.70710677
        %v6669 = vmul.f32 %v6637, 0.70710677
        %v6670 = vmul.f32 %v6638, 0.70710677
        %v6671 = vmul.f32 %v6639, 0.70710677
        %v6672 = vmul.f32 %v6640, 0.70710677
        %v6673 = vmul.f32 %v6641, 0.70710677
        %v6674 = vmul.f32 %v6658, %v6658
        %v6675 = vmin.f32 16.0, %v6674
        %v6676 = vmul.f32 %v6675, 2.1237322e-06
        %v6677 = vadd.f32 %v6676, 0.00028619796
        %v6678 = vmul.f32 %v6675, %v6677
        %v6679 = vadd.f32 %v6678, 0.0036580483
        %v6680 = vmul.f32 %v6675, %v6679
        %v6681 = vadd.f32 %v6680, 0.05243302
        %v6682 = vmul.f32 %v6675, %v6681
        %v6683 = vadd.f32 %v6682, 0.18741608
        %v6684 = vmul.f32 %v6675, %v6683
        %v6685 = vadd.f32 %v6684, 1.1283791
        %v6686 = vmul.f32 %v6658, %v6685
        %v6687 = vmul.f32 %v6675, 3.8918573e-05
        %v6688 = vadd.f32 %v6687, 0.001143296
        %v6689 = vmul.f32 %v6675, %v6688
        %v6690 = vadd.f32 %v6689, 0.014752088
        %v6691 = vmul.f32 %v6675, %v6690
        %v6692 = vadd.f32 %v6691, 0.112945676
        %v6693 = vmul.f32 %v6675, %v6692
        %v6694 = vadd.f32 %v6693, 0.4994258
        %v6695 = vmul.f32 %v6675, %v6694
        %v6696 = vadd.f32 %v6695, 1.0
        %v6697 = vrcp.pop %v6696
        %v6698 = vmul.f32 %v6696, %v6697
        %v6699 = vsub.f32 1.0, %v6698
        %v6700 = vmul.f32 %v6697, %v6699
        %v6701 = vadd.f32 %v6697, %v6700
        %vm6702 = vweird.f32 %v6696
        %vm6703 = vweird.f32 %v6697
        %vm6704 = vmor %vm6702, %vm6703
        %v6705 = vsel %vm6704, %v6697, %v6701
        %v6706 = vand.u32 2147483647, %v6696
        %vm6707 = vcmp.eq.f32.partialorder %v6706, 8.507059e+37
        %v6708 = vand.u32 %v6696, 2147483648
        %v6709 = vor.u32 1.1754944e-38, %v6708
        %v6710 = vsel %vm6707, %v6709, %v6705
        %v6711 = vmul.f32 %v6686, %v6710
        %v6712 = vmin.f32 %v6711, 1.0
        %v6713 = vmax.f32 %v6712, -1.0
        %v6714 = vmul.f32 %v6659, %v6659
        %v6715 = vmin.f32 16.0, %v6714
        %v6716 = vmul.f32 %v6715, 2.1237322e-06
        %v6717 = vadd.f32 %v6716, 0.00028619796
        %v6718 = vmul.f32 %v6715, %v6717
        %v6719 = vadd.f32 %v6718, 0.0036580483
        %v6720 = vmul.f32 %v6715, %v6719
        %v6721 = vadd.f32 %v6720, 0.05243302
        %v6722 = vmul.f32 %v6715, %v6721
        %v6723 = vadd.f32 %v6722, 0.18741608
        %v6724 = vmul.f32 %v6715, %v6723
        %v6725 = vadd.f32 %v6724, 1.1283791
        %v6726 = vmul.f32 %v6659, %v6725
        %v6727 = vmul.f32 %v6715, 3.8918573e-05
        %v6728 = vadd.f32 %v6727, 0.001143296
        %v6729 = vmul.f32 %v6715, %v6728
        %v6730 = vadd.f32 %v6729, 0.014752088
        %v6731 = vmul.f32 %v6715, %v6730
        %v6732 = vadd.f32 %v6731, 0.112945676
        %v6733 = vmul.f32 %v6715, %v6732
        %v6734 = vadd.f32 %v6733, 0.4994258
        %v6735 = vmul.f32 %v6715, %v6734
        %v6736 = vadd.f32 %v6735, 1.0
        %v6737 = vrcp.pop %v6736
        %v6738 = vmul.f32 %v6736, %v6737
        %v6739 = vsub.f32 1.0, %v6738
        %v6740 = vmul.f32 %v6737, %v6739
        %v6741 = vadd.f32 %v6737, %v6740
        %vm6742 = vweird.f32 %v6736
        %vm6743 = vweird.f32 %v6737
        %vm6744 = vmor %vm6742, %vm6743
        %v6745 = vsel %vm6744, %v6737, %v6741
        %v6746 = vand.u32 2147483647, %v6736
        %vm6747 = vcmp.eq.f32.partialorder %v6746, 8.507059e+37
        %v6748 = vand.u32 %v6736, 2147483648
        %v6749 = vor.u32 1.1754944e-38, %v6748
        %v6750 = vsel %vm6747, %v6749, %v6745
        %v6751 = vmul.f32 %v6726, %v6750
        %v6752 = vmin.f32 %v6751, 1.0
        %v6753 = vmax.f32 %v6752, -1.0
        %v6754 = vmul.f32 %v6660, %v6660
        %v6755 = vmin.f32 16.0, %v6754
        %v6756 = vmul.f32 %v6755, 2.1237322e-06
        %v6757 = vadd.f32 %v6756, 0.00028619796
        %v6758 = vmul.f32 %v6755, %v6757
        %v6759 = vadd.f32 %v6758, 0.0036580483
        %v6760 = vmul.f32 %v6755, %v6759
        %v6761 = vadd.f32 %v6760, 0.05243302
        %v6762 = vmul.f32 %v6755, %v6761
        %v6763 = vadd.f32 %v6762, 0.18741608
        %v6764 = vmul.f32 %v6755, %v6763
        %v6765 = vadd.f32 %v6764, 1.1283791
        %v6766 = vmul.f32 %v6660, %v6765
        %v6767 = vmul.f32 %v6755, 3.8918573e-05
        %v6768 = vadd.f32 %v6767, 0.001143296
        %v6769 = vmul.f32 %v6755, %v6768
        %v6770 = vadd.f32 %v6769, 0.014752088
        %v6771 = vmul.f32 %v6755, %v6770
        %v6772 = vadd.f32 %v6771, 0.112945676
        %v6773 = vmul.f32 %v6755, %v6772
        %v6774 = vadd.f32 %v6773, 0.4994258
        %v6775 = vmul.f32 %v6755, %v6774
        %v6776 = vadd.f32 %v6775, 1.0
        %v6777 = vrcp.pop %v6776
        %v6778 = vmul.f32 %v6776, %v6777
        %v6779 = vsub.f32 1.0, %v6778
        %v6780 = vmul.f32 %v6777, %v6779
        %v6781 = vadd.f32 %v6777, %v6780
        %vm6782 = vweird.f32 %v6776
        %vm6783 = vweird.f32 %v6777
        %vm6784 = vmor %vm6782, %vm6783
        %v6785 = vsel %vm6784, %v6777, %v6781
        %v6786 = vand.u32 2147483647, %v6776
        %vm6787 = vcmp.eq.f32.partialorder %v6786, 8.507059e+37
        %v6788 = vand.u32 %v6776, 2147483648
        %v6789 = vor.u32 1.1754944e-38, %v6788
        %v6790 = vsel %vm6787, %v6789, %v6785
        %v6791 = vmul.f32 %v6766, %v6790
        %v6792 = vmin.f32 %v6791, 1.0
        %v6793 = vmax.f32 %v6792, -1.0
        %v6794 = vmul.f32 %v6661, %v6661
        %v6795 = vmin.f32 16.0, %v6794
        %v6796 = vmul.f32 %v6795, 2.1237322e-06
        %v6797 = vadd.f32 %v6796, 0.00028619796
        %v6798 = vmul.f32 %v6795, %v6797
        %v6799 = vadd.f32 %v6798, 0.0036580483
        %v6800 = vmul.f32 %v6795, %v6799
        %v6801 = vadd.f32 %v6800, 0.05243302
        %v6802 = vmul.f32 %v6795, %v6801
        %v6803 = vadd.f32 %v6802, 0.18741608
        %v6804 = vmul.f32 %v6795, %v6803
        %v6805 = vadd.f32 %v6804, 1.1283791
        %v6806 = vmul.f32 %v6661, %v6805
        %v6807 = vmul.f32 %v6795, 3.8918573e-05
        %v6808 = vadd.f32 %v6807, 0.001143296
        %v6809 = vmul.f32 %v6795, %v6808
        %v6810 = vadd.f32 %v6809, 0.014752088
        %v6811 = vmul.f32 %v6795, %v6810
        %v6812 = vadd.f32 %v6811, 0.112945676
        %v6813 = vmul.f32 %v6795, %v6812
        %v6814 = vadd.f32 %v6813, 0.4994258
        %v6815 = vmul.f32 %v6795, %v6814
        %v6816 = vadd.f32 %v6815, 1.0
        %v6817 = vrcp.pop %v6816
        %v6818 = vmul.f32 %v6816, %v6817
        %v6819 = vsub.f32 1.0, %v6818
        %v6820 = vmul.f32 %v6817, %v6819
        %v6821 = vadd.f32 %v6817, %v6820
        %vm6822 = vweird.f32 %v6816
        %vm6823 = vweird.f32 %v6817
        %vm6824 = vmor %vm6822, %vm6823
        %v6825 = vsel %vm6824, %v6817, %v6821
        %v6826 = vand.u32 2147483647, %v6816
        %vm6827 = vcmp.eq.f32.partialorder %v6826, 8.507059e+37
        %v6828 = vand.u32 %v6816, 2147483648
        %v6829 = vor.u32 1.1754944e-38, %v6828
        %v6830 = vsel %vm6827, %v6829, %v6825
        %v6831 = vmul.f32 %v6806, %v6830
        %v6832 = vmin.f32 %v6831, 1.0
        %v6833 = vmax.f32 %v6832, -1.0
        %v6834 = vmul.f32 %v6662, %v6662
        %v6835 = vmin.f32 16.0, %v6834
        %v6836 = vmul.f32 %v6835, 2.1237322e-06
        %v6837 = vadd.f32 %v6836, 0.00028619796
        %v6838 = vmul.f32 %v6835, %v6837
        %v6839 = vadd.f32 %v6838, 0.0036580483
        %v6840 = vmul.f32 %v6835, %v6839
        %v6841 = vadd.f32 %v6840, 0.05243302
        %v6842 = vmul.f32 %v6835, %v6841
        %v6843 = vadd.f32 %v6842, 0.18741608
        %v6844 = vmul.f32 %v6835, %v6843
        %v6845 = vadd.f32 %v6844, 1.1283791
        %v6846 = vmul.f32 %v6662, %v6845
        %v6847 = vmul.f32 %v6835, 3.8918573e-05
        %v6848 = vadd.f32 %v6847, 0.001143296
        %v6849 = vmul.f32 %v6835, %v6848
        %v6850 = vadd.f32 %v6849, 0.014752088
        %v6851 = vmul.f32 %v6835, %v6850
        %v6852 = vadd.f32 %v6851, 0.112945676
        %v6853 = vmul.f32 %v6835, %v6852
        %v6854 = vadd.f32 %v6853, 0.4994258
        %v6855 = vmul.f32 %v6835, %v6854
        %v6856 = vadd.f32 %v6855, 1.0
        %v6857 = vrcp.pop %v6856
        %v6858 = vmul.f32 %v6856, %v6857
        %v6859 = vsub.f32 1.0, %v6858
        %v6860 = vmul.f32 %v6857, %v6859
        %v6861 = vadd.f32 %v6857, %v6860
        %vm6862 = vweird.f32 %v6856
        %vm6863 = vweird.f32 %v6857
        %vm6864 = vmor %vm6862, %vm6863
        %v6865 = vsel %vm6864, %v6857, %v6861
        %v6866 = vand.u32 2147483647, %v6856
        %vm6867 = vcmp.eq.f32.partialorder %v6866, 8.507059e+37
        %v6868 = vand.u32 %v6856, 2147483648
        %v6869 = vor.u32 1.1754944e-38, %v6868
        %v6870 = vsel %vm6867, %v6869, %v6865
        %v6871 = vmul.f32 %v6846, %v6870
        %v6872 = vmin.f32 %v6871, 1.0
        %v6873 = vmax.f32 %v6872, -1.0
        %v6874 = vmul.f32 %v6663, %v6663
        %v6875 = vmin.f32 16.0, %v6874
        %v6876 = vmul.f32 %v6875, 2.1237322e-06
        %v6877 = vadd.f32 %v6876, 0.00028619796
        %v6878 = vmul.f32 %v6875, %v6877
        %v6879 = vadd.f32 %v6878, 0.0036580483
        %v6880 = vmul.f32 %v6875, %v6879
        %v6881 = vadd.f32 %v6880, 0.05243302
        %v6882 = vmul.f32 %v6875, %v6881
        %v6883 = vadd.f32 %v6882, 0.18741608
        %v6884 = vmul.f32 %v6875, %v6883
        %v6885 = vadd.f32 %v6884, 1.1283791
        %v6886 = vmul.f32 %v6663, %v6885
        %v6887 = vmul.f32 %v6875, 3.8918573e-05
        %v6888 = vadd.f32 %v6887, 0.001143296
        %v6889 = vmul.f32 %v6875, %v6888
        %v6890 = vadd.f32 %v6889, 0.014752088
        %v6891 = vmul.f32 %v6875, %v6890
        %v6892 = vadd.f32 %v6891, 0.112945676
        %v6893 = vmul.f32 %v6875, %v6892
        %v6894 = vadd.f32 %v6893, 0.4994258
        %v6895 = vmul.f32 %v6875, %v6894
        %v6896 = vadd.f32 %v6895, 1.0
        %v6897 = vrcp.pop %v6896
        %v6898 = vmul.f32 %v6896, %v6897
        %v6899 = vsub.f32 1.0, %v6898
        %v6900 = vmul.f32 %v6897, %v6899
        %v6901 = vadd.f32 %v6897, %v6900
        %vm6902 = vweird.f32 %v6896
        %vm6903 = vweird.f32 %v6897
        %vm6904 = vmor %vm6902, %vm6903
        %v6905 = vsel %vm6904, %v6897, %v6901
        %v6906 = vand.u32 2147483647, %v6896
        %vm6907 = vcmp.eq.f32.partialorder %v6906, 8.507059e+37
        %v6908 = vand.u32 %v6896, 2147483648
        %v6909 = vor.u32 1.1754944e-38, %v6908
        %v6910 = vsel %vm6907, %v6909, %v6905
        %v6911 = vmul.f32 %v6886, %v6910
        %v6912 = vmin.f32 %v6911, 1.0
        %v6913 = vmax.f32 %v6912, -1.0
        %v6914 = vmul.f32 %v6664, %v6664
        %v6915 = vmin.f32 16.0, %v6914
        %v6916 = vmul.f32 %v6915, 2.1237322e-06
        %v6917 = vadd.f32 %v6916, 0.00028619796
        %v6918 = vmul.f32 %v6915, %v6917
        %v6919 = vadd.f32 %v6918, 0.0036580483
        %v6920 = vmul.f32 %v6915, %v6919
        %v6921 = vadd.f32 %v6920, 0.05243302
        %v6922 = vmul.f32 %v6915, %v6921
        %v6923 = vadd.f32 %v6922, 0.18741608
        %v6924 = vmul.f32 %v6915, %v6923
        %v6925 = vadd.f32 %v6924, 1.1283791
        %v6926 = vmul.f32 %v6664, %v6925
        %v6927 = vmul.f32 %v6915, 3.8918573e-05
        %v6928 = vadd.f32 %v6927, 0.001143296
        %v6929 = vmul.f32 %v6915, %v6928
        %v6930 = vadd.f32 %v6929, 0.014752088
        %v6931 = vmul.f32 %v6915, %v6930
        %v6932 = vadd.f32 %v6931, 0.112945676
        %v6933 = vmul.f32 %v6915, %v6932
        %v6934 = vadd.f32 %v6933, 0.4994258
        %v6935 = vmul.f32 %v6915, %v6934
        %v6936 = vadd.f32 %v6935, 1.0
        %v6937 = vrcp.pop %v6936
        %v6938 = vmul.f32 %v6936, %v6937
        %v6939 = vsub.f32 1.0, %v6938
        %v6940 = vmul.f32 %v6937, %v6939
        %v6941 = vadd.f32 %v6937, %v6940
        %vm6942 = vweird.f32 %v6936
        %vm6943 = vweird.f32 %v6937
        %vm6944 = vmor %vm6942, %vm6943
        %v6945 = vsel %vm6944, %v6937, %v6941
        %v6946 = vand.u32 2147483647, %v6936
        %vm6947 = vcmp.eq.f32.partialorder %v6946, 8.507059e+37
        %v6948 = vand.u32 %v6936, 2147483648
        %v6949 = vor.u32 1.1754944e-38, %v6948
        %v6950 = vsel %vm6947, %v6949, %v6945
        %v6951 = vmul.f32 %v6926, %v6950
        %v6952 = vmin.f32 %v6951, 1.0
        %v6953 = vmax.f32 %v6952, -1.0
        %v6954 = vmul.f32 %v6665, %v6665
        %v6955 = vmin.f32 16.0, %v6954
        %v6956 = vmul.f32 %v6955, 2.1237322e-06
        %v6957 = vadd.f32 %v6956, 0.00028619796
        %v6958 = vmul.f32 %v6955, %v6957
        %v6959 = vadd.f32 %v6958, 0.0036580483
        %v6960 = vmul.f32 %v6955, %v6959
        %v6961 = vadd.f32 %v6960, 0.05243302
        %v6962 = vmul.f32 %v6955, %v6961
        %v6963 = vadd.f32 %v6962, 0.18741608
        %v6964 = vmul.f32 %v6955, %v6963
        %v6965 = vadd.f32 %v6964, 1.1283791
        %v6966 = vmul.f32 %v6665, %v6965
        %v6967 = vmul.f32 %v6955, 3.8918573e-05
        %v6968 = vadd.f32 %v6967, 0.001143296
        %v6969 = vmul.f32 %v6955, %v6968
        %v6970 = vadd.f32 %v6969, 0.014752088
        %v6971 = vmul.f32 %v6955, %v6970
        %v6972 = vadd.f32 %v6971, 0.112945676
        %v6973 = vmul.f32 %v6955, %v6972
        %v6974 = vadd.f32 %v6973, 0.4994258
        %v6975 = vmul.f32 %v6955, %v6974
        %v6976 = vadd.f32 %v6975, 1.0
        %v6977 = vrcp.pop %v6976
        %v6978 = vmul.f32 %v6976, %v6977
        %v6979 = vsub.f32 1.0, %v6978
        %v6980 = vmul.f32 %v6977, %v6979
        %v6981 = vadd.f32 %v6977, %v6980
        %vm6982 = vweird.f32 %v6976
        %vm6983 = vweird.f32 %v6977
        %vm6984 = vmor %vm6982, %vm6983
        %v6985 = vsel %vm6984, %v6977, %v6981
        %v6986 = vand.u32 2147483647, %v6976
        %vm6987 = vcmp.eq.f32.partialorder %v6986, 8.507059e+37
        %v6988 = vand.u32 %v6976, 2147483648
        %v6989 = vor.u32 1.1754944e-38, %v6988
        %v6990 = vsel %vm6987, %v6989, %v6985
        %v6991 = vmul.f32 %v6966, %v6990
        %v6992 = vmin.f32 %v6991, 1.0
        %v6993 = vmax.f32 %v6992, -1.0
        %v6994 = vmul.f32 %v6666, %v6666
        %v6995 = vmin.f32 16.0, %v6994
        %v6996 = vmul.f32 %v6995, 2.1237322e-06
        %v6997 = vadd.f32 %v6996, 0.00028619796
        %v6998 = vmul.f32 %v6995, %v6997
        %v6999 = vadd.f32 %v6998, 0.0036580483
        %v7000 = vmul.f32 %v6995, %v6999
        %v7001 = vadd.f32 %v7000, 0.05243302
        %v7002 = vmul.f32 %v6995, %v7001
        %v7003 = vadd.f32 %v7002, 0.18741608
        %v7004 = vmul.f32 %v6995, %v7003
        %v7005 = vadd.f32 %v7004, 1.1283791
        %v7006 = vmul.f32 %v6666, %v7005
        %v7007 = vmul.f32 %v6995, 3.8918573e-05
        %v7008 = vadd.f32 %v7007, 0.001143296
        %v7009 = vmul.f32 %v6995, %v7008
        %v7010 = vadd.f32 %v7009, 0.014752088
        %v7011 = vmul.f32 %v6995, %v7010
        %v7012 = vadd.f32 %v7011, 0.112945676
        %v7013 = vmul.f32 %v6995, %v7012
        %v7014 = vadd.f32 %v7013, 0.4994258
        %v7015 = vmul.f32 %v6995, %v7014
        %v7016 = vadd.f32 %v7015, 1.0
        %v7017 = vrcp.pop %v7016
        %v7018 = vmul.f32 %v7016, %v7017
        %v7019 = vsub.f32 1.0, %v7018
        %v7020 = vmul.f32 %v7017, %v7019
        %v7021 = vadd.f32 %v7017, %v7020
        %vm7022 = vweird.f32 %v7016
        %vm7023 = vweird.f32 %v7017
        %vm7024 = vmor %vm7022, %vm7023
        %v7025 = vsel %vm7024, %v7017, %v7021
        %v7026 = vand.u32 2147483647, %v7016
        %vm7027 = vcmp.eq.f32.partialorder %v7026, 8.507059e+37
        %v7028 = vand.u32 %v7016, 2147483648
        %v7029 = vor.u32 1.1754944e-38, %v7028
        %v7030 = vsel %vm7027, %v7029, %v7025
        %v7031 = vmul.f32 %v7006, %v7030
        %v7032 = vmin.f32 %v7031, 1.0
        %v7033 = vmax.f32 %v7032, -1.0
        %v7034 = vmul.f32 %v6667, %v6667
        %v7035 = vmin.f32 16.0, %v7034
        %v7036 = vmul.f32 %v7035, 2.1237322e-06
        %v7037 = vadd.f32 %v7036, 0.00028619796
        %v7038 = vmul.f32 %v7035, %v7037
        %v7039 = vadd.f32 %v7038, 0.0036580483
        %v7040 = vmul.f32 %v7035, %v7039
        %v7041 = vadd.f32 %v7040, 0.05243302
        %v7042 = vmul.f32 %v7035, %v7041
        %v7043 = vadd.f32 %v7042, 0.18741608
        %v7044 = vmul.f32 %v7035, %v7043
        %v7045 = vadd.f32 %v7044, 1.1283791
        %v7046 = vmul.f32 %v6667, %v7045
        %v7047 = vmul.f32 %v7035, 3.8918573e-05
        %v7048 = vadd.f32 %v7047, 0.001143296
        %v7049 = vmul.f32 %v7035, %v7048
        %v7050 = vadd.f32 %v7049, 0.014752088
        %v7051 = vmul.f32 %v7035, %v7050
        %v7052 = vadd.f32 %v7051, 0.112945676
        %v7053 = vmul.f32 %v7035, %v7052
        %v7054 = vadd.f32 %v7053, 0.4994258
        %v7055 = vmul.f32 %v7035, %v7054
        %v7056 = vadd.f32 %v7055, 1.0
        %v7057 = vrcp.pop %v7056
        %v7058 = vmul.f32 %v7056, %v7057
        %v7059 = vsub.f32 1.0, %v7058
        %v7060 = vmul.f32 %v7057, %v7059
        %v7061 = vadd.f32 %v7057, %v7060
        %vm7062 = vweird.f32 %v7056
        %vm7063 = vweird.f32 %v7057
        %vm7064 = vmor %vm7062, %vm7063
        %v7065 = vsel %vm7064, %v7057, %v7061
        %v7066 = vand.u32 2147483647, %v7056
        %vm7067 = vcmp.eq.f32.partialorder %v7066, 8.507059e+37
        %v7068 = vand.u32 %v7056, 2147483648
        %v7069 = vor.u32 1.1754944e-38, %v7068
        %v7070 = vsel %vm7067, %v7069, %v7065
        %v7071 = vmul.f32 %v7046, %v7070
        %v7072 = vmin.f32 %v7071, 1.0
        %v7073 = vmax.f32 %v7072, -1.0
        %v7074 = vmul.f32 %v6668, %v6668
        %v7075 = vmin.f32 16.0, %v7074
        %v7076 = vmul.f32 %v7075, 2.1237322e-06
        %v7077 = vadd.f32 %v7076, 0.00028619796
        %v7078 = vmul.f32 %v7075, %v7077
        %v7079 = vadd.f32 %v7078, 0.0036580483
        %v7080 = vmul.f32 %v7075, %v7079
        %v7081 = vadd.f32 %v7080, 0.05243302
        %v7082 = vmul.f32 %v7075, %v7081
        %v7083 = vadd.f32 %v7082, 0.18741608
        %v7084 = vmul.f32 %v7075, %v7083
        %v7085 = vadd.f32 %v7084, 1.1283791
        %v7086 = vmul.f32 %v6668, %v7085
        %v7087 = vmul.f32 %v7075, 3.8918573e-05
        %v7088 = vadd.f32 %v7087, 0.001143296
        %v7089 = vmul.f32 %v7075, %v7088
        %v7090 = vadd.f32 %v7089, 0.014752088
        %v7091 = vmul.f32 %v7075, %v7090
        %v7092 = vadd.f32 %v7091, 0.112945676
        %v7093 = vmul.f32 %v7075, %v7092
        %v7094 = vadd.f32 %v7093, 0.4994258
        %v7095 = vmul.f32 %v7075, %v7094
        %v7096 = vadd.f32 %v7095, 1.0
        %v7097 = vrcp.pop %v7096
        %v7098 = vmul.f32 %v7096, %v7097
        %v7099 = vsub.f32 1.0, %v7098
        %v7100 = vmul.f32 %v7097, %v7099
        %v7101 = vadd.f32 %v7097, %v7100
        %vm7102 = vweird.f32 %v7096
        %vm7103 = vweird.f32 %v7097
        %vm7104 = vmor %vm7102, %vm7103
        %v7105 = vsel %vm7104, %v7097, %v7101
        %v7106 = vand.u32 2147483647, %v7096
        %vm7107 = vcmp.eq.f32.partialorder %v7106, 8.507059e+37
        %v7108 = vand.u32 %v7096, 2147483648
        %v7109 = vor.u32 1.1754944e-38, %v7108
        %v7110 = vsel %vm7107, %v7109, %v7105
        %v7111 = vmul.f32 %v7086, %v7110
        %v7112 = vmin.f32 %v7111, 1.0
        %v7113 = vmax.f32 %v7112, -1.0
        %v7114 = vmul.f32 %v6669, %v6669
        %v7115 = vmin.f32 16.0, %v7114
        %v7116 = vmul.f32 %v7115, 2.1237322e-06
        %v7117 = vadd.f32 %v7116, 0.00028619796
        %v7118 = vmul.f32 %v7115, %v7117
        %v7119 = vadd.f32 %v7118, 0.0036580483
        %v7120 = vmul.f32 %v7115, %v7119
        %v7121 = vadd.f32 %v7120, 0.05243302
        %v7122 = vmul.f32 %v7115, %v7121
        %v7123 = vadd.f32 %v7122, 0.18741608
        %v7124 = vmul.f32 %v7115, %v7123
        %v7125 = vadd.f32 %v7124, 1.1283791
        %v7126 = vmul.f32 %v6669, %v7125
        %v7127 = vmul.f32 %v7115, 3.8918573e-05
        %v7128 = vadd.f32 %v7127, 0.001143296
        %v7129 = vmul.f32 %v7115, %v7128
        %v7130 = vadd.f32 %v7129, 0.014752088
        %v7131 = vmul.f32 %v7115, %v7130
        %v7132 = vadd.f32 %v7131, 0.112945676
        %v7133 = vmul.f32 %v7115, %v7132
        %v7134 = vadd.f32 %v7133, 0.4994258
        %v7135 = vmul.f32 %v7115, %v7134
        %v7136 = vadd.f32 %v7135, 1.0
        %v7137 = vrcp.pop %v7136
        %v7138 = vmul.f32 %v7136, %v7137
        %v7139 = vsub.f32 1.0, %v7138
        %v7140 = vmul.f32 %v7137, %v7139
        %v7141 = vadd.f32 %v7137, %v7140
        %vm7142 = vweird.f32 %v7136
        %vm7143 = vweird.f32 %v7137
        %vm7144 = vmor %vm7142, %vm7143
        %v7145 = vsel %vm7144, %v7137, %v7141
        %v7146 = vand.u32 2147483647, %v7136
        %vm7147 = vcmp.eq.f32.partialorder %v7146, 8.507059e+37
        %v7148 = vand.u32 %v7136, 2147483648
        %v7149 = vor.u32 1.1754944e-38, %v7148
        %v7150 = vsel %vm7147, %v7149, %v7145
        %v7151 = vmul.f32 %v7126, %v7150
        %v7152 = vmin.f32 %v7151, 1.0
        %v7153 = vmax.f32 %v7152, -1.0
        %v7154 = vmul.f32 %v6670, %v6670
        %v7155 = vmin.f32 16.0, %v7154
        %v7156 = vmul.f32 %v7155, 2.1237322e-06
        %v7157 = vadd.f32 %v7156, 0.00028619796
        %v7158 = vmul.f32 %v7155, %v7157
        %v7159 = vadd.f32 %v7158, 0.0036580483
        %v7160 = vmul.f32 %v7155, %v7159
        %v7161 = vadd.f32 %v7160, 0.05243302
        %v7162 = vmul.f32 %v7155, %v7161
        %v7163 = vadd.f32 %v7162, 0.18741608
        %v7164 = vmul.f32 %v7155, %v7163
        %v7165 = vadd.f32 %v7164, 1.1283791
        %v7166 = vmul.f32 %v6670, %v7165
        %v7167 = vmul.f32 %v7155, 3.8918573e-05
        %v7168 = vadd.f32 %v7167, 0.001143296
        %v7169 = vmul.f32 %v7155, %v7168
        %v7170 = vadd.f32 %v7169, 0.014752088
        %v7171 = vmul.f32 %v7155, %v7170
        %v7172 = vadd.f32 %v7171, 0.112945676
        %v7173 = vmul.f32 %v7155, %v7172
        %v7174 = vadd.f32 %v7173, 0.4994258
        %v7175 = vmul.f32 %v7155, %v7174
        %v7176 = vadd.f32 %v7175, 1.0
        %v7177 = vrcp.pop %v7176
        %v7178 = vmul.f32 %v7176, %v7177
        %v7179 = vsub.f32 1.0, %v7178
        %v7180 = vmul.f32 %v7177, %v7179
        %v7181 = vadd.f32 %v7177, %v7180
        %vm7182 = vweird.f32 %v7176
        %vm7183 = vweird.f32 %v7177
        %vm7184 = vmor %vm7182, %vm7183
        %v7185 = vsel %vm7184, %v7177, %v7181
        %v7186 = vand.u32 2147483647, %v7176
        %vm7187 = vcmp.eq.f32.partialorder %v7186, 8.507059e+37
        %v7188 = vand.u32 %v7176, 2147483648
        %v7189 = vor.u32 1.1754944e-38, %v7188
        %v7190 = vsel %vm7187, %v7189, %v7185
        %v7191 = vmul.f32 %v7166, %v7190
        %v7192 = vmin.f32 %v7191, 1.0
        %v7193 = vmax.f32 %v7192, -1.0
        %v7194 = vmul.f32 %v6671, %v6671
        %v7195 = vmin.f32 16.0, %v7194
        %v7196 = vmul.f32 %v7195, 2.1237322e-06
        %v7197 = vadd.f32 %v7196, 0.00028619796
        %v7198 = vmul.f32 %v7195, %v7197
        %v7199 = vadd.f32 %v7198, 0.0036580483
        %v7200 = vmul.f32 %v7195, %v7199
        %v7201 = vadd.f32 %v7200, 0.05243302
        %v7202 = vmul.f32 %v7195, %v7201
        %v7203 = vadd.f32 %v7202, 0.18741608
        %v7204 = vmul.f32 %v7195, %v7203
        %v7205 = vadd.f32 %v7204, 1.1283791
        %v7206 = vmul.f32 %v6671, %v7205
        %v7207 = vmul.f32 %v7195, 3.8918573e-05
        %v7208 = vadd.f32 %v7207, 0.001143296
        %v7209 = vmul.f32 %v7195, %v7208
        %v7210 = vadd.f32 %v7209, 0.014752088
        %v7211 = vmul.f32 %v7195, %v7210
        %v7212 = vadd.f32 %v7211, 0.112945676
        %v7213 = vmul.f32 %v7195, %v7212
        %v7214 = vadd.f32 %v7213, 0.4994258
        %v7215 = vmul.f32 %v7195, %v7214
        %v7216 = vadd.f32 %v7215, 1.0
        %v7217 = vrcp.pop %v7216
        %v7218 = vmul.f32 %v7216, %v7217
        %v7219 = vsub.f32 1.0, %v7218
        %v7220 = vmul.f32 %v7217, %v7219
        %v7221 = vadd.f32 %v7217, %v7220
        %vm7222 = vweird.f32 %v7216
        %vm7223 = vweird.f32 %v7217
        %vm7224 = vmor %vm7222, %vm7223
        %v7225 = vsel %vm7224, %v7217, %v7221
        %v7226 = vand.u32 2147483647, %v7216
        %vm7227 = vcmp.eq.f32.partialorder %v7226, 8.507059e+37
        %v7228 = vand.u32 %v7216, 2147483648
        %v7229 = vor.u32 1.1754944e-38, %v7228
        %v7230 = vsel %vm7227, %v7229, %v7225
        %v7231 = vmul.f32 %v7206, %v7230
        %v7232 = vmin.f32 %v7231, 1.0
        %v7233 = vmax.f32 %v7232, -1.0
        %v7234 = vmul.f32 %v6672, %v6672
        %v7235 = vmin.f32 16.0, %v7234
        %v7236 = vmul.f32 %v7235, 2.1237322e-06
        %v7237 = vadd.f32 %v7236, 0.00028619796
        %v7238 = vmul.f32 %v7235, %v7237
        %v7239 = vadd.f32 %v7238, 0.0036580483
        %v7240 = vmul.f32 %v7235, %v7239
        %v7241 = vadd.f32 %v7240, 0.05243302
        %v7242 = vmul.f32 %v7235, %v7241
        %v7243 = vadd.f32 %v7242, 0.18741608
        %v7244 = vmul.f32 %v7235, %v7243
        %v7245 = vadd.f32 %v7244, 1.1283791
        %v7246 = vmul.f32 %v6672, %v7245
        %v7247 = vmul.f32 %v7235, 3.8918573e-05
        %v7248 = vadd.f32 %v7247, 0.001143296
        %v7249 = vmul.f32 %v7235, %v7248
        %v7250 = vadd.f32 %v7249, 0.014752088
        %v7251 = vmul.f32 %v7235, %v7250
        %v7252 = vadd.f32 %v7251, 0.112945676
        %v7253 = vmul.f32 %v7235, %v7252
        %v7254 = vadd.f32 %v7253, 0.4994258
        %v7255 = vmul.f32 %v7235, %v7254
        %v7256 = vadd.f32 %v7255, 1.0
        %v7257 = vrcp.pop %v7256
        %v7258 = vmul.f32 %v7256, %v7257
        %v7259 = vsub.f32 1.0, %v7258
        %v7260 = vmul.f32 %v7257, %v7259
        %v7261 = vadd.f32 %v7257, %v7260
        %vm7262 = vweird.f32 %v7256
        %vm7263 = vweird.f32 %v7257
        %vm7264 = vmor %vm7262, %vm7263
        %v7265 = vsel %vm7264, %v7257, %v7261
        %v7266 = vand.u32 2147483647, %v7256
        %vm7267 = vcmp.eq.f32.partialorder %v7266, 8.507059e+37
        %v7268 = vand.u32 %v7256, 2147483648
        %v7269 = vor.u32 1.1754944e-38, %v7268
        %v7270 = vsel %vm7267, %v7269, %v7265
        %v7271 = vmul.f32 %v7246, %v7270
        %v7272 = vmin.f32 %v7271, 1.0
        %v7273 = vmax.f32 %v7272, -1.0
        %v7274 = vmul.f32 %v6673, %v6673
        %v7275 = vmin.f32 16.0, %v7274
        %v7276 = vmul.f32 %v7275, 2.1237322e-06
        %v7277 = vadd.f32 %v7276, 0.00028619796
        %v7278 = vmul.f32 %v7275, %v7277
        %v7279 = vadd.f32 %v7278, 0.0036580483
        %v7280 = vmul.f32 %v7275, %v7279
        %v7281 = vadd.f32 %v7280, 0.05243302
        %v7282 = vmul.f32 %v7275, %v7281
        %v7283 = vadd.f32 %v7282, 0.18741608
        %v7284 = vmul.f32 %v7275, %v7283
        %v7285 = vadd.f32 %v7284, 1.1283791
        %v7286 = vmul.f32 %v6673, %v7285
        %v7287 = vmul.f32 %v7275, 3.8918573e-05
        %v7288 = vadd.f32 %v7287, 0.001143296
        %v7289 = vmul.f32 %v7275, %v7288
        %v7290 = vadd.f32 %v7289, 0.014752088
        %v7291 = vmul.f32 %v7275, %v7290
        %v7292 = vadd.f32 %v7291, 0.112945676
        %v7293 = vmul.f32 %v7275, %v7292
        %v7294 = vadd.f32 %v7293, 0.4994258
        %v7295 = vmul.f32 %v7275, %v7294
        %v7296 = vadd.f32 %v7295, 1.0
        %v7297 = vrcp.pop %v7296
        %v7298 = vmul.f32 %v7296, %v7297
        %v7299 = vsub.f32 1.0, %v7298
        %v7300 = vmul.f32 %v7297, %v7299
        %v7301 = vadd.f32 %v7297, %v7300
        %vm7302 = vweird.f32 %v7296
        %vm7303 = vweird.f32 %v7297
        %vm7304 = vmor %vm7302, %vm7303
        %v7305 = vsel %vm7304, %v7297, %v7301
        %v7306 = vand.u32 2147483647, %v7296
        %vm7307 = vcmp.eq.f32.partialorder %v7306, 8.507059e+37
        %v7308 = vand.u32 %v7296, 2147483648
        %v7309 = vor.u32 1.1754944e-38, %v7308
        %v7310 = vsel %vm7307, %v7309, %v7305
        %v7311 = vmul.f32 %v7286, %v7310
        %v7312 = vmin.f32 %v7311, 1.0
        %v7313 = vmax.f32 %v7312, -1.0
        %v7314 = vadd.f32 %v6713, 1.0
        %v7315 = vadd.f32 %v6753, 1.0
        %v7316 = vadd.f32 %v6793, 1.0
        %v7317 = vadd.f32 %v6833, 1.0
        %v7318 = vadd.f32 %v6873, 1.0
        %v7319 = vadd.f32 %v6913, 1.0
        %v7320 = vadd.f32 %v6953, 1.0
        %v7321 = vadd.f32 %v6993, 1.0
        %v7322 = vadd.f32 %v7033, 1.0
        %v7323 = vadd.f32 %v7073, 1.0
        %v7324 = vadd.f32 %v7113, 1.0
        %v7325 = vadd.f32 %v7153, 1.0
        %v7326 = vadd.f32 %v7193, 1.0
        %v7327 = vadd.f32 %v7233, 1.0
        %v7328 = vadd.f32 %v7273, 1.0
        %v7329 = vadd.f32 %v7313, 1.0
        %v7330 = vmul.f32 %v6642, %v7314
        %v7331 = vmul.f32 %v6643, %v7315
        %v7332 = vmul.f32 %v6644, %v7316
        %v7333 = vmul.f32 %v6645, %v7317
        %v7334 = vmul.f32 %v6646, %v7318
        %v7335 = vmul.f32 %v6647, %v7319
        %v7336 = vmul.f32 %v6648, %v7320
        %v7337 = vmul.f32 %v6649, %v7321
        %v7338 = vmul.f32 %v6650, %v7322
        %v7339 = vmul.f32 %v6651, %v7323
        %v7340 = vmul.f32 %v6652, %v7324
        %v7341 = vmul.f32 %v6653, %v7325
        %v7342 = vmul.f32 %v6654, %v7326
        %v7343 = vmul.f32 %v6655, %v7327
        %v7344 = vmul.f32 %v6656, %v7328
        %v7345 = vmul.f32 %v6657, %v7329
        %v7346 = vpack.c.bf16 %v7331, %v7330
        %v7347 = vpack.c.bf16 %v7333, %v7332
        %v7348 = vpack.c.bf16 %v7335, %v7334
        %v7349 = vpack.c.bf16 %v7337, %v7336
        %v7350 = vpack.c.bf16 %v7339, %v7338
        %v7351 = vpack.c.bf16 %v7341, %v7340
        %v7352 = vpack.c.bf16 %v7343, %v7342
        %v7353 = vpack.c.bf16 %v7345, %v7344
        %s7354 = scalar_lea.vmem %s4, 64
        %v7355 = vld [vmem:[%s7354] sm:$0xf]
        %v7356 = vld [vmem:[%s7354 + $0x4] sm:$0xf]
        %v7357 = vld [vmem:[%s7354 + $0x8] sm:$0xf]
        %v7358 = vld [vmem:[%s7354 + $0xc] sm:$0xf]
        %v7359 = vld [vmem:[%s7354 + $0x10] sm:$0xf]
        %v7360 = vld [vmem:[%s7354 + $0x14] sm:$0xf]
        %v7361 = vld [vmem:[%s7354 + $0x18] sm:$0xf]
        %v7362 = vld [vmem:[%s7354 + $0x1c] sm:$0xf]
        %v7363 = vld [vmem:[%s7354 + $0x20] sm:$0xf]
        %v7364 = vld [vmem:[%s7354 + $0x24] sm:$0xf]
        %v7365 = vld [vmem:[%s7354 + $0x28] sm:$0xf]
        %v7366 = vld [vmem:[%s7354 + $0x2c] sm:$0xf]
        %v7367 = vld [vmem:[%s7354 + $0x30] sm:$0xf]
        %v7368 = vld [vmem:[%s7354 + $0x34] sm:$0xf]
        %v7369 = vld [vmem:[%s7354 + $0x38] sm:$0xf]
        %v7370 = vld [vmem:[%s7354 + $0x3c] sm:$0xf]
        %v7371 = vperm.slane %v252, 0
        %v7388 = vunpack.c.l.b16 %v7355
        %v7389 = vunpack.c.l.b16 %v7356
        %v7390 = vunpack.c.l.b16 %v7357
        %v7391 = vunpack.c.l.b16 %v7358
        %v7392 = vunpack.c.l.b16 %v7359
        %v7393 = vunpack.c.l.b16 %v7360
        %v7394 = vunpack.c.l.b16 %v7361
        %v7395 = vunpack.c.l.b16 %v7362
        %v7396 = vunpack.c.l.b16 %v7363
        %v7397 = vunpack.c.l.b16 %v7364
        %v7398 = vunpack.c.l.b16 %v7365
        %v7399 = vunpack.c.l.b16 %v7366
        %v7400 = vunpack.c.l.b16 %v7367
        %v7401 = vunpack.c.l.b16 %v7368
        %v7402 = vunpack.c.l.b16 %v7369
        %v7403 = vunpack.c.l.b16 %v7370
        %v7404 = vpack.c.b16 %v7389, %v7388
        %v7405 = vpack.c.b16 %v7391, %v7390
        %v7406 = vpack.c.b16 %v7393, %v7392
        %v7407 = vpack.c.b16 %v7395, %v7394
        %v7408 = vpack.c.b16 %v7397, %v7396
        %v7409 = vpack.c.b16 %v7399, %v7398
        %v7410 = vpack.c.b16 %v7401, %v7400
        %v7411 = vpack.c.b16 %v7403, %v7402
        %7420 = vmatpush.bf16.msra.mxu0 %v7411
        %7421 = vmatpush.bf16.msra.mxu0 %v7410
        %7422 = vmatpush.bf16.msra.mxu0 %v7409
        %7423 = vmatpush.bf16.msra.mxu0 %v7408
        %7424 = vmatpush.bf16.msra.mxu0 %v7407
        %7425 = vmatpush.bf16.msra.mxu0 %v7406
        %7426 = vmatpush.bf16.msra.mxu0 %v7405
        %7427 = vmatpush.bf16.msra.mxu0 %v7404
        %7428 = vmatmul.bf16.gmra.mxu0 %v7346
        %v7429 = vpop.f32.mrf.mxu0
        %v7430 = vadd.f32 %v7371, %v7429
        %v7431 = vpop.f32.mrf.mxu0
        %v7432 = vadd.f32 %v7371, %v7431
        %7433 = vmatmul.bf16.gmra.mxu0 %v7347
        %v7434 = vpop.f32.mrf.mxu0
        %v7435 = vadd.f32 %v7371, %v7434
        %v7436 = vpop.f32.mrf.mxu0
        %v7437 = vadd.f32 %v7371, %v7436
        %7438 = vmatmul.bf16.gmra.mxu0 %v7348
        %v7439 = vpop.f32.mrf.mxu0
        %v7440 = vadd.f32 %v7371, %v7439
        %v7441 = vpop.f32.mrf.mxu0
        %v7442 = vadd.f32 %v7371, %v7441
        %7443 = vmatmul.bf16.gmra.mxu0 %v7349
        %v7444 = vpop.f32.mrf.mxu0
        %v7445 = vadd.f32 %v7371, %v7444
        %v7446 = vpop.f32.mrf.mxu0
        %v7447 = vadd.f32 %v7371, %v7446
        %7448 = vmatmul.bf16.gmra.mxu0 %v7350
        %v7449 = vpop.f32.mrf.mxu0
        %v7450 = vadd.f32 %v7371, %v7449
        %v7451 = vpop.f32.mrf.mxu0
        %v7452 = vadd.f32 %v7371, %v7451
        %7453 = vmatmul.bf16.gmra.mxu0 %v7351
        %v7454 = vpop.f32.mrf.mxu0
        %v7455 = vadd.f32 %v7371, %v7454
        %v7456 = vpop.f32.mrf.mxu0
        %v7457 = vadd.f32 %v7371, %v7456
        %7458 = vmatmul.bf16.gmra.mxu0 %v7352
        %v7459 = vpop.f32.mrf.mxu0
        %v7460 = vadd.f32 %v7371, %v7459
        %v7461 = vpop.f32.mrf.mxu0
        %v7462 = vadd.f32 %v7371, %v7461
        %7463 = vmatmul.bf16.gmra.mxu0 %v7353
        %v7464 = vpop.f32.mrf.mxu0
        %v7465 = vadd.f32 %v7371, %v7464
        %v7466 = vpop.f32.mrf.mxu0
        %v7467 = vadd.f32 %v7371, %v7466
        %7468 = vdwg.mxu0
        %v7469 = vmul.f32 %v7430, 0.5
        %v7470 = vmul.f32 %v7432, 0.5
        %v7471 = vmul.f32 %v7435, 0.5
        %v7472 = vmul.f32 %v7437, 0.5
        %v7473 = vmul.f32 %v7440, 0.5
        %v7474 = vmul.f32 %v7442, 0.5
        %v7475 = vmul.f32 %v7445, 0.5
        %v7476 = vmul.f32 %v7447, 0.5
        %v7477 = vmul.f32 %v7450, 0.5
        %v7478 = vmul.f32 %v7452, 0.5
        %v7479 = vmul.f32 %v7455, 0.5
        %v7480 = vmul.f32 %v7457, 0.5
        %v7481 = vmul.f32 %v7460, 0.5
        %v7482 = vmul.f32 %v7462, 0.5
        %v7483 = vmul.f32 %v7465, 0.5
        %v7484 = vmul.f32 %v7467, 0.5
        %v7485 = vmul.f32 %v7430, 0.70710677
        %v7486 = vmul.f32 %v7432, 0.70710677
        %v7487 = vmul.f32 %v7435, 0.70710677
        %v7488 = vmul.f32 %v7437, 0.70710677
        %v7489 = vmul.f32 %v7440, 0.70710677
        %v7490 = vmul.f32 %v7442, 0.70710677
        %v7491 = vmul.f32 %v7445, 0.70710677
        %v7492 = vmul.f32 %v7447, 0.70710677
        %v7493 = vmul.f32 %v7450, 0.70710677
        %v7494 = vmul.f32 %v7452, 0.70710677
        %v7495 = vmul.f32 %v7455, 0.70710677
        %v7496 = vmul.f32 %v7457, 0.70710677
        %v7497 = vmul.f32 %v7460, 0.70710677
        %v7498 = vmul.f32 %v7462, 0.70710677
        %v7499 = vmul.f32 %v7465, 0.70710677
        %v7500 = vmul.f32 %v7467, 0.70710677
        %v7501 = vmul.f32 %v7485, %v7485
        %v7502 = vmin.f32 16.0, %v7501
        %v7503 = vmul.f32 %v7502, 2.1237322e-06
        %v7504 = vadd.f32 %v7503, 0.00028619796
        %v7505 = vmul.f32 %v7502, %v7504
        %v7506 = vadd.f32 %v7505, 0.0036580483
        %v7507 = vmul.f32 %v7502, %v7506
        %v7508 = vadd.f32 %v7507, 0.05243302
        %v7509 = vmul.f32 %v7502, %v7508
        %v7510 = vadd.f32 %v7509, 0.18741608
        %v7511 = vmul.f32 %v7502, %v7510
        %v7512 = vadd.f32 %v7511, 1.1283791
        %v7513 = vmul.f32 %v7485, %v7512
        %v7514 = vmul.f32 %v7502, 3.8918573e-05
        %v7515 = vadd.f32 %v7514, 0.001143296
        %v7516 = vmul.f32 %v7502, %v7515
        %v7517 = vadd.f32 %v7516, 0.014752088
        %v7518 = vmul.f32 %v7502, %v7517
        %v7519 = vadd.f32 %v7518, 0.112945676
        %v7520 = vmul.f32 %v7502, %v7519
        %v7521 = vadd.f32 %v7520, 0.4994258
        %v7522 = vmul.f32 %v7502, %v7521
        %v7523 = vadd.f32 %v7522, 1.0
        %v7524 = vrcp.pop %v7523
        %v7525 = vmul.f32 %v7523, %v7524
        %v7526 = vsub.f32 1.0, %v7525
        %v7527 = vmul.f32 %v7524, %v7526
        %v7528 = vadd.f32 %v7524, %v7527
        %vm7529 = vweird.f32 %v7523
        %vm7530 = vweird.f32 %v7524
        %vm7531 = vmor %vm7529, %vm7530
        %v7532 = vsel %vm7531, %v7524, %v7528
        %v7533 = vand.u32 2147483647, %v7523
        %vm7534 = vcmp.eq.f32.partialorder %v7533, 8.507059e+37
        %v7535 = vand.u32 %v7523, 2147483648
        %v7536 = vor.u32 1.1754944e-38, %v7535
        %v7537 = vsel %vm7534, %v7536, %v7532
        %v7538 = vmul.f32 %v7513, %v7537
        %v7539 = vmin.f32 %v7538, 1.0
        %v7540 = vmax.f32 %v7539, -1.0
        %v7541 = vmul.f32 %v7486, %v7486
        %v7542 = vmin.f32 16.0, %v7541
        %v7543 = vmul.f32 %v7542, 2.1237322e-06
        %v7544 = vadd.f32 %v7543, 0.00028619796
        %v7545 = vmul.f32 %v7542, %v7544
        %v7546 = vadd.f32 %v7545, 0.0036580483
        %v7547 = vmul.f32 %v7542, %v7546
        %v7548 = vadd.f32 %v7547, 0.05243302
        %v7549 = vmul.f32 %v7542, %v7548
        %v7550 = vadd.f32 %v7549, 0.18741608
        %v7551 = vmul.f32 %v7542, %v7550
        %v7552 = vadd.f32 %v7551, 1.1283791
        %v7553 = vmul.f32 %v7486, %v7552
        %v7554 = vmul.f32 %v7542, 3.8918573e-05
        %v7555 = vadd.f32 %v7554, 0.001143296
        %v7556 = vmul.f32 %v7542, %v7555
        %v7557 = vadd.f32 %v7556, 0.014752088
        %v7558 = vmul.f32 %v7542, %v7557
        %v7559 = vadd.f32 %v7558, 0.112945676
        %v7560 = vmul.f32 %v7542, %v7559
        %v7561 = vadd.f32 %v7560, 0.4994258
        %v7562 = vmul.f32 %v7542, %v7561
        %v7563 = vadd.f32 %v7562, 1.0
        %v7564 = vrcp.pop %v7563
        %v7565 = vmul.f32 %v7563, %v7564
        %v7566 = vsub.f32 1.0, %v7565
        %v7567 = vmul.f32 %v7564, %v7566
        %v7568 = vadd.f32 %v7564, %v7567
        %vm7569 = vweird.f32 %v7563
        %vm7570 = vweird.f32 %v7564
        %vm7571 = vmor %vm7569, %vm7570
        %v7572 = vsel %vm7571, %v7564, %v7568
        %v7573 = vand.u32 2147483647, %v7563
        %vm7574 = vcmp.eq.f32.partialorder %v7573, 8.507059e+37
        %v7575 = vand.u32 %v7563, 2147483648
        %v7576 = vor.u32 1.1754944e-38, %v7575
        %v7577 = vsel %vm7574, %v7576, %v7572
        %v7578 = vmul.f32 %v7553, %v7577
        %v7579 = vmin.f32 %v7578, 1.0
        %v7580 = vmax.f32 %v7579, -1.0
        %v7581 = vmul.f32 %v7487, %v7487
        %v7582 = vmin.f32 16.0, %v7581
        %v7583 = vmul.f32 %v7582, 2.1237322e-06
        %v7584 = vadd.f32 %v7583, 0.00028619796
        %v7585 = vmul.f32 %v7582, %v7584
        %v7586 = vadd.f32 %v7585, 0.0036580483
        %v7587 = vmul.f32 %v7582, %v7586
        %v7588 = vadd.f32 %v7587, 0.05243302
        %v7589 = vmul.f32 %v7582, %v7588
        %v7590 = vadd.f32 %v7589, 0.18741608
        %v7591 = vmul.f32 %v7582, %v7590
        %v7592 = vadd.f32 %v7591, 1.1283791
        %v7593 = vmul.f32 %v7487, %v7592
        %v7594 = vmul.f32 %v7582, 3.8918573e-05
        %v7595 = vadd.f32 %v7594, 0.001143296
        %v7596 = vmul.f32 %v7582, %v7595
        %v7597 = vadd.f32 %v7596, 0.014752088
        %v7598 = vmul.f32 %v7582, %v7597
        %v7599 = vadd.f32 %v7598, 0.112945676
        %v7600 = vmul.f32 %v7582, %v7599
        %v7601 = vadd.f32 %v7600, 0.4994258
        %v7602 = vmul.f32 %v7582, %v7601
        %v7603 = vadd.f32 %v7602, 1.0
        %v7604 = vrcp.pop %v7603
        %v7605 = vmul.f32 %v7603, %v7604
        %v7606 = vsub.f32 1.0, %v7605
        %v7607 = vmul.f32 %v7604, %v7606
        %v7608 = vadd.f32 %v7604, %v7607
        %vm7609 = vweird.f32 %v7603
        %vm7610 = vweird.f32 %v7604
        %vm7611 = vmor %vm7609, %vm7610
        %v7612 = vsel %vm7611, %v7604, %v7608
        %v7613 = vand.u32 2147483647, %v7603
        %vm7614 = vcmp.eq.f32.partialorder %v7613, 8.507059e+37
        %v7615 = vand.u32 %v7603, 2147483648
        %v7616 = vor.u32 1.1754944e-38, %v7615
        %v7617 = vsel %vm7614, %v7616, %v7612
        %v7618 = vmul.f32 %v7593, %v7617
        %v7619 = vmin.f32 %v7618, 1.0
        %v7620 = vmax.f32 %v7619, -1.0
        %v7621 = vmul.f32 %v7488, %v7488
        %v7622 = vmin.f32 16.0, %v7621
        %v7623 = vmul.f32 %v7622, 2.1237322e-06
        %v7624 = vadd.f32 %v7623, 0.00028619796
        %v7625 = vmul.f32 %v7622, %v7624
        %v7626 = vadd.f32 %v7625, 0.0036580483
        %v7627 = vmul.f32 %v7622, %v7626
        %v7628 = vadd.f32 %v7627, 0.05243302
        %v7629 = vmul.f32 %v7622, %v7628
        %v7630 = vadd.f32 %v7629, 0.18741608
        %v7631 = vmul.f32 %v7622, %v7630
        %v7632 = vadd.f32 %v7631, 1.1283791
        %v7633 = vmul.f32 %v7488, %v7632
        %v7634 = vmul.f32 %v7622, 3.8918573e-05
        %v7635 = vadd.f32 %v7634, 0.001143296
        %v7636 = vmul.f32 %v7622, %v7635
        %v7637 = vadd.f32 %v7636, 0.014752088
        %v7638 = vmul.f32 %v7622, %v7637
        %v7639 = vadd.f32 %v7638, 0.112945676
        %v7640 = vmul.f32 %v7622, %v7639
        %v7641 = vadd.f32 %v7640, 0.4994258
        %v7642 = vmul.f32 %v7622, %v7641
        %v7643 = vadd.f32 %v7642, 1.0
        %v7644 = vrcp.pop %v7643
        %v7645 = vmul.f32 %v7643, %v7644
        %v7646 = vsub.f32 1.0, %v7645
        %v7647 = vmul.f32 %v7644, %v7646
        %v7648 = vadd.f32 %v7644, %v7647
        %vm7649 = vweird.f32 %v7643
        %vm7650 = vweird.f32 %v7644
        %vm7651 = vmor %vm7649, %vm7650
        %v7652 = vsel %vm7651, %v7644, %v7648
        %v7653 = vand.u32 2147483647, %v7643
        %vm7654 = vcmp.eq.f32.partialorder %v7653, 8.507059e+37
        %v7655 = vand.u32 %v7643, 2147483648
        %v7656 = vor.u32 1.1754944e-38, %v7655
        %v7657 = vsel %vm7654, %v7656, %v7652
        %v7658 = vmul.f32 %v7633, %v7657
        %v7659 = vmin.f32 %v7658, 1.0
        %v7660 = vmax.f32 %v7659, -1.0
        %v7661 = vmul.f32 %v7489, %v7489
        %v7662 = vmin.f32 16.0, %v7661
        %v7663 = vmul.f32 %v7662, 2.1237322e-06
        %v7664 = vadd.f32 %v7663, 0.00028619796
        %v7665 = vmul.f32 %v7662, %v7664
        %v7666 = vadd.f32 %v7665, 0.0036580483
        %v7667 = vmul.f32 %v7662, %v7666
        %v7668 = vadd.f32 %v7667, 0.05243302
        %v7669 = vmul.f32 %v7662, %v7668
        %v7670 = vadd.f32 %v7669, 0.18741608
        %v7671 = vmul.f32 %v7662, %v7670
        %v7672 = vadd.f32 %v7671, 1.1283791
        %v7673 = vmul.f32 %v7489, %v7672
        %v7674 = vmul.f32 %v7662, 3.8918573e-05
        %v7675 = vadd.f32 %v7674, 0.001143296
        %v7676 = vmul.f32 %v7662, %v7675
        %v7677 = vadd.f32 %v7676, 0.014752088
        %v7678 = vmul.f32 %v7662, %v7677
        %v7679 = vadd.f32 %v7678, 0.112945676
        %v7680 = vmul.f32 %v7662, %v7679
        %v7681 = vadd.f32 %v7680, 0.4994258
        %v7682 = vmul.f32 %v7662, %v7681
        %v7683 = vadd.f32 %v7682, 1.0
        %v7684 = vrcp.pop %v7683
        %v7685 = vmul.f32 %v7683, %v7684
        %v7686 = vsub.f32 1.0, %v7685
        %v7687 = vmul.f32 %v7684, %v7686
        %v7688 = vadd.f32 %v7684, %v7687
        %vm7689 = vweird.f32 %v7683
        %vm7690 = vweird.f32 %v7684
        %vm7691 = vmor %vm7689, %vm7690
        %v7692 = vsel %vm7691, %v7684, %v7688
        %v7693 = vand.u32 2147483647, %v7683
        %vm7694 = vcmp.eq.f32.partialorder %v7693, 8.507059e+37
        %v7695 = vand.u32 %v7683, 2147483648
        %v7696 = vor.u32 1.1754944e-38, %v7695
        %v7697 = vsel %vm7694, %v7696, %v7692
        %v7698 = vmul.f32 %v7673, %v7697
        %v7699 = vmin.f32 %v7698, 1.0
        %v7700 = vmax.f32 %v7699, -1.0
        %v7701 = vmul.f32 %v7490, %v7490
        %v7702 = vmin.f32 16.0, %v7701
        %v7703 = vmul.f32 %v7702, 2.1237322e-06
        %v7704 = vadd.f32 %v7703, 0.00028619796
        %v7705 = vmul.f32 %v7702, %v7704
        %v7706 = vadd.f32 %v7705, 0.0036580483
        %v7707 = vmul.f32 %v7702, %v7706
        %v7708 = vadd.f32 %v7707, 0.05243302
        %v7709 = vmul.f32 %v7702, %v7708
        %v7710 = vadd.f32 %v7709, 0.18741608
        %v7711 = vmul.f32 %v7702, %v7710
        %v7712 = vadd.f32 %v7711, 1.1283791
        %v7713 = vmul.f32 %v7490, %v7712
        %v7714 = vmul.f32 %v7702, 3.8918573e-05
        %v7715 = vadd.f32 %v7714, 0.001143296
        %v7716 = vmul.f32 %v7702, %v7715
        %v7717 = vadd.f32 %v7716, 0.014752088
        %v7718 = vmul.f32 %v7702, %v7717
        %v7719 = vadd.f32 %v7718, 0.112945676
        %v7720 = vmul.f32 %v7702, %v7719
        %v7721 = vadd.f32 %v7720, 0.4994258
        %v7722 = vmul.f32 %v7702, %v7721
        %v7723 = vadd.f32 %v7722, 1.0
        %v7724 = vrcp.pop %v7723
        %v7725 = vmul.f32 %v7723, %v7724
        %v7726 = vsub.f32 1.0, %v7725
        %v7727 = vmul.f32 %v7724, %v7726
        %v7728 = vadd.f32 %v7724, %v7727
        %vm7729 = vweird.f32 %v7723
        %vm7730 = vweird.f32 %v7724
        %vm7731 = vmor %vm7729, %vm7730
        %v7732 = vsel %vm7731, %v7724, %v7728
        %v7733 = vand.u32 2147483647, %v7723
        %vm7734 = vcmp.eq.f32.partialorder %v7733, 8.507059e+37
        %v7735 = vand.u32 %v7723, 2147483648
        %v7736 = vor.u32 1.1754944e-38, %v7735
        %v7737 = vsel %vm7734, %v7736, %v7732
        %v7738 = vmul.f32 %v7713, %v7737
        %v7739 = vmin.f32 %v7738, 1.0
        %v7740 = vmax.f32 %v7739, -1.0
        %v7741 = vmul.f32 %v7491, %v7491
        %v7742 = vmin.f32 16.0, %v7741
        %v7743 = vmul.f32 %v7742, 2.1237322e-06
        %v7744 = vadd.f32 %v7743, 0.00028619796
        %v7745 = vmul.f32 %v7742, %v7744
        %v7746 = vadd.f32 %v7745, 0.0036580483
        %v7747 = vmul.f32 %v7742, %v7746
        %v7748 = vadd.f32 %v7747, 0.05243302
        %v7749 = vmul.f32 %v7742, %v7748
        %v7750 = vadd.f32 %v7749, 0.18741608
        %v7751 = vmul.f32 %v7742, %v7750
        %v7752 = vadd.f32 %v7751, 1.1283791
        %v7753 = vmul.f32 %v7491, %v7752
        %v7754 = vmul.f32 %v7742, 3.8918573e-05
        %v7755 = vadd.f32 %v7754, 0.001143296
        %v7756 = vmul.f32 %v7742, %v7755
        %v7757 = vadd.f32 %v7756, 0.014752088
        %v7758 = vmul.f32 %v7742, %v7757
        %v7759 = vadd.f32 %v7758, 0.112945676
        %v7760 = vmul.f32 %v7742, %v7759
        %v7761 = vadd.f32 %v7760, 0.4994258
        %v7762 = vmul.f32 %v7742, %v7761
        %v7763 = vadd.f32 %v7762, 1.0
        %v7764 = vrcp.pop %v7763
        %v7765 = vmul.f32 %v7763, %v7764
        %v7766 = vsub.f32 1.0, %v7765
        %v7767 = vmul.f32 %v7764, %v7766
        %v7768 = vadd.f32 %v7764, %v7767
        %vm7769 = vweird.f32 %v7763
        %vm7770 = vweird.f32 %v7764
        %vm7771 = vmor %vm7769, %vm7770
        %v7772 = vsel %vm7771, %v7764, %v7768
        %v7773 = vand.u32 2147483647, %v7763
        %vm7774 = vcmp.eq.f32.partialorder %v7773, 8.507059e+37
        %v7775 = vand.u32 %v7763, 2147483648
        %v7776 = vor.u32 1.1754944e-38, %v7775
        %v7777 = vsel %vm7774, %v7776, %v7772
        %v7778 = vmul.f32 %v7753, %v7777
        %v7779 = vmin.f32 %v7778, 1.0
        %v7780 = vmax.f32 %v7779, -1.0
        %v7781 = vmul.f32 %v7492, %v7492
        %v7782 = vmin.f32 16.0, %v7781
        %v7783 = vmul.f32 %v7782, 2.1237322e-06
        %v7784 = vadd.f32 %v7783, 0.00028619796
        %v7785 = vmul.f32 %v7782, %v7784
        %v7786 = vadd.f32 %v7785, 0.0036580483
        %v7787 = vmul.f32 %v7782, %v7786
        %v7788 = vadd.f32 %v7787, 0.05243302
        %v7789 = vmul.f32 %v7782, %v7788
        %v7790 = vadd.f32 %v7789, 0.18741608
        %v7791 = vmul.f32 %v7782, %v7790
        %v7792 = vadd.f32 %v7791, 1.1283791
        %v7793 = vmul.f32 %v7492, %v7792
        %v7794 = vmul.f32 %v7782, 3.8918573e-05
        %v7795 = vadd.f32 %v7794, 0.001143296
        %v7796 = vmul.f32 %v7782, %v7795
        %v7797 = vadd.f32 %v7796, 0.014752088
        %v7798 = vmul.f32 %v7782, %v7797
        %v7799 = vadd.f32 %v7798, 0.112945676
        %v7800 = vmul.f32 %v7782, %v7799
        %v7801 = vadd.f32 %v7800, 0.4994258
        %v7802 = vmul.f32 %v7782, %v7801
        %v7803 = vadd.f32 %v7802, 1.0
        %v7804 = vrcp.pop %v7803
        %v7805 = vmul.f32 %v7803, %v7804
        %v7806 = vsub.f32 1.0, %v7805
        %v7807 = vmul.f32 %v7804, %v7806
        %v7808 = vadd.f32 %v7804, %v7807
        %vm7809 = vweird.f32 %v7803
        %vm7810 = vweird.f32 %v7804
        %vm7811 = vmor %vm7809, %vm7810
        %v7812 = vsel %vm7811, %v7804, %v7808
        %v7813 = vand.u32 2147483647, %v7803
        %vm7814 = vcmp.eq.f32.partialorder %v7813, 8.507059e+37
        %v7815 = vand.u32 %v7803, 2147483648
        %v7816 = vor.u32 1.1754944e-38, %v7815
        %v7817 = vsel %vm7814, %v7816, %v7812
        %v7818 = vmul.f32 %v7793, %v7817
        %v7819 = vmin.f32 %v7818, 1.0
        %v7820 = vmax.f32 %v7819, -1.0
        %v7821 = vmul.f32 %v7493, %v7493
        %v7822 = vmin.f32 16.0, %v7821
        %v7823 = vmul.f32 %v7822, 2.1237322e-06
        %v7824 = vadd.f32 %v7823, 0.00028619796
        %v7825 = vmul.f32 %v7822, %v7824
        %v7826 = vadd.f32 %v7825, 0.0036580483
        %v7827 = vmul.f32 %v7822, %v7826
        %v7828 = vadd.f32 %v7827, 0.05243302
        %v7829 = vmul.f32 %v7822, %v7828
        %v7830 = vadd.f32 %v7829, 0.18741608
        %v7831 = vmul.f32 %v7822, %v7830
        %v7832 = vadd.f32 %v7831, 1.1283791
        %v7833 = vmul.f32 %v7493, %v7832
        %v7834 = vmul.f32 %v7822, 3.8918573e-05
        %v7835 = vadd.f32 %v7834, 0.001143296
        %v7836 = vmul.f32 %v7822, %v7835
        %v7837 = vadd.f32 %v7836, 0.014752088
        %v7838 = vmul.f32 %v7822, %v7837
        %v7839 = vadd.f32 %v7838, 0.112945676
        %v7840 = vmul.f32 %v7822, %v7839
        %v7841 = vadd.f32 %v7840, 0.4994258
        %v7842 = vmul.f32 %v7822, %v7841
        %v7843 = vadd.f32 %v7842, 1.0
        %v7844 = vrcp.pop %v7843
        %v7845 = vmul.f32 %v7843, %v7844
        %v7846 = vsub.f32 1.0, %v7845
        %v7847 = vmul.f32 %v7844, %v7846
        %v7848 = vadd.f32 %v7844, %v7847
        %vm7849 = vweird.f32 %v7843
        %vm7850 = vweird.f32 %v7844
        %vm7851 = vmor %vm7849, %vm7850
        %v7852 = vsel %vm7851, %v7844, %v7848
        %v7853 = vand.u32 2147483647, %v7843
        %vm7854 = vcmp.eq.f32.partialorder %v7853, 8.507059e+37
        %v7855 = vand.u32 %v7843, 2147483648
        %v7856 = vor.u32 1.1754944e-38, %v7855
        %v7857 = vsel %vm7854, %v7856, %v7852
        %v7858 = vmul.f32 %v7833, %v7857
        %v7859 = vmin.f32 %v7858, 1.0
        %v7860 = vmax.f32 %v7859, -1.0
        %v7861 = vmul.f32 %v7494, %v7494
        %v7862 = vmin.f32 16.0, %v7861
        %v7863 = vmul.f32 %v7862, 2.1237322e-06
        %v7864 = vadd.f32 %v7863, 0.00028619796
        %v7865 = vmul.f32 %v7862, %v7864
        %v7866 = vadd.f32 %v7865, 0.0036580483
        %v7867 = vmul.f32 %v7862, %v7866
        %v7868 = vadd.f32 %v7867, 0.05243302
        %v7869 = vmul.f32 %v7862, %v7868
        %v7870 = vadd.f32 %v7869, 0.18741608
        %v7871 = vmul.f32 %v7862, %v7870
        %v7872 = vadd.f32 %v7871, 1.1283791
        %v7873 = vmul.f32 %v7494, %v7872
        %v7874 = vmul.f32 %v7862, 3.8918573e-05
        %v7875 = vadd.f32 %v7874, 0.001143296
        %v7876 = vmul.f32 %v7862, %v7875
        %v7877 = vadd.f32 %v7876, 0.014752088
        %v7878 = vmul.f32 %v7862, %v7877
        %v7879 = vadd.f32 %v7878, 0.112945676
        %v7880 = vmul.f32 %v7862, %v7879
        %v7881 = vadd.f32 %v7880, 0.4994258
        %v7882 = vmul.f32 %v7862, %v7881
        %v7883 = vadd.f32 %v7882, 1.0
        %v7884 = vrcp.pop %v7883
        %v7885 = vmul.f32 %v7883, %v7884
        %v7886 = vsub.f32 1.0, %v7885
        %v7887 = vmul.f32 %v7884, %v7886
        %v7888 = vadd.f32 %v7884, %v7887
        %vm7889 = vweird.f32 %v7883
        %vm7890 = vweird.f32 %v7884
        %vm7891 = vmor %vm7889, %vm7890
        %v7892 = vsel %vm7891, %v7884, %v7888
        %v7893 = vand.u32 2147483647, %v7883
        %vm7894 = vcmp.eq.f32.partialorder %v7893, 8.507059e+37
        %v7895 = vand.u32 %v7883, 2147483648
        %v7896 = vor.u32 1.1754944e-38, %v7895
        %v7897 = vsel %vm7894, %v7896, %v7892
        %v7898 = vmul.f32 %v7873, %v7897
        %v7899 = vmin.f32 %v7898, 1.0
        %v7900 = vmax.f32 %v7899, -1.0
        %v7901 = vmul.f32 %v7495, %v7495
        %v7902 = vmin.f32 16.0, %v7901
        %v7903 = vmul.f32 %v7902, 2.1237322e-06
        %v7904 = vadd.f32 %v7903, 0.00028619796
        %v7905 = vmul.f32 %v7902, %v7904
        %v7906 = vadd.f32 %v7905, 0.0036580483
        %v7907 = vmul.f32 %v7902, %v7906
        %v7908 = vadd.f32 %v7907, 0.05243302
        %v7909 = vmul.f32 %v7902, %v7908
        %v7910 = vadd.f32 %v7909, 0.18741608
        %v7911 = vmul.f32 %v7902, %v7910
        %v7912 = vadd.f32 %v7911, 1.1283791
        %v7913 = vmul.f32 %v7495, %v7912
        %v7914 = vmul.f32 %v7902, 3.8918573e-05
        %v7915 = vadd.f32 %v7914, 0.001143296
        %v7916 = vmul.f32 %v7902, %v7915
        %v7917 = vadd.f32 %v7916, 0.014752088
        %v7918 = vmul.f32 %v7902, %v7917
        %v7919 = vadd.f32 %v7918, 0.112945676
        %v7920 = vmul.f32 %v7902, %v7919
        %v7921 = vadd.f32 %v7920, 0.4994258
        %v7922 = vmul.f32 %v7902, %v7921
        %v7923 = vadd.f32 %v7922, 1.0
        %v7924 = vrcp.pop %v7923
        %v7925 = vmul.f32 %v7923, %v7924
        %v7926 = vsub.f32 1.0, %v7925
        %v7927 = vmul.f32 %v7924, %v7926
        %v7928 = vadd.f32 %v7924, %v7927
        %vm7929 = vweird.f32 %v7923
        %vm7930 = vweird.f32 %v7924
        %vm7931 = vmor %vm7929, %vm7930
        %v7932 = vsel %vm7931, %v7924, %v7928
        %v7933 = vand.u32 2147483647, %v7923
        %vm7934 = vcmp.eq.f32.partialorder %v7933, 8.507059e+37
        %v7935 = vand.u32 %v7923, 2147483648
        %v7936 = vor.u32 1.1754944e-38, %v7935
        %v7937 = vsel %vm7934, %v7936, %v7932
        %v7938 = vmul.f32 %v7913, %v7937
        %v7939 = vmin.f32 %v7938, 1.0
        %v7940 = vmax.f32 %v7939, -1.0
        %v7941 = vmul.f32 %v7496, %v7496
        %v7942 = vmin.f32 16.0, %v7941
        %v7943 = vmul.f32 %v7942, 2.1237322e-06
        %v7944 = vadd.f32 %v7943, 0.00028619796
        %v7945 = vmul.f32 %v7942, %v7944
        %v7946 = vadd.f32 %v7945, 0.0036580483
        %v7947 = vmul.f32 %v7942, %v7946
        %v7948 = vadd.f32 %v7947, 0.05243302
        %v7949 = vmul.f32 %v7942, %v7948
        %v7950 = vadd.f32 %v7949, 0.18741608
        %v7951 = vmul.f32 %v7942, %v7950
        %v7952 = vadd.f32 %v7951, 1.1283791
        %v7953 = vmul.f32 %v7496, %v7952
        %v7954 = vmul.f32 %v7942, 3.8918573e-05
        %v7955 = vadd.f32 %v7954, 0.001143296
        %v7956 = vmul.f32 %v7942, %v7955
        %v7957 = vadd.f32 %v7956, 0.014752088
        %v7958 = vmul.f32 %v7942, %v7957
        %v7959 = vadd.f32 %v7958, 0.112945676
        %v7960 = vmul.f32 %v7942, %v7959
        %v7961 = vadd.f32 %v7960, 0.4994258
        %v7962 = vmul.f32 %v7942, %v7961
        %v7963 = vadd.f32 %v7962, 1.0
        %v7964 = vrcp.pop %v7963
        %v7965 = vmul.f32 %v7963, %v7964
        %v7966 = vsub.f32 1.0, %v7965
        %v7967 = vmul.f32 %v7964, %v7966
        %v7968 = vadd.f32 %v7964, %v7967
        %vm7969 = vweird.f32 %v7963
        %vm7970 = vweird.f32 %v7964
        %vm7971 = vmor %vm7969, %vm7970
        %v7972 = vsel %vm7971, %v7964, %v7968
        %v7973 = vand.u32 2147483647, %v7963
        %vm7974 = vcmp.eq.f32.partialorder %v7973, 8.507059e+37
        %v7975 = vand.u32 %v7963, 2147483648
        %v7976 = vor.u32 1.1754944e-38, %v7975
        %v7977 = vsel %vm7974, %v7976, %v7972
        %v7978 = vmul.f32 %v7953, %v7977
        %v7979 = vmin.f32 %v7978, 1.0
        %v7980 = vmax.f32 %v7979, -1.0
        %v7981 = vmul.f32 %v7497, %v7497
        %v7982 = vmin.f32 16.0, %v7981
        %v7983 = vmul.f32 %v7982, 2.1237322e-06
        %v7984 = vadd.f32 %v7983, 0.00028619796
        %v7985 = vmul.f32 %v7982, %v7984
        %v7986 = vadd.f32 %v7985, 0.0036580483
        %v7987 = vmul.f32 %v7982, %v7986
        %v7988 = vadd.f32 %v7987, 0.05243302
        %v7989 = vmul.f32 %v7982, %v7988
        %v7990 = vadd.f32 %v7989, 0.18741608
        %v7991 = vmul.f32 %v7982, %v7990
        %v7992 = vadd.f32 %v7991, 1.1283791
        %v7993 = vmul.f32 %v7497, %v7992
        %v7994 = vmul.f32 %v7982, 3.8918573e-05
        %v7995 = vadd.f32 %v7994, 0.001143296
        %v7996 = vmul.f32 %v7982, %v7995
        %v7997 = vadd.f32 %v7996, 0.014752088
        %v7998 = vmul.f32 %v7982, %v7997
        %v7999 = vadd.f32 %v7998, 0.112945676
        %v8000 = vmul.f32 %v7982, %v7999
        %v8001 = vadd.f32 %v8000, 0.4994258
        %v8002 = vmul.f32 %v7982, %v8001
        %v8003 = vadd.f32 %v8002, 1.0
        %v8004 = vrcp.pop %v8003
        %v8005 = vmul.f32 %v8003, %v8004
        %v8006 = vsub.f32 1.0, %v8005
        %v8007 = vmul.f32 %v8004, %v8006
        %v8008 = vadd.f32 %v8004, %v8007
        %vm8009 = vweird.f32 %v8003
        %vm8010 = vweird.f32 %v8004
        %vm8011 = vmor %vm8009, %vm8010
        %v8012 = vsel %vm8011, %v8004, %v8008
        %v8013 = vand.u32 2147483647, %v8003
        %vm8014 = vcmp.eq.f32.partialorder %v8013, 8.507059e+37
        %v8015 = vand.u32 %v8003, 2147483648
        %v8016 = vor.u32 1.1754944e-38, %v8015
        %v8017 = vsel %vm8014, %v8016, %v8012
        %v8018 = vmul.f32 %v7993, %v8017
        %v8019 = vmin.f32 %v8018, 1.0
        %v8020 = vmax.f32 %v8019, -1.0
        %v8021 = vmul.f32 %v7498, %v7498
        %v8022 = vmin.f32 16.0, %v8021
        %v8023 = vmul.f32 %v8022, 2.1237322e-06
        %v8024 = vadd.f32 %v8023, 0.00028619796
        %v8025 = vmul.f32 %v8022, %v8024
        %v8026 = vadd.f32 %v8025, 0.0036580483
        %v8027 = vmul.f32 %v8022, %v8026
        %v8028 = vadd.f32 %v8027, 0.05243302
        %v8029 = vmul.f32 %v8022, %v8028
        %v8030 = vadd.f32 %v8029, 0.18741608
        %v8031 = vmul.f32 %v8022, %v8030
        %v8032 = vadd.f32 %v8031, 1.1283791
        %v8033 = vmul.f32 %v7498, %v8032
        %v8034 = vmul.f32 %v8022, 3.8918573e-05
        %v8035 = vadd.f32 %v8034, 0.001143296
        %v8036 = vmul.f32 %v8022, %v8035
        %v8037 = vadd.f32 %v8036, 0.014752088
        %v8038 = vmul.f32 %v8022, %v8037
        %v8039 = vadd.f32 %v8038, 0.112945676
        %v8040 = vmul.f32 %v8022, %v8039
        %v8041 = vadd.f32 %v8040, 0.4994258
        %v8042 = vmul.f32 %v8022, %v8041
        %v8043 = vadd.f32 %v8042, 1.0
        %v8044 = vrcp.pop %v8043
        %v8045 = vmul.f32 %v8043, %v8044
        %v8046 = vsub.f32 1.0, %v8045
        %v8047 = vmul.f32 %v8044, %v8046
        %v8048 = vadd.f32 %v8044, %v8047
        %vm8049 = vweird.f32 %v8043
        %vm8050 = vweird.f32 %v8044
        %vm8051 = vmor %vm8049, %vm8050
        %v8052 = vsel %vm8051, %v8044, %v8048
        %v8053 = vand.u32 2147483647, %v8043
        %vm8054 = vcmp.eq.f32.partialorder %v8053, 8.507059e+37
        %v8055 = vand.u32 %v8043, 2147483648
        %v8056 = vor.u32 1.1754944e-38, %v8055
        %v8057 = vsel %vm8054, %v8056, %v8052
        %v8058 = vmul.f32 %v8033, %v8057
        %v8059 = vmin.f32 %v8058, 1.0
        %v8060 = vmax.f32 %v8059, -1.0
        %v8061 = vmul.f32 %v7499, %v7499
        %v8062 = vmin.f32 16.0, %v8061
        %v8063 = vmul.f32 %v8062, 2.1237322e-06
        %v8064 = vadd.f32 %v8063, 0.00028619796
        %v8065 = vmul.f32 %v8062, %v8064
        %v8066 = vadd.f32 %v8065, 0.0036580483
        %v8067 = vmul.f32 %v8062, %v8066
        %v8068 = vadd.f32 %v8067, 0.05243302
        %v8069 = vmul.f32 %v8062, %v8068
        %v8070 = vadd.f32 %v8069, 0.18741608
        %v8071 = vmul.f32 %v8062, %v8070
        %v8072 = vadd.f32 %v8071, 1.1283791
        %v8073 = vmul.f32 %v7499, %v8072
        %v8074 = vmul.f32 %v8062, 3.8918573e-05
        %v8075 = vadd.f32 %v8074, 0.001143296
        %v8076 = vmul.f32 %v8062, %v8075
        %v8077 = vadd.f32 %v8076, 0.014752088
        %v8078 = vmul.f32 %v8062, %v8077
        %v8079 = vadd.f32 %v8078, 0.112945676
        %v8080 = vmul.f32 %v8062, %v8079
        %v8081 = vadd.f32 %v8080, 0.4994258
        %v8082 = vmul.f32 %v8062, %v8081
        %v8083 = vadd.f32 %v8082, 1.0
        %v8084 = vrcp.pop %v8083
        %v8085 = vmul.f32 %v8083, %v8084
        %v8086 = vsub.f32 1.0, %v8085
        %v8087 = vmul.f32 %v8084, %v8086
        %v8088 = vadd.f32 %v8084, %v8087
        %vm8089 = vweird.f32 %v8083
        %vm8090 = vweird.f32 %v8084
        %vm8091 = vmor %vm8089, %vm8090
        %v8092 = vsel %vm8091, %v8084, %v8088
        %v8093 = vand.u32 2147483647, %v8083
        %vm8094 = vcmp.eq.f32.partialorder %v8093, 8.507059e+37
        %v8095 = vand.u32 %v8083, 2147483648
        %v8096 = vor.u32 1.1754944e-38, %v8095
        %v8097 = vsel %vm8094, %v8096, %v8092
        %v8098 = vmul.f32 %v8073, %v8097
        %v8099 = vmin.f32 %v8098, 1.0
        %v8100 = vmax.f32 %v8099, -1.0
        %v8101 = vmul.f32 %v7500, %v7500
        %v8102 = vmin.f32 16.0, %v8101
        %v8103 = vmul.f32 %v8102, 2.1237322e-06
        %v8104 = vadd.f32 %v8103, 0.00028619796
        %v8105 = vmul.f32 %v8102, %v8104
        %v8106 = vadd.f32 %v8105, 0.0036580483
        %v8107 = vmul.f32 %v8102, %v8106
        %v8108 = vadd.f32 %v8107, 0.05243302
        %v8109 = vmul.f32 %v8102, %v8108
        %v8110 = vadd.f32 %v8109, 0.18741608
        %v8111 = vmul.f32 %v8102, %v8110
        %v8112 = vadd.f32 %v8111, 1.1283791
        %v8113 = vmul.f32 %v7500, %v8112
        %v8114 = vmul.f32 %v8102, 3.8918573e-05
        %v8115 = vadd.f32 %v8114, 0.001143296
        %v8116 = vmul.f32 %v8102, %v8115
        %v8117 = vadd.f32 %v8116, 0.014752088
        %v8118 = vmul.f32 %v8102, %v8117
        %v8119 = vadd.f32 %v8118, 0.112945676
        %v8120 = vmul.f32 %v8102, %v8119
        %v8121 = vadd.f32 %v8120, 0.4994258
        %v8122 = vmul.f32 %v8102, %v8121
        %v8123 = vadd.f32 %v8122, 1.0
        %v8124 = vrcp.pop %v8123
        %v8125 = vmul.f32 %v8123, %v8124
        %v8126 = vsub.f32 1.0, %v8125
        %v8127 = vmul.f32 %v8124, %v8126
        %v8128 = vadd.f32 %v8124, %v8127
        %vm8129 = vweird.f32 %v8123
        %vm8130 = vweird.f32 %v8124
        %vm8131 = vmor %vm8129, %vm8130
        %v8132 = vsel %vm8131, %v8124, %v8128
        %v8133 = vand.u32 2147483647, %v8123
        %vm8134 = vcmp.eq.f32.partialorder %v8133, 8.507059e+37
        %v8135 = vand.u32 %v8123, 2147483648
        %v8136 = vor.u32 1.1754944e-38, %v8135
        %v8137 = vsel %vm8134, %v8136, %v8132
        %v8138 = vmul.f32 %v8113, %v8137
        %v8139 = vmin.f32 %v8138, 1.0
        %v8140 = vmax.f32 %v8139, -1.0
        %v8141 = vadd.f32 %v7540, 1.0
        %v8142 = vadd.f32 %v7580, 1.0
        %v8143 = vadd.f32 %v7620, 1.0
        %v8144 = vadd.f32 %v7660, 1.0
        %v8145 = vadd.f32 %v7700, 1.0
        %v8146 = vadd.f32 %v7740, 1.0
        %v8147 = vadd.f32 %v7780, 1.0
        %v8148 = vadd.f32 %v7820, 1.0
        %v8149 = vadd.f32 %v7860, 1.0
        %v8150 = vadd.f32 %v7900, 1.0
        %v8151 = vadd.f32 %v7940, 1.0
        %v8152 = vadd.f32 %v7980, 1.0
        %v8153 = vadd.f32 %v8020, 1.0
        %v8154 = vadd.f32 %v8060, 1.0
        %v8155 = vadd.f32 %v8100, 1.0
        %v8156 = vadd.f32 %v8140, 1.0
        %v8157 = vmul.f32 %v7469, %v8141
        %v8158 = vmul.f32 %v7470, %v8142
        %v8159 = vmul.f32 %v7471, %v8143
        %v8160 = vmul.f32 %v7472, %v8144
        %v8161 = vmul.f32 %v7473, %v8145
        %v8162 = vmul.f32 %v7474, %v8146
        %v8163 = vmul.f32 %v7475, %v8147
        %v8164 = vmul.f32 %v7476, %v8148
        %v8165 = vmul.f32 %v7477, %v8149
        %v8166 = vmul.f32 %v7478, %v8150
        %v8167 = vmul.f32 %v7479, %v8151
        %v8168 = vmul.f32 %v7480, %v8152
        %v8169 = vmul.f32 %v7481, %v8153
        %v8170 = vmul.f32 %v7482, %v8154
        %v8171 = vmul.f32 %v7483, %v8155
        %v8172 = vmul.f32 %v7484, %v8156
        %v8173 = vpack.c.bf16 %v8158, %v8157
        %v8174 = vpack.c.bf16 %v8160, %v8159
        %v8175 = vpack.c.bf16 %v8162, %v8161
        %v8176 = vpack.c.bf16 %v8164, %v8163
        %v8177 = vpack.c.bf16 %v8166, %v8165
        %v8178 = vpack.c.bf16 %v8168, %v8167
        %v8179 = vpack.c.bf16 %v8170, %v8169
        %v8180 = vpack.c.bf16 %v8172, %v8171
        %s8181 = scalar_lea.vmem %s4, 128
        %v8182 = vld [vmem:[%s8181] sm:$0xf]
        %v8183 = vld [vmem:[%s8181 + $0x4] sm:$0xf]
        %v8184 = vld [vmem:[%s8181 + $0x8] sm:$0xf]
        %v8185 = vld [vmem:[%s8181 + $0xc] sm:$0xf]
        %v8186 = vld [vmem:[%s8181 + $0x10] sm:$0xf]
        %v8187 = vld [vmem:[%s8181 + $0x14] sm:$0xf]
        %v8188 = vld [vmem:[%s8181 + $0x18] sm:$0xf]
        %v8189 = vld [vmem:[%s8181 + $0x1c] sm:$0xf]
        %v8190 = vld [vmem:[%s8181 + $0x20] sm:$0xf]
        %v8191 = vld [vmem:[%s8181 + $0x24] sm:$0xf]
        %v8192 = vld [vmem:[%s8181 + $0x28] sm:$0xf]
        %v8193 = vld [vmem:[%s8181 + $0x2c] sm:$0xf]
        %v8194 = vld [vmem:[%s8181 + $0x30] sm:$0xf]
        %v8195 = vld [vmem:[%s8181 + $0x34] sm:$0xf]
        %v8196 = vld [vmem:[%s8181 + $0x38] sm:$0xf]
        %v8197 = vld [vmem:[%s8181 + $0x3c] sm:$0xf]
        %v8198 = vperm.slane %v253, 0
        %v8215 = vunpack.c.l.b16 %v8182
        %v8216 = vunpack.c.l.b16 %v8183
        %v8217 = vunpack.c.l.b16 %v8184
        %v8218 = vunpack.c.l.b16 %v8185
        %v8219 = vunpack.c.l.b16 %v8186
        %v8220 = vunpack.c.l.b16 %v8187
        %v8221 = vunpack.c.l.b16 %v8188
        %v8222 = vunpack.c.l.b16 %v8189
        %v8223 = vunpack.c.l.b16 %v8190
        %v8224 = vunpack.c.l.b16 %v8191
        %v8225 = vunpack.c.l.b16 %v8192
        %v8226 = vunpack.c.l.b16 %v8193
        %v8227 = vunpack.c.l.b16 %v8194
        %v8228 = vunpack.c.l.b16 %v8195
        %v8229 = vunpack.c.l.b16 %v8196
        %v8230 = vunpack.c.l.b16 %v8197
        %v8231 = vpack.c.b16 %v8216, %v8215
        %v8232 = vpack.c.b16 %v8218, %v8217
        %v8233 = vpack.c.b16 %v8220, %v8219
        %v8234 = vpack.c.b16 %v8222, %v8221
        %v8235 = vpack.c.b16 %v8224, %v8223
        %v8236 = vpack.c.b16 %v8226, %v8225
        %v8237 = vpack.c.b16 %v8228, %v8227
        %v8238 = vpack.c.b16 %v8230, %v8229
        %8247 = vmatpush.bf16.msra.mxu0 %v8238
        %8248 = vmatpush.bf16.msra.mxu0 %v8237
        %8249 = vmatpush.bf16.msra.mxu0 %v8236
        %8250 = vmatpush.bf16.msra.mxu0 %v8235
        %8251 = vmatpush.bf16.msra.mxu0 %v8234
        %8252 = vmatpush.bf16.msra.mxu0 %v8233
        %8253 = vmatpush.bf16.msra.mxu0 %v8232
        %8254 = vmatpush.bf16.msra.mxu0 %v8231
        %8255 = vmatmul.bf16.gmra.mxu0 %v8173
        %v8256 = vpop.f32.mrf.mxu0
        %v8257 = vadd.f32 %v8198, %v8256
        %v8258 = vpop.f32.mrf.mxu0
        %v8259 = vadd.f32 %v8198, %v8258
        %8260 = vmatmul.bf16.gmra.mxu0 %v8174
        %v8261 = vpop.f32.mrf.mxu0
        %v8262 = vadd.f32 %v8198, %v8261
        %v8263 = vpop.f32.mrf.mxu0
        %v8264 = vadd.f32 %v8198, %v8263
        %8265 = vmatmul.bf16.gmra.mxu0 %v8175
        %v8266 = vpop.f32.mrf.mxu0
        %v8267 = vadd.f32 %v8198, %v8266
        %v8268 = vpop.f32.mrf.mxu0
        %v8269 = vadd.f32 %v8198, %v8268
        %8270 = vmatmul.bf16.gmra.mxu0 %v8176
        %v8271 = vpop.f32.mrf.mxu0
        %v8272 = vadd.f32 %v8198, %v8271
        %v8273 = vpop.f32.mrf.mxu0
        %v8274 = vadd.f32 %v8198, %v8273
        %8275 = vmatmul.bf16.gmra.mxu0 %v8177
        %v8276 = vpop.f32.mrf.mxu0
        %v8277 = vadd.f32 %v8198, %v8276
        %v8278 = vpop.f32.mrf.mxu0
        %v8279 = vadd.f32 %v8198, %v8278
        %8280 = vmatmul.bf16.gmra.mxu0 %v8178
        %v8281 = vpop.f32.mrf.mxu0
        %v8282 = vadd.f32 %v8198, %v8281
        %v8283 = vpop.f32.mrf.mxu0
        %v8284 = vadd.f32 %v8198, %v8283
        %8285 = vmatmul.bf16.gmra.mxu0 %v8179
        %v8286 = vpop.f32.mrf.mxu0
        %v8287 = vadd.f32 %v8198, %v8286
        %v8288 = vpop.f32.mrf.mxu0
        %v8289 = vadd.f32 %v8198, %v8288
        %8290 = vmatmul.bf16.gmra.mxu0 %v8180
        %v8291 = vpop.f32.mrf.mxu0
        %v8292 = vadd.f32 %v8198, %v8291
        %v8293 = vpop.f32.mrf.mxu0
        %v8294 = vadd.f32 %v8198, %v8293
        %8295 = vdwg.mxu0
        %v8296 = vmul.f32 %v8257, 0.5
        %v8297 = vmul.f32 %v8259, 0.5
        %v8298 = vmul.f32 %v8262, 0.5
        %v8299 = vmul.f32 %v8264, 0.5
        %v8300 = vmul.f32 %v8267, 0.5
        %v8301 = vmul.f32 %v8269, 0.5
        %v8302 = vmul.f32 %v8272, 0.5
        %v8303 = vmul.f32 %v8274, 0.5
        %v8304 = vmul.f32 %v8277, 0.5
        %v8305 = vmul.f32 %v8279, 0.5
        %v8306 = vmul.f32 %v8282, 0.5
        %v8307 = vmul.f32 %v8284, 0.5
        %v8308 = vmul.f32 %v8287, 0.5
        %v8309 = vmul.f32 %v8289, 0.5
        %v8310 = vmul.f32 %v8292, 0.5
        %v8311 = vmul.f32 %v8294, 0.5
        %v8312 = vmul.f32 %v8257, 0.70710677
        %v8313 = vmul.f32 %v8259, 0.70710677
        %v8314 = vmul.f32 %v8262, 0.70710677
        %v8315 = vmul.f32 %v8264, 0.70710677
        %v8316 = vmul.f32 %v8267, 0.70710677
        %v8317 = vmul.f32 %v8269, 0.70710677
        %v8318 = vmul.f32 %v8272, 0.70710677
        %v8319 = vmul.f32 %v8274, 0.70710677
        %v8320 = vmul.f32 %v8277, 0.70710677
        %v8321 = vmul.f32 %v8279, 0.70710677
        %v8322 = vmul.f32 %v8282, 0.70710677
        %v8323 = vmul.f32 %v8284, 0.70710677
        %v8324 = vmul.f32 %v8287, 0.70710677
        %v8325 = vmul.f32 %v8289, 0.70710677
        %v8326 = vmul.f32 %v8292, 0.70710677
        %v8327 = vmul.f32 %v8294, 0.70710677
        %v8328 = vmul.f32 %v8312, %v8312
        %v8329 = vmin.f32 16.0, %v8328
        %v8330 = vmul.f32 %v8329, 2.1237322e-06
        %v8331 = vadd.f32 %v8330, 0.00028619796
        %v8332 = vmul.f32 %v8329, %v8331
        %v8333 = vadd.f32 %v8332, 0.0036580483
        %v8334 = vmul.f32 %v8329, %v8333
        %v8335 = vadd.f32 %v8334, 0.05243302
        %v8336 = vmul.f32 %v8329, %v8335
        %v8337 = vadd.f32 %v8336, 0.18741608
        %v8338 = vmul.f32 %v8329, %v8337
        %v8339 = vadd.f32 %v8338, 1.1283791
        %v8340 = vmul.f32 %v8312, %v8339
        %v8341 = vmul.f32 %v8329, 3.8918573e-05
        %v8342 = vadd.f32 %v8341, 0.001143296
        %v8343 = vmul.f32 %v8329, %v8342
        %v8344 = vadd.f32 %v8343, 0.014752088
        %v8345 = vmul.f32 %v8329, %v8344
        %v8346 = vadd.f32 %v8345, 0.112945676
        %v8347 = vmul.f32 %v8329, %v8346
        %v8348 = vadd.f32 %v8347, 0.4994258
        %v8349 = vmul.f32 %v8329, %v8348
        %v8350 = vadd.f32 %v8349, 1.0
        %v8351 = vrcp.pop %v8350
        %v8352 = vmul.f32 %v8350, %v8351
        %v8353 = vsub.f32 1.0, %v8352
        %v8354 = vmul.f32 %v8351, %v8353
        %v8355 = vadd.f32 %v8351, %v8354
        %vm8356 = vweird.f32 %v8350
        %vm8357 = vweird.f32 %v8351
        %vm8358 = vmor %vm8356, %vm8357
        %v8359 = vsel %vm8358, %v8351, %v8355
        %v8360 = vand.u32 2147483647, %v8350
        %vm8361 = vcmp.eq.f32.partialorder %v8360, 8.507059e+37
        %v8362 = vand.u32 %v8350, 2147483648
        %v8363 = vor.u32 1.1754944e-38, %v8362
        %v8364 = vsel %vm8361, %v8363, %v8359
        %v8365 = vmul.f32 %v8340, %v8364
        %v8366 = vmin.f32 %v8365, 1.0
        %v8367 = vmax.f32 %v8366, -1.0
        %v8368 = vmul.f32 %v8313, %v8313
        %v8369 = vmin.f32 16.0, %v8368
        %v8370 = vmul.f32 %v8369, 2.1237322e-06
        %v8371 = vadd.f32 %v8370, 0.00028619796
        %v8372 = vmul.f32 %v8369, %v8371
        %v8373 = vadd.f32 %v8372, 0.0036580483
        %v8374 = vmul.f32 %v8369, %v8373
        %v8375 = vadd.f32 %v8374, 0.05243302
        %v8376 = vmul.f32 %v8369, %v8375
        %v8377 = vadd.f32 %v8376, 0.18741608
        %v8378 = vmul.f32 %v8369, %v8377
        %v8379 = vadd.f32 %v8378, 1.1283791
        %v8380 = vmul.f32 %v8313, %v8379
        %v8381 = vmul.f32 %v8369, 3.8918573e-05
        %v8382 = vadd.f32 %v8381, 0.001143296
        %v8383 = vmul.f32 %v8369, %v8382
        %v8384 = vadd.f32 %v8383, 0.014752088
        %v8385 = vmul.f32 %v8369, %v8384
        %v8386 = vadd.f32 %v8385, 0.112945676
        %v8387 = vmul.f32 %v8369, %v8386
        %v8388 = vadd.f32 %v8387, 0.4994258
        %v8389 = vmul.f32 %v8369, %v8388
        %v8390 = vadd.f32 %v8389, 1.0
        %v8391 = vrcp.pop %v8390
        %v8392 = vmul.f32 %v8390, %v8391
        %v8393 = vsub.f32 1.0, %v8392
        %v8394 = vmul.f32 %v8391, %v8393
        %v8395 = vadd.f32 %v8391, %v8394
        %vm8396 = vweird.f32 %v8390
        %vm8397 = vweird.f32 %v8391
        %vm8398 = vmor %vm8396, %vm8397
        %v8399 = vsel %vm8398, %v8391, %v8395
        %v8400 = vand.u32 2147483647, %v8390
        %vm8401 = vcmp.eq.f32.partialorder %v8400, 8.507059e+37
        %v8402 = vand.u32 %v8390, 2147483648
        %v8403 = vor.u32 1.1754944e-38, %v8402
        %v8404 = vsel %vm8401, %v8403, %v8399
        %v8405 = vmul.f32 %v8380, %v8404
        %v8406 = vmin.f32 %v8405, 1.0
        %v8407 = vmax.f32 %v8406, -1.0
        %v8408 = vmul.f32 %v8314, %v8314
        %v8409 = vmin.f32 16.0, %v8408
        %v8410 = vmul.f32 %v8409, 2.1237322e-06
        %v8411 = vadd.f32 %v8410, 0.00028619796
        %v8412 = vmul.f32 %v8409, %v8411
        %v8413 = vadd.f32 %v8412, 0.0036580483
        %v8414 = vmul.f32 %v8409, %v8413
        %v8415 = vadd.f32 %v8414, 0.05243302
        %v8416 = vmul.f32 %v8409, %v8415
        %v8417 = vadd.f32 %v8416, 0.18741608
        %v8418 = vmul.f32 %v8409, %v8417
        %v8419 = vadd.f32 %v8418, 1.1283791
        %v8420 = vmul.f32 %v8314, %v8419
        %v8421 = vmul.f32 %v8409, 3.8918573e-05
        %v8422 = vadd.f32 %v8421, 0.001143296
        %v8423 = vmul.f32 %v8409, %v8422
        %v8424 = vadd.f32 %v8423, 0.014752088
        %v8425 = vmul.f32 %v8409, %v8424
        %v8426 = vadd.f32 %v8425, 0.112945676
        %v8427 = vmul.f32 %v8409, %v8426
        %v8428 = vadd.f32 %v8427, 0.4994258
        %v8429 = vmul.f32 %v8409, %v8428
        %v8430 = vadd.f32 %v8429, 1.0
        %v8431 = vrcp.pop %v8430
        %v8432 = vmul.f32 %v8430, %v8431
        %v8433 = vsub.f32 1.0, %v8432
        %v8434 = vmul.f32 %v8431, %v8433
        %v8435 = vadd.f32 %v8431, %v8434
        %vm8436 = vweird.f32 %v8430
        %vm8437 = vweird.f32 %v8431
        %vm8438 = vmor %vm8436, %vm8437
        %v8439 = vsel %vm8438, %v8431, %v8435
        %v8440 = vand.u32 2147483647, %v8430
        %vm8441 = vcmp.eq.f32.partialorder %v8440, 8.507059e+37
        %v8442 = vand.u32 %v8430, 2147483648
        %v8443 = vor.u32 1.1754944e-38, %v8442
        %v8444 = vsel %vm8441, %v8443, %v8439
        %v8445 = vmul.f32 %v8420, %v8444
        %v8446 = vmin.f32 %v8445, 1.0
        %v8447 = vmax.f32 %v8446, -1.0
        %v8448 = vmul.f32 %v8315, %v8315
        %v8449 = vmin.f32 16.0, %v8448
        %v8450 = vmul.f32 %v8449, 2.1237322e-06
        %v8451 = vadd.f32 %v8450, 0.00028619796
        %v8452 = vmul.f32 %v8449, %v8451
        %v8453 = vadd.f32 %v8452, 0.0036580483
        %v8454 = vmul.f32 %v8449, %v8453
        %v8455 = vadd.f32 %v8454, 0.05243302
        %v8456 = vmul.f32 %v8449, %v8455
        %v8457 = vadd.f32 %v8456, 0.18741608
        %v8458 = vmul.f32 %v8449, %v8457
        %v8459 = vadd.f32 %v8458, 1.1283791
        %v8460 = vmul.f32 %v8315, %v8459
        %v8461 = vmul.f32 %v8449, 3.8918573e-05
        %v8462 = vadd.f32 %v8461, 0.001143296
        %v8463 = vmul.f32 %v8449, %v8462
        %v8464 = vadd.f32 %v8463, 0.014752088
        %v8465 = vmul.f32 %v8449, %v8464
        %v8466 = vadd.f32 %v8465, 0.112945676
        %v8467 = vmul.f32 %v8449, %v8466
        %v8468 = vadd.f32 %v8467, 0.4994258
        %v8469 = vmul.f32 %v8449, %v8468
        %v8470 = vadd.f32 %v8469, 1.0
        %v8471 = vrcp.pop %v8470
        %v8472 = vmul.f32 %v8470, %v8471
        %v8473 = vsub.f32 1.0, %v8472
        %v8474 = vmul.f32 %v8471, %v8473
        %v8475 = vadd.f32 %v8471, %v8474
        %vm8476 = vweird.f32 %v8470
        %vm8477 = vweird.f32 %v8471
        %vm8478 = vmor %vm8476, %vm8477
        %v8479 = vsel %vm8478, %v8471, %v8475
        %v8480 = vand.u32 2147483647, %v8470
        %vm8481 = vcmp.eq.f32.partialorder %v8480, 8.507059e+37
        %v8482 = vand.u32 %v8470, 2147483648
        %v8483 = vor.u32 1.1754944e-38, %v8482
        %v8484 = vsel %vm8481, %v8483, %v8479
        %v8485 = vmul.f32 %v8460, %v8484
        %v8486 = vmin.f32 %v8485, 1.0
        %v8487 = vmax.f32 %v8486, -1.0
        %v8488 = vmul.f32 %v8316, %v8316
        %v8489 = vmin.f32 16.0, %v8488
        %v8490 = vmul.f32 %v8489, 2.1237322e-06
        %v8491 = vadd.f32 %v8490, 0.00028619796
        %v8492 = vmul.f32 %v8489, %v8491
        %v8493 = vadd.f32 %v8492, 0.0036580483
        %v8494 = vmul.f32 %v8489, %v8493
        %v8495 = vadd.f32 %v8494, 0.05243302
        %v8496 = vmul.f32 %v8489, %v8495
        %v8497 = vadd.f32 %v8496, 0.18741608
        %v8498 = vmul.f32 %v8489, %v8497
        %v8499 = vadd.f32 %v8498, 1.1283791
        %v8500 = vmul.f32 %v8316, %v8499
        %v8501 = vmul.f32 %v8489, 3.8918573e-05
        %v8502 = vadd.f32 %v8501, 0.001143296
        %v8503 = vmul.f32 %v8489, %v8502
        %v8504 = vadd.f32 %v8503, 0.014752088
        %v8505 = vmul.f32 %v8489, %v8504
        %v8506 = vadd.f32 %v8505, 0.112945676
        %v8507 = vmul.f32 %v8489, %v8506
        %v8508 = vadd.f32 %v8507, 0.4994258
        %v8509 = vmul.f32 %v8489, %v8508
        %v8510 = vadd.f32 %v8509, 1.0
        %v8511 = vrcp.pop %v8510
        %v8512 = vmul.f32 %v8510, %v8511
        %v8513 = vsub.f32 1.0, %v8512
        %v8514 = vmul.f32 %v8511, %v8513
        %v8515 = vadd.f32 %v8511, %v8514
        %vm8516 = vweird.f32 %v8510
        %vm8517 = vweird.f32 %v8511
        %vm8518 = vmor %vm8516, %vm8517
        %v8519 = vsel %vm8518, %v8511, %v8515
        %v8520 = vand.u32 2147483647, %v8510
        %vm8521 = vcmp.eq.f32.partialorder %v8520, 8.507059e+37
        %v8522 = vand.u32 %v8510, 2147483648
        %v8523 = vor.u32 1.1754944e-38, %v8522
        %v8524 = vsel %vm8521, %v8523, %v8519
        %v8525 = vmul.f32 %v8500, %v8524
        %v8526 = vmin.f32 %v8525, 1.0
        %v8527 = vmax.f32 %v8526, -1.0
        %v8528 = vmul.f32 %v8317, %v8317
        %v8529 = vmin.f32 16.0, %v8528
        %v8530 = vmul.f32 %v8529, 2.1237322e-06
        %v8531 = vadd.f32 %v8530, 0.00028619796
        %v8532 = vmul.f32 %v8529, %v8531
        %v8533 = vadd.f32 %v8532, 0.0036580483
        %v8534 = vmul.f32 %v8529, %v8533
        %v8535 = vadd.f32 %v8534, 0.05243302
        %v8536 = vmul.f32 %v8529, %v8535
        %v8537 = vadd.f32 %v8536, 0.18741608
        %v8538 = vmul.f32 %v8529, %v8537
        %v8539 = vadd.f32 %v8538, 1.1283791
        %v8540 = vmul.f32 %v8317, %v8539
        %v8541 = vmul.f32 %v8529, 3.8918573e-05
        %v8542 = vadd.f32 %v8541, 0.001143296
        %v8543 = vmul.f32 %v8529, %v8542
        %v8544 = vadd.f32 %v8543, 0.014752088
        %v8545 = vmul.f32 %v8529, %v8544
        %v8546 = vadd.f32 %v8545, 0.112945676
        %v8547 = vmul.f32 %v8529, %v8546
        %v8548 = vadd.f32 %v8547, 0.4994258
        %v8549 = vmul.f32 %v8529, %v8548
        %v8550 = vadd.f32 %v8549, 1.0
        %v8551 = vrcp.pop %v8550
        %v8552 = vmul.f32 %v8550, %v8551
        %v8553 = vsub.f32 1.0, %v8552
        %v8554 = vmul.f32 %v8551, %v8553
        %v8555 = vadd.f32 %v8551, %v8554
        %vm8556 = vweird.f32 %v8550
        %vm8557 = vweird.f32 %v8551
        %vm8558 = vmor %vm8556, %vm8557
        %v8559 = vsel %vm8558, %v8551, %v8555
        %v8560 = vand.u32 2147483647, %v8550
        %vm8561 = vcmp.eq.f32.partialorder %v8560, 8.507059e+37
        %v8562 = vand.u32 %v8550, 2147483648
        %v8563 = vor.u32 1.1754944e-38, %v8562
        %v8564 = vsel %vm8561, %v8563, %v8559
        %v8565 = vmul.f32 %v8540, %v8564
        %v8566 = vmin.f32 %v8565, 1.0
        %v8567 = vmax.f32 %v8566, -1.0
        %v8568 = vmul.f32 %v8318, %v8318
        %v8569 = vmin.f32 16.0, %v8568
        %v8570 = vmul.f32 %v8569, 2.1237322e-06
        %v8571 = vadd.f32 %v8570, 0.00028619796
        %v8572 = vmul.f32 %v8569, %v8571
        %v8573 = vadd.f32 %v8572, 0.0036580483
        %v8574 = vmul.f32 %v8569, %v8573
        %v8575 = vadd.f32 %v8574, 0.05243302
        %v8576 = vmul.f32 %v8569, %v8575
        %v8577 = vadd.f32 %v8576, 0.18741608
        %v8578 = vmul.f32 %v8569, %v8577
        %v8579 = vadd.f32 %v8578, 1.1283791
        %v8580 = vmul.f32 %v8318, %v8579
        %v8581 = vmul.f32 %v8569, 3.8918573e-05
        %v8582 = vadd.f32 %v8581, 0.001143296
        %v8583 = vmul.f32 %v8569, %v8582
        %v8584 = vadd.f32 %v8583, 0.014752088
        %v8585 = vmul.f32 %v8569, %v8584
        %v8586 = vadd.f32 %v8585, 0.112945676
        %v8587 = vmul.f32 %v8569, %v8586
        %v8588 = vadd.f32 %v8587, 0.4994258
        %v8589 = vmul.f32 %v8569, %v8588
        %v8590 = vadd.f32 %v8589, 1.0
        %v8591 = vrcp.pop %v8590
        %v8592 = vmul.f32 %v8590, %v8591
        %v8593 = vsub.f32 1.0, %v8592
        %v8594 = vmul.f32 %v8591, %v8593
        %v8595 = vadd.f32 %v8591, %v8594
        %vm8596 = vweird.f32 %v8590
        %vm8597 = vweird.f32 %v8591
        %vm8598 = vmor %vm8596, %vm8597
        %v8599 = vsel %vm8598, %v8591, %v8595
        %v8600 = vand.u32 2147483647, %v8590
        %vm8601 = vcmp.eq.f32.partialorder %v8600, 8.507059e+37
        %v8602 = vand.u32 %v8590, 2147483648
        %v8603 = vor.u32 1.1754944e-38, %v8602
        %v8604 = vsel %vm8601, %v8603, %v8599
        %v8605 = vmul.f32 %v8580, %v8604
        %v8606 = vmin.f32 %v8605, 1.0
        %v8607 = vmax.f32 %v8606, -1.0
        %v8608 = vmul.f32 %v8319, %v8319
        %v8609 = vmin.f32 16.0, %v8608
        %v8610 = vmul.f32 %v8609, 2.1237322e-06
        %v8611 = vadd.f32 %v8610, 0.00028619796
        %v8612 = vmul.f32 %v8609, %v8611
        %v8613 = vadd.f32 %v8612, 0.0036580483
        %v8614 = vmul.f32 %v8609, %v8613
        %v8615 = vadd.f32 %v8614, 0.05243302
        %v8616 = vmul.f32 %v8609, %v8615
        %v8617 = vadd.f32 %v8616, 0.18741608
        %v8618 = vmul.f32 %v8609, %v8617
        %v8619 = vadd.f32 %v8618, 1.1283791
        %v8620 = vmul.f32 %v8319, %v8619
        %v8621 = vmul.f32 %v8609, 3.8918573e-05
        %v8622 = vadd.f32 %v8621, 0.001143296
        %v8623 = vmul.f32 %v8609, %v8622
        %v8624 = vadd.f32 %v8623, 0.014752088
        %v8625 = vmul.f32 %v8609, %v8624
        %v8626 = vadd.f32 %v8625, 0.112945676
        %v8627 = vmul.f32 %v8609, %v8626
        %v8628 = vadd.f32 %v8627, 0.4994258
        %v8629 = vmul.f32 %v8609, %v8628
        %v8630 = vadd.f32 %v8629, 1.0
        %v8631 = vrcp.pop %v8630
        %v8632 = vmul.f32 %v8630, %v8631
        %v8633 = vsub.f32 1.0, %v8632
        %v8634 = vmul.f32 %v8631, %v8633
        %v8635 = vadd.f32 %v8631, %v8634
        %vm8636 = vweird.f32 %v8630
        %vm8637 = vweird.f32 %v8631
        %vm8638 = vmor %vm8636, %vm8637
        %v8639 = vsel %vm8638, %v8631, %v8635
        %v8640 = vand.u32 2147483647, %v8630
        %vm8641 = vcmp.eq.f32.partialorder %v8640, 8.507059e+37
        %v8642 = vand.u32 %v8630, 2147483648
        %v8643 = vor.u32 1.1754944e-38, %v8642
        %v8644 = vsel %vm8641, %v8643, %v8639
        %v8645 = vmul.f32 %v8620, %v8644
        %v8646 = vmin.f32 %v8645, 1.0
        %v8647 = vmax.f32 %v8646, -1.0
        %v8648 = vmul.f32 %v8320, %v8320
        %v8649 = vmin.f32 16.0, %v8648
        %v8650 = vmul.f32 %v8649, 2.1237322e-06
        %v8651 = vadd.f32 %v8650, 0.00028619796
        %v8652 = vmul.f32 %v8649, %v8651
        %v8653 = vadd.f32 %v8652, 0.0036580483
        %v8654 = vmul.f32 %v8649, %v8653
        %v8655 = vadd.f32 %v8654, 0.05243302
        %v8656 = vmul.f32 %v8649, %v8655
        %v8657 = vadd.f32 %v8656, 0.18741608
        %v8658 = vmul.f32 %v8649, %v8657
        %v8659 = vadd.f32 %v8658, 1.1283791
        %v8660 = vmul.f32 %v8320, %v8659
        %v8661 = vmul.f32 %v8649, 3.8918573e-05
        %v8662 = vadd.f32 %v8661, 0.001143296
        %v8663 = vmul.f32 %v8649, %v8662
        %v8664 = vadd.f32 %v8663, 0.014752088
        %v8665 = vmul.f32 %v8649, %v8664
        %v8666 = vadd.f32 %v8665, 0.112945676
        %v8667 = vmul.f32 %v8649, %v8666
        %v8668 = vadd.f32 %v8667, 0.4994258
        %v8669 = vmul.f32 %v8649, %v8668
        %v8670 = vadd.f32 %v8669, 1.0
        %v8671 = vrcp.pop %v8670
        %v8672 = vmul.f32 %v8670, %v8671
        %v8673 = vsub.f32 1.0, %v8672
        %v8674 = vmul.f32 %v8671, %v8673
        %v8675 = vadd.f32 %v8671, %v8674
        %vm8676 = vweird.f32 %v8670
        %vm8677 = vweird.f32 %v8671
        %vm8678 = vmor %vm8676, %vm8677
        %v8679 = vsel %vm8678, %v8671, %v8675
        %v8680 = vand.u32 2147483647, %v8670
        %vm8681 = vcmp.eq.f32.partialorder %v8680, 8.507059e+37
        %v8682 = vand.u32 %v8670, 2147483648
        %v8683 = vor.u32 1.1754944e-38, %v8682
        %v8684 = vsel %vm8681, %v8683, %v8679
        %v8685 = vmul.f32 %v8660, %v8684
        %v8686 = vmin.f32 %v8685, 1.0
        %v8687 = vmax.f32 %v8686, -1.0
        %v8688 = vmul.f32 %v8321, %v8321
        %v8689 = vmin.f32 16.0, %v8688
        %v8690 = vmul.f32 %v8689, 2.1237322e-06
        %v8691 = vadd.f32 %v8690, 0.00028619796
        %v8692 = vmul.f32 %v8689, %v8691
        %v8693 = vadd.f32 %v8692, 0.0036580483
        %v8694 = vmul.f32 %v8689, %v8693
        %v8695 = vadd.f32 %v8694, 0.05243302
        %v8696 = vmul.f32 %v8689, %v8695
        %v8697 = vadd.f32 %v8696, 0.18741608
        %v8698 = vmul.f32 %v8689, %v8697
        %v8699 = vadd.f32 %v8698, 1.1283791
        %v8700 = vmul.f32 %v8321, %v8699
        %v8701 = vmul.f32 %v8689, 3.8918573e-05
        %v8702 = vadd.f32 %v8701, 0.001143296
        %v8703 = vmul.f32 %v8689, %v8702
        %v8704 = vadd.f32 %v8703, 0.014752088
        %v8705 = vmul.f32 %v8689, %v8704
        %v8706 = vadd.f32 %v8705, 0.112945676
        %v8707 = vmul.f32 %v8689, %v8706
        %v8708 = vadd.f32 %v8707, 0.4994258
        %v8709 = vmul.f32 %v8689, %v8708
        %v8710 = vadd.f32 %v8709, 1.0
        %v8711 = vrcp.pop %v8710
        %v8712 = vmul.f32 %v8710, %v8711
        %v8713 = vsub.f32 1.0, %v8712
        %v8714 = vmul.f32 %v8711, %v8713
        %v8715 = vadd.f32 %v8711, %v8714
        %vm8716 = vweird.f32 %v8710
        %vm8717 = vweird.f32 %v8711
        %vm8718 = vmor %vm8716, %vm8717
        %v8719 = vsel %vm8718, %v8711, %v8715
        %v8720 = vand.u32 2147483647, %v8710
        %vm8721 = vcmp.eq.f32.partialorder %v8720, 8.507059e+37
        %v8722 = vand.u32 %v8710, 2147483648
        %v8723 = vor.u32 1.1754944e-38, %v8722
        %v8724 = vsel %vm8721, %v8723, %v8719
        %v8725 = vmul.f32 %v8700, %v8724
        %v8726 = vmin.f32 %v8725, 1.0
        %v8727 = vmax.f32 %v8726, -1.0
        %v8728 = vmul.f32 %v8322, %v8322
        %v8729 = vmin.f32 16.0, %v8728
        %v8730 = vmul.f32 %v8729, 2.1237322e-06
        %v8731 = vadd.f32 %v8730, 0.00028619796
        %v8732 = vmul.f32 %v8729, %v8731
        %v8733 = vadd.f32 %v8732, 0.0036580483
        %v8734 = vmul.f32 %v8729, %v8733
        %v8735 = vadd.f32 %v8734, 0.05243302
        %v8736 = vmul.f32 %v8729, %v8735
        %v8737 = vadd.f32 %v8736, 0.18741608
        %v8738 = vmul.f32 %v8729, %v8737
        %v8739 = vadd.f32 %v8738, 1.1283791
        %v8740 = vmul.f32 %v8322, %v8739
        %v8741 = vmul.f32 %v8729, 3.8918573e-05
        %v8742 = vadd.f32 %v8741, 0.001143296
        %v8743 = vmul.f32 %v8729, %v8742
        %v8744 = vadd.f32 %v8743, 0.014752088
        %v8745 = vmul.f32 %v8729, %v8744
        %v8746 = vadd.f32 %v8745, 0.112945676
        %v8747 = vmul.f32 %v8729, %v8746
        %v8748 = vadd.f32 %v8747, 0.4994258
        %v8749 = vmul.f32 %v8729, %v8748
        %v8750 = vadd.f32 %v8749, 1.0
        %v8751 = vrcp.pop %v8750
        %v8752 = vmul.f32 %v8750, %v8751
        %v8753 = vsub.f32 1.0, %v8752
        %v8754 = vmul.f32 %v8751, %v8753
        %v8755 = vadd.f32 %v8751, %v8754
        %vm8756 = vweird.f32 %v8750
        %vm8757 = vweird.f32 %v8751
        %vm8758 = vmor %vm8756, %vm8757
        %v8759 = vsel %vm8758, %v8751, %v8755
        %v8760 = vand.u32 2147483647, %v8750
        %vm8761 = vcmp.eq.f32.partialorder %v8760, 8.507059e+37
        %v8762 = vand.u32 %v8750, 2147483648
        %v8763 = vor.u32 1.1754944e-38, %v8762
        %v8764 = vsel %vm8761, %v8763, %v8759
        %v8765 = vmul.f32 %v8740, %v8764
        %v8766 = vmin.f32 %v8765, 1.0
        %v8767 = vmax.f32 %v8766, -1.0
        %v8768 = vmul.f32 %v8323, %v8323
        %v8769 = vmin.f32 16.0, %v8768
        %v8770 = vmul.f32 %v8769, 2.1237322e-06
        %v8771 = vadd.f32 %v8770, 0.00028619796
        %v8772 = vmul.f32 %v8769, %v8771
        %v8773 = vadd.f32 %v8772, 0.0036580483
        %v8774 = vmul.f32 %v8769, %v8773
        %v8775 = vadd.f32 %v8774, 0.05243302
        %v8776 = vmul.f32 %v8769, %v8775
        %v8777 = vadd.f32 %v8776, 0.18741608
        %v8778 = vmul.f32 %v8769, %v8777
        %v8779 = vadd.f32 %v8778, 1.1283791
        %v8780 = vmul.f32 %v8323, %v8779
        %v8781 = vmul.f32 %v8769, 3.8918573e-05
        %v8782 = vadd.f32 %v8781, 0.001143296
        %v8783 = vmul.f32 %v8769, %v8782
        %v8784 = vadd.f32 %v8783, 0.014752088
        %v8785 = vmul.f32 %v8769, %v8784
        %v8786 = vadd.f32 %v8785, 0.112945676
        %v8787 = vmul.f32 %v8769, %v8786
        %v8788 = vadd.f32 %v8787, 0.4994258
        %v8789 = vmul.f32 %v8769, %v8788
        %v8790 = vadd.f32 %v8789, 1.0
        %v8791 = vrcp.pop %v8790
        %v8792 = vmul.f32 %v8790, %v8791
        %v8793 = vsub.f32 1.0, %v8792
        %v8794 = vmul.f32 %v8791, %v8793
        %v8795 = vadd.f32 %v8791, %v8794
        %vm8796 = vweird.f32 %v8790
        %vm8797 = vweird.f32 %v8791
        %vm8798 = vmor %vm8796, %vm8797
        %v8799 = vsel %vm8798, %v8791, %v8795
        %v8800 = vand.u32 2147483647, %v8790
        %vm8801 = vcmp.eq.f32.partialorder %v8800, 8.507059e+37
        %v8802 = vand.u32 %v8790, 2147483648
        %v8803 = vor.u32 1.1754944e-38, %v8802
        %v8804 = vsel %vm8801, %v8803, %v8799
        %v8805 = vmul.f32 %v8780, %v8804
        %v8806 = vmin.f32 %v8805, 1.0
        %v8807 = vmax.f32 %v8806, -1.0
        %v8808 = vmul.f32 %v8324, %v8324
        %v8809 = vmin.f32 16.0, %v8808
        %v8810 = vmul.f32 %v8809, 2.1237322e-06
        %v8811 = vadd.f32 %v8810, 0.00028619796
        %v8812 = vmul.f32 %v8809, %v8811
        %v8813 = vadd.f32 %v8812, 0.0036580483
        %v8814 = vmul.f32 %v8809, %v8813
        %v8815 = vadd.f32 %v8814, 0.05243302
        %v8816 = vmul.f32 %v8809, %v8815
        %v8817 = vadd.f32 %v8816, 0.18741608
        %v8818 = vmul.f32 %v8809, %v8817
        %v8819 = vadd.f32 %v8818, 1.1283791
        %v8820 = vmul.f32 %v8324, %v8819
        %v8821 = vmul.f32 %v8809, 3.8918573e-05
        %v8822 = vadd.f32 %v8821, 0.001143296
        %v8823 = vmul.f32 %v8809, %v8822
        %v8824 = vadd.f32 %v8823, 0.014752088
        %v8825 = vmul.f32 %v8809, %v8824
        %v8826 = vadd.f32 %v8825, 0.112945676
        %v8827 = vmul.f32 %v8809, %v8826
        %v8828 = vadd.f32 %v8827, 0.4994258
        %v8829 = vmul.f32 %v8809, %v8828
        %v8830 = vadd.f32 %v8829, 1.0
        %v8831 = vrcp.pop %v8830
        %v8832 = vmul.f32 %v8830, %v8831
        %v8833 = vsub.f32 1.0, %v8832
        %v8834 = vmul.f32 %v8831, %v8833
        %v8835 = vadd.f32 %v8831, %v8834
        %vm8836 = vweird.f32 %v8830
        %vm8837 = vweird.f32 %v8831
        %vm8838 = vmor %vm8836, %vm8837
        %v8839 = vsel %vm8838, %v8831, %v8835
        %v8840 = vand.u32 2147483647, %v8830
        %vm8841 = vcmp.eq.f32.partialorder %v8840, 8.507059e+37
        %v8842 = vand.u32 %v8830, 2147483648
        %v8843 = vor.u32 1.1754944e-38, %v8842
        %v8844 = vsel %vm8841, %v8843, %v8839
        %v8845 = vmul.f32 %v8820, %v8844
        %v8846 = vmin.f32 %v8845, 1.0
        %v8847 = vmax.f32 %v8846, -1.0
        %v8848 = vmul.f32 %v8325, %v8325
        %v8849 = vmin.f32 16.0, %v8848
        %v8850 = vmul.f32 %v8849, 2.1237322e-06
        %v8851 = vadd.f32 %v8850, 0.00028619796
        %v8852 = vmul.f32 %v8849, %v8851
        %v8853 = vadd.f32 %v8852, 0.0036580483
        %v8854 = vmul.f32 %v8849, %v8853
        %v8855 = vadd.f32 %v8854, 0.05243302
        %v8856 = vmul.f32 %v8849, %v8855
        %v8857 = vadd.f32 %v8856, 0.18741608
        %v8858 = vmul.f32 %v8849, %v8857
        %v8859 = vadd.f32 %v8858, 1.1283791
        %v8860 = vmul.f32 %v8325, %v8859
        %v8861 = vmul.f32 %v8849, 3.8918573e-05
        %v8862 = vadd.f32 %v8861, 0.001143296
        %v8863 = vmul.f32 %v8849, %v8862
        %v8864 = vadd.f32 %v8863, 0.014752088
        %v8865 = vmul.f32 %v8849, %v8864
        %v8866 = vadd.f32 %v8865, 0.112945676
        %v8867 = vmul.f32 %v8849, %v8866
        %v8868 = vadd.f32 %v8867, 0.4994258
        %v8869 = vmul.f32 %v8849, %v8868
        %v8870 = vadd.f32 %v8869, 1.0
        %v8871 = vrcp.pop %v8870
        %v8872 = vmul.f32 %v8870, %v8871
        %v8873 = vsub.f32 1.0, %v8872
        %v8874 = vmul.f32 %v8871, %v8873
        %v8875 = vadd.f32 %v8871, %v8874
        %vm8876 = vweird.f32 %v8870
        %vm8877 = vweird.f32 %v8871
        %vm8878 = vmor %vm8876, %vm8877
        %v8879 = vsel %vm8878, %v8871, %v8875
        %v8880 = vand.u32 2147483647, %v8870
        %vm8881 = vcmp.eq.f32.partialorder %v8880, 8.507059e+37
        %v8882 = vand.u32 %v8870, 2147483648
        %v8883 = vor.u32 1.1754944e-38, %v8882
        %v8884 = vsel %vm8881, %v8883, %v8879
        %v8885 = vmul.f32 %v8860, %v8884
        %v8886 = vmin.f32 %v8885, 1.0
        %v8887 = vmax.f32 %v8886, -1.0
        %v8888 = vmul.f32 %v8326, %v8326
        %v8889 = vmin.f32 16.0, %v8888
        %v8890 = vmul.f32 %v8889, 2.1237322e-06
        %v8891 = vadd.f32 %v8890, 0.00028619796
        %v8892 = vmul.f32 %v8889, %v8891
        %v8893 = vadd.f32 %v8892, 0.0036580483
        %v8894 = vmul.f32 %v8889, %v8893
        %v8895 = vadd.f32 %v8894, 0.05243302
        %v8896 = vmul.f32 %v8889, %v8895
        %v8897 = vadd.f32 %v8896, 0.18741608
        %v8898 = vmul.f32 %v8889, %v8897
        %v8899 = vadd.f32 %v8898, 1.1283791
        %v8900 = vmul.f32 %v8326, %v8899
        %v8901 = vmul.f32 %v8889, 3.8918573e-05
        %v8902 = vadd.f32 %v8901, 0.001143296
        %v8903 = vmul.f32 %v8889, %v8902
        %v8904 = vadd.f32 %v8903, 0.014752088
        %v8905 = vmul.f32 %v8889, %v8904
        %v8906 = vadd.f32 %v8905, 0.112945676
        %v8907 = vmul.f32 %v8889, %v8906
        %v8908 = vadd.f32 %v8907, 0.4994258
        %v8909 = vmul.f32 %v8889, %v8908
        %v8910 = vadd.f32 %v8909, 1.0
        %v8911 = vrcp.pop %v8910
        %v8912 = vmul.f32 %v8910, %v8911
        %v8913 = vsub.f32 1.0, %v8912
        %v8914 = vmul.f32 %v8911, %v8913
        %v8915 = vadd.f32 %v8911, %v8914
        %vm8916 = vweird.f32 %v8910
        %vm8917 = vweird.f32 %v8911
        %vm8918 = vmor %vm8916, %vm8917
        %v8919 = vsel %vm8918, %v8911, %v8915
        %v8920 = vand.u32 2147483647, %v8910
        %vm8921 = vcmp.eq.f32.partialorder %v8920, 8.507059e+37
        %v8922 = vand.u32 %v8910, 2147483648
        %v8923 = vor.u32 1.1754944e-38, %v8922
        %v8924 = vsel %vm8921, %v8923, %v8919
        %v8925 = vmul.f32 %v8900, %v8924
        %v8926 = vmin.f32 %v8925, 1.0
        %v8927 = vmax.f32 %v8926, -1.0
        %v8928 = vmul.f32 %v8327, %v8327
        %v8929 = vmin.f32 16.0, %v8928
        %v8930 = vmul.f32 %v8929, 2.1237322e-06
        %v8931 = vadd.f32 %v8930, 0.00028619796
        %v8932 = vmul.f32 %v8929, %v8931
        %v8933 = vadd.f32 %v8932, 0.0036580483
        %v8934 = vmul.f32 %v8929, %v8933
        %v8935 = vadd.f32 %v8934, 0.05243302
        %v8936 = vmul.f32 %v8929, %v8935
        %v8937 = vadd.f32 %v8936, 0.18741608
        %v8938 = vmul.f32 %v8929, %v8937
        %v8939 = vadd.f32 %v8938, 1.1283791
        %v8940 = vmul.f32 %v8327, %v8939
        %v8941 = vmul.f32 %v8929, 3.8918573e-05
        %v8942 = vadd.f32 %v8941, 0.001143296
        %v8943 = vmul.f32 %v8929, %v8942
        %v8944 = vadd.f32 %v8943, 0.014752088
        %v8945 = vmul.f32 %v8929, %v8944
        %v8946 = vadd.f32 %v8945, 0.112945676
        %v8947 = vmul.f32 %v8929, %v8946
        %v8948 = vadd.f32 %v8947, 0.4994258
        %v8949 = vmul.f32 %v8929, %v8948
        %v8950 = vadd.f32 %v8949, 1.0
        %v8951 = vrcp.pop %v8950
        %v8952 = vmul.f32 %v8950, %v8951
        %v8953 = vsub.f32 1.0, %v8952
        %v8954 = vmul.f32 %v8951, %v8953
        %v8955 = vadd.f32 %v8951, %v8954
        %vm8956 = vweird.f32 %v8950
        %vm8957 = vweird.f32 %v8951
        %vm8958 = vmor %vm8956, %vm8957
        %v8959 = vsel %vm8958, %v8951, %v8955
        %v8960 = vand.u32 2147483647, %v8950
        %vm8961 = vcmp.eq.f32.partialorder %v8960, 8.507059e+37
        %v8962 = vand.u32 %v8950, 2147483648
        %v8963 = vor.u32 1.1754944e-38, %v8962
        %v8964 = vsel %vm8961, %v8963, %v8959
        %v8965 = vmul.f32 %v8940, %v8964
        %v8966 = vmin.f32 %v8965, 1.0
        %v8967 = vmax.f32 %v8966, -1.0
        %v8968 = vadd.f32 %v8367, 1.0
        %v8969 = vadd.f32 %v8407, 1.0
        %v8970 = vadd.f32 %v8447, 1.0
        %v8971 = vadd.f32 %v8487, 1.0
        %v8972 = vadd.f32 %v8527, 1.0
        %v8973 = vadd.f32 %v8567, 1.0
        %v8974 = vadd.f32 %v8607, 1.0
        %v8975 = vadd.f32 %v8647, 1.0
        %v8976 = vadd.f32 %v8687, 1.0
        %v8977 = vadd.f32 %v8727, 1.0
        %v8978 = vadd.f32 %v8767, 1.0
        %v8979 = vadd.f32 %v8807, 1.0
        %v8980 = vadd.f32 %v8847, 1.0
        %v8981 = vadd.f32 %v8887, 1.0
        %v8982 = vadd.f32 %v8927, 1.0
        %v8983 = vadd.f32 %v8967, 1.0
        %v8984 = vmul.f32 %v8296, %v8968
        %v8985 = vmul.f32 %v8297, %v8969
        %v8986 = vmul.f32 %v8298, %v8970
        %v8987 = vmul.f32 %v8299, %v8971
        %v8988 = vmul.f32 %v8300, %v8972
        %v8989 = vmul.f32 %v8301, %v8973
        %v8990 = vmul.f32 %v8302, %v8974
        %v8991 = vmul.f32 %v8303, %v8975
        %v8992 = vmul.f32 %v8304, %v8976
        %v8993 = vmul.f32 %v8305, %v8977
        %v8994 = vmul.f32 %v8306, %v8978
        %v8995 = vmul.f32 %v8307, %v8979
        %v8996 = vmul.f32 %v8308, %v8980
        %v8997 = vmul.f32 %v8309, %v8981
        %v8998 = vmul.f32 %v8310, %v8982
        %v8999 = vmul.f32 %v8311, %v8983
        %v9000 = vpack.c.bf16 %v8985, %v8984
        %v9001 = vpack.c.bf16 %v8987, %v8986
        %v9002 = vpack.c.bf16 %v8989, %v8988
        %v9003 = vpack.c.bf16 %v8991, %v8990
        %v9004 = vpack.c.bf16 %v8993, %v8992
        %v9005 = vpack.c.bf16 %v8995, %v8994
        %v9006 = vpack.c.bf16 %v8997, %v8996
        %v9007 = vpack.c.bf16 %v8999, %v8998
        %s9008 = scalar_lea.vmem %s4, 192
        %v9009 = vld [vmem:[%s9008] sm:$0xf]
        %v9010 = vld [vmem:[%s9008 + $0x4] sm:$0xf]
        %v9011 = vld [vmem:[%s9008 + $0x8] sm:$0xf]
        %v9012 = vld [vmem:[%s9008 + $0xc] sm:$0xf]
        %v9013 = vld [vmem:[%s9008 + $0x10] sm:$0xf]
        %v9014 = vld [vmem:[%s9008 + $0x14] sm:$0xf]
        %v9015 = vld [vmem:[%s9008 + $0x18] sm:$0xf]
        %v9016 = vld [vmem:[%s9008 + $0x1c] sm:$0xf]
        %v9017 = vld [vmem:[%s9008 + $0x20] sm:$0xf]
        %v9018 = vld [vmem:[%s9008 + $0x24] sm:$0xf]
        %v9019 = vld [vmem:[%s9008 + $0x28] sm:$0xf]
        %v9020 = vld [vmem:[%s9008 + $0x2c] sm:$0xf]
        %v9021 = vld [vmem:[%s9008 + $0x30] sm:$0xf]
        %v9022 = vld [vmem:[%s9008 + $0x34] sm:$0xf]
        %v9023 = vld [vmem:[%s9008 + $0x38] sm:$0xf]
        %v9024 = vld [vmem:[%s9008 + $0x3c] sm:$0xf]
        %v9025 = vperm.slane %v254, 0
        %v9042 = vunpack.c.l.b16 %v9009
        %v9043 = vunpack.c.l.b16 %v9010
        %v9044 = vunpack.c.l.b16 %v9011
        %v9045 = vunpack.c.l.b16 %v9012
        %v9046 = vunpack.c.l.b16 %v9013
        %v9047 = vunpack.c.l.b16 %v9014
        %v9048 = vunpack.c.l.b16 %v9015
        %v9049 = vunpack.c.l.b16 %v9016
        %v9050 = vunpack.c.l.b16 %v9017
        %v9051 = vunpack.c.l.b16 %v9018
        %v9052 = vunpack.c.l.b16 %v9019
        %v9053 = vunpack.c.l.b16 %v9020
        %v9054 = vunpack.c.l.b16 %v9021
        %v9055 = vunpack.c.l.b16 %v9022
        %v9056 = vunpack.c.l.b16 %v9023
        %v9057 = vunpack.c.l.b16 %v9024
        %v9058 = vpack.c.b16 %v9043, %v9042
        %v9059 = vpack.c.b16 %v9045, %v9044
        %v9060 = vpack.c.b16 %v9047, %v9046
        %v9061 = vpack.c.b16 %v9049, %v9048
        %v9062 = vpack.c.b16 %v9051, %v9050
        %v9063 = vpack.c.b16 %v9053, %v9052
        %v9064 = vpack.c.b16 %v9055, %v9054
        %v9065 = vpack.c.b16 %v9057, %v9056
        %9074 = vmatpush.bf16.msra.mxu0 %v9065
        %9075 = vmatpush.bf16.msra.mxu0 %v9064
        %9076 = vmatpush.bf16.msra.mxu0 %v9063
        %9077 = vmatpush.bf16.msra.mxu0 %v9062
        %9078 = vmatpush.bf16.msra.mxu0 %v9061
        %9079 = vmatpush.bf16.msra.mxu0 %v9060
        %9080 = vmatpush.bf16.msra.mxu0 %v9059
        %9081 = vmatpush.bf16.msra.mxu0 %v9058
        %9082 = vmatmul.bf16.gmra.mxu0 %v9000
        %v9083 = vpop.f32.mrf.mxu0
        %v9084 = vadd.f32 %v9025, %v9083
        %v9085 = vpop.f32.mrf.mxu0
        %v9086 = vadd.f32 %v9025, %v9085
        %9087 = vmatmul.bf16.gmra.mxu0 %v9001
        %v9088 = vpop.f32.mrf.mxu0
        %v9089 = vadd.f32 %v9025, %v9088
        %v9090 = vpop.f32.mrf.mxu0
        %v9091 = vadd.f32 %v9025, %v9090
        %9092 = vmatmul.bf16.gmra.mxu0 %v9002
        %v9093 = vpop.f32.mrf.mxu0
        %v9094 = vadd.f32 %v9025, %v9093
        %v9095 = vpop.f32.mrf.mxu0
        %v9096 = vadd.f32 %v9025, %v9095
        %9097 = vmatmul.bf16.gmra.mxu0 %v9003
        %v9098 = vpop.f32.mrf.mxu0
        %v9099 = vadd.f32 %v9025, %v9098
        %v9100 = vpop.f32.mrf.mxu0
        %v9101 = vadd.f32 %v9025, %v9100
        %9102 = vmatmul.bf16.gmra.mxu0 %v9004
        %v9103 = vpop.f32.mrf.mxu0
        %v9104 = vadd.f32 %v9025, %v9103
        %v9105 = vpop.f32.mrf.mxu0
        %v9106 = vadd.f32 %v9025, %v9105
        %9107 = vmatmul.bf16.gmra.mxu0 %v9005
        %v9108 = vpop.f32.mrf.mxu0
        %v9109 = vadd.f32 %v9025, %v9108
        %v9110 = vpop.f32.mrf.mxu0
        %v9111 = vadd.f32 %v9025, %v9110
        %9112 = vmatmul.bf16.gmra.mxu0 %v9006
        %v9113 = vpop.f32.mrf.mxu0
        %v9114 = vadd.f32 %v9025, %v9113
        %v9115 = vpop.f32.mrf.mxu0
        %v9116 = vadd.f32 %v9025, %v9115
        %9117 = vmatmul.bf16.gmra.mxu0 %v9007
        %v9118 = vpop.f32.mrf.mxu0
        %v9119 = vadd.f32 %v9025, %v9118
        %v9120 = vpop.f32.mrf.mxu0
        %v9121 = vadd.f32 %v9025, %v9120
        %9122 = vdwg.mxu0
        %v9123 = vpack.c.bf16 %v9084, %v9084
        %v9124 = vpack.c.bf16 %v9086, %v9086
        %v9125 = vpack.c.bf16 %v9089, %v9089
        %v9126 = vpack.c.bf16 %v9091, %v9091
        %v9127 = vpack.c.bf16 %v9094, %v9094
        %v9128 = vpack.c.bf16 %v9096, %v9096
        %v9129 = vpack.c.bf16 %v9099, %v9099
        %v9130 = vpack.c.bf16 %v9101, %v9101
        %v9131 = vpack.c.bf16 %v9104, %v9104
        %v9132 = vpack.c.bf16 %v9106, %v9106
        %v9133 = vpack.c.bf16 %v9109, %v9109
        %v9134 = vpack.c.bf16 %v9111, %v9111
        %v9135 = vpack.c.bf16 %v9114, %v9114
        %v9136 = vpack.c.bf16 %v9116, %v9116
        %v9137 = vpack.c.bf16 %v9119, %v9119
        %v9138 = vpack.c.bf16 %v9121, %v9121
        %9139 = vst [vmem:[%s234] sm:$0xf] %v9123
        %9140 = vst [vmem:[%s234 + $0x4] sm:$0xf] %v9124
        %9141 = vst [vmem:[%s234 + $0x8] sm:$0xf] %v9125
        %9142 = vst [vmem:[%s234 + $0xc] sm:$0xf] %v9126
        %9143 = vst [vmem:[%s234 + $0x10] sm:$0xf] %v9127
        %9144 = vst [vmem:[%s234 + $0x14] sm:$0xf] %v9128
        %9145 = vst [vmem:[%s234 + $0x18] sm:$0xf] %v9129
        %9146 = vst [vmem:[%s234 + $0x1c] sm:$0xf] %v9130
        %9147 = vst [vmem:[%s234 + $0x20] sm:$0xf] %v9131
        %9148 = vst [vmem:[%s234 + $0x24] sm:$0xf] %v9132
        %9149 = vst [vmem:[%s234 + $0x28] sm:$0xf] %v9133
        %9150 = vst [vmem:[%s234 + $0x2c] sm:$0xf] %v9134
        %9151 = vst [vmem:[%s234 + $0x30] sm:$0xf] %v9135
        %9152 = vst [vmem:[%s234 + $0x34] sm:$0xf] %v9136
        %9153 = vst [vmem:[%s234 + $0x38] sm:$0xf] %v9137
        %9154 = vst [vmem:[%s234 + $0x3c] sm:$0xf] %v9138
        %s9155 = sand.u32 %s142, 1
        %s9156 = scalar_lea.sflag [#allocation3], %s9155
        %s9157 = sand.u32 %s142, 1
        %s9158 = smul.addr %s9157, 64
        %s9159 = scalar_lea.vmem [#allocation2], %s9158
        // Predicated region
        $region41: #{tpu_custom_call.1} parent=39 // pred_check
          %p9160 = pneg %p152
        $region42: #{tpu_custom_call.1} parent=39 // pred_check_branch
          %9162 = sbr.rel (%p9160) target = $region44
        $region43: #{tpu_custom_call.1} parent=39 // pred_region
          %s9163 = smul.u32 16, %s19
          %9165 = vsyncadd %s9156, 0
          %s9166 = smul.addr %s9163, 4
          %s9167 = scalar_lea.hbm %s5, %s9166
          %s9168 = sshll.u32 %s9159, 4
          %s9169 = int_to_ptr.vmem [resolvable:$true] %s9168
          %s9170 = sshll.u32 %s9167, 4
          %s9171 = int_to_ptr.hbm [resolvable:$true] %s9170
          %9176 = dma.vmem_to_hbm [thread:$0]  %s9169, 1024, %s9171, %s9156, 64, 64, 4
        $region44: #{tpu_custom_call.1} parent=39 // pred_fallthru
          _
      $region40: #{tpu_custom_call.1} parent=5 // pred_fallthru
        _
      %p9177 = scmp.le.s32.totalorder 2, %s14
      // Predicated region
      $region45: #{tpu_custom_call.1} parent=5 // pred_check
        %p9178 = pneg %p9177
      $region46: #{tpu_custom_call.1} parent=5 // pred_check_branch
        %9180 = sbr.rel (%p9178) target = $region48
      $region47: #{tpu_custom_call.1} parent=5 // pred_region
        %s9181 = ssub.s32 %s14, 2
        // Predicated region
        $region49: #{tpu_custom_call.1} parent=47 // pred_check
          %p9182 = pneg %p158
        $region50: #{tpu_custom_call.1} parent=47 // pred_check_branch
          %9184 = sbr.rel (%p9182) target = $region52
        $region51: #{tpu_custom_call.1} parent=47 // pred_region
          %s9185 = sand.u32 %s143, 1
          %s9186 = scalar_lea.sflag [#allocation3], %s9185
          %s9187 = sand.u32 %s143, 1
          %s9188 = smul.addr %s9187, 64
          %s9189 = scalar_lea.vmem [#allocation2], %s9188
          %9191 = dma.done %s9186, 1024
        $region52: #{tpu_custom_call.1} parent=47 // pred_fallthru
          _
      $region48: #{tpu_custom_call.1} parent=5 // pred_fallthru
        _
    $region6: #{tpu_custom_call.1} parent=1 // loop_footer
      %s18 = sadd.s32 1, %s14
    $region7: #{tpu_custom_call.1} parent=1 // loop_footer_branch
      %13 = sbr.rel target = $region3
    $region8: #{tpu_custom_call.1} parent=1 // loop_exit
      _
    %9192 = vsyncpa [#allocation3], 1
    %s9193 = scalar_lea.sflag [#allocation3], 1
    %9194 = vsyncpa %s9193, 1

</llo_original>
